<compile_context>
chip_gen: v5e
topology: v5e:2x2
jax: 0.10.0
libtpu: 0.0.40
codegen_flags: <defaults>
</compile_context>

<pallas_src>
import functools

import numpy as np
import jax
import jax.numpy as jnp
from jax.experimental import pallas as pl
from jax.experimental.pallas import tpu as pltpu


# ----------------------------------------------------------------------------- kernel
def _pvn_kernel(p1_ref, mask_ref, w1_ref, b1_ref, w2_ref, b2_ref, w3_ref, b3_ref,
                wh_ref, bh_ref, wp0_ref, wp1_ref, bp_ref, wv1_ref, bv1_ref,
                wv2_ref, bv2_ref, out_ref, *, num_actions, boards, height, width):
    f32 = jnp.float32
    bf16 = jnp.bfloat16
    hw = height * width
    tile_m = boards * hw
    out_cols = out_ref.shape[-1]

    # conv1 (+ folded BN1) + relu: plain matmul on lane-padded, pre-im2col'd input.
    x = jnp.dot(p1_ref[...], w1_ref[...], preferred_element_type=f32)
    x = jnp.maximum(x + b1_ref[...], 0.0)                               # (tile_m, 256) f32

    masks = mask_ref[...]                                               # (tile_m, 9) 0/1
    taps = [(dy, dx) for dy in (-1, 0, 1) for dx in (-1, 0, 1)]         # == im2col order

    # 3x3 conv (+ folded BN) + relu: per-tap row roll (XLU) + 0/1 validity mask (VPU);
    # all 9 taps lane-concatenated, then ONE K=9*256 MXU matmul with internal f32 accum.
    def conv3x3(x_f32, w_ref, b_ref):
        cols = []
        for t, (dy, dx) in enumerate(taps):
            s = dy * width + dx                                         # row offset of tap
            rolled = x_f32 if s == 0 else pltpu.roll(x_f32, (-s) % tile_m, 0)
            cols.append((rolled * masks[:, t:t + 1]).astype(bf16))      # zero out-of-board taps
        patches = jnp.concatenate(cols, axis=-1)                        # (tile_m, 9*256) bf16
        y = jnp.dot(patches, w_ref[...], preferred_element_type=f32)
        return jnp.maximum(y + b_ref[...], 0.0)

    x = conv3x3(x, w2_ref, b2_ref)                                      # (tile_m, 256)
    x = conv3x3(x, w3_ref, b3_ref)                                      # (tile_m, 256)

    # merged policy/value 1x1 convs (+ folded BN) + relu, lane-padded to 128 columns
    # (lane 0,1 = policy channels, lane 2 = value channel, rest zero).
    h = jnp.dot(x.astype(bf16), wh_ref[...], preferred_element_type=f32)
    h = jnp.maximum(h + bh_ref[...], 0.0)                               # (tile_m, 128) f32

    wp0 = wp0_ref[...]                                                  # (HW, out_cols)
    wp1 = wp1_ref[...]
    bp = bp_ref[...]                                                    # (1, out_cols)
    wv1 = wv1_ref[...]                                                  # (HW, 256)
    bv1 = bv1_ref[...]
    wv2 = wv2_ref[...]                                                  # (1, 256)
    bv2 = bv2_ref[...]                                                  # (1, 1)
    lane = jax.lax.broadcasted_iota(jnp.int32, (1, out_cols), 1)

    # Heads: single-copy fc weights, spatial reduce on the XLU, static unroll over the
    # (<= 8) boards in this tile.  All tensors stay 2-D and sublane-aligned (HW % 8 == 0).
    for b in range(boards):
        hb = h[b * hw:(b + 1) * hw]                                     # (HW, 128)

        # ---- policy ------------------------------------------------------------------
        tb = hb[:, 0:1] * wp0 + hb[:, 1:2] * wp1                        # (HW, out_cols)
        logits = jnp.sum(tb, axis=0, keepdims=True) + bp                # (1, out_cols)
        logits = jnp.where(lane < num_actions, logits, -1e30)           # mask padded lanes (f32)
        logits = logits - jnp.max(logits, axis=-1, keepdims=True)
        e = jnp.exp(logits)
        probs = e / jnp.sum(e, axis=-1, keepdims=True)                  # exact normalization

        # ---- value -------------------------------------------------------------------
        ub = hb[:, 2:3] * wv1                                           # (HW, 256)
        v1 = jnp.maximum(jnp.sum(ub, axis=0, keepdims=True) + bv1, 0.0) # (1, 256)
        val = jnp.tanh(jnp.sum(v1 * wv2, axis=-1, keepdims=True) + bv2) # (1, 1)

        # value folded into the last (padded) lane of the lane-dense policy row.
        row = jnp.where(lane == out_cols - 1, val, probs)
        out_ref[pl.ds(b, 1), :] = row.astype(out_ref.dtype)


# ------------------------------------------------------------------------------- glue
def im2col_3x3(x_nhwc):
    """(B,H,W,C) -> (B*H*W, 9*C), SAME (pad=1) 3x3 patches, column order (tap, cin)."""
    B, H, W, C = x_nhwc.shape
    xp = jnp.pad(x_nhwc, ((0, 0), (1, 1), (1, 1), (0, 0)))
    cols = []
    for dy in range(3):
        for dx in range(3):
            cols.append(xp[:, dy:dy + H, dx:dx + W, :])
    return jnp.concatenate(cols, axis=-1).reshape(B * H * W, 9 * C)


def _make_tap_masks(boards, H, W):
    """(boards*HW, 9) 0/1 mask: tap t valid at row m iff the shifted position stays on-board."""
    hw = H * W
    taps = [(dy, dx) for dy in (-1, 0, 1) for dx in (-1, 0, 1)]
    m = np.zeros((boards * hw, 9), np.float32)
    for t, (dy, dx) in enumerate(taps):
        for b in range(boards):
            for h in range(H):
                for w in range(W):
                    if 0 <= h + dy < H and 0 <= w + dx < W:
                        m[b * hw + h * W + w, t] = 1.0
    return jnp.asarray(m)


def _pick_boards_per_tile(B, hw):
    """Whole boards per grid step (~256-512 rows), keeping block shapes (8,128)-legal."""
    target = max(1, 512 // hw)
    if B <= target:
        return B
    for bpt in range(min(B, target), 0, -1):
        if B % bpt == 0 and bpt % 8 == 0 and (bpt * hw) % 8 == 0:
            return bpt
    return B


def bn_fold(bn, eps=1e-5):
    scale = bn["gamma"] / jnp.sqrt(bn["var"] + eps)
    shift = bn["beta"] - bn["mean"] * scale
    return scale, shift


def init_params(key, board_size, num_actions):
    keys = iter(jax.random.split(key, 40))

    def dense(shape, fan_in):
        return jax.random.normal(next(keys), shape, jnp.float32) / jnp.sqrt(float(fan_in))

    def bias(n):
        return 0.01 * jax.random.normal(next(keys), (n,), jnp.float32)

    def bn(c):
        return dict(
            gamma=1.0 + 0.1 * jax.random.normal(next(keys), (c,), jnp.float32),
            beta=0.1 * jax.random.normal(next(keys), (c,), jnp.float32),
            mean=0.1 * jax.random.normal(next(keys), (c,), jnp.float32),
            var=0.5 + jax.random.uniform(next(keys), (c,), jnp.float32),
        )

    bs2 = board_size * board_size
    p = {}
    p["conv1"] = dict(w=dense((9 * 4, 256), 9 * 4), b=bias(256))        # (3,3,Cin,Cout) flat
    p["bn1"] = bn(256)
    p["conv2"] = dict(w=dense((9 * 256, 256), 9 * 256), b=bias(256))
    p["bn2"] = bn(256)
    p["conv3"] = dict(w=dense((9 * 256, 256), 9 * 256), b=bias(256))
    p["bn3"] = bn(256)
    p["policy_conv"] = dict(w=dense((256, 2), 256), b=bias(2))          # 1x1 conv
    p["policy_bn"] = bn(2)
    p["policy_fc"] = dict(w=dense((2 * bs2, num_actions), 2 * bs2), b=bias(num_actions))
    p["value_conv"] = dict(w=dense((256, 1), 256), b=bias(1))           # 1x1 conv
    p["value_bn"] = bn(1)
    p["value_fc1"] = dict(w=dense((bs2, 256), bs2), b=bias(256))
    p["value_fc2"] = dict(w=dense((256, 1), 256), b=bias(1))
    return p


# --------------------------------------------------------------------------- forward
def policy_value_forward(params, x_nchw):
    B, Cin, H, W = x_nchw.shape
    HW = H * W
    C = params["conv1"]["w"].shape[1]                 # 256
    A = params["policy_fc"]["w"].shape[1]             # num_actions
    A_pad = -(-A // 128) * 128                        # lane-dense policy width
    out_cols = A_pad if A_pad > A else A_pad + 128    # keep >=1 spare lane for the value
    HEAD_N = 128                                      # merged 1x1-conv head width
    K1 = -(-(9 * Cin) // 128) * 128                   # lane-padded conv1 contraction dim
    bf = jnp.bfloat16
    f32 = jnp.float32

    bpt = _pick_boards_per_tile(B, HW)                # whole boards per grid step
    tile_m = bpt * HW
    grid = (B // bpt,)

    # conv1 input: lane-padded im2col patches (tiny: 9*Cin real columns).
    x = jnp.transpose(x_nchw, (0, 2, 3, 1)).astype(f32)                 # NHWC
    p1 = im2col_3x3(x)                                                  # (M, 9*Cin)
    p1 = jnp.pad(p1, ((0, 0), (0, K1 - 9 * Cin))).astype(bf)            # (M, K1) bf16

    # Fold BN (eval mode) + conv bias into weights/bias.
    def fold(conv, bn):
        scale, shift = bn_fold(bn)
        return conv["w"] * scale[None, :], conv["b"] * scale + shift

    w1, b1 = fold(params["conv1"], params["bn1"])
    w2, b2 = fold(params["conv2"], params["bn2"])
    w3, b3 = fold(params["conv3"], params["bn3"])
    wpc, bpc = fold(params["policy_conv"], params["policy_bn"])
    wvc, bvc = fold(params["value_conv"], params["value_bn"])

    w1 = jnp.pad(w1, ((0, K1 - 9 * Cin), (0, 0)))                       # rows match padded p1

    # Merge both 1x1 head convs into one lane-dense (C, 128) weight.
    wh = jnp.zeros((C, HEAD_N), f32).at[:, 0:2].set(wpc).at[:, 2:3].set(wvc)
    bh = jnp.zeros((HEAD_N,), f32).at[0:2].set(bpc).at[2:3].set(bvc)

    # Single-copy head fc weights (no batch tiling).  The NCHW (c,h,w) flatten of the
    # policy head is absorbed by splitting policy_fc per channel: (2*HW, A) -> 2x(HW, out_cols).
    wfc = params["policy_fc"]["w"].reshape(2, HW, A)
    wp0 = jnp.zeros((HW, out_cols), f32).at[:, :A].set(wfc[0])
    wp1 = jnp.zeros((HW, out_cols), f32).at[:, :A].set(wfc[1])
    bp = jnp.zeros((out_cols,), f32).at[:A].set(params["policy_fc"]["b"])
    wv1 = params["value_fc1"]["w"]                                      # (HW, 256)
    bv1 = params["value_fc1"]["b"]
    wv2 = params["value_fc2"]["w"].reshape(1, C)                        # (1, 256)
    bv2 = params["value_fc2"]["b"].reshape(1, 1)

    masks = _make_tap_masks(bpt, H, W)                                  # (tile_m, 9)

    def const_spec(shape):
        if len(shape) == 2:
            return pl.BlockSpec(shape, lambda i: (0, 0))
        return pl.BlockSpec(shape, lambda i: (0,) * len(shape))

    operands_and_specs = [
        (p1, pl.BlockSpec((tile_m, K1), lambda i: (i, 0))),
        (masks, const_spec((tile_m, 9))),
        (w1.astype(bf), const_spec((K1, C))),
        (b1.reshape(1, C).astype(f32), const_spec((1, C))),
        (w2.astype(bf), const_spec((9 * C, C))),
        (b2.reshape(1, C).astype(f32), const_spec((1, C))),
        (w3.astype(bf), const_spec((9 * C, C))),
        (b3.reshape(1, C).astype(f32), const_spec((1, C))),
        (wh.astype(bf), const_spec((C, HEAD_N))),
        (bh.reshape(1, HEAD_N).astype(f32), const_spec((1, HEAD_N))),
        (wp0, const_spec((HW, out_cols))),
        (wp1, const_spec((HW, out_cols))),
        (bp.reshape(1, out_cols), const_spec((1, out_cols))),
        (wv1.astype(f32), const_spec((HW, C))),
        (bv1.reshape(1, C).astype(f32), const_spec((1, C))),
        (wv2.astype(f32), const_spec((1, C))),
        (bv2.astype(f32), const_spec((1, 1))),
    ]
    operands = [op for op, _ in operands_and_specs]
    in_specs = [sp for _, sp in operands_and_specs]

    out = pl.pallas_call(
        functools.partial(_pvn_kernel, num_actions=A, boards=bpt, height=H, width=W),
        grid=grid,
        out_shape=jax.ShapeDtypeStruct((B, out_cols), f32),
        in_specs=in_specs,
        out_specs=pl.BlockSpec((bpt, out_cols), lambda i: (i, 0)),
        compiler_params=pltpu.CompilerParams(dimension_semantics=("parallel",)),
    )(*operands)

    policy = out[:, :A]
    value = out[:, out_cols - 1:out_cols]
    return policy, value


# ------------------------------------------------------------------------- reference
def reference_forward(params, x_nchw):
    hi = jax.lax.Precision.HIGHEST

    def mm(a, b):
        return jnp.dot(a, b, precision=hi)

    B, Cin, H, W = x_nchw.shape
    x = jnp.transpose(x_nchw, (0, 2, 3, 1)).astype(jnp.float32)
    for i in (1, 2, 3):
        patches = im2col_3x3(x)
        scale, shift = bn_fold(params[f"bn{i}"])
        y = mm(patches, params[f"conv{i}"]["w"]) + params[f"conv{i}"]["b"]
        y = jnp.maximum(y * scale + shift, 0.0)
        x = y.reshape(B, H, W, -1)
    x_flat = x.reshape(B * H * W, -1)

    scale, shift = bn_fold(params["policy_bn"])
    ph = jnp.maximum((mm(x_flat, params["policy_conv"]["w"]) + params["policy_conv"]["b"])
                     * scale + shift, 0.0)
    ph = ph.reshape(B, H, W, 2).transpose(0, 3, 1, 2).reshape(B, 2 * H * W)
    logits = mm(ph, params["policy_fc"]["w"]) + params["policy_fc"]["b"]
    policy = jax.nn.softmax(logits, axis=1)

    scale, shift = bn_fold(params["value_bn"])
    vh = jnp.maximum((mm(x_flat, params["value_conv"]["w"]) + params["value_conv"]["b"])
                     * scale + shift, 0.0)
    vh = vh.reshape(B, H * W)
    v = jnp.maximum(mm(vh, params["value_fc1"]["w"]) + params["value_fc1"]["b"], 0.0)
    value = jnp.tanh(mm(v, params["value_fc2"]["w"]) + params["value_fc2"]["b"])
    return policy, value


# ------------------------------------------------------------------------------ main
if __name__ == "__main__":
    board_size = 8
    num_actions = board_size * board_size + 1   # board cells + pass
    batch = 2

    key = jax.random.PRNGKey(0)
    kp, kx = jax.random.split(key)
    params = init_params(kp, board_size, num_actions)
    x = jax.random.normal(kx, (batch, 4, board_size, board_size), jnp.float32)  # NCHW

    policy, value = jax.jit(policy_value_forward)(params, x)
    policy, value = jax.block_until_ready((policy, value))

    ref_policy, ref_value = reference_forward(params, x)

    assert policy.shape == (batch, num_actions)
    assert value.shape == (batch, 1)
    assert bool(jnp.all(jnp.isfinite(policy))) and bool(jnp.all(jnp.isfinite(value)))
    assert bool(jnp.allclose(jnp.sum(policy, axis=1), 1.0, atol=1e-3))
    # bf16 MXU operands (f32 accumulation) => slightly looser tolerances than pure f32.
    assert bool(jnp.allclose(policy, ref_policy, rtol=2e-2, atol=3e-3)), \
        f"policy max abs err {float(jnp.max(jnp.abs(policy - ref_policy)))}"
    assert bool(jnp.allclose(value, ref_value, rtol=2e-2, atol=1e-2)), \
        f"value max abs err {float(jnp.max(jnp.abs(value - ref_value)))}"

    print("KERNEL_OK")
</pallas_src>

<mosaic_0001>
module attributes {stable_mosaic.version = 11 : i64} {
  func.func @_pvn_kernel(%arg0: i32, %arg1: memref<128x128xbf16, #tpu.memory_space<vmem>>, %arg2: memref<128x9xf32, #tpu.memory_space<vmem>>, %arg3: memref<128x256xbf16, #tpu.memory_space<vmem>>, %arg4: memref<1x256xf32, #tpu.memory_space<vmem>>, %arg5: memref<2304x256xbf16, #tpu.memory_space<vmem>>, %arg6: memref<1x256xf32, #tpu.memory_space<vmem>>, %arg7: memref<2304x256xbf16, #tpu.memory_space<vmem>>, %arg8: memref<1x256xf32, #tpu.memory_space<vmem>>, %arg9: memref<256x128xbf16, #tpu.memory_space<vmem>>, %arg10: memref<1x128xf32, #tpu.memory_space<vmem>>, %arg11: memref<64x128xf32, #tpu.memory_space<vmem>>, %arg12: memref<64x128xf32, #tpu.memory_space<vmem>>, %arg13: memref<1x128xf32, #tpu.memory_space<vmem>>, %arg14: memref<64x256xf32, #tpu.memory_space<vmem>>, %arg15: memref<1x256xf32, #tpu.memory_space<vmem>>, %arg16: memref<1x256xf32, #tpu.memory_space<vmem>>, %arg17: memref<1x1xf32, #tpu.memory_space<vmem>>, %arg18: memref<2x128xf32, #tpu.memory_space<vmem>>) attributes {dimension_semantics = [#tpu.dimension_semantics<parallel>], iteration_bounds = array<i64: 1>, scalar_prefetch = 0 : i64, scratch_operands = 0 : i64, tpu.core_type = #tpu.core_type<tc>, window_params = [{transform_indices = @transform_0, window_bounds = array<i64: 128, 128>}, {pipeline_mode = #tpu.pipeline_mode<synchronous>, transform_indices = @transform_1, window_bounds = array<i64: 128, 9>}, {pipeline_mode = #tpu.pipeline_mode<synchronous>, transform_indices = @transform_2, window_bounds = array<i64: 128, 256>}, {pipeline_mode = #tpu.pipeline_mode<synchronous>, transform_indices = @transform_3, window_bounds = array<i64: 1, 256>}, {pipeline_mode = #tpu.pipeline_mode<synchronous>, transform_indices = @transform_4, window_bounds = array<i64: 2304, 256>}, {pipeline_mode = #tpu.pipeline_mode<synchronous>, transform_indices = @transform_5, window_bounds = array<i64: 1, 256>}, {pipeline_mode = #tpu.pipeline_mode<synchronous>, transform_indices = @transform_6, window_bounds = array<i64: 2304, 256>}, {pipeline_mode = #tpu.pipeline_mode<synchronous>, transform_indices = @transform_7, window_bounds = array<i64: 1, 256>}, {pipeline_mode = #tpu.pipeline_mode<synchronous>, transform_indices = @transform_8, window_bounds = array<i64: 256, 128>}, {pipeline_mode = #tpu.pipeline_mode<synchronous>, transform_indices = @transform_9, window_bounds = array<i64: 1, 128>}, {pipeline_mode = #tpu.pipeline_mode<synchronous>, transform_indices = @transform_10, window_bounds = array<i64: 64, 128>}, {pipeline_mode = #tpu.pipeline_mode<synchronous>, transform_indices = @transform_11, window_bounds = array<i64: 64, 128>}, {pipeline_mode = #tpu.pipeline_mode<synchronous>, transform_indices = @transform_12, window_bounds = array<i64: 1, 128>}, {pipeline_mode = #tpu.pipeline_mode<synchronous>, transform_indices = @transform_13, window_bounds = array<i64: 64, 256>}, {pipeline_mode = #tpu.pipeline_mode<synchronous>, transform_indices = @transform_14, window_bounds = array<i64: 1, 256>}, {pipeline_mode = #tpu.pipeline_mode<synchronous>, transform_indices = @transform_15, window_bounds = array<i64: 1, 256>}, {pipeline_mode = #tpu.pipeline_mode<synchronous>, transform_indices = @transform_16, window_bounds = array<i64: 1, 1>}, {transform_indices = @transform_17, window_bounds = array<i64: 2, 128>}]} {
    %c0 = arith.constant 0 : index
    %c0_0 = arith.constant 0 : index
    %0 = vector.load %arg1[%c0, %c0_0] : memref<128x128xbf16, #tpu.memory_space<vmem>>, vector<128x128xbf16>
    %c0_1 = arith.constant 0 : index
    %c0_2 = arith.constant 0 : index
    %1 = vector.load %arg3[%c0_1, %c0_2] : memref<128x256xbf16, #tpu.memory_space<vmem>>, vector<128x256xbf16>
    %cst = arith.constant dense<0.000000e+00> : vector<128x256xf32>
    %2 = tpu.matmul %0, %1, %cst {dimension_numbers = #tpu.dot_dimension_numbers<[1], [0], [0], [1], [0, 0, 1, 1], [], []>} : vector<128x128xbf16>, vector<128x256xbf16>, vector<128x256xf32> -> vector<128x256xf32>
    %c0_3 = arith.constant 0 : index
    %c0_4 = arith.constant 0 : index
    %3 = vector.load %arg4[%c0_3, %c0_4] : memref<1x256xf32, #tpu.memory_space<vmem>>, vector<1x256xf32>
    %4 = vector.broadcast %3 : vector<1x256xf32> to vector<128x256xf32>
    %5 = arith.addf %2, %4 : vector<128x256xf32>
    %cst_5 = arith.constant 0.000000e+00 : f32
    %6 = vector.broadcast %cst_5 : f32 to vector<128x256xf32>
    %7 = arith.maximumf %5, %6 : vector<128x256xf32>
    %c0_6 = arith.constant 0 : index
    %c0_7 = arith.constant 0 : index
    %8 = vector.load %arg2[%c0_6, %c0_7] : memref<128x9xf32, #tpu.memory_space<vmem>>, vector<128x9xf32>
    %c9_i32 = arith.constant 9 : i32
    %9 = tpu.dynamic_rotate %7 by %c9_i32 dim 0 : vector<128x256xf32>, i32 -> vector<128x256xf32>
    %10 = vector.extract_strided_slice %8 {offsets = [0, 0], sizes = [128, 1], strides = [1, 1]} : vector<128x9xf32> to vector<128x1xf32>
    %11 = vector.broadcast %10 : vector<128x1xf32> to vector<128x256xf32>
    %12 = arith.mulf %9, %11 : vector<128x256xf32>
    %13 = arith.truncf %12 : vector<128x256xf32> to vector<128x256xbf16>
    %c8_i32 = arith.constant 8 : i32
    %14 = tpu.dynamic_rotate %7 by %c8_i32 dim 0 : vector<128x256xf32>, i32 -> vector<128x256xf32>
    %15 = vector.extract_strided_slice %8 {offsets = [0, 1], sizes = [128, 1], strides = [1, 1]} : vector<128x9xf32> to vector<128x1xf32>
    %16 = vector.broadcast %15 : vector<128x1xf32> to vector<128x256xf32>
    %17 = arith.mulf %14, %16 : vector<128x256xf32>
    %18 = arith.truncf %17 : vector<128x256xf32> to vector<128x256xbf16>
    %c7_i32 = arith.constant 7 : i32
    %19 = tpu.dynamic_rotate %7 by %c7_i32 dim 0 : vector<128x256xf32>, i32 -> vector<128x256xf32>
    %20 = vector.extract_strided_slice %8 {offsets = [0, 2], sizes = [128, 1], strides = [1, 1]} : vector<128x9xf32> to vector<128x1xf32>
    %21 = vector.broadcast %20 : vector<128x1xf32> to vector<128x256xf32>
    %22 = arith.mulf %19, %21 : vector<128x256xf32>
    %23 = arith.truncf %22 : vector<128x256xf32> to vector<128x256xbf16>
    %c1_i32 = arith.constant 1 : i32
    %24 = tpu.dynamic_rotate %7 by %c1_i32 dim 0 : vector<128x256xf32>, i32 -> vector<128x256xf32>
    %25 = vector.extract_strided_slice %8 {offsets = [0, 3], sizes = [128, 1], strides = [1, 1]} : vector<128x9xf32> to vector<128x1xf32>
    %26 = vector.broadcast %25 : vector<128x1xf32> to vector<128x256xf32>
    %27 = arith.mulf %24, %26 : vector<128x256xf32>
    %28 = arith.truncf %27 : vector<128x256xf32> to vector<128x256xbf16>
    %29 = vector.extract_strided_slice %8 {offsets = [0, 4], sizes = [128, 1], strides = [1, 1]} : vector<128x9xf32> to vector<128x1xf32>
    %30 = vector.broadcast %29 : vector<128x1xf32> to vector<128x256xf32>
    %31 = arith.mulf %7, %30 : vector<128x256xf32>
    %32 = arith.truncf %31 : vector<128x256xf32> to vector<128x256xbf16>
    %c127_i32 = arith.constant 127 : i32
    %33 = tpu.dynamic_rotate %7 by %c127_i32 dim 0 : vector<128x256xf32>, i32 -> vector<128x256xf32>
    %34 = vector.extract_strided_slice %8 {offsets = [0, 5], sizes = [128, 1], strides = [1, 1]} : vector<128x9xf32> to vector<128x1xf32>
    %35 = vector.broadcast %34 : vector<128x1xf32> to vector<128x256xf32>
    %36 = arith.mulf %33, %35 : vector<128x256xf32>
    %37 = arith.truncf %36 : vector<128x256xf32> to vector<128x256xbf16>
    %c121_i32 = arith.constant 121 : i32
    %38 = tpu.dynamic_rotate %7 by %c121_i32 dim 0 : vector<128x256xf32>, i32 -> vector<128x256xf32>
    %39 = vector.extract_strided_slice %8 {offsets = [0, 6], sizes = [128, 1], strides = [1, 1]} : vector<128x9xf32> to vector<128x1xf32>
    %40 = vector.broadcast %39 : vector<128x1xf32> to vector<128x256xf32>
    %41 = arith.mulf %38, %40 : vector<128x256xf32>
    %42 = arith.truncf %41 : vector<128x256xf32> to vector<128x256xbf16>
    %c120_i32 = arith.constant 120 : i32
    %43 = tpu.dynamic_rotate %7 by %c120_i32 dim 0 : vector<128x256xf32>, i32 -> vector<128x256xf32>
    %44 = vector.extract_strided_slice %8 {offsets = [0, 7], sizes = [128, 1], strides = [1, 1]} : vector<128x9xf32> to vector<128x1xf32>
    %45 = vector.broadcast %44 : vector<128x1xf32> to vector<128x256xf32>
    %46 = arith.mulf %43, %45 : vector<128x256xf32>
    %47 = arith.truncf %46 : vector<128x256xf32> to vector<128x256xbf16>
    %c119_i32 = arith.constant 119 : i32
    %48 = tpu.dynamic_rotate %7 by %c119_i32 dim 0 : vector<128x256xf32>, i32 -> vector<128x256xf32>
    %49 = vector.extract_strided_slice %8 {offsets = [0, 8], sizes = [128, 1], strides = [1, 1]} : vector<128x9xf32> to vector<128x1xf32>
    %50 = vector.broadcast %49 : vector<128x1xf32> to vector<128x256xf32>
    %51 = arith.mulf %48, %50 : vector<128x256xf32>
    %52 = arith.truncf %51 : vector<128x256xf32> to vector<128x256xbf16>
    %53 = tpu.concatenate %13, %18, %23, %28, %32, %37, %42, %47, %52 in 1 : vector<128x256xbf16>, vector<128x256xbf16>, vector<128x256xbf16>, vector<128x256xbf16>, vector<128x256xbf16>, vector<128x256xbf16>, vector<128x256xbf16>, vector<128x256xbf16>, vector<128x256xbf16> -> vector<128x2304xbf16>
    %c0_8 = arith.constant 0 : index
    %c0_9 = arith.constant 0 : index
    %54 = vector.load %arg5[%c0_8, %c0_9] : memref<2304x256xbf16, #tpu.memory_space<vmem>>, vector<2304x256xbf16>
    %cst_10 = arith.constant dense<0.000000e+00> : vector<128x256xf32>
    %55 = tpu.matmul %53, %54, %cst_10 {dimension_numbers = #tpu.dot_dimension_numbers<[1], [0], [0], [1], [0, 0, 1, 1], [], []>} : vector<128x2304xbf16>, vector<2304x256xbf16>, vector<128x256xf32> -> vector<128x256xf32>
    %c0_11 = arith.constant 0 : index
    %c0_12 = arith.constant 0 : index
    %56 = vector.load %arg6[%c0_11, %c0_12] : memref<1x256xf32, #tpu.memory_space<vmem>>, vector<1x256xf32>
    %57 = vector.broadcast %56 : vector<1x256xf32> to vector<128x256xf32>
    %58 = arith.addf %55, %57 : vector<128x256xf32>
    %cst_13 = arith.constant 0.000000e+00 : f32
    %59 = vector.broadcast %cst_13 : f32 to vector<128x256xf32>
    %60 = arith.maximumf %58, %59 : vector<128x256xf32>
    %c9_i32_14 = arith.constant 9 : i32
    %61 = tpu.dynamic_rotate %60 by %c9_i32_14 dim 0 : vector<128x256xf32>, i32 -> vector<128x256xf32>
    %62 = vector.extract_strided_slice %8 {offsets = [0, 0], sizes = [128, 1], strides = [1, 1]} : vector<128x9xf32> to vector<128x1xf32>
    %63 = vector.broadcast %62 : vector<128x1xf32> to vector<128x256xf32>
    %64 = arith.mulf %61, %63 : vector<128x256xf32>
    %65 = arith.truncf %64 : vector<128x256xf32> to vector<128x256xbf16>
    %c8_i32_15 = arith.constant 8 : i32
    %66 = tpu.dynamic_rotate %60 by %c8_i32_15 dim 0 : vector<128x256xf32>, i32 -> vector<128x256xf32>
    %67 = vector.extract_strided_slice %8 {offsets = [0, 1], sizes = [128, 1], strides = [1, 1]} : vector<128x9xf32> to vector<128x1xf32>
    %68 = vector.broadcast %67 : vector<128x1xf32> to vector<128x256xf32>
    %69 = arith.mulf %66, %68 : vector<128x256xf32>
    %70 = arith.truncf %69 : vector<128x256xf32> to vector<128x256xbf16>
    %c7_i32_16 = arith.constant 7 : i32
    %71 = tpu.dynamic_rotate %60 by %c7_i32_16 dim 0 : vector<128x256xf32>, i32 -> vector<128x256xf32>
    %72 = vector.extract_strided_slice %8 {offsets = [0, 2], sizes = [128, 1], strides = [1, 1]} : vector<128x9xf32> to vector<128x1xf32>
    %73 = vector.broadcast %72 : vector<128x1xf32> to vector<128x256xf32>
    %74 = arith.mulf %71, %73 : vector<128x256xf32>
    %75 = arith.truncf %74 : vector<128x256xf32> to vector<128x256xbf16>
    %c1_i32_17 = arith.constant 1 : i32
    %76 = tpu.dynamic_rotate %60 by %c1_i32_17 dim 0 : vector<128x256xf32>, i32 -> vector<128x256xf32>
    %77 = vector.extract_strided_slice %8 {offsets = [0, 3], sizes = [128, 1], strides = [1, 1]} : vector<128x9xf32> to vector<128x1xf32>
    %78 = vector.broadcast %77 : vector<128x1xf32> to vector<128x256xf32>
    %79 = arith.mulf %76, %78 : vector<128x256xf32>
    %80 = arith.truncf %79 : vector<128x256xf32> to vector<128x256xbf16>
    %81 = vector.extract_strided_slice %8 {offsets = [0, 4], sizes = [128, 1], strides = [1, 1]} : vector<128x9xf32> to vector<128x1xf32>
    %82 = vector.broadcast %81 : vector<128x1xf32> to vector<128x256xf32>
    %83 = arith.mulf %60, %82 : vector<128x256xf32>
    %84 = arith.truncf %83 : vector<128x256xf32> to vector<128x256xbf16>
    %c127_i32_18 = arith.constant 127 : i32
    %85 = tpu.dynamic_rotate %60 by %c127_i32_18 dim 0 : vector<128x256xf32>, i32 -> vector<128x256xf32>
    %86 = vector.extract_strided_slice %8 {offsets = [0, 5], sizes = [128, 1], strides = [1, 1]} : vector<128x9xf32> to vector<128x1xf32>
    %87 = vector.broadcast %86 : vector<128x1xf32> to vector<128x256xf32>
    %88 = arith.mulf %85, %87 : vector<128x256xf32>
    %89 = arith.truncf %88 : vector<128x256xf32> to vector<128x256xbf16>
    %c121_i32_19 = arith.constant 121 : i32
    %90 = tpu.dynamic_rotate %60 by %c121_i32_19 dim 0 : vector<128x256xf32>, i32 -> vector<128x256xf32>
    %91 = vector.extract_strided_slice %8 {offsets = [0, 6], sizes = [128, 1], strides = [1, 1]} : vector<128x9xf32> to vector<128x1xf32>
    %92 = vector.broadcast %91 : vector<128x1xf32> to vector<128x256xf32>
    %93 = arith.mulf %90, %92 : vector<128x256xf32>
    %94 = arith.truncf %93 : vector<128x256xf32> to vector<128x256xbf16>
    %c120_i32_20 = arith.constant 120 : i32
    %95 = tpu.dynamic_rotate %60 by %c120_i32_20 dim 0 : vector<128x256xf32>, i32 -> vector<128x256xf32>
    %96 = vector.extract_strided_slice %8 {offsets = [0, 7], sizes = [128, 1], strides = [1, 1]} : vector<128x9xf32> to vector<128x1xf32>
    %97 = vector.broadcast %96 : vector<128x1xf32> to vector<128x256xf32>
    %98 = arith.mulf %95, %97 : vector<128x256xf32>
    %99 = arith.truncf %98 : vector<128x256xf32> to vector<128x256xbf16>
    %c119_i32_21 = arith.constant 119 : i32
    %100 = tpu.dynamic_rotate %60 by %c119_i32_21 dim 0 : vector<128x256xf32>, i32 -> vector<128x256xf32>
    %101 = vector.extract_strided_slice %8 {offsets = [0, 8], sizes = [128, 1], strides = [1, 1]} : vector<128x9xf32> to vector<128x1xf32>
    %102 = vector.broadcast %101 : vector<128x1xf32> to vector<128x256xf32>
    %103 = arith.mulf %100, %102 : vector<128x256xf32>
    %104 = arith.truncf %103 : vector<128x256xf32> to vector<128x256xbf16>
    %105 = tpu.concatenate %65, %70, %75, %80, %84, %89, %94, %99, %104 in 1 : vector<128x256xbf16>, vector<128x256xbf16>, vector<128x256xbf16>, vector<128x256xbf16>, vector<128x256xbf16>, vector<128x256xbf16>, vector<128x256xbf16>, vector<128x256xbf16>, vector<128x256xbf16> -> vector<128x2304xbf16>
    %c0_22 = arith.constant 0 : index
    %c0_23 = arith.constant 0 : index
    %106 = vector.load %arg7[%c0_22, %c0_23] : memref<2304x256xbf16, #tpu.memory_space<vmem>>, vector<2304x256xbf16>
    %cst_24 = arith.constant dense<0.000000e+00> : vector<128x256xf32>
    %107 = tpu.matmul %105, %106, %cst_24 {dimension_numbers = #tpu.dot_dimension_numbers<[1], [0], [0], [1], [0, 0, 1, 1], [], []>} : vector<128x2304xbf16>, vector<2304x256xbf16>, vector<128x256xf32> -> vector<128x256xf32>
    %c0_25 = arith.constant 0 : index
    %c0_26 = arith.constant 0 : index
    %108 = vector.load %arg8[%c0_25, %c0_26] : memref<1x256xf32, #tpu.memory_space<vmem>>, vector<1x256xf32>
    %109 = vector.broadcast %108 : vector<1x256xf32> to vector<128x256xf32>
    %110 = arith.addf %107, %109 : vector<128x256xf32>
    %cst_27 = arith.constant 0.000000e+00 : f32
    %111 = vector.broadcast %cst_27 : f32 to vector<128x256xf32>
    %112 = arith.maximumf %110, %111 : vector<128x256xf32>
    %113 = arith.truncf %112 : vector<128x256xf32> to vector<128x256xbf16>
    %c0_28 = arith.constant 0 : index
    %c0_29 = arith.constant 0 : index
    %114 = vector.load %arg9[%c0_28, %c0_29] : memref<256x128xbf16, #tpu.memory_space<vmem>>, vector<256x128xbf16>
    %cst_30 = arith.constant dense<0.000000e+00> : vector<128x128xf32>
    %115 = tpu.matmul %113, %114, %cst_30 {dimension_numbers = #tpu.dot_dimension_numbers<[1], [0], [0], [1], [0, 0, 1, 1], [], []>} : vector<128x256xbf16>, vector<256x128xbf16>, vector<128x128xf32> -> vector<128x128xf32>
    %c0_31 = arith.constant 0 : index
    %c0_32 = arith.constant 0 : index
    %116 = vector.load %arg10[%c0_31, %c0_32] : memref<1x128xf32, #tpu.memory_space<vmem>>, vector<1x128xf32>
    %117 = vector.broadcast %116 : vector<1x128xf32> to vector<128x128xf32>
    %118 = arith.addf %115, %117 : vector<128x128xf32>
    %cst_33 = arith.constant 0.000000e+00 : f32
    %119 = vector.broadcast %cst_33 : f32 to vector<128x128xf32>
    %120 = arith.maximumf %118, %119 : vector<128x128xf32>
    %c0_34 = arith.constant 0 : index
    %c0_35 = arith.constant 0 : index
    %121 = vector.load %arg11[%c0_34, %c0_35] : memref<64x128xf32, #tpu.memory_space<vmem>>, vector<64x128xf32>
    %c0_36 = arith.constant 0 : index
    %c0_37 = arith.constant 0 : index
    %122 = vector.load %arg12[%c0_36, %c0_37] : memref<64x128xf32, #tpu.memory_space<vmem>>, vector<64x128xf32>
    %c0_38 = arith.constant 0 : index
    %c0_39 = arith.constant 0 : index
    %123 = vector.load %arg13[%c0_38, %c0_39] : memref<1x128xf32, #tpu.memory_space<vmem>>, vector<1x128xf32>
    %c0_40 = arith.constant 0 : index
    %c0_41 = arith.constant 0 : index
    %124 = vector.load %arg14[%c0_40, %c0_41] : memref<64x256xf32, #tpu.memory_space<vmem>>, vector<64x256xf32>
    %c0_42 = arith.constant 0 : index
    %c0_43 = arith.constant 0 : index
    %125 = vector.load %arg15[%c0_42, %c0_43] : memref<1x256xf32, #tpu.memory_space<vmem>>, vector<1x256xf32>
    %c0_44 = arith.constant 0 : index
    %c0_45 = arith.constant 0 : index
    %126 = vector.load %arg16[%c0_44, %c0_45] : memref<1x256xf32, #tpu.memory_space<vmem>>, vector<1x256xf32>
    %c0_46 = arith.constant 0 : index
    %c0_47 = arith.constant 0 : index
    %127 = vector.load %arg17[%c0_46, %c0_47] : memref<1x1xf32, #tpu.memory_space<vmem>>, vector<1x1xf32>
    %128 = tpu.iota {dimensions = array<i32: 1>} : vector<1x128xi32>
    %129 = vector.extract_strided_slice %120 {offsets = [0, 0], sizes = [64, 128], strides = [1, 1]} : vector<128x128xf32> to vector<64x128xf32>
    %130 = vector.extract_strided_slice %129 {offsets = [0, 0], sizes = [64, 1], strides = [1, 1]} : vector<64x128xf32> to vector<64x1xf32>
    %131 = vector.broadcast %130 : vector<64x1xf32> to vector<64x128xf32>
    %132 = arith.mulf %131, %121 : vector<64x128xf32>
    %133 = vector.extract_strided_slice %129 {offsets = [0, 1], sizes = [64, 1], strides = [1, 1]} : vector<64x128xf32> to vector<64x1xf32>
    %134 = vector.broadcast %133 : vector<64x1xf32> to vector<64x128xf32>
    %135 = arith.mulf %134, %122 : vector<64x128xf32>
    %136 = arith.addf %132, %135 : vector<64x128xf32>
    %cst_48 = arith.constant dense<0.000000e+00> : vector<128xf32>
    %137 = vector.multi_reduction <add>, %136, %cst_48 [0] : vector<64x128xf32> to vector<128xf32>
    %138 = vector.shape_cast %137 : vector<128xf32> to vector<1x128xf32>
    %139 = arith.addf %138, %123 : vector<1x128xf32>
    %c65_i32 = arith.constant 65 : i32
    %140 = vector.broadcast %c65_i32 : i32 to vector<1x128xi32>
    %141 = arith.cmpi slt, %128, %140 : vector<1x128xi32>
    %cst_49 = arith.constant -1.000000e+30 : f32
    %142 = vector.broadcast %cst_49 : f32 to vector<1x128xf32>
    %143 = arith.select %141, %139, %142 : vector<1x128xi1>, vector<1x128xf32>
    %cst_50 = arith.constant dense<0xFF800000> : vector<1xf32>
    %144 = vector.multi_reduction <maximumf>, %143, %cst_50 [1] : vector<1x128xf32> to vector<1xf32>
    %145 = vector.shape_cast %144 : vector<1xf32> to vector<1x1xf32>
    %146 = vector.broadcast %145 : vector<1x1xf32> to vector<1x128xf32>
    %147 = arith.subf %143, %146 : vector<1x128xf32>
    %148 = math.exp %147 : vector<1x128xf32>
    %cst_51 = arith.constant dense<0.000000e+00> : vector<1xf32>
    %149 = vector.multi_reduction <add>, %148, %cst_51 [1] : vector<1x128xf32> to vector<1xf32>
    %150 = vector.shape_cast %149 : vector<1xf32> to vector<1x1xf32>
    %151 = vector.broadcast %150 : vector<1x1xf32> to vector<1x128xf32>
    %152 = arith.divf %148, %151 : vector<1x128xf32>
    %153 = vector.extract_strided_slice %129 {offsets = [0, 2], sizes = [64, 1], strides = [1, 1]} : vector<64x128xf32> to vector<64x1xf32>
    %154 = vector.broadcast %153 : vector<64x1xf32> to vector<64x256xf32>
    %155 = arith.mulf %154, %124 : vector<64x256xf32>
    %cst_52 = arith.constant dense<0.000000e+00> : vector<256xf32>
    %156 = vector.multi_reduction <add>, %155, %cst_52 [0] : vector<64x256xf32> to vector<256xf32>
    %157 = vector.shape_cast %156 : vector<256xf32> to vector<1x256xf32>
    %158 = arith.addf %157, %125 : vector<1x256xf32>
    %cst_53 = arith.constant 0.000000e+00 : f32
    %159 = vector.broadcast %cst_53 : f32 to vector<1x256xf32>
    %160 = arith.maximumf %158, %159 : vector<1x256xf32>
    %161 = arith.mulf %160, %126 : vector<1x256xf32>
    %cst_54 = arith.constant dense<0.000000e+00> : vector<1xf32>
    %162 = vector.multi_reduction <add>, %161, %cst_54 [1] : vector<1x256xf32> to vector<1xf32>
    %163 = vector.shape_cast %162 : vector<1xf32> to vector<1x1xf32>
    %164 = arith.addf %163, %127 : vector<1x1xf32>
    %165 = math.tanh %164 : vector<1x1xf32>
    %c127_i32_55 = arith.constant 127 : i32
    %166 = vector.broadcast %c127_i32_55 : i32 to vector<1x128xi32>
    %167 = arith.cmpi eq, %128, %166 : vector<1x128xi32>
    %168 = vector.shape_cast %165 : vector<1x1xf32> to vector<1x1xf32>
    %169 = vector.broadcast %168 : vector<1x1xf32> to vector<1x128xf32>
    %170 = arith.select %167, %169, %152 : vector<1x128xi1>, vector<1x128xf32>
    %c0_56 = arith.constant 0 : index
    %c0_57 = arith.constant 0 : index
    %171 = vector.load %arg18[%c0_56, %c0_57] : memref<2x128xf32, #tpu.memory_space<vmem>>, vector<1x128xf32>
    tpu.vector_store %arg18[%c0_56, %c0_57], %170 {strides = array<i32>} : memref<2x128xf32, #tpu.memory_space<vmem>>, vector<1x128xf32>,
    %172 = vector.extract_strided_slice %120 {offsets = [64, 0], sizes = [64, 128], strides = [1, 1]} : vector<128x128xf32> to vector<64x128xf32>
    %173 = vector.extract_strided_slice %172 {offsets = [0, 0], sizes = [64, 1], strides = [1, 1]} : vector<64x128xf32> to vector<64x1xf32>
    %174 = vector.broadcast %173 : vector<64x1xf32> to vector<64x128xf32>
    %175 = arith.mulf %174, %121 : vector<64x128xf32>
    %176 = vector.extract_strided_slice %172 {offsets = [0, 1], sizes = [64, 1], strides = [1, 1]} : vector<64x128xf32> to vector<64x1xf32>
    %177 = vector.broadcast %176 : vector<64x1xf32> to vector<64x128xf32>
    %178 = arith.mulf %177, %122 : vector<64x128xf32>
    %179 = arith.addf %175, %178 : vector<64x128xf32>
    %cst_58 = arith.constant dense<0.000000e+00> : vector<128xf32>
    %180 = vector.multi_reduction <add>, %179, %cst_58 [0] : vector<64x128xf32> to vector<128xf32>
    %181 = vector.shape_cast %180 : vector<128xf32> to vector<1x128xf32>
    %182 = arith.addf %181, %123 : vector<1x128xf32>
    %c65_i32_59 = arith.constant 65 : i32
    %183 = vector.broadcast %c65_i32_59 : i32 to vector<1x128xi32>
    %184 = arith.cmpi slt, %128, %183 : vector<1x128xi32>
    %cst_60 = arith.constant -1.000000e+30 : f32
    %185 = vector.broadcast %cst_60 : f32 to vector<1x128xf32>
    %186 = arith.select %184, %182, %185 : vector<1x128xi1>, vector<1x128xf32>
    %cst_61 = arith.constant dense<0xFF800000> : vector<1xf32>
    %187 = vector.multi_reduction <maximumf>, %186, %cst_61 [1] : vector<1x128xf32> to vector<1xf32>
    %188 = vector.shape_cast %187 : vector<1xf32> to vector<1x1xf32>
    %189 = vector.broadcast %188 : vector<1x1xf32> to vector<1x128xf32>
    %190 = arith.subf %186, %189 : vector<1x128xf32>
    %191 = math.exp %190 : vector<1x128xf32>
    %cst_62 = arith.constant dense<0.000000e+00> : vector<1xf32>
    %192 = vector.multi_reduction <add>, %191, %cst_62 [1] : vector<1x128xf32> to vector<1xf32>
    %193 = vector.shape_cast %192 : vector<1xf32> to vector<1x1xf32>
    %194 = vector.broadcast %193 : vector<1x1xf32> to vector<1x128xf32>
    %195 = arith.divf %191, %194 : vector<1x128xf32>
    %196 = vector.extract_strided_slice %172 {offsets = [0, 2], sizes = [64, 1], strides = [1, 1]} : vector<64x128xf32> to vector<64x1xf32>
    %197 = vector.broadcast %196 : vector<64x1xf32> to vector<64x256xf32>
    %198 = arith.mulf %197, %124 : vector<64x256xf32>
    %cst_63 = arith.constant dense<0.000000e+00> : vector<256xf32>
    %199 = vector.multi_reduction <add>, %198, %cst_63 [0] : vector<64x256xf32> to vector<256xf32>
    %200 = vector.shape_cast %199 : vector<256xf32> to vector<1x256xf32>
    %201 = arith.addf %200, %125 : vector<1x256xf32>
    %cst_64 = arith.constant 0.000000e+00 : f32
    %202 = vector.broadcast %cst_64 : f32 to vector<1x256xf32>
    %203 = arith.maximumf %201, %202 : vector<1x256xf32>
    %204 = arith.mulf %203, %126 : vector<1x256xf32>
    %cst_65 = arith.constant dense<0.000000e+00> : vector<1xf32>
    %205 = vector.multi_reduction <add>, %204, %cst_65 [1] : vector<1x256xf32> to vector<1xf32>
    %206 = vector.shape_cast %205 : vector<1xf32> to vector<1x1xf32>
    %207 = arith.addf %206, %127 : vector<1x1xf32>
    %208 = math.tanh %207 : vector<1x1xf32>
    %c127_i32_66 = arith.constant 127 : i32
    %209 = vector.broadcast %c127_i32_66 : i32 to vector<1x128xi32>
    %210 = arith.cmpi eq, %128, %209 : vector<1x128xi32>
    %211 = vector.shape_cast %208 : vector<1x1xf32> to vector<1x1xf32>
    %212 = vector.broadcast %211 : vector<1x1xf32> to vector<1x128xf32>
    %213 = arith.select %210, %212, %195 : vector<1x128xi1>, vector<1x128xf32>
    %c1 = arith.constant 1 : index
    %c0_67 = arith.constant 0 : index
    %214 = vector.load %arg18[%c1, %c0_67] : memref<2x128xf32, #tpu.memory_space<vmem>>, vector<1x128xf32>
    tpu.vector_store %arg18[%c1, %c0_67], %213 {strides = array<i32>} : memref<2x128xf32, #tpu.memory_space<vmem>>, vector<1x128xf32>,
    return
  }
  func.func @transform_0(%arg0: i32) -> (i32, i32) {
    %c0_i32 = arith.constant 0 : i32
    %c0_i32_0 = arith.constant 0 : i32
    return %arg0, %c0_i32 : i32, i32
  }
  func.func @transform_1(%arg0: i32) -> (i32, i32) {
    %c0_i32 = arith.constant 0 : i32
    %c0_i32_0 = arith.constant 0 : i32
    %c0_i32_1 = arith.constant 0 : i32
    return %c0_i32, %c0_i32_0 : i32, i32
  }
  func.func @transform_2(%arg0: i32) -> (i32, i32) {
    %c0_i32 = arith.constant 0 : i32
    %c0_i32_0 = arith.constant 0 : i32
    %c0_i32_1 = arith.constant 0 : i32
    return %c0_i32, %c0_i32_0 : i32, i32
  }
  func.func @transform_3(%arg0: i32) -> (i32, i32) {
    %c0_i32 = arith.constant 0 : i32
    %c0_i32_0 = arith.constant 0 : i32
    %c0_i32_1 = arith.constant 0 : i32
    return %c0_i32, %c0_i32_0 : i32, i32
  }
  func.func @transform_4(%arg0: i32) -> (i32, i32) {
    %c0_i32 = arith.constant 0 : i32
    %c0_i32_0 = arith.constant 0 : i32
    %c0_i32_1 = arith.constant 0 : i32
    return %c0_i32, %c0_i32_0 : i32, i32
  }
  func.func @transform_5(%arg0: i32) -> (i32, i32) {
    %c0_i32 = arith.constant 0 : i32
    %c0_i32_0 = arith.constant 0 : i32
    %c0_i32_1 = arith.constant 0 : i32
    return %c0_i32, %c0_i32_0 : i32, i32
  }
  func.func @transform_6(%arg0: i32) -> (i32, i32) {
    %c0_i32 = arith.constant 0 : i32
    %c0_i32_0 = arith.constant 0 : i32
    %c0_i32_1 = arith.constant 0 : i32
    return %c0_i32, %c0_i32_0 : i32, i32
  }
  func.func @transform_7(%arg0: i32) -> (i32, i32) {
    %c0_i32 = arith.constant 0 : i32
    %c0_i32_0 = arith.constant 0 : i32
    %c0_i32_1 = arith.constant 0 : i32
    return %c0_i32, %c0_i32_0 : i32, i32
  }
  func.func @transform_8(%arg0: i32) -> (i32, i32) {
    %c0_i32 = arith.constant 0 : i32
    %c0_i32_0 = arith.constant 0 : i32
    %c0_i32_1 = arith.constant 0 : i32
    return %c0_i32, %c0_i32_0 : i32, i32
  }
  func.func @transform_9(%arg0: i32) -> (i32, i32) {
    %c0_i32 = arith.constant 0 : i32
    %c0_i32_0 = arith.constant 0 : i32
    %c0_i32_1 = arith.constant 0 : i32
    return %c0_i32, %c0_i32_0 : i32, i32
  }
  func.func @transform_10(%arg0: i32) -> (i32, i32) {
    %c0_i32 = arith.constant 0 : i32
    %c0_i32_0 = arith.constant 0 : i32
    %c0_i32_1 = arith.constant 0 : i32
    return %c0_i32, %c0_i32_0 : i32, i32
  }
  func.func @transform_11(%arg0: i32) -> (i32, i32) {
    %c0_i32 = arith.constant 0 : i32
    %c0_i32_0 = arith.constant 0 : i32
    %c0_i32_1 = arith.constant 0 : i32
    return %c0_i32, %c0_i32_0 : i32, i32
  }
  func.func @transform_12(%arg0: i32) -> (i32, i32) {
    %c0_i32 = arith.constant 0 : i32
    %c0_i32_0 = arith.constant 0 : i32
    %c0_i32_1 = arith.constant 0 : i32
    return %c0_i32, %c0_i32_0 : i32, i32
  }
  func.func @transform_13(%arg0: i32) -> (i32, i32) {
    %c0_i32 = arith.constant 0 : i32
    %c0_i32_0 = arith.constant 0 : i32
    %c0_i32_1 = arith.constant 0 : i32
    return %c0_i32, %c0_i32_0 : i32, i32
  }
  func.func @transform_14(%arg0: i32) -> (i32, i32) {
    %c0_i32 = arith.constant 0 : i32
    %c0_i32_0 = arith.constant 0 : i32
    %c0_i32_1 = arith.constant 0 : i32
    return %c0_i32, %c0_i32_0 : i32, i32
  }
  func.func @transform_15(%arg0: i32) -> (i32, i32) {
    %c0_i32 = arith.constant 0 : i32
    %c0_i32_0 = arith.constant 0 : i32
    %c0_i32_1 = arith.constant 0 : i32
    return %c0_i32, %c0_i32_0 : i32, i32
  }
  func.func @transform_16(%arg0: i32) -> (i32, i32) {
    %c0_i32 = arith.constant 0 : i32
    %c0_i32_0 = arith.constant 0 : i32
    %c0_i32_1 = arith.constant 0 : i32
    return %c0_i32, %c0_i32_0 : i32, i32
  }
  func.func @transform_17(%arg0: i32) -> (i32, i32) {
    %c0_i32 = arith.constant 0 : i32
    %c0_i32_0 = arith.constant 0 : i32
    return %arg0, %c0_i32 : i32, i32
  }
}

</mosaic_0001>

<llo_original>
// kernel: policy_value_forward.1
$region0: #{policy_value_forward.1}
  #allocation0 [shape = 'u32[]', space=smem, size = 0x4, offset = 0x4, fixed_abs, tag = 'smem constant byte address 0x4 - core index']
  #allocation1 [shape = 'u32[72,128]{1,0:T(1,128)}', space=vmem, size = 0x9000, scoped, tag = 'internal scratch']
  #allocation2 [shape = 'f32[1,1]{1,0:T(1,128)S(1)}', space=vmem, size = 0x200, scoped, tag = 'scoped memory for policy_value_forward.1']
  %s0 = inlined_call_operand.vmem [shape: bf16[128,128], index: 0, kind: input, shape index: {}]
  %s1 = inlined_call_operand.vmem [shape: f32[128,9], index: 1, kind: input, shape index: {}]
  %s2 = inlined_call_operand.vmem [shape: bf16[128,256], index: 2, kind: input, shape index: {}]
  %s3 = inlined_call_operand.vmem [shape: f32[1,256], index: 3, kind: input, shape index: {}]
  %s4 = inlined_call_operand.vmem [shape: bf16[2304,256], index: 4, kind: input, shape index: {}]
  %s5 = inlined_call_operand.vmem [shape: f32[1,256], index: 5, kind: input, shape index: {}]
  %s6 = inlined_call_operand.vmem [shape: bf16[2304,256], index: 6, kind: input, shape index: {}]
  %s7 = inlined_call_operand.vmem [shape: f32[1,256], index: 7, kind: input, shape index: {}]
  %s8 = inlined_call_operand.vmem [shape: bf16[256,128], index: 8, kind: input, shape index: {}]
  %s9 = inlined_call_operand.vmem [shape: f32[1,128], index: 9, kind: input, shape index: {}]
  %s10 = inlined_call_operand.vmem [shape: f32[64,128], index: 10, kind: input, shape index: {}]
  %s11 = inlined_call_operand.vmem [shape: f32[64,128], index: 11, kind: input, shape index: {}]
  %s12 = inlined_call_operand.vmem [shape: f32[1,128], index: 12, kind: input, shape index: {}]
  %s13 = inlined_call_operand.vmem [shape: f32[64,256], index: 13, kind: input, shape index: {}]
  %s14 = inlined_call_operand.vmem [shape: f32[1,256], index: 14, kind: input, shape index: {}]
  %s15 = inlined_call_operand.vmem [shape: f32[1,256], index: 15, kind: input, shape index: {}]
  %s16 = inlined_call_operand.<no memory space> [shape: f32[1,1], index: 16, kind: input, shape index: {}]
  %s17 = inlined_call_operand.vmem [shape: f32[2,128], index: 17, kind: output, shape index: {}]
  %s18 = sld [smem:[#allocation0]]
  $region78: #{policy_value_forward.1} parent=0
    _
  %s20 = ssub.s32 1, %s18
  %s21 = scalar_select 0, %s20, %s18
  %v22 = vstv %s16
  %23 = vst [vmem:[#allocation2] sm:$0x1] %v22
  // Predicated region
  $region2: #{policy_value_forward.1} parent=0 // pred_check
    _
  $region3: #{policy_value_forward.1} parent=0 // pred_check_branch
    %25 = sbr.rel (0) target = $region5
  $region4: #{policy_value_forward.1} parent=0 // pred_region
    _
  $region5: #{policy_value_forward.1} parent=0 // pred_fallthru
    _
  // Predicated region
  $region6: #{policy_value_forward.1} parent=0 // pred_check
    _
  $region7: #{policy_value_forward.1} parent=0 // pred_check_branch
    %27 = sbr.rel (0) target = $region9
  $region8: #{policy_value_forward.1} parent=0 // pred_region
    _
  $region9: #{policy_value_forward.1} parent=0 // pred_fallthru
    _
  // Predicated region
  $region10: #{policy_value_forward.1} parent=0 // pred_check
    _
  $region11: #{policy_value_forward.1} parent=0 // pred_check_branch
    %29 = sbr.rel (0) target = $region13
  $region12: #{policy_value_forward.1} parent=0 // pred_region
    _
  $region13: #{policy_value_forward.1} parent=0 // pred_fallthru
    _
  // Predicated region
  $region14: #{policy_value_forward.1} parent=0 // pred_check
    _
  $region15: #{policy_value_forward.1} parent=0 // pred_check_branch
    %31 = sbr.rel (0) target = $region17
  $region16: #{policy_value_forward.1} parent=0 // pred_region
    _
  $region17: #{policy_value_forward.1} parent=0 // pred_fallthru
    _
  // Predicated region
  $region18: #{policy_value_forward.1} parent=0 // pred_check
    _
  $region19: #{policy_value_forward.1} parent=0 // pred_check_branch
    %33 = sbr.rel (0) target = $region21
  $region20: #{policy_value_forward.1} parent=0 // pred_region
    _
  $region21: #{policy_value_forward.1} parent=0 // pred_fallthru
    _
  // Predicated region
  $region22: #{policy_value_forward.1} parent=0 // pred_check
    _
  $region23: #{policy_value_forward.1} parent=0 // pred_check_branch
    %35 = sbr.rel (0) target = $region25
  $region24: #{policy_value_forward.1} parent=0 // pred_region
    _
  $region25: #{policy_value_forward.1} parent=0 // pred_fallthru
    _
  // Predicated region
  $region26: #{policy_value_forward.1} parent=0 // pred_check
    _
  $region27: #{policy_value_forward.1} parent=0 // pred_check_branch
    %37 = sbr.rel (0) target = $region29
  $region28: #{policy_value_forward.1} parent=0 // pred_region
    _
  $region29: #{policy_value_forward.1} parent=0 // pred_fallthru
    _
  // Predicated region
  $region30: #{policy_value_forward.1} parent=0 // pred_check
    _
  $region31: #{policy_value_forward.1} parent=0 // pred_check_branch
    %39 = sbr.rel (0) target = $region33
  $region32: #{policy_value_forward.1} parent=0 // pred_region
    _
  $region33: #{policy_value_forward.1} parent=0 // pred_fallthru
    _
  // Predicated region
  $region34: #{policy_value_forward.1} parent=0 // pred_check
    _
  $region35: #{policy_value_forward.1} parent=0 // pred_check_branch
    %41 = sbr.rel (0) target = $region37
  $region36: #{policy_value_forward.1} parent=0 // pred_region
    _
  $region37: #{policy_value_forward.1} parent=0 // pred_fallthru
    _
  // Predicated region
  $region38: #{policy_value_forward.1} parent=0 // pred_check
    _
  $region39: #{policy_value_forward.1} parent=0 // pred_check_branch
    %43 = sbr.rel (0) target = $region41
  $region40: #{policy_value_forward.1} parent=0 // pred_region
    _
  $region41: #{policy_value_forward.1} parent=0 // pred_fallthru
    _
  // Predicated region
  $region42: #{policy_value_forward.1} parent=0 // pred_check
    _
  $region43: #{policy_value_forward.1} parent=0 // pred_check_branch
    %45 = sbr.rel (0) target = $region45
  $region44: #{policy_value_forward.1} parent=0 // pred_region
    _
  $region45: #{policy_value_forward.1} parent=0 // pred_fallthru
    _
  // Predicated region
  $region46: #{policy_value_forward.1} parent=0 // pred_check
    _
  $region47: #{policy_value_forward.1} parent=0 // pred_check_branch
    %47 = sbr.rel (0) target = $region49
  $region48: #{policy_value_forward.1} parent=0 // pred_region
    _
  $region49: #{policy_value_forward.1} parent=0 // pred_fallthru
    _
  // Predicated region
  $region50: #{policy_value_forward.1} parent=0 // pred_check
    _
  $region51: #{policy_value_forward.1} parent=0 // pred_check_branch
    %49 = sbr.rel (0) target = $region53
  $region52: #{policy_value_forward.1} parent=0 // pred_region
    _
  $region53: #{policy_value_forward.1} parent=0 // pred_fallthru
    _
  // Predicated region
  $region54: #{policy_value_forward.1} parent=0 // pred_check
    _
  $region55: #{policy_value_forward.1} parent=0 // pred_check_branch
    %51 = sbr.rel (0) target = $region57
  $region56: #{policy_value_forward.1} parent=0 // pred_region
    _
  $region57: #{policy_value_forward.1} parent=0 // pred_fallthru
    _
  // Predicated region
  $region58: #{policy_value_forward.1} parent=0 // pred_check
    _
  $region59: #{policy_value_forward.1} parent=0 // pred_check_branch
    %53 = sbr.rel (0) target = $region61
  $region60: #{policy_value_forward.1} parent=0 // pred_region
    _
  $region61: #{policy_value_forward.1} parent=0 // pred_fallthru
    _
  // Predicated region
  $region62: #{policy_value_forward.1} parent=0 // pred_check
    _
  $region63: #{policy_value_forward.1} parent=0 // pred_check_branch
    %55 = sbr.rel (0) target = $region65
  $region64: #{policy_value_forward.1} parent=0 // pred_region
    _
  $region65: #{policy_value_forward.1} parent=0 // pred_fallthru
    _
  // Predicated region
  $region66: #{policy_value_forward.1} parent=0 // pred_check
    _
  $region67: #{policy_value_forward.1} parent=0 // pred_check_branch
    %57 = sbr.rel (0) target = $region69
  $region68: #{policy_value_forward.1} parent=0 // pred_region
    _
  $region69: #{policy_value_forward.1} parent=0 // pred_fallthru
    _
  %v58 = vld [vmem:[%s0] sm:$0xf]
  %v59 = vld [vmem:[%s0 + $0x4] sm:$0xf]
  %v60 = vld [vmem:[%s0 + $0x8] sm:$0xf]
  %v61 = vld [vmem:[%s0 + $0xc] sm:$0xf]
  %v62 = vld [vmem:[%s0 + $0x10] sm:$0xf]
  %v63 = vld [vmem:[%s0 + $0x14] sm:$0xf]
  %v64 = vld [vmem:[%s0 + $0x18] sm:$0xf]
  %v65 = vld [vmem:[%s0 + $0x1c] sm:$0xf]
  %v66 = vld [vmem:[%s0 + $0x20] sm:$0xf]
  %v67 = vld [vmem:[%s0 + $0x24] sm:$0xf]
  %v68 = vld [vmem:[%s0 + $0x28] sm:$0xf]
  %v69 = vld [vmem:[%s0 + $0x2c] sm:$0xf]
  %v70 = vld [vmem:[%s0 + $0x30] sm:$0xf]
  %v71 = vld [vmem:[%s0 + $0x34] sm:$0xf]
  %v72 = vld [vmem:[%s0 + $0x38] sm:$0xf]
  %v73 = vld [vmem:[%s0 + $0x3c] sm:$0xf]
  %v74 = vld [vmem:[%s2] sm:$0xff]
  %v75 = vld [vmem:[%s2 + $0x8] sm:$0xff]
  %v76 = vld [vmem:[%s2 + $0x10] sm:$0xff]
  %v77 = vld [vmem:[%s2 + $0x18] sm:$0xff]
  %v78 = vld [vmem:[%s2 + $0x20] sm:$0xff]
  %v79 = vld [vmem:[%s2 + $0x28] sm:$0xff]
  %v80 = vld [vmem:[%s2 + $0x30] sm:$0xff]
  %v81 = vld [vmem:[%s2 + $0x38] sm:$0xff]
  %v82 = vld [vmem:[%s2 + $0x40] sm:$0xff]
  %v83 = vld [vmem:[%s2 + $0x48] sm:$0xff]
  %v84 = vld [vmem:[%s2 + $0x50] sm:$0xff]
  %v85 = vld [vmem:[%s2 + $0x58] sm:$0xff]
  %v86 = vld [vmem:[%s2 + $0x60] sm:$0xff]
  %v87 = vld [vmem:[%s2 + $0x68] sm:$0xff]
  %v88 = vld [vmem:[%s2 + $0x70] sm:$0xff]
  %v89 = vld [vmem:[%s2 + $0x78] sm:$0xff]
  %v90 = vld [vmem:[%s3] sm:$0x3]
  %v92 = vperm.slane %v90, 0
  %v93 = vperm.slane %v90, 1
  %v112 = vunpack.c.l.b16 %v58
  %v113 = vunpack.c.l.b16 %v59
  %v114 = vunpack.c.l.b16 %v60
  %v115 = vunpack.c.l.b16 %v61
  %v116 = vunpack.c.l.b16 %v62
  %v117 = vunpack.c.l.b16 %v63
  %v118 = vunpack.c.l.b16 %v64
  %v119 = vunpack.c.l.b16 %v65
  %v120 = vunpack.c.l.b16 %v66
  %v121 = vunpack.c.l.b16 %v67
  %v122 = vunpack.c.l.b16 %v68
  %v123 = vunpack.c.l.b16 %v69
  %v124 = vunpack.c.l.b16 %v70
  %v125 = vunpack.c.l.b16 %v71
  %v126 = vunpack.c.l.b16 %v72
  %v127 = vunpack.c.l.b16 %v73
  %v128 = vpack.c.b16 %v113, %v112
  %v129 = vpack.c.b16 %v115, %v114
  %v130 = vpack.c.b16 %v117, %v116
  %v131 = vpack.c.b16 %v119, %v118
  %v132 = vpack.c.b16 %v121, %v120
  %v133 = vpack.c.b16 %v123, %v122
  %v134 = vpack.c.b16 %v125, %v124
  %v135 = vpack.c.b16 %v127, %v126
  %v160 = vunpack.c.l.b16 %v74
  %v161 = vunpack.c.h.b16 %v74
  %v162 = vunpack.c.l.b16 %v75
  %v163 = vunpack.c.h.b16 %v75
  %v164 = vunpack.c.l.b16 %v76
  %v165 = vunpack.c.h.b16 %v76
  %v166 = vunpack.c.l.b16 %v77
  %v167 = vunpack.c.h.b16 %v77
  %v168 = vunpack.c.l.b16 %v78
  %v169 = vunpack.c.h.b16 %v78
  %v170 = vunpack.c.l.b16 %v79
  %v171 = vunpack.c.h.b16 %v79
  %v172 = vunpack.c.l.b16 %v80
  %v173 = vunpack.c.h.b16 %v80
  %v174 = vunpack.c.l.b16 %v81
  %v175 = vunpack.c.h.b16 %v81
  %v176 = vunpack.c.l.b16 %v82
  %v177 = vunpack.c.h.b16 %v82
  %v178 = vunpack.c.l.b16 %v83
  %v179 = vunpack.c.h.b16 %v83
  %v180 = vunpack.c.l.b16 %v84
  %v181 = vunpack.c.h.b16 %v84
  %v182 = vunpack.c.l.b16 %v85
  %v183 = vunpack.c.h.b16 %v85
  %v184 = vunpack.c.l.b16 %v86
  %v185 = vunpack.c.h.b16 %v86
  %v186 = vunpack.c.l.b16 %v87
  %v187 = vunpack.c.h.b16 %v87
  %v188 = vunpack.c.l.b16 %v88
  %v189 = vunpack.c.h.b16 %v88
  %v190 = vunpack.c.l.b16 %v89
  %v191 = vunpack.c.h.b16 %v89
  %v192 = vpack.c.b16 %v162, %v160
  %v193 = vpack.c.b16 %v163, %v161
  %v194 = vpack.c.b16 %v166, %v164
  %v195 = vpack.c.b16 %v167, %v165
  %v196 = vpack.c.b16 %v170, %v168
  %v197 = vpack.c.b16 %v171, %v169
  %v198 = vpack.c.b16 %v174, %v172
  %v199 = vpack.c.b16 %v175, %v173
  %v200 = vpack.c.b16 %v178, %v176
  %v201 = vpack.c.b16 %v179, %v177
  %v202 = vpack.c.b16 %v182, %v180
  %v203 = vpack.c.b16 %v183, %v181
  %v204 = vpack.c.b16 %v186, %v184
  %v205 = vpack.c.b16 %v187, %v185
  %v206 = vpack.c.b16 %v190, %v188
  %v207 = vpack.c.b16 %v191, %v189
  %224 = vmatpush.bf16.msra.mxu0 %v206
  %225 = vmatpush.bf16.msra.mxu0 %v204
  %226 = vmatpush.bf16.msra.mxu0 %v202
  %227 = vmatpush.bf16.msra.mxu0 %v200
  %228 = vmatpush.bf16.msra.mxu0 %v198
  %229 = vmatpush.bf16.msra.mxu0 %v196
  %230 = vmatpush.bf16.msra.mxu0 %v194
  %231 = vmatpush.bf16.msra.mxu0 %v192
  %232 = vmatmul.bf16.gmra.mxu0 %v128
  %v233 = vpop.f32.mrf.mxu0
  %v234 = vadd.f32 %v92, %v233
  %v235 = vpop.f32.mrf.mxu0
  %v236 = vadd.f32 %v92, %v235
  %237 = vmatmul.bf16.gmra.mxu0 %v129
  %v238 = vpop.f32.mrf.mxu0
  %v239 = vadd.f32 %v92, %v238
  %v240 = vpop.f32.mrf.mxu0
  %v241 = vadd.f32 %v92, %v240
  %242 = vmatmul.bf16.gmra.mxu0 %v130
  %v243 = vpop.f32.mrf.mxu0
  %v244 = vadd.f32 %v92, %v243
  %v245 = vpop.f32.mrf.mxu0
  %v246 = vadd.f32 %v92, %v245
  %247 = vmatmul.bf16.gmra.mxu0 %v131
  %v248 = vpop.f32.mrf.mxu0
  %v249 = vadd.f32 %v92, %v248
  %v250 = vpop.f32.mrf.mxu0
  %v251 = vadd.f32 %v92, %v250
  %252 = vmatmul.bf16.gmra.mxu0 %v132
  %v253 = vpop.f32.mrf.mxu0
  %v254 = vadd.f32 %v92, %v253
  %v255 = vpop.f32.mrf.mxu0
  %v256 = vadd.f32 %v92, %v255
  %257 = vmatmul.bf16.gmra.mxu0 %v133
  %v258 = vpop.f32.mrf.mxu0
  %v259 = vadd.f32 %v92, %v258
  %v260 = vpop.f32.mrf.mxu0
  %v261 = vadd.f32 %v92, %v260
  %262 = vmatmul.bf16.gmra.mxu0 %v134
  %v263 = vpop.f32.mrf.mxu0
  %v264 = vadd.f32 %v92, %v263
  %v265 = vpop.f32.mrf.mxu0
  %v266 = vadd.f32 %v92, %v265
  %267 = vmatmul.bf16.gmra.mxu0 %v135
  %v268 = vpop.f32.mrf.mxu0
  %v269 = vadd.f32 %v92, %v268
  %v270 = vpop.f32.mrf.mxu0
  %v271 = vadd.f32 %v92, %v270
  %272 = vdwg.mxu0
  %273 = vmatpush.bf16.msra.mxu0 %v207
  %274 = vmatpush.bf16.msra.mxu0 %v205
  %275 = vmatpush.bf16.msra.mxu0 %v203
  %276 = vmatpush.bf16.msra.mxu0 %v201
  %277 = vmatpush.bf16.msra.mxu0 %v199
  %278 = vmatpush.bf16.msra.mxu0 %v197
  %279 = vmatpush.bf16.msra.mxu0 %v195
  %280 = vmatpush.bf16.msra.mxu0 %v193
  %281 = vmatmul.bf16.gmra.mxu0 %v128
  %v282 = vpop.f32.mrf.mxu0
  %v283 = vadd.f32 %v93, %v282
  %v284 = vpop.f32.mrf.mxu0
  %v285 = vadd.f32 %v93, %v284
  %286 = vmatmul.bf16.gmra.mxu0 %v129
  %v287 = vpop.f32.mrf.mxu0
  %v288 = vadd.f32 %v93, %v287
  %v289 = vpop.f32.mrf.mxu0
  %v290 = vadd.f32 %v93, %v289
  %291 = vmatmul.bf16.gmra.mxu0 %v130
  %v292 = vpop.f32.mrf.mxu0
  %v293 = vadd.f32 %v93, %v292
  %v294 = vpop.f32.mrf.mxu0
  %v295 = vadd.f32 %v93, %v294
  %296 = vmatmul.bf16.gmra.mxu0 %v131
  %v297 = vpop.f32.mrf.mxu0
  %v298 = vadd.f32 %v93, %v297
  %v299 = vpop.f32.mrf.mxu0
  %v300 = vadd.f32 %v93, %v299
  %301 = vmatmul.bf16.gmra.mxu0 %v132
  %v302 = vpop.f32.mrf.mxu0
  %v303 = vadd.f32 %v93, %v302
  %v304 = vpop.f32.mrf.mxu0
  %v305 = vadd.f32 %v93, %v304
  %306 = vmatmul.bf16.gmra.mxu0 %v133
  %v307 = vpop.f32.mrf.mxu0
  %v308 = vadd.f32 %v93, %v307
  %v309 = vpop.f32.mrf.mxu0
  %v310 = vadd.f32 %v93, %v309
  %311 = vmatmul.bf16.gmra.mxu0 %v134
  %v312 = vpop.f32.mrf.mxu0
  %v313 = vadd.f32 %v93, %v312
  %v314 = vpop.f32.mrf.mxu0
  %v315 = vadd.f32 %v93, %v314
  %316 = vmatmul.bf16.gmra.mxu0 %v135
  %v317 = vpop.f32.mrf.mxu0
  %v318 = vadd.f32 %v93, %v317
  %v319 = vpop.f32.mrf.mxu0
  %v320 = vadd.f32 %v93, %v319
  %321 = vdwg.mxu0
  %v322 = vmax.f32 %v234, 0.0
  %v323 = vmax.f32 %v283, 0.0
  %v324 = vmax.f32 %v236, 0.0
  %v325 = vmax.f32 %v285, 0.0
  %v326 = vmax.f32 %v239, 0.0
  %v327 = vmax.f32 %v288, 0.0
  %v328 = vmax.f32 %v241, 0.0
  %v329 = vmax.f32 %v290, 0.0
  %v330 = vmax.f32 %v244, 0.0
  %v331 = vmax.f32 %v293, 0.0
  %v332 = vmax.f32 %v246, 0.0
  %v333 = vmax.f32 %v295, 0.0
  %v334 = vmax.f32 %v249, 0.0
  %v335 = vmax.f32 %v298, 0.0
  %v336 = vmax.f32 %v251, 0.0
  %v337 = vmax.f32 %v300, 0.0
  %v338 = vmax.f32 %v254, 0.0
  %v339 = vmax.f32 %v303, 0.0
  %v340 = vmax.f32 %v256, 0.0
  %v341 = vmax.f32 %v305, 0.0
  %v342 = vmax.f32 %v259, 0.0
  %v343 = vmax.f32 %v308, 0.0
  %v344 = vmax.f32 %v261, 0.0
  %v345 = vmax.f32 %v310, 0.0
  %v346 = vmax.f32 %v264, 0.0
  %v347 = vmax.f32 %v313, 0.0
  %v348 = vmax.f32 %v266, 0.0
  %v349 = vmax.f32 %v315, 0.0
  %v350 = vmax.f32 %v269, 0.0
  %v351 = vmax.f32 %v318, 0.0
  %v352 = vmax.f32 %v271, 0.0
  %v353 = vmax.f32 %v320, 0.0
  %v354 = vld [vmem:[%s1] sm:$0xff]
  %v355 = vld [vmem:[%s1 + $0x8] sm:$0xff]
  %v356 = vld [vmem:[%s1 + $0x10] sm:$0xff]
  %v357 = vld [vmem:[%s1 + $0x18] sm:$0xff]
  %v358 = vld [vmem:[%s1 + $0x20] sm:$0xff]
  %v359 = vld [vmem:[%s1 + $0x28] sm:$0xff]
  %v360 = vld [vmem:[%s1 + $0x30] sm:$0xff]
  %v361 = vld [vmem:[%s1 + $0x38] sm:$0xff]
  %v362 = vld [vmem:[%s1 + $0x40] sm:$0xff]
  %v363 = vld [vmem:[%s1 + $0x48] sm:$0xff]
  %v364 = vld [vmem:[%s1 + $0x50] sm:$0xff]
  %v365 = vld [vmem:[%s1 + $0x58] sm:$0xff]
  %v366 = vld [vmem:[%s1 + $0x60] sm:$0xff]
  %v367 = vld [vmem:[%s1 + $0x68] sm:$0xff]
  %v368 = vld [vmem:[%s1 + $0x70] sm:$0xff]
  %v369 = vld [vmem:[%s1 + $0x78] sm:$0xff]
  %v370 = vrot.slane %v322, 7
  %v371 = vrot.slane %v323, 7
  %v372 = vrot.slane %v324, 7
  %v373 = vrot.slane %v325, 7
  %v374 = vrot.slane %v326, 7
  %v375 = vrot.slane %v327, 7
  %v376 = vrot.slane %v328, 7
  %v377 = vrot.slane %v329, 7
  %v378 = vrot.slane %v330, 7
  %v379 = vrot.slane %v331, 7
  %v380 = vrot.slane %v332, 7
  %v381 = vrot.slane %v333, 7
  %v382 = vrot.slane %v334, 7
  %v383 = vrot.slane %v335, 7
  %v384 = vrot.slane %v336, 7
  %v385 = vrot.slane %v337, 7
  %v386 = vrot.slane %v338, 7
  %v387 = vrot.slane %v339, 7
  %v388 = vrot.slane %v340, 7
  %v389 = vrot.slane %v341, 7
  %v390 = vrot.slane %v342, 7
  %v391 = vrot.slane %v343, 7
  %v392 = vrot.slane %v344, 7
  %v393 = vrot.slane %v345, 7
  %v394 = vrot.slane %v346, 7
  %v395 = vrot.slane %v347, 7
  %v396 = vrot.slane %v348, 7
  %v397 = vrot.slane %v349, 7
  %v398 = vrot.slane %v350, 7
  %v399 = vrot.slane %v351, 7
  %v400 = vrot.slane %v352, 7
  %v401 = vrot.slane %v353, 7
  %v402 = vlaneseq
  %v403 = vshrl.u32 %v402, 7
  %vm404 = vcmp.lt.s32.totalorder %v403, 1
  %v405 = vsel %vm404, %v398, %v400
  %v406 = vsel %vm404, %v399, %v401
  %v407 = vsel %vm404, %v396, %v398
  %v408 = vsel %vm404, %v397, %v399
  %v409 = vsel %vm404, %v394, %v396
  %v410 = vsel %vm404, %v395, %v397
  %v411 = vsel %vm404, %v392, %v394
  %v412 = vsel %vm404, %v393, %v395
  %v413 = vsel %vm404, %v390, %v392
  %v414 = vsel %vm404, %v391, %v393
  %v415 = vsel %vm404, %v388, %v390
  %v416 = vsel %vm404, %v389, %v391
  %v417 = vsel %vm404, %v386, %v388
  %v418 = vsel %vm404, %v387, %v389
  %v419 = vsel %vm404, %v384, %v386
  %v420 = vsel %vm404, %v385, %v387
  %v421 = vsel %vm404, %v382, %v384
  %v422 = vsel %vm404, %v383, %v385
  %v423 = vsel %vm404, %v380, %v382
  %v424 = vsel %vm404, %v381, %v383
  %v425 = vsel %vm404, %v378, %v380
  %v426 = vsel %vm404, %v379, %v381
  %v427 = vsel %vm404, %v376, %v378
  %v428 = vsel %vm404, %v377, %v379
  %v429 = vsel %vm404, %v374, %v376
  %v430 = vsel %vm404, %v375, %v377
  %v431 = vsel %vm404, %v372, %v374
  %v432 = vsel %vm404, %v373, %v375
  %v433 = vsel %vm404, %v370, %v372
  %v434 = vsel %vm404, %v371, %v373
  %v435 = vsel %vm404, %v400, %v370
  %v436 = vsel %vm404, %v401, %v371
  %438 = vset.pattern.permute.xlu0 0
  %439 = vperm.xlu0 %438, %v354
  %v440 = vpop.permute.xlu0 %439
  %443 = vset.pattern.permute.xlu0 0
  %444 = vperm.xlu0 %443, %v355
  %v445 = vpop.permute.xlu0 %444
  %448 = vset.pattern.permute.xlu0 0
  %449 = vperm.xlu0 %448, %v356
  %v450 = vpop.permute.xlu0 %449
  %453 = vset.pattern.permute.xlu0 0
  %454 = vperm.xlu0 %453, %v357
  %v455 = vpop.permute.xlu0 %454
  %458 = vset.pattern.permute.xlu0 0
  %459 = vperm.xlu0 %458, %v358
  %v460 = vpop.permute.xlu0 %459
  %463 = vset.pattern.permute.xlu0 0
  %464 = vperm.xlu0 %463, %v359
  %v465 = vpop.permute.xlu0 %464
  %468 = vset.pattern.permute.xlu0 0
  %469 = vperm.xlu0 %468, %v360
  %v470 = vpop.permute.xlu0 %469
  %473 = vset.pattern.permute.xlu0 0
  %474 = vperm.xlu0 %473, %v361
  %v475 = vpop.permute.xlu0 %474
  %478 = vset.pattern.permute.xlu0 0
  %479 = vperm.xlu0 %478, %v362
  %v480 = vpop.permute.xlu0 %479
  %483 = vset.pattern.permute.xlu0 0
  %484 = vperm.xlu0 %483, %v363
  %v485 = vpop.permute.xlu0 %484
  %488 = vset.pattern.permute.xlu0 0
  %489 = vperm.xlu0 %488, %v364
  %v490 = vpop.permute.xlu0 %489
  %493 = vset.pattern.permute.xlu0 0
  %494 = vperm.xlu0 %493, %v365
  %v495 = vpop.permute.xlu0 %494
  %498 = vset.pattern.permute.xlu0 0
  %499 = vperm.xlu0 %498, %v366
  %v500 = vpop.permute.xlu0 %499
  %503 = vset.pattern.permute.xlu0 0
  %504 = vperm.xlu0 %503, %v367
  %v505 = vpop.permute.xlu0 %504
  %508 = vset.pattern.permute.xlu0 0
  %509 = vperm.xlu0 %508, %v368
  %v510 = vpop.permute.xlu0 %509
  %513 = vset.pattern.permute.xlu0 0
  %514 = vperm.xlu0 %513, %v369
  %v515 = vpop.permute.xlu0 %514
  %v517 = vmul.f32 %v405, %v440
  %v518 = vmul.f32 %v406, %v440
  %v519 = vmul.f32 %v435, %v445
  %v520 = vmul.f32 %v436, %v445
  %v521 = vmul.f32 %v433, %v450
  %v522 = vmul.f32 %v434, %v450
  %v523 = vmul.f32 %v431, %v455
  %v524 = vmul.f32 %v432, %v455
  %v525 = vmul.f32 %v429, %v460
  %v526 = vmul.f32 %v430, %v460
  %v527 = vmul.f32 %v427, %v465
  %v528 = vmul.f32 %v428, %v465
  %v529 = vmul.f32 %v425, %v470
  %v530 = vmul.f32 %v426, %v470
  %v531 = vmul.f32 %v423, %v475
  %v532 = vmul.f32 %v424, %v475
  %v533 = vmul.f32 %v421, %v480
  %v534 = vmul.f32 %v422, %v480
  %v535 = vmul.f32 %v419, %v485
  %v536 = vmul.f32 %v420, %v485
  %v537 = vmul.f32 %v417, %v490
  %v538 = vmul.f32 %v418, %v490
  %v539 = vmul.f32 %v415, %v495
  %v540 = vmul.f32 %v416, %v495
  %v541 = vmul.f32 %v413, %v500
  %v542 = vmul.f32 %v414, %v500
  %v543 = vmul.f32 %v411, %v505
  %v544 = vmul.f32 %v412, %v505
  %v545 = vmul.f32 %v409, %v510
  %v546 = vmul.f32 %v410, %v510
  %v547 = vmul.f32 %v407, %v515
  %v548 = vmul.f32 %v408, %v515
  %v549 = vpack.c.bf16 %v518, %v517
  %v550 = vpack.c.bf16 %v520, %v519
  %v551 = vpack.c.bf16 %v522, %v521
  %v552 = vpack.c.bf16 %v524, %v523
  %v553 = vpack.c.bf16 %v526, %v525
  %v554 = vpack.c.bf16 %v528, %v527
  %v555 = vpack.c.bf16 %v530, %v529
  %v556 = vpack.c.bf16 %v532, %v531
  %v557 = vpack.c.bf16 %v534, %v533
  %v558 = vpack.c.bf16 %v536, %v535
  %v559 = vpack.c.bf16 %v538, %v537
  %v560 = vpack.c.bf16 %v540, %v539
  %v561 = vpack.c.bf16 %v542, %v541
  %v562 = vpack.c.bf16 %v544, %v543
  %v563 = vpack.c.bf16 %v546, %v545
  %v564 = vpack.c.bf16 %v548, %v547
  %565 = vset.pattern.permute.xlu0 1
  %566 = vperm.xlu0 %565, %v354
  %v567 = vpop.permute.xlu0 %566
  %569 = vset.pattern.permute.xlu0 1
  %570 = vperm.xlu0 %569, %v355
  %v571 = vpop.permute.xlu0 %570
  %573 = vset.pattern.permute.xlu0 1
  %574 = vperm.xlu0 %573, %v356
  %v575 = vpop.permute.xlu0 %574
  %577 = vset.pattern.permute.xlu0 1
  %578 = vperm.xlu0 %577, %v357
  %v579 = vpop.permute.xlu0 %578
  %581 = vset.pattern.permute.xlu0 1
  %582 = vperm.xlu0 %581, %v358
  %v583 = vpop.permute.xlu0 %582
  %585 = vset.pattern.permute.xlu0 1
  %586 = vperm.xlu0 %585, %v359
  %v587 = vpop.permute.xlu0 %586
  %589 = vset.pattern.permute.xlu0 1
  %590 = vperm.xlu0 %589, %v360
  %v591 = vpop.permute.xlu0 %590
  %593 = vset.pattern.permute.xlu0 1
  %594 = vperm.xlu0 %593, %v361
  %v595 = vpop.permute.xlu0 %594
  %597 = vset.pattern.permute.xlu0 1
  %598 = vperm.xlu0 %597, %v362
  %v599 = vpop.permute.xlu0 %598
  %601 = vset.pattern.permute.xlu0 1
  %602 = vperm.xlu0 %601, %v363
  %v603 = vpop.permute.xlu0 %602
  %605 = vset.pattern.permute.xlu0 1
  %606 = vperm.xlu0 %605, %v364
  %v607 = vpop.permute.xlu0 %606
  %609 = vset.pattern.permute.xlu0 1
  %610 = vperm.xlu0 %609, %v365
  %v611 = vpop.permute.xlu0 %610
  %613 = vset.pattern.permute.xlu0 1
  %614 = vperm.xlu0 %613, %v366
  %v615 = vpop.permute.xlu0 %614
  %617 = vset.pattern.permute.xlu0 1
  %618 = vperm.xlu0 %617, %v367
  %v619 = vpop.permute.xlu0 %618
  %621 = vset.pattern.permute.xlu0 1
  %622 = vperm.xlu0 %621, %v368
  %v623 = vpop.permute.xlu0 %622
  %625 = vset.pattern.permute.xlu0 1
  %626 = vperm.xlu0 %625, %v369
  %v627 = vpop.permute.xlu0 %626
  %v629 = vmul.f32 %v352, %v567
  %v630 = vmul.f32 %v353, %v567
  %v631 = vmul.f32 %v322, %v571
  %v632 = vmul.f32 %v323, %v571
  %v633 = vmul.f32 %v324, %v575
  %v634 = vmul.f32 %v325, %v575
  %v635 = vmul.f32 %v326, %v579
  %v636 = vmul.f32 %v327, %v579
  %v637 = vmul.f32 %v328, %v583
  %v638 = vmul.f32 %v329, %v583
  %v639 = vmul.f32 %v330, %v587
  %v640 = vmul.f32 %v331, %v587
  %v641 = vmul.f32 %v332, %v591
  %v642 = vmul.f32 %v333, %v591
  %v643 = vmul.f32 %v334, %v595
  %v644 = vmul.f32 %v335, %v595
  %v645 = vmul.f32 %v336, %v599
  %v646 = vmul.f32 %v337, %v599
  %v647 = vmul.f32 %v338, %v603
  %v648 = vmul.f32 %v339, %v603
  %v649 = vmul.f32 %v340, %v607
  %v650 = vmul.f32 %v341, %v607
  %v651 = vmul.f32 %v342, %v611
  %v652 = vmul.f32 %v343, %v611
  %v653 = vmul.f32 %v344, %v615
  %v654 = vmul.f32 %v345, %v615
  %v655 = vmul.f32 %v346, %v619
  %v656 = vmul.f32 %v347, %v619
  %v657 = vmul.f32 %v348, %v623
  %v658 = vmul.f32 %v349, %v623
  %v659 = vmul.f32 %v350, %v627
  %v660 = vmul.f32 %v351, %v627
  %v661 = vpack.c.bf16 %v630, %v629
  %v662 = vpack.c.bf16 %v632, %v631
  %v663 = vpack.c.bf16 %v634, %v633
  %v664 = vpack.c.bf16 %v636, %v635
  %v665 = vpack.c.bf16 %v638, %v637
  %v666 = vpack.c.bf16 %v640, %v639
  %v667 = vpack.c.bf16 %v642, %v641
  %v668 = vpack.c.bf16 %v644, %v643
  %v669 = vpack.c.bf16 %v646, %v645
  %v670 = vpack.c.bf16 %v648, %v647
  %v671 = vpack.c.bf16 %v650, %v649
  %v672 = vpack.c.bf16 %v652, %v651
  %v673 = vpack.c.bf16 %v654, %v653
  %v674 = vpack.c.bf16 %v656, %v655
  %v675 = vpack.c.bf16 %v658, %v657
  %v676 = vpack.c.bf16 %v660, %v659
  %v677 = vrot.slane %v322, 1
  %v678 = vrot.slane %v323, 1
  %v679 = vrot.slane %v324, 1
  %v680 = vrot.slane %v325, 1
  %v681 = vrot.slane %v326, 1
  %v682 = vrot.slane %v327, 1
  %v683 = vrot.slane %v328, 1
  %v684 = vrot.slane %v329, 1
  %v685 = vrot.slane %v330, 1
  %v686 = vrot.slane %v331, 1
  %v687 = vrot.slane %v332, 1
  %v688 = vrot.slane %v333, 1
  %v689 = vrot.slane %v334, 1
  %v690 = vrot.slane %v335, 1
  %v691 = vrot.slane %v336, 1
  %v692 = vrot.slane %v337, 1
  %v693 = vrot.slane %v338, 1
  %v694 = vrot.slane %v339, 1
  %v695 = vrot.slane %v340, 1
  %v696 = vrot.slane %v341, 1
  %v697 = vrot.slane %v342, 1
  %v698 = vrot.slane %v343, 1
  %v699 = vrot.slane %v344, 1
  %v700 = vrot.slane %v345, 1
  %v701 = vrot.slane %v346, 1
  %v702 = vrot.slane %v347, 1
  %v703 = vrot.slane %v348, 1
  %v704 = vrot.slane %v349, 1
  %v705 = vrot.slane %v350, 1
  %v706 = vrot.slane %v351, 1
  %v707 = vrot.slane %v352, 1
  %v708 = vrot.slane %v353, 1
  %vm709 = vcmp.lt.s32.totalorder %v403, 7
  %v710 = vsel %vm709, %v705, %v707
  %v711 = vsel %vm709, %v706, %v708
  %v712 = vsel %vm709, %v703, %v705
  %v713 = vsel %vm709, %v704, %v706
  %v714 = vsel %vm709, %v701, %v703
  %v715 = vsel %vm709, %v702, %v704
  %v716 = vsel %vm709, %v699, %v701
  %v717 = vsel %vm709, %v700, %v702
  %v718 = vsel %vm709, %v697, %v699
  %v719 = vsel %vm709, %v698, %v700
  %v720 = vsel %vm709, %v695, %v697
  %v721 = vsel %vm709, %v696, %v698
  %v722 = vsel %vm709, %v693, %v695
  %v723 = vsel %vm709, %v694, %v696
  %v724 = vsel %vm709, %v691, %v693
  %v725 = vsel %vm709, %v692, %v694
  %v726 = vsel %vm709, %v689, %v691
  %v727 = vsel %vm709, %v690, %v692
  %v728 = vsel %vm709, %v687, %v689
  %v729 = vsel %vm709, %v688, %v690
  %v730 = vsel %vm709, %v685, %v687
  %v731 = vsel %vm709, %v686, %v688
  %v732 = vsel %vm709, %v683, %v685
  %v733 = vsel %vm709, %v684, %v686
  %v734 = vsel %vm709, %v681, %v683
  %v735 = vsel %vm709, %v682, %v684
  %v736 = vsel %vm709, %v679, %v681
  %v737 = vsel %vm709, %v680, %v682
  %v738 = vsel %vm709, %v677, %v679
  %v739 = vsel %vm709, %v678, %v680
  %v740 = vsel %vm709, %v707, %v677
  %v741 = vsel %vm709, %v708, %v678
  %742 = vset.pattern.permute.xlu0 2
  %743 = vperm.xlu0 %742, %v354
  %v744 = vpop.permute.xlu0 %743
  %746 = vset.pattern.permute.xlu0 2
  %747 = vperm.xlu0 %746, %v355
  %v748 = vpop.permute.xlu0 %747
  %750 = vset.pattern.permute.xlu0 2
  %751 = vperm.xlu0 %750, %v356
  %v752 = vpop.permute.xlu0 %751
  %754 = vset.pattern.permute.xlu0 2
  %755 = vperm.xlu0 %754, %v357
  %v756 = vpop.permute.xlu0 %755
  %758 = vset.pattern.permute.xlu0 2
  %759 = vperm.xlu0 %758, %v358
  %v760 = vpop.permute.xlu0 %759
  %762 = vset.pattern.permute.xlu0 2
  %763 = vperm.xlu0 %762, %v359
  %v764 = vpop.permute.xlu0 %763
  %766 = vset.pattern.permute.xlu0 2
  %767 = vperm.xlu0 %766, %v360
  %v768 = vpop.permute.xlu0 %767
  %770 = vset.pattern.permute.xlu0 2
  %771 = vperm.xlu0 %770, %v361
  %v772 = vpop.permute.xlu0 %771
  %774 = vset.pattern.permute.xlu0 2
  %775 = vperm.xlu0 %774, %v362
  %v776 = vpop.permute.xlu0 %775
  %778 = vset.pattern.permute.xlu0 2
  %779 = vperm.xlu0 %778, %v363
  %v780 = vpop.permute.xlu0 %779
  %782 = vset.pattern.permute.xlu0 2
  %783 = vperm.xlu0 %782, %v364
  %v784 = vpop.permute.xlu0 %783
  %786 = vset.pattern.permute.xlu0 2
  %787 = vperm.xlu0 %786, %v365
  %v788 = vpop.permute.xlu0 %787
  %790 = vset.pattern.permute.xlu0 2
  %791 = vperm.xlu0 %790, %v366
  %v792 = vpop.permute.xlu0 %791
  %794 = vset.pattern.permute.xlu0 2
  %795 = vperm.xlu0 %794, %v367
  %v796 = vpop.permute.xlu0 %795
  %798 = vset.pattern.permute.xlu0 2
  %799 = vperm.xlu0 %798, %v368
  %v800 = vpop.permute.xlu0 %799
  %802 = vset.pattern.permute.xlu0 2
  %803 = vperm.xlu0 %802, %v369
  %v804 = vpop.permute.xlu0 %803
  %v806 = vmul.f32 %v740, %v744
  %v807 = vmul.f32 %v741, %v744
  %v808 = vmul.f32 %v738, %v748
  %v809 = vmul.f32 %v739, %v748
  %v810 = vmul.f32 %v736, %v752
  %v811 = vmul.f32 %v737, %v752
  %v812 = vmul.f32 %v734, %v756
  %v813 = vmul.f32 %v735, %v756
  %v814 = vmul.f32 %v732, %v760
  %v815 = vmul.f32 %v733, %v760
  %v816 = vmul.f32 %v730, %v764
  %v817 = vmul.f32 %v731, %v764
  %v818 = vmul.f32 %v728, %v768
  %v819 = vmul.f32 %v729, %v768
  %v820 = vmul.f32 %v726, %v772
  %v821 = vmul.f32 %v727, %v772
  %v822 = vmul.f32 %v724, %v776
  %v823 = vmul.f32 %v725, %v776
  %v824 = vmul.f32 %v722, %v780
  %v825 = vmul.f32 %v723, %v780
  %v826 = vmul.f32 %v720, %v784
  %v827 = vmul.f32 %v721, %v784
  %v828 = vmul.f32 %v718, %v788
  %v829 = vmul.f32 %v719, %v788
  %v830 = vmul.f32 %v716, %v792
  %v831 = vmul.f32 %v717, %v792
  %v832 = vmul.f32 %v714, %v796
  %v833 = vmul.f32 %v715, %v796
  %v834 = vmul.f32 %v712, %v800
  %v835 = vmul.f32 %v713, %v800
  %v836 = vmul.f32 %v710, %v804
  %v837 = vmul.f32 %v711, %v804
  %v838 = vpack.c.bf16 %v807, %v806
  %v839 = vpack.c.bf16 %v809, %v808
  %v840 = vpack.c.bf16 %v811, %v810
  %v841 = vpack.c.bf16 %v813, %v812
  %v842 = vpack.c.bf16 %v815, %v814
  %v843 = vpack.c.bf16 %v817, %v816
  %v844 = vpack.c.bf16 %v819, %v818
  %v845 = vpack.c.bf16 %v821, %v820
  %v846 = vpack.c.bf16 %v823, %v822
  %v847 = vpack.c.bf16 %v825, %v824
  %v848 = vpack.c.bf16 %v827, %v826
  %v849 = vpack.c.bf16 %v829, %v828
  %v850 = vpack.c.bf16 %v831, %v830
  %v851 = vpack.c.bf16 %v833, %v832
  %v852 = vpack.c.bf16 %v835, %v834
  %v853 = vpack.c.bf16 %v837, %v836
  %854 = vset.pattern.permute.xlu0 3
  %855 = vperm.xlu0 %854, %v354
  %v856 = vpop.permute.xlu0 %855
  %858 = vset.pattern.permute.xlu0 3
  %859 = vperm.xlu0 %858, %v355
  %v860 = vpop.permute.xlu0 %859
  %862 = vset.pattern.permute.xlu0 3
  %863 = vperm.xlu0 %862, %v356
  %v864 = vpop.permute.xlu0 %863
  %866 = vset.pattern.permute.xlu0 3
  %867 = vperm.xlu0 %866, %v357
  %v868 = vpop.permute.xlu0 %867
  %870 = vset.pattern.permute.xlu0 3
  %871 = vperm.xlu0 %870, %v358
  %v872 = vpop.permute.xlu0 %871
  %874 = vset.pattern.permute.xlu0 3
  %875 = vperm.xlu0 %874, %v359
  %v876 = vpop.permute.xlu0 %875
  %878 = vset.pattern.permute.xlu0 3
  %879 = vperm.xlu0 %878, %v360
  %v880 = vpop.permute.xlu0 %879
  %882 = vset.pattern.permute.xlu0 3
  %883 = vperm.xlu0 %882, %v361
  %v884 = vpop.permute.xlu0 %883
  %886 = vset.pattern.permute.xlu0 3
  %887 = vperm.xlu0 %886, %v362
  %v888 = vpop.permute.xlu0 %887
  %890 = vset.pattern.permute.xlu0 3
  %891 = vperm.xlu0 %890, %v363
  %v892 = vpop.permute.xlu0 %891
  %894 = vset.pattern.permute.xlu0 3
  %895 = vperm.xlu0 %894, %v364
  %v896 = vpop.permute.xlu0 %895
  %898 = vset.pattern.permute.xlu0 3
  %899 = vperm.xlu0 %898, %v365
  %v900 = vpop.permute.xlu0 %899
  %902 = vset.pattern.permute.xlu0 3
  %903 = vperm.xlu0 %902, %v366
  %v904 = vpop.permute.xlu0 %903
  %906 = vset.pattern.permute.xlu0 3
  %907 = vperm.xlu0 %906, %v367
  %v908 = vpop.permute.xlu0 %907
  %910 = vset.pattern.permute.xlu0 3
  %911 = vperm.xlu0 %910, %v368
  %v912 = vpop.permute.xlu0 %911
  %914 = vset.pattern.permute.xlu0 3
  %915 = vperm.xlu0 %914, %v369
  %v916 = vpop.permute.xlu0 %915
  %v918 = vmul.f32 %v435, %v856
  %v919 = vmul.f32 %v436, %v856
  %v920 = vmul.f32 %v433, %v860
  %v921 = vmul.f32 %v434, %v860
  %v922 = vmul.f32 %v431, %v864
  %v923 = vmul.f32 %v432, %v864
  %v924 = vmul.f32 %v429, %v868
  %v925 = vmul.f32 %v430, %v868
  %v926 = vmul.f32 %v427, %v872
  %v927 = vmul.f32 %v428, %v872
  %v928 = vmul.f32 %v425, %v876
  %v929 = vmul.f32 %v426, %v876
  %v930 = vmul.f32 %v423, %v880
  %v931 = vmul.f32 %v424, %v880
  %v932 = vmul.f32 %v421, %v884
  %v933 = vmul.f32 %v422, %v884
  %v934 = vmul.f32 %v419, %v888
  %v935 = vmul.f32 %v420, %v888
  %v936 = vmul.f32 %v417, %v892
  %v937 = vmul.f32 %v418, %v892
  %v938 = vmul.f32 %v415, %v896
  %v939 = vmul.f32 %v416, %v896
  %v940 = vmul.f32 %v413, %v900
  %v941 = vmul.f32 %v414, %v900
  %v942 = vmul.f32 %v411, %v904
  %v943 = vmul.f32 %v412, %v904
  %v944 = vmul.f32 %v409, %v908
  %v945 = vmul.f32 %v410, %v908
  %v946 = vmul.f32 %v407, %v912
  %v947 = vmul.f32 %v408, %v912
  %v948 = vmul.f32 %v405, %v916
  %v949 = vmul.f32 %v406, %v916
  %v950 = vpack.c.bf16 %v919, %v918
  %v951 = vpack.c.bf16 %v921, %v920
  %v952 = vpack.c.bf16 %v923, %v922
  %v953 = vpack.c.bf16 %v925, %v924
  %v954 = vpack.c.bf16 %v927, %v926
  %v955 = vpack.c.bf16 %v929, %v928
  %v956 = vpack.c.bf16 %v931, %v930
  %v957 = vpack.c.bf16 %v933, %v932
  %v958 = vpack.c.bf16 %v935, %v934
  %v959 = vpack.c.bf16 %v937, %v936
  %v960 = vpack.c.bf16 %v939, %v938
  %v961 = vpack.c.bf16 %v941, %v940
  %v962 = vpack.c.bf16 %v943, %v942
  %v963 = vpack.c.bf16 %v945, %v944
  %v964 = vpack.c.bf16 %v947, %v946
  %v965 = vpack.c.bf16 %v949, %v948
  %966 = vset.pattern.permute.xlu0 4
  %967 = vperm.xlu0 %966, %v354
  %v968 = vpop.permute.xlu0 %967
  %970 = vset.pattern.permute.xlu0 4
  %971 = vperm.xlu0 %970, %v355
  %v972 = vpop.permute.xlu0 %971
  %974 = vset.pattern.permute.xlu0 4
  %975 = vperm.xlu0 %974, %v356
  %v976 = vpop.permute.xlu0 %975
  %978 = vset.pattern.permute.xlu0 4
  %979 = vperm.xlu0 %978, %v357
  %v980 = vpop.permute.xlu0 %979
  %982 = vset.pattern.permute.xlu0 4
  %983 = vperm.xlu0 %982, %v358
  %v984 = vpop.permute.xlu0 %983
  %986 = vset.pattern.permute.xlu0 4
  %987 = vperm.xlu0 %986, %v359
  %v988 = vpop.permute.xlu0 %987
  %990 = vset.pattern.permute.xlu0 4
  %991 = vperm.xlu0 %990, %v360
  %v992 = vpop.permute.xlu0 %991
  %994 = vset.pattern.permute.xlu0 4
  %995 = vperm.xlu0 %994, %v361
  %v996 = vpop.permute.xlu0 %995
  %998 = vset.pattern.permute.xlu0 4
  %999 = vperm.xlu0 %998, %v362
  %v1000 = vpop.permute.xlu0 %999
  %1002 = vset.pattern.permute.xlu0 4
  %1003 = vperm.xlu0 %1002, %v363
  %v1004 = vpop.permute.xlu0 %1003
  %1006 = vset.pattern.permute.xlu0 4
  %1007 = vperm.xlu0 %1006, %v364
  %v1008 = vpop.permute.xlu0 %1007
  %1010 = vset.pattern.permute.xlu0 4
  %1011 = vperm.xlu0 %1010, %v365
  %v1012 = vpop.permute.xlu0 %1011
  %1014 = vset.pattern.permute.xlu0 4
  %1015 = vperm.xlu0 %1014, %v366
  %v1016 = vpop.permute.xlu0 %1015
  %1018 = vset.pattern.permute.xlu0 4
  %1019 = vperm.xlu0 %1018, %v367
  %v1020 = vpop.permute.xlu0 %1019
  %1022 = vset.pattern.permute.xlu0 4
  %1023 = vperm.xlu0 %1022, %v368
  %v1024 = vpop.permute.xlu0 %1023
  %1026 = vset.pattern.permute.xlu0 4
  %1027 = vperm.xlu0 %1026, %v369
  %v1028 = vpop.permute.xlu0 %1027
  %v1030 = vmul.f32 %v322, %v968
  %v1031 = vmul.f32 %v323, %v968
  %v1032 = vmul.f32 %v324, %v972
  %v1033 = vmul.f32 %v325, %v972
  %v1034 = vmul.f32 %v326, %v976
  %v1035 = vmul.f32 %v327, %v976
  %v1036 = vmul.f32 %v328, %v980
  %v1037 = vmul.f32 %v329, %v980
  %v1038 = vmul.f32 %v330, %v984
  %v1039 = vmul.f32 %v331, %v984
  %v1040 = vmul.f32 %v332, %v988
  %v1041 = vmul.f32 %v333, %v988
  %v1042 = vmul.f32 %v334, %v992
  %v1043 = vmul.f32 %v335, %v992
  %v1044 = vmul.f32 %v336, %v996
  %v1045 = vmul.f32 %v337, %v996
  %v1046 = vmul.f32 %v338, %v1000
  %v1047 = vmul.f32 %v339, %v1000
  %v1048 = vmul.f32 %v340, %v1004
  %v1049 = vmul.f32 %v341, %v1004
  %v1050 = vmul.f32 %v342, %v1008
  %v1051 = vmul.f32 %v343, %v1008
  %v1052 = vmul.f32 %v344, %v1012
  %v1053 = vmul.f32 %v345, %v1012
  %v1054 = vmul.f32 %v346, %v1016
  %v1055 = vmul.f32 %v347, %v1016
  %v1056 = vmul.f32 %v348, %v1020
  %v1057 = vmul.f32 %v349, %v1020
  %v1058 = vmul.f32 %v350, %v1024
  %v1059 = vmul.f32 %v351, %v1024
  %v1060 = vmul.f32 %v352, %v1028
  %v1061 = vmul.f32 %v353, %v1028
  %v1062 = vpack.c.bf16 %v1031, %v1030
  %v1063 = vpack.c.bf16 %v1033, %v1032
  %v1064 = vpack.c.bf16 %v1035, %v1034
  %v1065 = vpack.c.bf16 %v1037, %v1036
  %v1066 = vpack.c.bf16 %v1039, %v1038
  %v1067 = vpack.c.bf16 %v1041, %v1040
  %v1068 = vpack.c.bf16 %v1043, %v1042
  %v1069 = vpack.c.bf16 %v1045, %v1044
  %v1070 = vpack.c.bf16 %v1047, %v1046
  %v1071 = vpack.c.bf16 %v1049, %v1048
  %v1072 = vpack.c.bf16 %v1051, %v1050
  %v1073 = vpack.c.bf16 %v1053, %v1052
  %v1074 = vpack.c.bf16 %v1055, %v1054
  %v1075 = vpack.c.bf16 %v1057, %v1056
  %v1076 = vpack.c.bf16 %v1059, %v1058
  %v1077 = vpack.c.bf16 %v1061, %v1060
  %1078 = vset.pattern.permute.xlu0 5
  %1079 = vperm.xlu0 %1078, %v354
  %v1080 = vpop.permute.xlu0 %1079
  %1082 = vset.pattern.permute.xlu0 5
  %1083 = vperm.xlu0 %1082, %v355
  %v1084 = vpop.permute.xlu0 %1083
  %1086 = vset.pattern.permute.xlu0 5
  %1087 = vperm.xlu0 %1086, %v356
  %v1088 = vpop.permute.xlu0 %1087
  %1090 = vset.pattern.permute.xlu0 5
  %1091 = vperm.xlu0 %1090, %v357
  %v1092 = vpop.permute.xlu0 %1091
  %1094 = vset.pattern.permute.xlu0 5
  %1095 = vperm.xlu0 %1094, %v358
  %v1096 = vpop.permute.xlu0 %1095
  %1098 = vset.pattern.permute.xlu0 5
  %1099 = vperm.xlu0 %1098, %v359
  %v1100 = vpop.permute.xlu0 %1099
  %1102 = vset.pattern.permute.xlu0 5
  %1103 = vperm.xlu0 %1102, %v360
  %v1104 = vpop.permute.xlu0 %1103
  %1106 = vset.pattern.permute.xlu0 5
  %1107 = vperm.xlu0 %1106, %v361
  %v1108 = vpop.permute.xlu0 %1107
  %1110 = vset.pattern.permute.xlu0 5
  %1111 = vperm.xlu0 %1110, %v362
  %v1112 = vpop.permute.xlu0 %1111
  %1114 = vset.pattern.permute.xlu0 5
  %1115 = vperm.xlu0 %1114, %v363
  %v1116 = vpop.permute.xlu0 %1115
  %1118 = vset.pattern.permute.xlu0 5
  %1119 = vperm.xlu0 %1118, %v364
  %v1120 = vpop.permute.xlu0 %1119
  %1122 = vset.pattern.permute.xlu0 5
  %1123 = vperm.xlu0 %1122, %v365
  %v1124 = vpop.permute.xlu0 %1123
  %1126 = vset.pattern.permute.xlu0 5
  %1127 = vperm.xlu0 %1126, %v366
  %v1128 = vpop.permute.xlu0 %1127
  %1130 = vset.pattern.permute.xlu0 5
  %1131 = vperm.xlu0 %1130, %v367
  %v1132 = vpop.permute.xlu0 %1131
  %1134 = vset.pattern.permute.xlu0 5
  %1135 = vperm.xlu0 %1134, %v368
  %v1136 = vpop.permute.xlu0 %1135
  %1138 = vset.pattern.permute.xlu0 5
  %1139 = vperm.xlu0 %1138, %v369
  %v1140 = vpop.permute.xlu0 %1139
  %v1142 = vmul.f32 %v738, %v1080
  %v1143 = vmul.f32 %v739, %v1080
  %v1144 = vmul.f32 %v736, %v1084
  %v1145 = vmul.f32 %v737, %v1084
  %v1146 = vmul.f32 %v734, %v1088
  %v1147 = vmul.f32 %v735, %v1088
  %v1148 = vmul.f32 %v732, %v1092
  %v1149 = vmul.f32 %v733, %v1092
  %v1150 = vmul.f32 %v730, %v1096
  %v1151 = vmul.f32 %v731, %v1096
  %v1152 = vmul.f32 %v728, %v1100
  %v1153 = vmul.f32 %v729, %v1100
  %v1154 = vmul.f32 %v726, %v1104
  %v1155 = vmul.f32 %v727, %v1104
  %v1156 = vmul.f32 %v724, %v1108
  %v1157 = vmul.f32 %v725, %v1108
  %v1158 = vmul.f32 %v722, %v1112
  %v1159 = vmul.f32 %v723, %v1112
  %v1160 = vmul.f32 %v720, %v1116
  %v1161 = vmul.f32 %v721, %v1116
  %v1162 = vmul.f32 %v718, %v1120
  %v1163 = vmul.f32 %v719, %v1120
  %v1164 = vmul.f32 %v716, %v1124
  %v1165 = vmul.f32 %v717, %v1124
  %v1166 = vmul.f32 %v714, %v1128
  %v1167 = vmul.f32 %v715, %v1128
  %v1168 = vmul.f32 %v712, %v1132
  %v1169 = vmul.f32 %v713, %v1132
  %v1170 = vmul.f32 %v710, %v1136
  %v1171 = vmul.f32 %v711, %v1136
  %v1172 = vmul.f32 %v740, %v1140
  %v1173 = vmul.f32 %v741, %v1140
  %v1174 = vpack.c.bf16 %v1143, %v1142
  %v1175 = vpack.c.bf16 %v1145, %v1144
  %v1176 = vpack.c.bf16 %v1147, %v1146
  %v1177 = vpack.c.bf16 %v1149, %v1148
  %v1178 = vpack.c.bf16 %v1151, %v1150
  %v1179 = vpack.c.bf16 %v1153, %v1152
  %v1180 = vpack.c.bf16 %v1155, %v1154
  %v1181 = vpack.c.bf16 %v1157, %v1156
  %v1182 = vpack.c.bf16 %v1159, %v1158
  %v1183 = vpack.c.bf16 %v1161, %v1160
  %v1184 = vpack.c.bf16 %v1163, %v1162
  %v1185 = vpack.c.bf16 %v1165, %v1164
  %v1186 = vpack.c.bf16 %v1167, %v1166
  %v1187 = vpack.c.bf16 %v1169, %v1168
  %v1188 = vpack.c.bf16 %v1171, %v1170
  %v1189 = vpack.c.bf16 %v1173, %v1172
  %1190 = vset.pattern.permute.xlu0 6
  %1191 = vperm.xlu0 %1190, %v354
  %v1192 = vpop.permute.xlu0 %1191
  %1194 = vset.pattern.permute.xlu0 6
  %1195 = vperm.xlu0 %1194, %v355
  %v1196 = vpop.permute.xlu0 %1195
  %1198 = vset.pattern.permute.xlu0 6
  %1199 = vperm.xlu0 %1198, %v356
  %v1200 = vpop.permute.xlu0 %1199
  %1202 = vset.pattern.permute.xlu0 6
  %1203 = vperm.xlu0 %1202, %v357
  %v1204 = vpop.permute.xlu0 %1203
  %1206 = vset.pattern.permute.xlu0 6
  %1207 = vperm.xlu0 %1206, %v358
  %v1208 = vpop.permute.xlu0 %1207
  %1210 = vset.pattern.permute.xlu0 6
  %1211 = vperm.xlu0 %1210, %v359
  %v1212 = vpop.permute.xlu0 %1211
  %1214 = vset.pattern.permute.xlu0 6
  %1215 = vperm.xlu0 %1214, %v360
  %v1216 = vpop.permute.xlu0 %1215
  %1218 = vset.pattern.permute.xlu0 6
  %1219 = vperm.xlu0 %1218, %v361
  %v1220 = vpop.permute.xlu0 %1219
  %1222 = vset.pattern.permute.xlu0 6
  %1223 = vperm.xlu0 %1222, %v362
  %v1224 = vpop.permute.xlu0 %1223
  %1226 = vset.pattern.permute.xlu0 6
  %1227 = vperm.xlu0 %1226, %v363
  %v1228 = vpop.permute.xlu0 %1227
  %1230 = vset.pattern.permute.xlu0 6
  %1231 = vperm.xlu0 %1230, %v364
  %v1232 = vpop.permute.xlu0 %1231
  %1234 = vset.pattern.permute.xlu0 6
  %1235 = vperm.xlu0 %1234, %v365
  %v1236 = vpop.permute.xlu0 %1235
  %1238 = vset.pattern.permute.xlu0 6
  %1239 = vperm.xlu0 %1238, %v366
  %v1240 = vpop.permute.xlu0 %1239
  %1242 = vset.pattern.permute.xlu0 6
  %1243 = vperm.xlu0 %1242, %v367
  %v1244 = vpop.permute.xlu0 %1243
  %1246 = vset.pattern.permute.xlu0 6
  %1247 = vperm.xlu0 %1246, %v368
  %v1248 = vpop.permute.xlu0 %1247
  %1250 = vset.pattern.permute.xlu0 6
  %1251 = vperm.xlu0 %1250, %v369
  %v1252 = vpop.permute.xlu0 %1251
  %v1254 = vmul.f32 %v433, %v1192
  %v1255 = vmul.f32 %v434, %v1192
  %v1256 = vmul.f32 %v431, %v1196
  %v1257 = vmul.f32 %v432, %v1196
  %v1258 = vmul.f32 %v429, %v1200
  %v1259 = vmul.f32 %v430, %v1200
  %v1260 = vmul.f32 %v427, %v1204
  %v1261 = vmul.f32 %v428, %v1204
  %v1262 = vmul.f32 %v425, %v1208
  %v1263 = vmul.f32 %v426, %v1208
  %v1264 = vmul.f32 %v423, %v1212
  %v1265 = vmul.f32 %v424, %v1212
  %v1266 = vmul.f32 %v421, %v1216
  %v1267 = vmul.f32 %v422, %v1216
  %v1268 = vmul.f32 %v419, %v1220
  %v1269 = vmul.f32 %v420, %v1220
  %v1270 = vmul.f32 %v417, %v1224
  %v1271 = vmul.f32 %v418, %v1224
  %v1272 = vmul.f32 %v415, %v1228
  %v1273 = vmul.f32 %v416, %v1228
  %v1274 = vmul.f32 %v413, %v1232
  %v1275 = vmul.f32 %v414, %v1232
  %v1276 = vmul.f32 %v411, %v1236
  %v1277 = vmul.f32 %v412, %v1236
  %v1278 = vmul.f32 %v409, %v1240
  %v1279 = vmul.f32 %v410, %v1240
  %v1280 = vmul.f32 %v407, %v1244
  %v1281 = vmul.f32 %v408, %v1244
  %v1282 = vmul.f32 %v405, %v1248
  %v1283 = vmul.f32 %v406, %v1248
  %v1284 = vmul.f32 %v435, %v1252
  %v1285 = vmul.f32 %v436, %v1252
  %v1286 = vpack.c.bf16 %v1255, %v1254
  %v1287 = vpack.c.bf16 %v1257, %v1256
  %v1288 = vpack.c.bf16 %v1259, %v1258
  %v1289 = vpack.c.bf16 %v1261, %v1260
  %v1290 = vpack.c.bf16 %v1263, %v1262
  %v1291 = vpack.c.bf16 %v1265, %v1264
  %v1292 = vpack.c.bf16 %v1267, %v1266
  %v1293 = vpack.c.bf16 %v1269, %v1268
  %v1294 = vpack.c.bf16 %v1271, %v1270
  %v1295 = vpack.c.bf16 %v1273, %v1272
  %v1296 = vpack.c.bf16 %v1275, %v1274
  %v1297 = vpack.c.bf16 %v1277, %v1276
  %v1298 = vpack.c.bf16 %v1279, %v1278
  %v1299 = vpack.c.bf16 %v1281, %v1280
  %v1300 = vpack.c.bf16 %v1283, %v1282
  %v1301 = vpack.c.bf16 %v1285, %v1284
  %1302 = vset.pattern.permute.xlu0 7
  %1303 = vperm.xlu0 %1302, %v354
  %v1304 = vpop.permute.xlu0 %1303
  %1306 = vset.pattern.permute.xlu0 7
  %1307 = vperm.xlu0 %1306, %v355
  %v1308 = vpop.permute.xlu0 %1307
  %1310 = vset.pattern.permute.xlu0 7
  %1311 = vperm.xlu0 %1310, %v356
  %v1312 = vpop.permute.xlu0 %1311
  %1314 = vset.pattern.permute.xlu0 7
  %1315 = vperm.xlu0 %1314, %v357
  %v1316 = vpop.permute.xlu0 %1315
  %1318 = vset.pattern.permute.xlu0 7
  %1319 = vperm.xlu0 %1318, %v358
  %v1320 = vpop.permute.xlu0 %1319
  %1322 = vset.pattern.permute.xlu0 7
  %1323 = vperm.xlu0 %1322, %v359
  %v1324 = vpop.permute.xlu0 %1323
  %1326 = vset.pattern.permute.xlu0 7
  %1327 = vperm.xlu0 %1326, %v360
  %v1328 = vpop.permute.xlu0 %1327
  %1330 = vset.pattern.permute.xlu0 7
  %1331 = vperm.xlu0 %1330, %v361
  %v1332 = vpop.permute.xlu0 %1331
  %1334 = vset.pattern.permute.xlu0 7
  %1335 = vperm.xlu0 %1334, %v362
  %v1336 = vpop.permute.xlu0 %1335
  %1338 = vset.pattern.permute.xlu0 7
  %1339 = vperm.xlu0 %1338, %v363
  %v1340 = vpop.permute.xlu0 %1339
  %1342 = vset.pattern.permute.xlu0 7
  %1343 = vperm.xlu0 %1342, %v364
  %v1344 = vpop.permute.xlu0 %1343
  %1346 = vset.pattern.permute.xlu0 7
  %1347 = vperm.xlu0 %1346, %v365
  %v1348 = vpop.permute.xlu0 %1347
  %1350 = vset.pattern.permute.xlu0 7
  %1351 = vperm.xlu0 %1350, %v366
  %v1352 = vpop.permute.xlu0 %1351
  %1354 = vset.pattern.permute.xlu0 7
  %1355 = vperm.xlu0 %1354, %v367
  %v1356 = vpop.permute.xlu0 %1355
  %1358 = vset.pattern.permute.xlu0 7
  %1359 = vperm.xlu0 %1358, %v368
  %v1360 = vpop.permute.xlu0 %1359
  %1362 = vset.pattern.permute.xlu0 7
  %1363 = vperm.xlu0 %1362, %v369
  %v1364 = vpop.permute.xlu0 %1363
  %v1366 = vmul.f32 %v324, %v1304
  %v1367 = vmul.f32 %v325, %v1304
  %v1368 = vmul.f32 %v326, %v1308
  %v1369 = vmul.f32 %v327, %v1308
  %v1370 = vmul.f32 %v328, %v1312
  %v1371 = vmul.f32 %v329, %v1312
  %v1372 = vmul.f32 %v330, %v1316
  %v1373 = vmul.f32 %v331, %v1316
  %v1374 = vmul.f32 %v332, %v1320
  %v1375 = vmul.f32 %v333, %v1320
  %v1376 = vmul.f32 %v334, %v1324
  %v1377 = vmul.f32 %v335, %v1324
  %v1378 = vmul.f32 %v336, %v1328
  %v1379 = vmul.f32 %v337, %v1328
  %v1380 = vmul.f32 %v338, %v1332
  %v1381 = vmul.f32 %v339, %v1332
  %v1382 = vmul.f32 %v340, %v1336
  %v1383 = vmul.f32 %v341, %v1336
  %v1384 = vmul.f32 %v342, %v1340
  %v1385 = vmul.f32 %v343, %v1340
  %v1386 = vmul.f32 %v344, %v1344
  %v1387 = vmul.f32 %v345, %v1344
  %v1388 = vmul.f32 %v346, %v1348
  %v1389 = vmul.f32 %v347, %v1348
  %v1390 = vmul.f32 %v348, %v1352
  %v1391 = vmul.f32 %v349, %v1352
  %v1392 = vmul.f32 %v350, %v1356
  %v1393 = vmul.f32 %v351, %v1356
  %v1394 = vmul.f32 %v352, %v1360
  %v1395 = vmul.f32 %v353, %v1360
  %v1396 = vmul.f32 %v322, %v1364
  %v1397 = vmul.f32 %v323, %v1364
  %v1398 = vpack.c.bf16 %v1367, %v1366
  %v1399 = vpack.c.bf16 %v1369, %v1368
  %v1400 = vpack.c.bf16 %v1371, %v1370
  %v1401 = vpack.c.bf16 %v1373, %v1372
  %v1402 = vpack.c.bf16 %v1375, %v1374
  %v1403 = vpack.c.bf16 %v1377, %v1376
  %v1404 = vpack.c.bf16 %v1379, %v1378
  %v1405 = vpack.c.bf16 %v1381, %v1380
  %v1406 = vpack.c.bf16 %v1383, %v1382
  %v1407 = vpack.c.bf16 %v1385, %v1384
  %v1408 = vpack.c.bf16 %v1387, %v1386
  %v1409 = vpack.c.bf16 %v1389, %v1388
  %v1410 = vpack.c.bf16 %v1391, %v1390
  %v1411 = vpack.c.bf16 %v1393, %v1392
  %v1412 = vpack.c.bf16 %v1395, %v1394
  %v1413 = vpack.c.bf16 %v1397, %v1396
  %1414 = vset.pattern.permute.xlu0 8
  %1415 = vperm.xlu0 %1414, %v354
  %v1416 = vpop.permute.xlu0 %1415
  %1418 = vset.pattern.permute.xlu0 8
  %1419 = vperm.xlu0 %1418, %v355
  %v1420 = vpop.permute.xlu0 %1419
  %1422 = vset.pattern.permute.xlu0 8
  %1423 = vperm.xlu0 %1422, %v356
  %v1424 = vpop.permute.xlu0 %1423
  %1426 = vset.pattern.permute.xlu0 8
  %1427 = vperm.xlu0 %1426, %v357
  %v1428 = vpop.permute.xlu0 %1427
  %1430 = vset.pattern.permute.xlu0 8
  %1431 = vperm.xlu0 %1430, %v358
  %v1432 = vpop.permute.xlu0 %1431
  %1434 = vset.pattern.permute.xlu0 8
  %1435 = vperm.xlu0 %1434, %v359
  %v1436 = vpop.permute.xlu0 %1435
  %1438 = vset.pattern.permute.xlu0 8
  %1439 = vperm.xlu0 %1438, %v360
  %v1440 = vpop.permute.xlu0 %1439
  %1442 = vset.pattern.permute.xlu0 8
  %1443 = vperm.xlu0 %1442, %v361
  %v1444 = vpop.permute.xlu0 %1443
  %1446 = vset.pattern.permute.xlu0 8
  %1447 = vperm.xlu0 %1446, %v362
  %v1448 = vpop.permute.xlu0 %1447
  %1450 = vset.pattern.permute.xlu0 8
  %1451 = vperm.xlu0 %1450, %v363
  %v1452 = vpop.permute.xlu0 %1451
  %1454 = vset.pattern.permute.xlu0 8
  %1455 = vperm.xlu0 %1454, %v364
  %v1456 = vpop.permute.xlu0 %1455
  %1458 = vset.pattern.permute.xlu0 8
  %1459 = vperm.xlu0 %1458, %v365
  %v1460 = vpop.permute.xlu0 %1459
  %1462 = vset.pattern.permute.xlu0 8
  %1463 = vperm.xlu0 %1462, %v366
  %v1464 = vpop.permute.xlu0 %1463
  %1466 = vset.pattern.permute.xlu0 8
  %1467 = vperm.xlu0 %1466, %v367
  %v1468 = vpop.permute.xlu0 %1467
  %1470 = vset.pattern.permute.xlu0 8
  %1471 = vperm.xlu0 %1470, %v368
  %v1472 = vpop.permute.xlu0 %1471
  %1474 = vset.pattern.permute.xlu0 8
  %1475 = vperm.xlu0 %1474, %v369
  %v1476 = vpop.permute.xlu0 %1475
  %v1478 = vmul.f32 %v736, %v1416
  %v1479 = vmul.f32 %v737, %v1416
  %v1480 = vmul.f32 %v734, %v1420
  %v1481 = vmul.f32 %v735, %v1420
  %v1482 = vmul.f32 %v732, %v1424
  %v1483 = vmul.f32 %v733, %v1424
  %v1484 = vmul.f32 %v730, %v1428
  %v1485 = vmul.f32 %v731, %v1428
  %v1486 = vmul.f32 %v728, %v1432
  %v1487 = vmul.f32 %v729, %v1432
  %v1488 = vmul.f32 %v726, %v1436
  %v1489 = vmul.f32 %v727, %v1436
  %v1490 = vmul.f32 %v724, %v1440
  %v1491 = vmul.f32 %v725, %v1440
  %v1492 = vmul.f32 %v722, %v1444
  %v1493 = vmul.f32 %v723, %v1444
  %v1494 = vmul.f32 %v720, %v1448
  %v1495 = vmul.f32 %v721, %v1448
  %v1496 = vmul.f32 %v718, %v1452
  %v1497 = vmul.f32 %v719, %v1452
  %v1498 = vmul.f32 %v716, %v1456
  %v1499 = vmul.f32 %v717, %v1456
  %v1500 = vmul.f32 %v714, %v1460
  %v1501 = vmul.f32 %v715, %v1460
  %v1502 = vmul.f32 %v712, %v1464
  %v1503 = vmul.f32 %v713, %v1464
  %v1504 = vmul.f32 %v710, %v1468
  %v1505 = vmul.f32 %v711, %v1468
  %v1506 = vmul.f32 %v740, %v1472
  %v1507 = vmul.f32 %v741, %v1472
  %v1508 = vmul.f32 %v738, %v1476
  %v1509 = vmul.f32 %v739, %v1476
  %v1510 = vpack.c.bf16 %v1479, %v1478
  %v1511 = vpack.c.bf16 %v1481, %v1480
  %v1512 = vpack.c.bf16 %v1483, %v1482
  %v1513 = vpack.c.bf16 %v1485, %v1484
  %v1514 = vpack.c.bf16 %v1487, %v1486
  %v1515 = vpack.c.bf16 %v1489, %v1488
  %v1516 = vpack.c.bf16 %v1491, %v1490
  %v1517 = vpack.c.bf16 %v1493, %v1492
  %v1518 = vpack.c.bf16 %v1495, %v1494
  %v1519 = vpack.c.bf16 %v1497, %v1496
  %v1520 = vpack.c.bf16 %v1499, %v1498
  %v1521 = vpack.c.bf16 %v1501, %v1500
  %v1522 = vpack.c.bf16 %v1503, %v1502
  %v1523 = vpack.c.bf16 %v1505, %v1504
  %v1524 = vpack.c.bf16 %v1507, %v1506
  %v1525 = vpack.c.bf16 %v1509, %v1508
  %v1542 = vunpack.c.l.b16 %v549
  %v1543 = vunpack.c.h.b16 %v549
  %v1544 = vunpack.c.l.b16 %v550
  %v1545 = vunpack.c.h.b16 %v550
  %v1546 = vunpack.c.l.b16 %v551
  %v1547 = vunpack.c.h.b16 %v551
  %v1548 = vunpack.c.l.b16 %v552
  %v1549 = vunpack.c.h.b16 %v552
  %v1550 = vunpack.c.l.b16 %v553
  %v1551 = vunpack.c.h.b16 %v553
  %v1552 = vunpack.c.l.b16 %v554
  %v1553 = vunpack.c.h.b16 %v554
  %v1554 = vunpack.c.l.b16 %v555
  %v1555 = vunpack.c.h.b16 %v555
  %v1556 = vunpack.c.l.b16 %v556
  %v1557 = vunpack.c.h.b16 %v556
  %v1558 = vunpack.c.l.b16 %v557
  %v1559 = vunpack.c.h.b16 %v557
  %v1560 = vunpack.c.l.b16 %v558
  %v1561 = vunpack.c.h.b16 %v558
  %v1562 = vunpack.c.l.b16 %v559
  %v1563 = vunpack.c.h.b16 %v559
  %v1564 = vunpack.c.l.b16 %v560
  %v1565 = vunpack.c.h.b16 %v560
  %v1566 = vunpack.c.l.b16 %v561
  %v1567 = vunpack.c.h.b16 %v561
  %v1568 = vunpack.c.l.b16 %v562
  %v1569 = vunpack.c.h.b16 %v562
  %v1570 = vunpack.c.l.b16 %v563
  %v1571 = vunpack.c.h.b16 %v563
  %v1572 = vunpack.c.l.b16 %v564
  %v1573 = vunpack.c.h.b16 %v564
  %v1574 = vpack.c.b16 %v1544, %v1542
  %v1575 = vpack.c.b16 %v1545, %v1543
  %v1576 = vpack.c.b16 %v1548, %v1546
  %v1577 = vpack.c.b16 %v1549, %v1547
  %v1578 = vpack.c.b16 %v1552, %v1550
  %v1579 = vpack.c.b16 %v1553, %v1551
  %v1580 = vpack.c.b16 %v1556, %v1554
  %v1581 = vpack.c.b16 %v1557, %v1555
  %v1582 = vpack.c.b16 %v1560, %v1558
  %v1583 = vpack.c.b16 %v1561, %v1559
  %v1584 = vpack.c.b16 %v1564, %v1562
  %v1585 = vpack.c.b16 %v1565, %v1563
  %v1586 = vpack.c.b16 %v1568, %v1566
  %v1587 = vpack.c.b16 %v1569, %v1567
  %v1588 = vpack.c.b16 %v1572, %v1570
  %v1589 = vpack.c.b16 %v1573, %v1571
  %v1622 = vunpack.c.l.b16 %v661
  %v1623 = vunpack.c.h.b16 %v661
  %v1624 = vunpack.c.l.b16 %v662
  %v1625 = vunpack.c.h.b16 %v662
  %v1626 = vunpack.c.l.b16 %v663
  %v1627 = vunpack.c.h.b16 %v663
  %v1628 = vunpack.c.l.b16 %v664
  %v1629 = vunpack.c.h.b16 %v664
  %v1630 = vunpack.c.l.b16 %v665
  %v1631 = vunpack.c.h.b16 %v665
  %v1632 = vunpack.c.l.b16 %v666
  %v1633 = vunpack.c.h.b16 %v666
  %v1634 = vunpack.c.l.b16 %v667
  %v1635 = vunpack.c.h.b16 %v667
  %v1636 = vunpack.c.l.b16 %v668
  %v1637 = vunpack.c.h.b16 %v668
  %v1638 = vunpack.c.l.b16 %v669
  %v1639 = vunpack.c.h.b16 %v669
  %v1640 = vunpack.c.l.b16 %v670
  %v1641 = vunpack.c.h.b16 %v670
  %v1642 = vunpack.c.l.b16 %v671
  %v1643 = vunpack.c.h.b16 %v671
  %v1644 = vunpack.c.l.b16 %v672
  %v1645 = vunpack.c.h.b16 %v672
  %v1646 = vunpack.c.l.b16 %v673
  %v1647 = vunpack.c.h.b16 %v673
  %v1648 = vunpack.c.l.b16 %v674
  %v1649 = vunpack.c.h.b16 %v674
  %v1650 = vunpack.c.l.b16 %v675
  %v1651 = vunpack.c.h.b16 %v675
  %v1652 = vunpack.c.l.b16 %v676
  %v1653 = vunpack.c.h.b16 %v676
  %v1654 = vpack.c.b16 %v1624, %v1622
  %v1655 = vpack.c.b16 %v1625, %v1623
  %v1656 = vpack.c.b16 %v1628, %v1626
  %v1657 = vpack.c.b16 %v1629, %v1627
  %v1658 = vpack.c.b16 %v1632, %v1630
  %v1659 = vpack.c.b16 %v1633, %v1631
  %v1660 = vpack.c.b16 %v1636, %v1634
  %v1661 = vpack.c.b16 %v1637, %v1635
  %v1662 = vpack.c.b16 %v1640, %v1638
  %v1663 = vpack.c.b16 %v1641, %v1639
  %v1664 = vpack.c.b16 %v1644, %v1642
  %v1665 = vpack.c.b16 %v1645, %v1643
  %v1666 = vpack.c.b16 %v1648, %v1646
  %v1667 = vpack.c.b16 %v1649, %v1647
  %v1668 = vpack.c.b16 %v1652, %v1650
  %v1669 = vpack.c.b16 %v1653, %v1651
  %v1702 = vunpack.c.l.b16 %v838
  %v1703 = vunpack.c.h.b16 %v838
  %v1704 = vunpack.c.l.b16 %v839
  %v1705 = vunpack.c.h.b16 %v839
  %v1706 = vunpack.c.l.b16 %v840
  %v1707 = vunpack.c.h.b16 %v840
  %v1708 = vunpack.c.l.b16 %v841
  %v1709 = vunpack.c.h.b16 %v841
  %v1710 = vunpack.c.l.b16 %v842
  %v1711 = vunpack.c.h.b16 %v842
  %v1712 = vunpack.c.l.b16 %v843
  %v1713 = vunpack.c.h.b16 %v843
  %v1714 = vunpack.c.l.b16 %v844
  %v1715 = vunpack.c.h.b16 %v844
  %v1716 = vunpack.c.l.b16 %v845
  %v1717 = vunpack.c.h.b16 %v845
  %v1718 = vunpack.c.l.b16 %v846
  %v1719 = vunpack.c.h.b16 %v846
  %v1720 = vunpack.c.l.b16 %v847
  %v1721 = vunpack.c.h.b16 %v847
  %v1722 = vunpack.c.l.b16 %v848
  %v1723 = vunpack.c.h.b16 %v848
  %v1724 = vunpack.c.l.b16 %v849
  %v1725 = vunpack.c.h.b16 %v849
  %v1726 = vunpack.c.l.b16 %v850
  %v1727 = vunpack.c.h.b16 %v850
  %v1728 = vunpack.c.l.b16 %v851
  %v1729 = vunpack.c.h.b16 %v851
  %v1730 = vunpack.c.l.b16 %v852
  %v1731 = vunpack.c.h.b16 %v852
  %v1732 = vunpack.c.l.b16 %v853
  %v1733 = vunpack.c.h.b16 %v853
  %v1734 = vpack.c.b16 %v1704, %v1702
  %v1735 = vpack.c.b16 %v1705, %v1703
  %v1736 = vpack.c.b16 %v1708, %v1706
  %v1737 = vpack.c.b16 %v1709, %v1707
  %v1738 = vpack.c.b16 %v1712, %v1710
  %v1739 = vpack.c.b16 %v1713, %v1711
  %v1740 = vpack.c.b16 %v1716, %v1714
  %v1741 = vpack.c.b16 %v1717, %v1715
  %v1742 = vpack.c.b16 %v1720, %v1718
  %v1743 = vpack.c.b16 %v1721, %v1719
  %v1744 = vpack.c.b16 %v1724, %v1722
  %v1745 = vpack.c.b16 %v1725, %v1723
  %v1746 = vpack.c.b16 %v1728, %v1726
  %v1747 = vpack.c.b16 %v1729, %v1727
  %v1748 = vpack.c.b16 %v1732, %v1730
  %v1749 = vpack.c.b16 %v1733, %v1731
  %v1782 = vunpack.c.l.b16 %v950
  %v1783 = vunpack.c.h.b16 %v950
  %v1784 = vunpack.c.l.b16 %v951
  %v1785 = vunpack.c.h.b16 %v951
  %v1786 = vunpack.c.l.b16 %v952
  %v1787 = vunpack.c.h.b16 %v952
  %v1788 = vunpack.c.l.b16 %v953
  %v1789 = vunpack.c.h.b16 %v953
  %v1790 = vunpack.c.l.b16 %v954
  %v1791 = vunpack.c.h.b16 %v954
  %v1792 = vunpack.c.l.b16 %v955
  %v1793 = vunpack.c.h.b16 %v955
  %v1794 = vunpack.c.l.b16 %v956
  %v1795 = vunpack.c.h.b16 %v956
  %v1796 = vunpack.c.l.b16 %v957
  %v1797 = vunpack.c.h.b16 %v957
  %v1798 = vunpack.c.l.b16 %v958
  %v1799 = vunpack.c.h.b16 %v958
  %v1800 = vunpack.c.l.b16 %v959
  %v1801 = vunpack.c.h.b16 %v959
  %v1802 = vunpack.c.l.b16 %v960
  %v1803 = vunpack.c.h.b16 %v960
  %v1804 = vunpack.c.l.b16 %v961
  %v1805 = vunpack.c.h.b16 %v961
  %v1806 = vunpack.c.l.b16 %v962
  %v1807 = vunpack.c.h.b16 %v962
  %v1808 = vunpack.c.l.b16 %v963
  %v1809 = vunpack.c.h.b16 %v963
  %v1810 = vunpack.c.l.b16 %v964
  %v1811 = vunpack.c.h.b16 %v964
  %v1812 = vunpack.c.l.b16 %v965
  %v1813 = vunpack.c.h.b16 %v965
  %v1814 = vpack.c.b16 %v1784, %v1782
  %v1815 = vpack.c.b16 %v1785, %v1783
  %v1816 = vpack.c.b16 %v1788, %v1786
  %v1817 = vpack.c.b16 %v1789, %v1787
  %v1818 = vpack.c.b16 %v1792, %v1790
  %v1819 = vpack.c.b16 %v1793, %v1791
  %v1820 = vpack.c.b16 %v1796, %v1794
  %v1821 = vpack.c.b16 %v1797, %v1795
  %v1822 = vpack.c.b16 %v1800, %v1798
  %v1823 = vpack.c.b16 %v1801, %v1799
  %v1824 = vpack.c.b16 %v1804, %v1802
  %v1825 = vpack.c.b16 %v1805, %v1803
  %v1826 = vpack.c.b16 %v1808, %v1806
  %v1827 = vpack.c.b16 %v1809, %v1807
  %v1828 = vpack.c.b16 %v1812, %v1810
  %v1829 = vpack.c.b16 %v1813, %v1811
  %v1862 = vunpack.c.l.b16 %v1062
  %v1863 = vunpack.c.h.b16 %v1062
  %v1864 = vunpack.c.l.b16 %v1063
  %v1865 = vunpack.c.h.b16 %v1063
  %v1866 = vunpack.c.l.b16 %v1064
  %v1867 = vunpack.c.h.b16 %v1064
  %v1868 = vunpack.c.l.b16 %v1065
  %v1869 = vunpack.c.h.b16 %v1065
  %v1870 = vunpack.c.l.b16 %v1066
  %v1871 = vunpack.c.h.b16 %v1066
  %v1872 = vunpack.c.l.b16 %v1067
  %v1873 = vunpack.c.h.b16 %v1067
  %v1874 = vunpack.c.l.b16 %v1068
  %v1875 = vunpack.c.h.b16 %v1068
  %v1876 = vunpack.c.l.b16 %v1069
  %v1877 = vunpack.c.h.b16 %v1069
  %v1878 = vunpack.c.l.b16 %v1070
  %v1879 = vunpack.c.h.b16 %v1070
  %v1880 = vunpack.c.l.b16 %v1071
  %v1881 = vunpack.c.h.b16 %v1071
  %v1882 = vunpack.c.l.b16 %v1072
  %v1883 = vunpack.c.h.b16 %v1072
  %v1884 = vunpack.c.l.b16 %v1073
  %v1885 = vunpack.c.h.b16 %v1073
  %v1886 = vunpack.c.l.b16 %v1074
  %v1887 = vunpack.c.h.b16 %v1074
  %v1888 = vunpack.c.l.b16 %v1075
  %v1889 = vunpack.c.h.b16 %v1075
  %v1890 = vunpack.c.l.b16 %v1076
  %v1891 = vunpack.c.h.b16 %v1076
  %v1892 = vunpack.c.l.b16 %v1077
  %v1893 = vunpack.c.h.b16 %v1077
  %v1894 = vpack.c.b16 %v1864, %v1862
  %v1895 = vpack.c.b16 %v1865, %v1863
  %v1896 = vpack.c.b16 %v1868, %v1866
  %v1897 = vpack.c.b16 %v1869, %v1867
  %v1898 = vpack.c.b16 %v1872, %v1870
  %v1899 = vpack.c.b16 %v1873, %v1871
  %v1900 = vpack.c.b16 %v1876, %v1874
  %v1901 = vpack.c.b16 %v1877, %v1875
  %v1902 = vpack.c.b16 %v1880, %v1878
  %v1903 = vpack.c.b16 %v1881, %v1879
  %v1904 = vpack.c.b16 %v1884, %v1882
  %v1905 = vpack.c.b16 %v1885, %v1883
  %v1906 = vpack.c.b16 %v1888, %v1886
  %v1907 = vpack.c.b16 %v1889, %v1887
  %v1908 = vpack.c.b16 %v1892, %v1890
  %v1909 = vpack.c.b16 %v1893, %v1891
  %v1942 = vunpack.c.l.b16 %v1174
  %v1943 = vunpack.c.h.b16 %v1174
  %v1944 = vunpack.c.l.b16 %v1175
  %v1945 = vunpack.c.h.b16 %v1175
  %v1946 = vunpack.c.l.b16 %v1176
  %v1947 = vunpack.c.h.b16 %v1176
  %v1948 = vunpack.c.l.b16 %v1177
  %v1949 = vunpack.c.h.b16 %v1177
  %v1950 = vunpack.c.l.b16 %v1178
  %v1951 = vunpack.c.h.b16 %v1178
  %v1952 = vunpack.c.l.b16 %v1179
  %v1953 = vunpack.c.h.b16 %v1179
  %v1954 = vunpack.c.l.b16 %v1180
  %v1955 = vunpack.c.h.b16 %v1180
  %v1956 = vunpack.c.l.b16 %v1181
  %v1957 = vunpack.c.h.b16 %v1181
  %v1958 = vunpack.c.l.b16 %v1182
  %v1959 = vunpack.c.h.b16 %v1182
  %v1960 = vunpack.c.l.b16 %v1183
  %v1961 = vunpack.c.h.b16 %v1183
  %v1962 = vunpack.c.l.b16 %v1184
  %v1963 = vunpack.c.h.b16 %v1184
  %v1964 = vunpack.c.l.b16 %v1185
  %v1965 = vunpack.c.h.b16 %v1185
  %v1966 = vunpack.c.l.b16 %v1186
  %v1967 = vunpack.c.h.b16 %v1186
  %v1968 = vunpack.c.l.b16 %v1187
  %v1969 = vunpack.c.h.b16 %v1187
  %v1970 = vunpack.c.l.b16 %v1188
  %v1971 = vunpack.c.h.b16 %v1188
  %v1972 = vunpack.c.l.b16 %v1189
  %v1973 = vunpack.c.h.b16 %v1189
  %v1974 = vpack.c.b16 %v1944, %v1942
  %v1975 = vpack.c.b16 %v1945, %v1943
  %v1976 = vpack.c.b16 %v1948, %v1946
  %v1977 = vpack.c.b16 %v1949, %v1947
  %v1978 = vpack.c.b16 %v1952, %v1950
  %v1979 = vpack.c.b16 %v1953, %v1951
  %v1980 = vpack.c.b16 %v1956, %v1954
  %v1981 = vpack.c.b16 %v1957, %v1955
  %v1982 = vpack.c.b16 %v1960, %v1958
  %v1983 = vpack.c.b16 %v1961, %v1959
  %v1984 = vpack.c.b16 %v1964, %v1962
  %v1985 = vpack.c.b16 %v1965, %v1963
  %v1986 = vpack.c.b16 %v1968, %v1966
  %v1987 = vpack.c.b16 %v1969, %v1967
  %v1988 = vpack.c.b16 %v1972, %v1970
  %v1989 = vpack.c.b16 %v1973, %v1971
  %v2022 = vunpack.c.l.b16 %v1286
  %v2023 = vunpack.c.h.b16 %v1286
  %v2024 = vunpack.c.l.b16 %v1287
  %v2025 = vunpack.c.h.b16 %v1287
  %v2026 = vunpack.c.l.b16 %v1288
  %v2027 = vunpack.c.h.b16 %v1288
  %v2028 = vunpack.c.l.b16 %v1289
  %v2029 = vunpack.c.h.b16 %v1289
  %v2030 = vunpack.c.l.b16 %v1290
  %v2031 = vunpack.c.h.b16 %v1290
  %v2032 = vunpack.c.l.b16 %v1291
  %v2033 = vunpack.c.h.b16 %v1291
  %v2034 = vunpack.c.l.b16 %v1292
  %v2035 = vunpack.c.h.b16 %v1292
  %v2036 = vunpack.c.l.b16 %v1293
  %v2037 = vunpack.c.h.b16 %v1293
  %v2038 = vunpack.c.l.b16 %v1294
  %v2039 = vunpack.c.h.b16 %v1294
  %v2040 = vunpack.c.l.b16 %v1295
  %v2041 = vunpack.c.h.b16 %v1295
  %v2042 = vunpack.c.l.b16 %v1296
  %v2043 = vunpack.c.h.b16 %v1296
  %v2044 = vunpack.c.l.b16 %v1297
  %v2045 = vunpack.c.h.b16 %v1297
  %v2046 = vunpack.c.l.b16 %v1298
  %v2047 = vunpack.c.h.b16 %v1298
  %v2048 = vunpack.c.l.b16 %v1299
  %v2049 = vunpack.c.h.b16 %v1299
  %v2050 = vunpack.c.l.b16 %v1300
  %v2051 = vunpack.c.h.b16 %v1300
  %v2052 = vunpack.c.l.b16 %v1301
  %v2053 = vunpack.c.h.b16 %v1301
  %v2054 = vpack.c.b16 %v2024, %v2022
  %v2055 = vpack.c.b16 %v2025, %v2023
  %v2056 = vpack.c.b16 %v2028, %v2026
  %v2057 = vpack.c.b16 %v2029, %v2027
  %v2058 = vpack.c.b16 %v2032, %v2030
  %v2059 = vpack.c.b16 %v2033, %v2031
  %v2060 = vpack.c.b16 %v2036, %v2034
  %v2061 = vpack.c.b16 %v2037, %v2035
  %v2062 = vpack.c.b16 %v2040, %v2038
  %v2063 = vpack.c.b16 %v2041, %v2039
  %v2064 = vpack.c.b16 %v2044, %v2042
  %v2065 = vpack.c.b16 %v2045, %v2043
  %v2066 = vpack.c.b16 %v2048, %v2046
  %v2067 = vpack.c.b16 %v2049, %v2047
  %v2068 = vpack.c.b16 %v2052, %v2050
  %v2069 = vpack.c.b16 %v2053, %v2051
  %v2102 = vunpack.c.l.b16 %v1398
  %v2103 = vunpack.c.h.b16 %v1398
  %v2104 = vunpack.c.l.b16 %v1399
  %v2105 = vunpack.c.h.b16 %v1399
  %v2106 = vunpack.c.l.b16 %v1400
  %v2107 = vunpack.c.h.b16 %v1400
  %v2108 = vunpack.c.l.b16 %v1401
  %v2109 = vunpack.c.h.b16 %v1401
  %v2110 = vunpack.c.l.b16 %v1402
  %v2111 = vunpack.c.h.b16 %v1402
  %v2112 = vunpack.c.l.b16 %v1403
  %v2113 = vunpack.c.h.b16 %v1403
  %v2114 = vunpack.c.l.b16 %v1404
  %v2115 = vunpack.c.h.b16 %v1404
  %v2116 = vunpack.c.l.b16 %v1405
  %v2117 = vunpack.c.h.b16 %v1405
  %v2118 = vunpack.c.l.b16 %v1406
  %v2119 = vunpack.c.h.b16 %v1406
  %v2120 = vunpack.c.l.b16 %v1407
  %v2121 = vunpack.c.h.b16 %v1407
  %v2122 = vunpack.c.l.b16 %v1408
  %v2123 = vunpack.c.h.b16 %v1408
  %v2124 = vunpack.c.l.b16 %v1409
  %v2125 = vunpack.c.h.b16 %v1409
  %v2126 = vunpack.c.l.b16 %v1410
  %v2127 = vunpack.c.h.b16 %v1410
  %v2128 = vunpack.c.l.b16 %v1411
  %v2129 = vunpack.c.h.b16 %v1411
  %v2130 = vunpack.c.l.b16 %v1412
  %v2131 = vunpack.c.h.b16 %v1412
  %v2132 = vunpack.c.l.b16 %v1413
  %v2133 = vunpack.c.h.b16 %v1413
  %v2134 = vpack.c.b16 %v2104, %v2102
  %v2135 = vpack.c.b16 %v2105, %v2103
  %v2136 = vpack.c.b16 %v2108, %v2106
  %v2137 = vpack.c.b16 %v2109, %v2107
  %v2138 = vpack.c.b16 %v2112, %v2110
  %v2139 = vpack.c.b16 %v2113, %v2111
  %v2140 = vpack.c.b16 %v2116, %v2114
  %v2141 = vpack.c.b16 %v2117, %v2115
  %v2142 = vpack.c.b16 %v2120, %v2118
  %v2143 = vpack.c.b16 %v2121, %v2119
  %v2144 = vpack.c.b16 %v2124, %v2122
  %v2145 = vpack.c.b16 %v2125, %v2123
  %v2146 = vpack.c.b16 %v2128, %v2126
  %v2147 = vpack.c.b16 %v2129, %v2127
  %v2148 = vpack.c.b16 %v2132, %v2130
  %v2149 = vpack.c.b16 %v2133, %v2131
  %v2182 = vunpack.c.l.b16 %v1510
  %v2183 = vunpack.c.h.b16 %v1510
  %v2184 = vunpack.c.l.b16 %v1511
  %v2185 = vunpack.c.h.b16 %v1511
  %v2186 = vunpack.c.l.b16 %v1512
  %v2187 = vunpack.c.h.b16 %v1512
  %v2188 = vunpack.c.l.b16 %v1513
  %v2189 = vunpack.c.h.b16 %v1513
  %v2190 = vunpack.c.l.b16 %v1514
  %v2191 = vunpack.c.h.b16 %v1514
  %v2192 = vunpack.c.l.b16 %v1515
  %v2193 = vunpack.c.h.b16 %v1515
  %v2194 = vunpack.c.l.b16 %v1516
  %v2195 = vunpack.c.h.b16 %v1516
  %v2196 = vunpack.c.l.b16 %v1517
  %v2197 = vunpack.c.h.b16 %v1517
  %v2198 = vunpack.c.l.b16 %v1518
  %v2199 = vunpack.c.h.b16 %v1518
  %v2200 = vunpack.c.l.b16 %v1519
  %v2201 = vunpack.c.h.b16 %v1519
  %v2202 = vunpack.c.l.b16 %v1520
  %v2203 = vunpack.c.h.b16 %v1520
  %v2204 = vunpack.c.l.b16 %v1521
  %v2205 = vunpack.c.h.b16 %v1521
  %v2206 = vunpack.c.l.b16 %v1522
  %v2207 = vunpack.c.h.b16 %v1522
  %v2208 = vunpack.c.l.b16 %v1523
  %v2209 = vunpack.c.h.b16 %v1523
  %v2210 = vunpack.c.l.b16 %v1524
  %v2211 = vunpack.c.h.b16 %v1524
  %v2212 = vunpack.c.l.b16 %v1525
  %v2213 = vunpack.c.h.b16 %v1525
  %v2214 = vpack.c.b16 %v2184, %v2182
  %v2215 = vpack.c.b16 %v2185, %v2183
  %v2216 = vpack.c.b16 %v2188, %v2186
  %v2217 = vpack.c.b16 %v2189, %v2187
  %v2218 = vpack.c.b16 %v2192, %v2190
  %v2219 = vpack.c.b16 %v2193, %v2191
  %v2220 = vpack.c.b16 %v2196, %v2194
  %v2221 = vpack.c.b16 %v2197, %v2195
  %v2222 = vpack.c.b16 %v2200, %v2198
  %v2223 = vpack.c.b16 %v2201, %v2199
  %v2224 = vpack.c.b16 %v2204, %v2202
  %v2225 = vpack.c.b16 %v2205, %v2203
  %v2226 = vpack.c.b16 %v2208, %v2206
  %v2227 = vpack.c.b16 %v2209, %v2207
  %v2228 = vpack.c.b16 %v2212, %v2210
  %v2229 = vpack.c.b16 %v2213, %v2211
  %v2246 = vld [vmem:[%s4] sm:$0xff]
  %v2247 = vld [vmem:[%s4 + $0x8] sm:$0xff]
  %v2248 = vld [vmem:[%s4 + $0x10] sm:$0xff]
  %v2249 = vld [vmem:[%s4 + $0x18] sm:$0xff]
  %v2250 = vld [vmem:[%s4 + $0x20] sm:$0xff]
  %v2251 = vld [vmem:[%s4 + $0x28] sm:$0xff]
  %v2252 = vld [vmem:[%s4 + $0x30] sm:$0xff]
  %v2253 = vld [vmem:[%s4 + $0x38] sm:$0xff]
  %v2254 = vld [vmem:[%s4 + $0x40] sm:$0xff]
  %v2255 = vld [vmem:[%s4 + $0x48] sm:$0xff]
  %v2256 = vld [vmem:[%s4 + $0x50] sm:$0xff]
  %v2257 = vld [vmem:[%s4 + $0x58] sm:$0xff]
  %v2258 = vld [vmem:[%s4 + $0x60] sm:$0xff]
  %v2259 = vld [vmem:[%s4 + $0x68] sm:$0xff]
  %v2260 = vld [vmem:[%s4 + $0x70] sm:$0xff]
  %v2261 = vld [vmem:[%s4 + $0x78] sm:$0xff]
  %v2262 = vld [vmem:[%s4 + $0x80] sm:$0xff]
  %v2263 = vld [vmem:[%s4 + $0x88] sm:$0xff]
  %v2264 = vld [vmem:[%s4 + $0x90] sm:$0xff]
  %v2265 = vld [vmem:[%s4 + $0x98] sm:$0xff]
  %v2266 = vld [vmem:[%s4 + $0xa0] sm:$0xff]
  %v2267 = vld [vmem:[%s4 + $0xa8] sm:$0xff]
  %v2268 = vld [vmem:[%s4 + $0xb0] sm:$0xff]
  %v2269 = vld [vmem:[%s4 + $0xb8] sm:$0xff]
  %v2270 = vld [vmem:[%s4 + $0xc0] sm:$0xff]
  %v2271 = vld [vmem:[%s4 + $0xc8] sm:$0xff]
  %v2272 = vld [vmem:[%s4 + $0xd0] sm:$0xff]
  %v2273 = vld [vmem:[%s4 + $0xd8] sm:$0xff]
  %v2274 = vld [vmem:[%s4 + $0xe0] sm:$0xff]
  %v2275 = vld [vmem:[%s4 + $0xe8] sm:$0xff]
  %v2276 = vld [vmem:[%s4 + $0xf0] sm:$0xff]
  %v2277 = vld [vmem:[%s4 + $0xf8] sm:$0xff]
  %v2278 = vld [vmem:[%s4 + $0x100] sm:$0xff]
  %v2279 = vld [vmem:[%s4 + $0x108] sm:$0xff]
  %v2280 = vld [vmem:[%s4 + $0x110] sm:$0xff]
  %v2281 = vld [vmem:[%s4 + $0x118] sm:$0xff]
  %v2282 = vld [vmem:[%s4 + $0x120] sm:$0xff]
  %v2283 = vld [vmem:[%s4 + $0x128] sm:$0xff]
  %v2284 = vld [vmem:[%s4 + $0x130] sm:$0xff]
  %v2285 = vld [vmem:[%s4 + $0x138] sm:$0xff]
  %v2286 = vld [vmem:[%s4 + $0x140] sm:$0xff]
  %v2287 = vld [vmem:[%s4 + $0x148] sm:$0xff]
  %v2288 = vld [vmem:[%s4 + $0x150] sm:$0xff]
  %v2289 = vld [vmem:[%s4 + $0x158] sm:$0xff]
  %v2290 = vld [vmem:[%s4 + $0x160] sm:$0xff]
  %v2291 = vld [vmem:[%s4 + $0x168] sm:$0xff]
  %v2292 = vld [vmem:[%s4 + $0x170] sm:$0xff]
  %v2293 = vld [vmem:[%s4 + $0x178] sm:$0xff]
  %v2294 = vld [vmem:[%s4 + $0x180] sm:$0xff]
  %v2295 = vld [vmem:[%s4 + $0x188] sm:$0xff]
  %v2296 = vld [vmem:[%s4 + $0x190] sm:$0xff]
  %v2297 = vld [vmem:[%s4 + $0x198] sm:$0xff]
  %v2298 = vld [vmem:[%s4 + $0x1a0] sm:$0xff]
  %v2299 = vld [vmem:[%s4 + $0x1a8] sm:$0xff]
  %v2300 = vld [vmem:[%s4 + $0x1b0] sm:$0xff]
  %v2301 = vld [vmem:[%s4 + $0x1b8] sm:$0xff]
  %v2302 = vld [vmem:[%s4 + $0x1c0] sm:$0xff]
  %v2303 = vld [vmem:[%s4 + $0x1c8] sm:$0xff]
  %v2304 = vld [vmem:[%s4 + $0x1d0] sm:$0xff]
  %v2305 = vld [vmem:[%s4 + $0x1d8] sm:$0xff]
  %v2306 = vld [vmem:[%s4 + $0x1e0] sm:$0xff]
  %v2307 = vld [vmem:[%s4 + $0x1e8] sm:$0xff]
  %v2308 = vld [vmem:[%s4 + $0x1f0] sm:$0xff]
  %v2309 = vld [vmem:[%s4 + $0x1f8] sm:$0xff]
  %v2310 = vld [vmem:[%s4 + $0x200] sm:$0xff]
  %v2311 = vld [vmem:[%s4 + $0x208] sm:$0xff]
  %v2312 = vld [vmem:[%s4 + $0x210] sm:$0xff]
  %v2313 = vld [vmem:[%s4 + $0x218] sm:$0xff]
  %v2314 = vld [vmem:[%s4 + $0x220] sm:$0xff]
  %v2315 = vld [vmem:[%s4 + $0x228] sm:$0xff]
  %v2316 = vld [vmem:[%s4 + $0x230] sm:$0xff]
  %v2317 = vld [vmem:[%s4 + $0x238] sm:$0xff]
  %v2318 = vld [vmem:[%s4 + $0x240] sm:$0xff]
  %v2319 = vld [vmem:[%s4 + $0x248] sm:$0xff]
  %v2320 = vld [vmem:[%s4 + $0x250] sm:$0xff]
  %v2321 = vld [vmem:[%s4 + $0x258] sm:$0xff]
  %v2322 = vld [vmem:[%s4 + $0x260] sm:$0xff]
  %v2323 = vld [vmem:[%s4 + $0x268] sm:$0xff]
  %v2324 = vld [vmem:[%s4 + $0x270] sm:$0xff]
  %v2325 = vld [vmem:[%s4 + $0x278] sm:$0xff]
  %v2326 = vld [vmem:[%s4 + $0x280] sm:$0xff]
  %v2327 = vld [vmem:[%s4 + $0x288] sm:$0xff]
  %v2328 = vld [vmem:[%s4 + $0x290] sm:$0xff]
  %v2329 = vld [vmem:[%s4 + $0x298] sm:$0xff]
  %v2330 = vld [vmem:[%s4 + $0x2a0] sm:$0xff]
  %v2331 = vld [vmem:[%s4 + $0x2a8] sm:$0xff]
  %v2332 = vld [vmem:[%s4 + $0x2b0] sm:$0xff]
  %v2333 = vld [vmem:[%s4 + $0x2b8] sm:$0xff]
  %v2334 = vld [vmem:[%s4 + $0x2c0] sm:$0xff]
  %v2335 = vld [vmem:[%s4 + $0x2c8] sm:$0xff]
  %v2336 = vld [vmem:[%s4 + $0x2d0] sm:$0xff]
  %v2337 = vld [vmem:[%s4 + $0x2d8] sm:$0xff]
  %v2338 = vld [vmem:[%s4 + $0x2e0] sm:$0xff]
  %v2339 = vld [vmem:[%s4 + $0x2e8] sm:$0xff]
  %v2340 = vld [vmem:[%s4 + $0x2f0] sm:$0xff]
  %v2341 = vld [vmem:[%s4 + $0x2f8] sm:$0xff]
  %v2342 = vld [vmem:[%s4 + $0x300] sm:$0xff]
  %v2343 = vld [vmem:[%s4 + $0x308] sm:$0xff]
  %v2344 = vld [vmem:[%s4 + $0x310] sm:$0xff]
  %v2345 = vld [vmem:[%s4 + $0x318] sm:$0xff]
  %v2346 = vld [vmem:[%s4 + $0x320] sm:$0xff]
  %v2347 = vld [vmem:[%s4 + $0x328] sm:$0xff]
  %v2348 = vld [vmem:[%s4 + $0x330] sm:$0xff]
  %v2349 = vld [vmem:[%s4 + $0x338] sm:$0xff]
  %v2350 = vld [vmem:[%s4 + $0x340] sm:$0xff]
  %v2351 = vld [vmem:[%s4 + $0x348] sm:$0xff]
  %v2352 = vld [vmem:[%s4 + $0x350] sm:$0xff]
  %v2353 = vld [vmem:[%s4 + $0x358] sm:$0xff]
  %v2354 = vld [vmem:[%s4 + $0x360] sm:$0xff]
  %v2355 = vld [vmem:[%s4 + $0x368] sm:$0xff]
  %v2356 = vld [vmem:[%s4 + $0x370] sm:$0xff]
  %v2357 = vld [vmem:[%s4 + $0x378] sm:$0xff]
  %v2358 = vld [vmem:[%s4 + $0x380] sm:$0xff]
  %v2359 = vld [vmem:[%s4 + $0x388] sm:$0xff]
  %v2360 = vld [vmem:[%s4 + $0x390] sm:$0xff]
  %v2361 = vld [vmem:[%s4 + $0x398] sm:$0xff]
  %v2362 = vld [vmem:[%s4 + $0x3a0] sm:$0xff]
  %v2363 = vld [vmem:[%s4 + $0x3a8] sm:$0xff]
  %v2364 = vld [vmem:[%s4 + $0x3b0] sm:$0xff]
  %v2365 = vld [vmem:[%s4 + $0x3b8] sm:$0xff]
  %v2366 = vld [vmem:[%s4 + $0x3c0] sm:$0xff]
  %v2367 = vld [vmem:[%s4 + $0x3c8] sm:$0xff]
  %v2368 = vld [vmem:[%s4 + $0x3d0] sm:$0xff]
  %v2369 = vld [vmem:[%s4 + $0x3d8] sm:$0xff]
  %v2370 = vld [vmem:[%s4 + $0x3e0] sm:$0xff]
  %v2371 = vld [vmem:[%s4 + $0x3e8] sm:$0xff]
  %v2372 = vld [vmem:[%s4 + $0x3f0] sm:$0xff]
  %v2373 = vld [vmem:[%s4 + $0x3f8] sm:$0xff]
  %v2374 = vld [vmem:[%s4 + $0x400] sm:$0xff]
  %v2375 = vld [vmem:[%s4 + $0x408] sm:$0xff]
  %v2376 = vld [vmem:[%s4 + $0x410] sm:$0xff]
  %v2377 = vld [vmem:[%s4 + $0x418] sm:$0xff]
  %v2378 = vld [vmem:[%s4 + $0x420] sm:$0xff]
  %v2379 = vld [vmem:[%s4 + $0x428] sm:$0xff]
  %v2380 = vld [vmem:[%s4 + $0x430] sm:$0xff]
  %v2381 = vld [vmem:[%s4 + $0x438] sm:$0xff]
  %v2382 = vld [vmem:[%s4 + $0x440] sm:$0xff]
  %v2383 = vld [vmem:[%s4 + $0x448] sm:$0xff]
  %v2384 = vld [vmem:[%s4 + $0x450] sm:$0xff]
  %v2385 = vld [vmem:[%s4 + $0x458] sm:$0xff]
  %v2386 = vld [vmem:[%s4 + $0x460] sm:$0xff]
  %v2387 = vld [vmem:[%s4 + $0x468] sm:$0xff]
  %v2388 = vld [vmem:[%s4 + $0x470] sm:$0xff]
  %v2389 = vld [vmem:[%s4 + $0x478] sm:$0xff]
  %v2390 = vld [vmem:[%s4 + $0x480] sm:$0xff]
  %v2391 = vld [vmem:[%s4 + $0x488] sm:$0xff]
  %v2392 = vld [vmem:[%s4 + $0x490] sm:$0xff]
  %v2393 = vld [vmem:[%s4 + $0x498] sm:$0xff]
  %v2394 = vld [vmem:[%s4 + $0x4a0] sm:$0xff]
  %v2395 = vld [vmem:[%s4 + $0x4a8] sm:$0xff]
  %v2396 = vld [vmem:[%s4 + $0x4b0] sm:$0xff]
  %v2397 = vld [vmem:[%s4 + $0x4b8] sm:$0xff]
  %v2398 = vld [vmem:[%s4 + $0x4c0] sm:$0xff]
  %v2399 = vld [vmem:[%s4 + $0x4c8] sm:$0xff]
  %v2400 = vld [vmem:[%s4 + $0x4d0] sm:$0xff]
  %v2401 = vld [vmem:[%s4 + $0x4d8] sm:$0xff]
  %v2402 = vld [vmem:[%s4 + $0x4e0] sm:$0xff]
  %v2403 = vld [vmem:[%s4 + $0x4e8] sm:$0xff]
  %v2404 = vld [vmem:[%s4 + $0x4f0] sm:$0xff]
  %v2405 = vld [vmem:[%s4 + $0x4f8] sm:$0xff]
  %v2406 = vld [vmem:[%s4 + $0x500] sm:$0xff]
  %v2407 = vld [vmem:[%s4 + $0x508] sm:$0xff]
  %v2408 = vld [vmem:[%s4 + $0x510] sm:$0xff]
  %v2409 = vld [vmem:[%s4 + $0x518] sm:$0xff]
  %v2410 = vld [vmem:[%s4 + $0x520] sm:$0xff]
  %v2411 = vld [vmem:[%s4 + $0x528] sm:$0xff]
  %v2412 = vld [vmem:[%s4 + $0x530] sm:$0xff]
  %v2413 = vld [vmem:[%s4 + $0x538] sm:$0xff]
  %v2414 = vld [vmem:[%s4 + $0x540] sm:$0xff]
  %v2415 = vld [vmem:[%s4 + $0x548] sm:$0xff]
  %v2416 = vld [vmem:[%s4 + $0x550] sm:$0xff]
  %v2417 = vld [vmem:[%s4 + $0x558] sm:$0xff]
  %v2418 = vld [vmem:[%s4 + $0x560] sm:$0xff]
  %v2419 = vld [vmem:[%s4 + $0x568] sm:$0xff]
  %v2420 = vld [vmem:[%s4 + $0x570] sm:$0xff]
  %v2421 = vld [vmem:[%s4 + $0x578] sm:$0xff]
  %v2422 = vld [vmem:[%s4 + $0x580] sm:$0xff]
  %v2423 = vld [vmem:[%s4 + $0x588] sm:$0xff]
  %v2424 = vld [vmem:[%s4 + $0x590] sm:$0xff]
  %v2425 = vld [vmem:[%s4 + $0x598] sm:$0xff]
  %v2426 = vld [vmem:[%s4 + $0x5a0] sm:$0xff]
  %v2427 = vld [vmem:[%s4 + $0x5a8] sm:$0xff]
  %v2428 = vld [vmem:[%s4 + $0x5b0] sm:$0xff]
  %v2429 = vld [vmem:[%s4 + $0x5b8] sm:$0xff]
  %v2430 = vld [vmem:[%s4 + $0x5c0] sm:$0xff]
  %v2431 = vld [vmem:[%s4 + $0x5c8] sm:$0xff]
  %v2432 = vld [vmem:[%s4 + $0x5d0] sm:$0xff]
  %v2433 = vld [vmem:[%s4 + $0x5d8] sm:$0xff]
  %v2434 = vld [vmem:[%s4 + $0x5e0] sm:$0xff]
  %v2435 = vld [vmem:[%s4 + $0x5e8] sm:$0xff]
  %v2436 = vld [vmem:[%s4 + $0x5f0] sm:$0xff]
  %v2437 = vld [vmem:[%s4 + $0x5f8] sm:$0xff]
  %v2438 = vld [vmem:[%s4 + $0x600] sm:$0xff]
  %v2439 = vld [vmem:[%s4 + $0x608] sm:$0xff]
  %v2440 = vld [vmem:[%s4 + $0x610] sm:$0xff]
  %v2441 = vld [vmem:[%s4 + $0x618] sm:$0xff]
  %v2442 = vld [vmem:[%s4 + $0x620] sm:$0xff]
  %v2443 = vld [vmem:[%s4 + $0x628] sm:$0xff]
  %v2444 = vld [vmem:[%s4 + $0x630] sm:$0xff]
  %v2445 = vld [vmem:[%s4 + $0x638] sm:$0xff]
  %v2446 = vld [vmem:[%s4 + $0x640] sm:$0xff]
  %v2447 = vld [vmem:[%s4 + $0x648] sm:$0xff]
  %v2448 = vld [vmem:[%s4 + $0x650] sm:$0xff]
  %v2449 = vld [vmem:[%s4 + $0x658] sm:$0xff]
  %v2450 = vld [vmem:[%s4 + $0x660] sm:$0xff]
  %v2451 = vld [vmem:[%s4 + $0x668] sm:$0xff]
  %v2452 = vld [vmem:[%s4 + $0x670] sm:$0xff]
  %v2453 = vld [vmem:[%s4 + $0x678] sm:$0xff]
  %v2454 = vld [vmem:[%s4 + $0x680] sm:$0xff]
  %v2455 = vld [vmem:[%s4 + $0x688] sm:$0xff]
  %v2456 = vld [vmem:[%s4 + $0x690] sm:$0xff]
  %v2457 = vld [vmem:[%s4 + $0x698] sm:$0xff]
  %v2458 = vld [vmem:[%s4 + $0x6a0] sm:$0xff]
  %v2459 = vld [vmem:[%s4 + $0x6a8] sm:$0xff]
  %v2460 = vld [vmem:[%s4 + $0x6b0] sm:$0xff]
  %v2461 = vld [vmem:[%s4 + $0x6b8] sm:$0xff]
  %v2462 = vld [vmem:[%s4 + $0x6c0] sm:$0xff]
  %v2463 = vld [vmem:[%s4 + $0x6c8] sm:$0xff]
  %v2464 = vld [vmem:[%s4 + $0x6d0] sm:$0xff]
  %v2465 = vld [vmem:[%s4 + $0x6d8] sm:$0xff]
  %v2466 = vld [vmem:[%s4 + $0x6e0] sm:$0xff]
  %v2467 = vld [vmem:[%s4 + $0x6e8] sm:$0xff]
  %v2468 = vld [vmem:[%s4 + $0x6f0] sm:$0xff]
  %v2469 = vld [vmem:[%s4 + $0x6f8] sm:$0xff]
  %v2470 = vld [vmem:[%s4 + $0x700] sm:$0xff]
  %v2471 = vld [vmem:[%s4 + $0x708] sm:$0xff]
  %v2472 = vld [vmem:[%s4 + $0x710] sm:$0xff]
  %v2473 = vld [vmem:[%s4 + $0x718] sm:$0xff]
  %v2474 = vld [vmem:[%s4 + $0x720] sm:$0xff]
  %v2475 = vld [vmem:[%s4 + $0x728] sm:$0xff]
  %v2476 = vld [vmem:[%s4 + $0x730] sm:$0xff]
  %v2477 = vld [vmem:[%s4 + $0x738] sm:$0xff]
  %v2478 = vld [vmem:[%s4 + $0x740] sm:$0xff]
  %v2479 = vld [vmem:[%s4 + $0x748] sm:$0xff]
  %v2480 = vld [vmem:[%s4 + $0x750] sm:$0xff]
  %v2481 = vld [vmem:[%s4 + $0x758] sm:$0xff]
  %v2482 = vld [vmem:[%s4 + $0x760] sm:$0xff]
  %v2483 = vld [vmem:[%s4 + $0x768] sm:$0xff]
  %v2484 = vld [vmem:[%s4 + $0x770] sm:$0xff]
  %v2485 = vld [vmem:[%s4 + $0x778] sm:$0xff]
  %v2486 = vld [vmem:[%s4 + $0x780] sm:$0xff]
  %v2487 = vld [vmem:[%s4 + $0x788] sm:$0xff]
  %v2488 = vld [vmem:[%s4 + $0x790] sm:$0xff]
  %v2489 = vld [vmem:[%s4 + $0x798] sm:$0xff]
  %v2490 = vld [vmem:[%s4 + $0x7a0] sm:$0xff]
  %v2491 = vld [vmem:[%s4 + $0x7a8] sm:$0xff]
  %v2492 = vld [vmem:[%s4 + $0x7b0] sm:$0xff]
  %v2493 = vld [vmem:[%s4 + $0x7b8] sm:$0xff]
  %v2494 = vld [vmem:[%s4 + $0x7c0] sm:$0xff]
  %v2495 = vld [vmem:[%s4 + $0x7c8] sm:$0xff]
  %v2496 = vld [vmem:[%s4 + $0x7d0] sm:$0xff]
  %v2497 = vld [vmem:[%s4 + $0x7d8] sm:$0xff]
  %v2498 = vld [vmem:[%s4 + $0x7e0] sm:$0xff]
  %v2499 = vld [vmem:[%s4 + $0x7e8] sm:$0xff]
  %v2500 = vld [vmem:[%s4 + $0x7f0] sm:$0xff]
  %v2501 = vld [vmem:[%s4 + $0x7f8] sm:$0xff]
  %v2502 = vld [vmem:[%s4 + $0x800] sm:$0xff]
  %v2503 = vld [vmem:[%s4 + $0x808] sm:$0xff]
  %v2504 = vld [vmem:[%s4 + $0x810] sm:$0xff]
  %v2505 = vld [vmem:[%s4 + $0x818] sm:$0xff]
  %v2506 = vld [vmem:[%s4 + $0x820] sm:$0xff]
  %v2507 = vld [vmem:[%s4 + $0x828] sm:$0xff]
  %v2508 = vld [vmem:[%s4 + $0x830] sm:$0xff]
  %v2509 = vld [vmem:[%s4 + $0x838] sm:$0xff]
  %v2510 = vld [vmem:[%s4 + $0x840] sm:$0xff]
  %v2511 = vld [vmem:[%s4 + $0x848] sm:$0xff]
  %v2512 = vld [vmem:[%s4 + $0x850] sm:$0xff]
  %v2513 = vld [vmem:[%s4 + $0x858] sm:$0xff]
  %v2514 = vld [vmem:[%s4 + $0x860] sm:$0xff]
  %v2515 = vld [vmem:[%s4 + $0x868] sm:$0xff]
  %v2516 = vld [vmem:[%s4 + $0x870] sm:$0xff]
  %v2517 = vld [vmem:[%s4 + $0x878] sm:$0xff]
  %v2518 = vld [vmem:[%s4 + $0x880] sm:$0xff]
  %v2519 = vld [vmem:[%s4 + $0x888] sm:$0xff]
  %v2520 = vld [vmem:[%s4 + $0x890] sm:$0xff]
  %v2521 = vld [vmem:[%s4 + $0x898] sm:$0xff]
  %v2522 = vld [vmem:[%s4 + $0x8a0] sm:$0xff]
  %v2523 = vld [vmem:[%s4 + $0x8a8] sm:$0xff]
  %v2524 = vld [vmem:[%s4 + $0x8b0] sm:$0xff]
  %v2525 = vld [vmem:[%s4 + $0x8b8] sm:$0xff]
  %v2526 = vld [vmem:[%s4 + $0x8c0] sm:$0xff]
  %v2527 = vld [vmem:[%s4 + $0x8c8] sm:$0xff]
  %v2528 = vld [vmem:[%s4 + $0x8d0] sm:$0xff]
  %v2529 = vld [vmem:[%s4 + $0x8d8] sm:$0xff]
  %v2530 = vld [vmem:[%s4 + $0x8e0] sm:$0xff]
  %v2531 = vld [vmem:[%s4 + $0x8e8] sm:$0xff]
  %v2532 = vld [vmem:[%s4 + $0x8f0] sm:$0xff]
  %v2533 = vld [vmem:[%s4 + $0x8f8] sm:$0xff]
  %v2534 = vld [vmem:[%s5] sm:$0x3]
  %v2536 = vperm.slane %v2534, 0
  %v2537 = vperm.slane %v2534, 1
  %v2828 = vunpack.c.l.b16 %v2246
  %v2829 = vunpack.c.h.b16 %v2246
  %v2830 = vunpack.c.l.b16 %v2247
  %v2831 = vunpack.c.h.b16 %v2247
  %v2832 = vunpack.c.l.b16 %v2248
  %v2833 = vunpack.c.h.b16 %v2248
  %v2834 = vunpack.c.l.b16 %v2249
  %v2835 = vunpack.c.h.b16 %v2249
  %v2836 = vunpack.c.l.b16 %v2250
  %v2837 = vunpack.c.h.b16 %v2250
  %v2838 = vunpack.c.l.b16 %v2251
  %v2839 = vunpack.c.h.b16 %v2251
  %v2840 = vunpack.c.l.b16 %v2252
  %v2841 = vunpack.c.h.b16 %v2252
  %v2842 = vunpack.c.l.b16 %v2253
  %v2843 = vunpack.c.h.b16 %v2253
  %v2844 = vunpack.c.l.b16 %v2254
  %v2845 = vunpack.c.h.b16 %v2254
  %v2846 = vunpack.c.l.b16 %v2255
  %v2847 = vunpack.c.h.b16 %v2255
  %v2848 = vunpack.c.l.b16 %v2256
  %v2849 = vunpack.c.h.b16 %v2256
  %v2850 = vunpack.c.l.b16 %v2257
  %v2851 = vunpack.c.h.b16 %v2257
  %v2852 = vunpack.c.l.b16 %v2258
  %v2853 = vunpack.c.h.b16 %v2258
  %v2854 = vunpack.c.l.b16 %v2259
  %v2855 = vunpack.c.h.b16 %v2259
  %v2856 = vunpack.c.l.b16 %v2260
  %v2857 = vunpack.c.h.b16 %v2260
  %v2858 = vunpack.c.l.b16 %v2261
  %v2859 = vunpack.c.h.b16 %v2261
  %v2860 = vunpack.c.l.b16 %v2262
  %v2861 = vunpack.c.h.b16 %v2262
  %v2862 = vunpack.c.l.b16 %v2263
  %v2863 = vunpack.c.h.b16 %v2263
  %v2864 = vunpack.c.l.b16 %v2264
  %v2865 = vunpack.c.h.b16 %v2264
  %v2866 = vunpack.c.l.b16 %v2265
  %v2867 = vunpack.c.h.b16 %v2265
  %v2868 = vunpack.c.l.b16 %v2266
  %v2869 = vunpack.c.h.b16 %v2266
  %v2870 = vunpack.c.l.b16 %v2267
  %v2871 = vunpack.c.h.b16 %v2267
  %v2872 = vunpack.c.l.b16 %v2268
  %v2873 = vunpack.c.h.b16 %v2268
  %v2874 = vunpack.c.l.b16 %v2269
  %v2875 = vunpack.c.h.b16 %v2269
  %v2876 = vunpack.c.l.b16 %v2270
  %v2877 = vunpack.c.h.b16 %v2270
  %v2878 = vunpack.c.l.b16 %v2271
  %v2879 = vunpack.c.h.b16 %v2271
  %v2880 = vunpack.c.l.b16 %v2272
  %v2881 = vunpack.c.h.b16 %v2272
  %v2882 = vunpack.c.l.b16 %v2273
  %v2883 = vunpack.c.h.b16 %v2273
  %v2884 = vunpack.c.l.b16 %v2274
  %v2885 = vunpack.c.h.b16 %v2274
  %v2886 = vunpack.c.l.b16 %v2275
  %v2887 = vunpack.c.h.b16 %v2275
  %v2888 = vunpack.c.l.b16 %v2276
  %v2889 = vunpack.c.h.b16 %v2276
  %v2890 = vunpack.c.l.b16 %v2277
  %v2891 = vunpack.c.h.b16 %v2277
  %v2892 = vunpack.c.l.b16 %v2278
  %v2893 = vunpack.c.h.b16 %v2278
  %v2894 = vunpack.c.l.b16 %v2279
  %v2895 = vunpack.c.h.b16 %v2279
  %v2896 = vunpack.c.l.b16 %v2280
  %v2897 = vunpack.c.h.b16 %v2280
  %v2898 = vunpack.c.l.b16 %v2281
  %v2899 = vunpack.c.h.b16 %v2281
  %v2900 = vunpack.c.l.b16 %v2282
  %v2901 = vunpack.c.h.b16 %v2282
  %v2902 = vunpack.c.l.b16 %v2283
  %v2903 = vunpack.c.h.b16 %v2283
  %v2904 = vunpack.c.l.b16 %v2284
  %v2905 = vunpack.c.h.b16 %v2284
  %v2906 = vunpack.c.l.b16 %v2285
  %v2907 = vunpack.c.h.b16 %v2285
  %v2908 = vunpack.c.l.b16 %v2286
  %v2909 = vunpack.c.h.b16 %v2286
  %v2910 = vunpack.c.l.b16 %v2287
  %v2911 = vunpack.c.h.b16 %v2287
  %v2912 = vunpack.c.l.b16 %v2288
  %v2913 = vunpack.c.h.b16 %v2288
  %v2914 = vunpack.c.l.b16 %v2289
  %v2915 = vunpack.c.h.b16 %v2289
  %v2916 = vunpack.c.l.b16 %v2290
  %v2917 = vunpack.c.h.b16 %v2290
  %v2918 = vunpack.c.l.b16 %v2291
  %v2919 = vunpack.c.h.b16 %v2291
  %v2920 = vunpack.c.l.b16 %v2292
  %v2921 = vunpack.c.h.b16 %v2292
  %v2922 = vunpack.c.l.b16 %v2293
  %v2923 = vunpack.c.h.b16 %v2293
  %v2924 = vunpack.c.l.b16 %v2294
  %v2925 = vunpack.c.h.b16 %v2294
  %v2926 = vunpack.c.l.b16 %v2295
  %v2927 = vunpack.c.h.b16 %v2295
  %v2928 = vunpack.c.l.b16 %v2296
  %v2929 = vunpack.c.h.b16 %v2296
  %v2930 = vunpack.c.l.b16 %v2297
  %v2931 = vunpack.c.h.b16 %v2297
  %v2932 = vunpack.c.l.b16 %v2298
  %v2933 = vunpack.c.h.b16 %v2298
  %v2934 = vunpack.c.l.b16 %v2299
  %v2935 = vunpack.c.h.b16 %v2299
  %v2936 = vunpack.c.l.b16 %v2300
  %v2937 = vunpack.c.h.b16 %v2300
  %v2938 = vunpack.c.l.b16 %v2301
  %v2939 = vunpack.c.h.b16 %v2301
  %v2940 = vunpack.c.l.b16 %v2302
  %v2941 = vunpack.c.h.b16 %v2302
  %v2942 = vunpack.c.l.b16 %v2303
  %v2943 = vunpack.c.h.b16 %v2303
  %v2944 = vunpack.c.l.b16 %v2304
  %v2945 = vunpack.c.h.b16 %v2304
  %v2946 = vunpack.c.l.b16 %v2305
  %v2947 = vunpack.c.h.b16 %v2305
  %v2948 = vunpack.c.l.b16 %v2306
  %v2949 = vunpack.c.h.b16 %v2306
  %v2950 = vunpack.c.l.b16 %v2307
  %v2951 = vunpack.c.h.b16 %v2307
  %v2952 = vunpack.c.l.b16 %v2308
  %v2953 = vunpack.c.h.b16 %v2308
  %v2954 = vunpack.c.l.b16 %v2309
  %v2955 = vunpack.c.h.b16 %v2309
  %v2956 = vunpack.c.l.b16 %v2310
  %v2957 = vunpack.c.h.b16 %v2310
  %v2958 = vunpack.c.l.b16 %v2311
  %v2959 = vunpack.c.h.b16 %v2311
  %v2960 = vunpack.c.l.b16 %v2312
  %v2961 = vunpack.c.h.b16 %v2312
  %v2962 = vunpack.c.l.b16 %v2313
  %v2963 = vunpack.c.h.b16 %v2313
  %v2964 = vunpack.c.l.b16 %v2314
  %v2965 = vunpack.c.h.b16 %v2314
  %v2966 = vunpack.c.l.b16 %v2315
  %v2967 = vunpack.c.h.b16 %v2315
  %v2968 = vunpack.c.l.b16 %v2316
  %v2969 = vunpack.c.h.b16 %v2316
  %v2970 = vunpack.c.l.b16 %v2317
  %v2971 = vunpack.c.h.b16 %v2317
  %v2972 = vunpack.c.l.b16 %v2318
  %v2973 = vunpack.c.h.b16 %v2318
  %v2974 = vunpack.c.l.b16 %v2319
  %v2975 = vunpack.c.h.b16 %v2319
  %v2976 = vunpack.c.l.b16 %v2320
  %v2977 = vunpack.c.h.b16 %v2320
  %v2978 = vunpack.c.l.b16 %v2321
  %v2979 = vunpack.c.h.b16 %v2321
  %v2980 = vunpack.c.l.b16 %v2322
  %v2981 = vunpack.c.h.b16 %v2322
  %v2982 = vunpack.c.l.b16 %v2323
  %v2983 = vunpack.c.h.b16 %v2323
  %v2984 = vunpack.c.l.b16 %v2324
  %v2985 = vunpack.c.h.b16 %v2324
  %v2986 = vunpack.c.l.b16 %v2325
  %v2987 = vunpack.c.h.b16 %v2325
  %v2988 = vunpack.c.l.b16 %v2326
  %v2989 = vunpack.c.h.b16 %v2326
  %v2990 = vunpack.c.l.b16 %v2327
  %v2991 = vunpack.c.h.b16 %v2327
  %v2992 = vunpack.c.l.b16 %v2328
  %v2993 = vunpack.c.h.b16 %v2328
  %v2994 = vunpack.c.l.b16 %v2329
  %v2995 = vunpack.c.h.b16 %v2329
  %v2996 = vunpack.c.l.b16 %v2330
  %v2997 = vunpack.c.h.b16 %v2330
  %v2998 = vunpack.c.l.b16 %v2331
  %v2999 = vunpack.c.h.b16 %v2331
  %v3000 = vunpack.c.l.b16 %v2332
  %v3001 = vunpack.c.h.b16 %v2332
  %v3002 = vunpack.c.l.b16 %v2333
  %v3003 = vunpack.c.h.b16 %v2333
  %v3004 = vunpack.c.l.b16 %v2334
  %v3005 = vunpack.c.h.b16 %v2334
  %v3006 = vunpack.c.l.b16 %v2335
  %v3007 = vunpack.c.h.b16 %v2335
  %v3008 = vunpack.c.l.b16 %v2336
  %v3009 = vunpack.c.h.b16 %v2336
  %v3010 = vunpack.c.l.b16 %v2337
  %v3011 = vunpack.c.h.b16 %v2337
  %v3012 = vunpack.c.l.b16 %v2338
  %v3013 = vunpack.c.h.b16 %v2338
  %v3014 = vunpack.c.l.b16 %v2339
  %v3015 = vunpack.c.h.b16 %v2339
  %v3016 = vunpack.c.l.b16 %v2340
  %v3017 = vunpack.c.h.b16 %v2340
  %v3018 = vunpack.c.l.b16 %v2341
  %v3019 = vunpack.c.h.b16 %v2341
  %v3020 = vunpack.c.l.b16 %v2342
  %v3021 = vunpack.c.h.b16 %v2342
  %v3022 = vunpack.c.l.b16 %v2343
  %v3023 = vunpack.c.h.b16 %v2343
  %v3024 = vunpack.c.l.b16 %v2344
  %v3025 = vunpack.c.h.b16 %v2344
  %v3026 = vunpack.c.l.b16 %v2345
  %v3027 = vunpack.c.h.b16 %v2345
  %v3028 = vunpack.c.l.b16 %v2346
  %v3029 = vunpack.c.h.b16 %v2346
  %v3030 = vunpack.c.l.b16 %v2347
  %v3031 = vunpack.c.h.b16 %v2347
  %v3032 = vunpack.c.l.b16 %v2348
  %v3033 = vunpack.c.h.b16 %v2348
  %v3034 = vunpack.c.l.b16 %v2349
  %v3035 = vunpack.c.h.b16 %v2349
  %v3036 = vunpack.c.l.b16 %v2350
  %v3037 = vunpack.c.h.b16 %v2350
  %v3038 = vunpack.c.l.b16 %v2351
  %v3039 = vunpack.c.h.b16 %v2351
  %v3040 = vunpack.c.l.b16 %v2352
  %v3041 = vunpack.c.h.b16 %v2352
  %v3042 = vunpack.c.l.b16 %v2353
  %v3043 = vunpack.c.h.b16 %v2353
  %v3044 = vunpack.c.l.b16 %v2354
  %v3045 = vunpack.c.h.b16 %v2354
  %v3046 = vunpack.c.l.b16 %v2355
  %v3047 = vunpack.c.h.b16 %v2355
  %v3048 = vunpack.c.l.b16 %v2356
  %v3049 = vunpack.c.h.b16 %v2356
  %v3050 = vunpack.c.l.b16 %v2357
  %v3051 = vunpack.c.h.b16 %v2357
  %v3052 = vunpack.c.l.b16 %v2358
  %v3053 = vunpack.c.h.b16 %v2358
  %v3054 = vunpack.c.l.b16 %v2359
  %v3055 = vunpack.c.h.b16 %v2359
  %v3056 = vunpack.c.l.b16 %v2360
  %v3057 = vunpack.c.h.b16 %v2360
  %v3058 = vunpack.c.l.b16 %v2361
  %v3059 = vunpack.c.h.b16 %v2361
  %v3060 = vunpack.c.l.b16 %v2362
  %v3061 = vunpack.c.h.b16 %v2362
  %v3062 = vunpack.c.l.b16 %v2363
  %v3063 = vunpack.c.h.b16 %v2363
  %v3064 = vunpack.c.l.b16 %v2364
  %v3065 = vunpack.c.h.b16 %v2364
  %v3066 = vunpack.c.l.b16 %v2365
  %v3067 = vunpack.c.h.b16 %v2365
  %v3068 = vunpack.c.l.b16 %v2366
  %v3069 = vunpack.c.h.b16 %v2366
  %v3070 = vunpack.c.l.b16 %v2367
  %v3071 = vunpack.c.h.b16 %v2367
  %v3072 = vunpack.c.l.b16 %v2368
  %v3073 = vunpack.c.h.b16 %v2368
  %v3074 = vunpack.c.l.b16 %v2369
  %v3075 = vunpack.c.h.b16 %v2369
  %v3076 = vunpack.c.l.b16 %v2370
  %v3077 = vunpack.c.h.b16 %v2370
  %v3078 = vunpack.c.l.b16 %v2371
  %v3079 = vunpack.c.h.b16 %v2371
  %v3080 = vunpack.c.l.b16 %v2372
  %v3081 = vunpack.c.h.b16 %v2372
  %v3082 = vunpack.c.l.b16 %v2373
  %v3083 = vunpack.c.h.b16 %v2373
  %v3084 = vunpack.c.l.b16 %v2374
  %v3085 = vunpack.c.h.b16 %v2374
  %v3086 = vunpack.c.l.b16 %v2375
  %v3087 = vunpack.c.h.b16 %v2375
  %v3088 = vunpack.c.l.b16 %v2376
  %v3089 = vunpack.c.h.b16 %v2376
  %v3090 = vunpack.c.l.b16 %v2377
  %v3091 = vunpack.c.h.b16 %v2377
  %v3092 = vunpack.c.l.b16 %v2378
  %v3093 = vunpack.c.h.b16 %v2378
  %v3094 = vunpack.c.l.b16 %v2379
  %v3095 = vunpack.c.h.b16 %v2379
  %v3096 = vunpack.c.l.b16 %v2380
  %v3097 = vunpack.c.h.b16 %v2380
  %v3098 = vunpack.c.l.b16 %v2381
  %v3099 = vunpack.c.h.b16 %v2381
  %v3100 = vunpack.c.l.b16 %v2382
  %v3101 = vunpack.c.h.b16 %v2382
  %v3102 = vunpack.c.l.b16 %v2383
  %v3103 = vunpack.c.h.b16 %v2383
  %v3104 = vunpack.c.l.b16 %v2384
  %v3105 = vunpack.c.h.b16 %v2384
  %v3106 = vunpack.c.l.b16 %v2385
  %v3107 = vunpack.c.h.b16 %v2385
  %v3108 = vunpack.c.l.b16 %v2386
  %v3109 = vunpack.c.h.b16 %v2386
  %v3110 = vunpack.c.l.b16 %v2387
  %v3111 = vunpack.c.h.b16 %v2387
  %v3112 = vunpack.c.l.b16 %v2388
  %v3113 = vunpack.c.h.b16 %v2388
  %v3114 = vunpack.c.l.b16 %v2389
  %v3115 = vunpack.c.h.b16 %v2389
  %v3116 = vunpack.c.l.b16 %v2390
  %v3117 = vunpack.c.h.b16 %v2390
  %v3118 = vunpack.c.l.b16 %v2391
  %v3119 = vunpack.c.h.b16 %v2391
  %v3120 = vunpack.c.l.b16 %v2392
  %v3121 = vunpack.c.h.b16 %v2392
  %v3122 = vunpack.c.l.b16 %v2393
  %v3123 = vunpack.c.h.b16 %v2393
  %v3124 = vunpack.c.l.b16 %v2394
  %v3125 = vunpack.c.h.b16 %v2394
  %v3126 = vunpack.c.l.b16 %v2395
  %v3127 = vunpack.c.h.b16 %v2395
  %v3128 = vunpack.c.l.b16 %v2396
  %v3129 = vunpack.c.h.b16 %v2396
  %v3130 = vunpack.c.l.b16 %v2397
  %v3131 = vunpack.c.h.b16 %v2397
  %v3132 = vunpack.c.l.b16 %v2398
  %v3133 = vunpack.c.h.b16 %v2398
  %v3134 = vunpack.c.l.b16 %v2399
  %v3135 = vunpack.c.h.b16 %v2399
  %v3136 = vunpack.c.l.b16 %v2400
  %v3137 = vunpack.c.h.b16 %v2400
  %v3138 = vunpack.c.l.b16 %v2401
  %v3139 = vunpack.c.h.b16 %v2401
  %v3140 = vunpack.c.l.b16 %v2402
  %v3141 = vunpack.c.h.b16 %v2402
  %v3142 = vunpack.c.l.b16 %v2403
  %v3143 = vunpack.c.h.b16 %v2403
  %v3144 = vunpack.c.l.b16 %v2404
  %v3145 = vunpack.c.h.b16 %v2404
  %v3146 = vunpack.c.l.b16 %v2405
  %v3147 = vunpack.c.h.b16 %v2405
  %v3148 = vunpack.c.l.b16 %v2406
  %v3149 = vunpack.c.h.b16 %v2406
  %v3150 = vunpack.c.l.b16 %v2407
  %v3151 = vunpack.c.h.b16 %v2407
  %v3152 = vunpack.c.l.b16 %v2408
  %v3153 = vunpack.c.h.b16 %v2408
  %v3154 = vunpack.c.l.b16 %v2409
  %v3155 = vunpack.c.h.b16 %v2409
  %v3156 = vunpack.c.l.b16 %v2410
  %v3157 = vunpack.c.h.b16 %v2410
  %v3158 = vunpack.c.l.b16 %v2411
  %v3159 = vunpack.c.h.b16 %v2411
  %v3160 = vunpack.c.l.b16 %v2412
  %v3161 = vunpack.c.h.b16 %v2412
  %v3162 = vunpack.c.l.b16 %v2413
  %v3163 = vunpack.c.h.b16 %v2413
  %v3164 = vunpack.c.l.b16 %v2414
  %v3165 = vunpack.c.h.b16 %v2414
  %v3166 = vunpack.c.l.b16 %v2415
  %v3167 = vunpack.c.h.b16 %v2415
  %v3168 = vunpack.c.l.b16 %v2416
  %v3169 = vunpack.c.h.b16 %v2416
  %v3170 = vunpack.c.l.b16 %v2417
  %v3171 = vunpack.c.h.b16 %v2417
  %v3172 = vunpack.c.l.b16 %v2418
  %v3173 = vunpack.c.h.b16 %v2418
  %v3174 = vunpack.c.l.b16 %v2419
  %v3175 = vunpack.c.h.b16 %v2419
  %v3176 = vunpack.c.l.b16 %v2420
  %v3177 = vunpack.c.h.b16 %v2420
  %v3178 = vunpack.c.l.b16 %v2421
  %v3179 = vunpack.c.h.b16 %v2421
  %v3180 = vunpack.c.l.b16 %v2422
  %v3181 = vunpack.c.h.b16 %v2422
  %v3182 = vunpack.c.l.b16 %v2423
  %v3183 = vunpack.c.h.b16 %v2423
  %v3184 = vunpack.c.l.b16 %v2424
  %v3185 = vunpack.c.h.b16 %v2424
  %v3186 = vunpack.c.l.b16 %v2425
  %v3187 = vunpack.c.h.b16 %v2425
  %v3188 = vunpack.c.l.b16 %v2426
  %v3189 = vunpack.c.h.b16 %v2426
  %v3190 = vunpack.c.l.b16 %v2427
  %v3191 = vunpack.c.h.b16 %v2427
  %v3192 = vunpack.c.l.b16 %v2428
  %v3193 = vunpack.c.h.b16 %v2428
  %v3194 = vunpack.c.l.b16 %v2429
  %v3195 = vunpack.c.h.b16 %v2429
  %v3196 = vunpack.c.l.b16 %v2430
  %v3197 = vunpack.c.h.b16 %v2430
  %v3198 = vunpack.c.l.b16 %v2431
  %v3199 = vunpack.c.h.b16 %v2431
  %v3200 = vunpack.c.l.b16 %v2432
  %v3201 = vunpack.c.h.b16 %v2432
  %v3202 = vunpack.c.l.b16 %v2433
  %v3203 = vunpack.c.h.b16 %v2433
  %v3204 = vunpack.c.l.b16 %v2434
  %v3205 = vunpack.c.h.b16 %v2434
  %v3206 = vunpack.c.l.b16 %v2435
  %v3207 = vunpack.c.h.b16 %v2435
  %v3208 = vunpack.c.l.b16 %v2436
  %v3209 = vunpack.c.h.b16 %v2436
  %v3210 = vunpack.c.l.b16 %v2437
  %v3211 = vunpack.c.h.b16 %v2437
  %v3212 = vunpack.c.l.b16 %v2438
  %v3213 = vunpack.c.h.b16 %v2438
  %v3214 = vunpack.c.l.b16 %v2439
  %v3215 = vunpack.c.h.b16 %v2439
  %v3216 = vunpack.c.l.b16 %v2440
  %v3217 = vunpack.c.h.b16 %v2440
  %v3218 = vunpack.c.l.b16 %v2441
  %v3219 = vunpack.c.h.b16 %v2441
  %v3220 = vunpack.c.l.b16 %v2442
  %v3221 = vunpack.c.h.b16 %v2442
  %v3222 = vunpack.c.l.b16 %v2443
  %v3223 = vunpack.c.h.b16 %v2443
  %v3224 = vunpack.c.l.b16 %v2444
  %v3225 = vunpack.c.h.b16 %v2444
  %v3226 = vunpack.c.l.b16 %v2445
  %v3227 = vunpack.c.h.b16 %v2445
  %v3228 = vunpack.c.l.b16 %v2446
  %v3229 = vunpack.c.h.b16 %v2446
  %v3230 = vunpack.c.l.b16 %v2447
  %v3231 = vunpack.c.h.b16 %v2447
  %v3232 = vunpack.c.l.b16 %v2448
  %v3233 = vunpack.c.h.b16 %v2448
  %v3234 = vunpack.c.l.b16 %v2449
  %v3235 = vunpack.c.h.b16 %v2449
  %v3236 = vunpack.c.l.b16 %v2450
  %v3237 = vunpack.c.h.b16 %v2450
  %v3238 = vunpack.c.l.b16 %v2451
  %v3239 = vunpack.c.h.b16 %v2451
  %v3240 = vunpack.c.l.b16 %v2452
  %v3241 = vunpack.c.h.b16 %v2452
  %v3242 = vunpack.c.l.b16 %v2453
  %v3243 = vunpack.c.h.b16 %v2453
  %v3244 = vunpack.c.l.b16 %v2454
  %v3245 = vunpack.c.h.b16 %v2454
  %v3246 = vunpack.c.l.b16 %v2455
  %v3247 = vunpack.c.h.b16 %v2455
  %v3248 = vunpack.c.l.b16 %v2456
  %v3249 = vunpack.c.h.b16 %v2456
  %v3250 = vunpack.c.l.b16 %v2457
  %v3251 = vunpack.c.h.b16 %v2457
  %v3252 = vunpack.c.l.b16 %v2458
  %v3253 = vunpack.c.h.b16 %v2458
  %v3254 = vunpack.c.l.b16 %v2459
  %v3255 = vunpack.c.h.b16 %v2459
  %v3256 = vunpack.c.l.b16 %v2460
  %v3257 = vunpack.c.h.b16 %v2460
  %v3258 = vunpack.c.l.b16 %v2461
  %v3259 = vunpack.c.h.b16 %v2461
  %v3260 = vunpack.c.l.b16 %v2462
  %v3261 = vunpack.c.h.b16 %v2462
  %v3262 = vunpack.c.l.b16 %v2463
  %v3263 = vunpack.c.h.b16 %v2463
  %v3264 = vunpack.c.l.b16 %v2464
  %v3265 = vunpack.c.h.b16 %v2464
  %v3266 = vunpack.c.l.b16 %v2465
  %v3267 = vunpack.c.h.b16 %v2465
  %v3268 = vunpack.c.l.b16 %v2466
  %v3269 = vunpack.c.h.b16 %v2466
  %v3270 = vunpack.c.l.b16 %v2467
  %v3271 = vunpack.c.h.b16 %v2467
  %v3272 = vunpack.c.l.b16 %v2468
  %v3273 = vunpack.c.h.b16 %v2468
  %v3274 = vunpack.c.l.b16 %v2469
  %v3275 = vunpack.c.h.b16 %v2469
  %v3276 = vunpack.c.l.b16 %v2470
  %v3277 = vunpack.c.h.b16 %v2470
  %v3278 = vunpack.c.l.b16 %v2471
  %v3279 = vunpack.c.h.b16 %v2471
  %v3280 = vunpack.c.l.b16 %v2472
  %v3281 = vunpack.c.h.b16 %v2472
  %v3282 = vunpack.c.l.b16 %v2473
  %v3283 = vunpack.c.h.b16 %v2473
  %v3284 = vunpack.c.l.b16 %v2474
  %v3285 = vunpack.c.h.b16 %v2474
  %v3286 = vunpack.c.l.b16 %v2475
  %v3287 = vunpack.c.h.b16 %v2475
  %v3288 = vunpack.c.l.b16 %v2476
  %v3289 = vunpack.c.h.b16 %v2476
  %v3290 = vunpack.c.l.b16 %v2477
  %v3291 = vunpack.c.h.b16 %v2477
  %v3292 = vunpack.c.l.b16 %v2478
  %v3293 = vunpack.c.h.b16 %v2478
  %v3294 = vunpack.c.l.b16 %v2479
  %v3295 = vunpack.c.h.b16 %v2479
  %v3296 = vunpack.c.l.b16 %v2480
  %v3297 = vunpack.c.h.b16 %v2480
  %v3298 = vunpack.c.l.b16 %v2481
  %v3299 = vunpack.c.h.b16 %v2481
  %v3300 = vunpack.c.l.b16 %v2482
  %v3301 = vunpack.c.h.b16 %v2482
  %v3302 = vunpack.c.l.b16 %v2483
  %v3303 = vunpack.c.h.b16 %v2483
  %v3304 = vunpack.c.l.b16 %v2484
  %v3305 = vunpack.c.h.b16 %v2484
  %v3306 = vunpack.c.l.b16 %v2485
  %v3307 = vunpack.c.h.b16 %v2485
  %v3308 = vunpack.c.l.b16 %v2486
  %v3309 = vunpack.c.h.b16 %v2486
  %v3310 = vunpack.c.l.b16 %v2487
  %v3311 = vunpack.c.h.b16 %v2487
  %v3312 = vunpack.c.l.b16 %v2488
  %v3313 = vunpack.c.h.b16 %v2488
  %v3314 = vunpack.c.l.b16 %v2489
  %v3315 = vunpack.c.h.b16 %v2489
  %v3316 = vunpack.c.l.b16 %v2490
  %v3317 = vunpack.c.h.b16 %v2490
  %v3318 = vunpack.c.l.b16 %v2491
  %v3319 = vunpack.c.h.b16 %v2491
  %v3320 = vunpack.c.l.b16 %v2492
  %v3321 = vunpack.c.h.b16 %v2492
  %v3322 = vunpack.c.l.b16 %v2493
  %v3323 = vunpack.c.h.b16 %v2493
  %v3324 = vunpack.c.l.b16 %v2494
  %v3325 = vunpack.c.h.b16 %v2494
  %v3326 = vunpack.c.l.b16 %v2495
  %v3327 = vunpack.c.h.b16 %v2495
  %v3328 = vunpack.c.l.b16 %v2496
  %v3329 = vunpack.c.h.b16 %v2496
  %v3330 = vunpack.c.l.b16 %v2497
  %v3331 = vunpack.c.h.b16 %v2497
  %v3332 = vunpack.c.l.b16 %v2498
  %v3333 = vunpack.c.h.b16 %v2498
  %v3334 = vunpack.c.l.b16 %v2499
  %v3335 = vunpack.c.h.b16 %v2499
  %v3336 = vunpack.c.l.b16 %v2500
  %v3337 = vunpack.c.h.b16 %v2500
  %v3338 = vunpack.c.l.b16 %v2501
  %v3339 = vunpack.c.h.b16 %v2501
  %v3340 = vunpack.c.l.b16 %v2502
  %v3341 = vunpack.c.h.b16 %v2502
  %v3342 = vunpack.c.l.b16 %v2503
  %v3343 = vunpack.c.h.b16 %v2503
  %v3344 = vunpack.c.l.b16 %v2504
  %v3345 = vunpack.c.h.b16 %v2504
  %v3346 = vunpack.c.l.b16 %v2505
  %v3347 = vunpack.c.h.b16 %v2505
  %v3348 = vunpack.c.l.b16 %v2506
  %v3349 = vunpack.c.h.b16 %v2506
  %v3350 = vunpack.c.l.b16 %v2507
  %v3351 = vunpack.c.h.b16 %v2507
  %v3352 = vunpack.c.l.b16 %v2508
  %v3353 = vunpack.c.h.b16 %v2508
  %v3354 = vunpack.c.l.b16 %v2509
  %v3355 = vunpack.c.h.b16 %v2509
  %v3356 = vunpack.c.l.b16 %v2510
  %v3357 = vunpack.c.h.b16 %v2510
  %v3358 = vunpack.c.l.b16 %v2511
  %v3359 = vunpack.c.h.b16 %v2511
  %v3360 = vunpack.c.l.b16 %v2512
  %v3361 = vunpack.c.h.b16 %v2512
  %v3362 = vunpack.c.l.b16 %v2513
  %v3363 = vunpack.c.h.b16 %v2513
  %v3364 = vunpack.c.l.b16 %v2514
  %v3365 = vunpack.c.h.b16 %v2514
  %v3366 = vunpack.c.l.b16 %v2515
  %v3367 = vunpack.c.h.b16 %v2515
  %v3368 = vunpack.c.l.b16 %v2516
  %v3369 = vunpack.c.h.b16 %v2516
  %v3370 = vunpack.c.l.b16 %v2517
  %v3371 = vunpack.c.h.b16 %v2517
  %v3372 = vunpack.c.l.b16 %v2518
  %v3373 = vunpack.c.h.b16 %v2518
  %v3374 = vunpack.c.l.b16 %v2519
  %v3375 = vunpack.c.h.b16 %v2519
  %v3376 = vunpack.c.l.b16 %v2520
  %v3377 = vunpack.c.h.b16 %v2520
  %v3378 = vunpack.c.l.b16 %v2521
  %v3379 = vunpack.c.h.b16 %v2521
  %v3380 = vunpack.c.l.b16 %v2522
  %v3381 = vunpack.c.h.b16 %v2522
  %v3382 = vunpack.c.l.b16 %v2523
  %v3383 = vunpack.c.h.b16 %v2523
  %v3384 = vunpack.c.l.b16 %v2524
  %v3385 = vunpack.c.h.b16 %v2524
  %v3386 = vunpack.c.l.b16 %v2525
  %v3387 = vunpack.c.h.b16 %v2525
  %v3388 = vunpack.c.l.b16 %v2526
  %v3389 = vunpack.c.h.b16 %v2526
  %v3390 = vunpack.c.l.b16 %v2527
  %v3391 = vunpack.c.h.b16 %v2527
  %v3392 = vunpack.c.l.b16 %v2528
  %v3393 = vunpack.c.h.b16 %v2528
  %v3394 = vunpack.c.l.b16 %v2529
  %v3395 = vunpack.c.h.b16 %v2529
  %v3396 = vunpack.c.l.b16 %v2530
  %v3397 = vunpack.c.h.b16 %v2530
  %v3398 = vunpack.c.l.b16 %v2531
  %v3399 = vunpack.c.h.b16 %v2531
  %v3400 = vunpack.c.l.b16 %v2532
  %v3401 = vunpack.c.h.b16 %v2532
  %v3402 = vunpack.c.l.b16 %v2533
  %v3403 = vunpack.c.h.b16 %v2533
  %v3404 = vpack.c.b16 %v2830, %v2828
  %v3405 = vpack.c.b16 %v2831, %v2829
  %v3406 = vpack.c.b16 %v2834, %v2832
  %v3407 = vpack.c.b16 %v2835, %v2833
  %v3408 = vpack.c.b16 %v2838, %v2836
  %v3409 = vpack.c.b16 %v2839, %v2837
  %v3410 = vpack.c.b16 %v2842, %v2840
  %v3411 = vpack.c.b16 %v2843, %v2841
  %v3412 = vpack.c.b16 %v2846, %v2844
  %v3413 = vpack.c.b16 %v2847, %v2845
  %v3414 = vpack.c.b16 %v2850, %v2848
  %v3415 = vpack.c.b16 %v2851, %v2849
  %v3416 = vpack.c.b16 %v2854, %v2852
  %v3417 = vpack.c.b16 %v2855, %v2853
  %v3418 = vpack.c.b16 %v2858, %v2856
  %v3419 = vpack.c.b16 %v2859, %v2857
  %v3420 = vpack.c.b16 %v2862, %v2860
  %v3421 = vpack.c.b16 %v2863, %v2861
  %v3422 = vpack.c.b16 %v2866, %v2864
  %v3423 = vpack.c.b16 %v2867, %v2865
  %v3424 = vpack.c.b16 %v2870, %v2868
  %v3425 = vpack.c.b16 %v2871, %v2869
  %v3426 = vpack.c.b16 %v2874, %v2872
  %v3427 = vpack.c.b16 %v2875, %v2873
  %v3428 = vpack.c.b16 %v2878, %v2876
  %v3429 = vpack.c.b16 %v2879, %v2877
  %v3430 = vpack.c.b16 %v2882, %v2880
  %v3431 = vpack.c.b16 %v2883, %v2881
  %v3432 = vpack.c.b16 %v2886, %v2884
  %v3433 = vpack.c.b16 %v2887, %v2885
  %v3434 = vpack.c.b16 %v2890, %v2888
  %v3435 = vpack.c.b16 %v2891, %v2889
  %v3436 = vpack.c.b16 %v2894, %v2892
  %v3437 = vpack.c.b16 %v2895, %v2893
  %v3438 = vpack.c.b16 %v2898, %v2896
  %v3439 = vpack.c.b16 %v2899, %v2897
  %v3440 = vpack.c.b16 %v2902, %v2900
  %v3441 = vpack.c.b16 %v2903, %v2901
  %v3442 = vpack.c.b16 %v2906, %v2904
  %v3443 = vpack.c.b16 %v2907, %v2905
  %v3444 = vpack.c.b16 %v2910, %v2908
  %v3445 = vpack.c.b16 %v2911, %v2909
  %v3446 = vpack.c.b16 %v2914, %v2912
  %v3447 = vpack.c.b16 %v2915, %v2913
  %v3448 = vpack.c.b16 %v2918, %v2916
  %v3449 = vpack.c.b16 %v2919, %v2917
  %v3450 = vpack.c.b16 %v2922, %v2920
  %v3451 = vpack.c.b16 %v2923, %v2921
  %v3452 = vpack.c.b16 %v2926, %v2924
  %v3453 = vpack.c.b16 %v2927, %v2925
  %v3454 = vpack.c.b16 %v2930, %v2928
  %v3455 = vpack.c.b16 %v2931, %v2929
  %v3456 = vpack.c.b16 %v2934, %v2932
  %v3457 = vpack.c.b16 %v2935, %v2933
  %v3458 = vpack.c.b16 %v2938, %v2936
  %v3459 = vpack.c.b16 %v2939, %v2937
  %v3460 = vpack.c.b16 %v2942, %v2940
  %v3461 = vpack.c.b16 %v2943, %v2941
  %v3462 = vpack.c.b16 %v2946, %v2944
  %v3463 = vpack.c.b16 %v2947, %v2945
  %v3464 = vpack.c.b16 %v2950, %v2948
  %v3465 = vpack.c.b16 %v2951, %v2949
  %v3466 = vpack.c.b16 %v2954, %v2952
  %v3467 = vpack.c.b16 %v2955, %v2953
  %v3468 = vpack.c.b16 %v2958, %v2956
  %v3469 = vpack.c.b16 %v2959, %v2957
  %v3470 = vpack.c.b16 %v2962, %v2960
  %v3471 = vpack.c.b16 %v2963, %v2961
  %v3472 = vpack.c.b16 %v2966, %v2964
  %v3473 = vpack.c.b16 %v2967, %v2965
  %v3474 = vpack.c.b16 %v2970, %v2968
  %v3475 = vpack.c.b16 %v2971, %v2969
  %v3476 = vpack.c.b16 %v2974, %v2972
  %v3477 = vpack.c.b16 %v2975, %v2973
  %v3478 = vpack.c.b16 %v2978, %v2976
  %v3479 = vpack.c.b16 %v2979, %v2977
  %v3480 = vpack.c.b16 %v2982, %v2980
  %v3481 = vpack.c.b16 %v2983, %v2981
  %v3482 = vpack.c.b16 %v2986, %v2984
  %v3483 = vpack.c.b16 %v2987, %v2985
  %v3484 = vpack.c.b16 %v2990, %v2988
  %v3485 = vpack.c.b16 %v2991, %v2989
  %v3486 = vpack.c.b16 %v2994, %v2992
  %v3487 = vpack.c.b16 %v2995, %v2993
  %v3488 = vpack.c.b16 %v2998, %v2996
  %v3489 = vpack.c.b16 %v2999, %v2997
  %v3490 = vpack.c.b16 %v3002, %v3000
  %v3491 = vpack.c.b16 %v3003, %v3001
  %v3492 = vpack.c.b16 %v3006, %v3004
  %v3493 = vpack.c.b16 %v3007, %v3005
  %v3494 = vpack.c.b16 %v3010, %v3008
  %v3495 = vpack.c.b16 %v3011, %v3009
  %v3496 = vpack.c.b16 %v3014, %v3012
  %v3497 = vpack.c.b16 %v3015, %v3013
  %v3498 = vpack.c.b16 %v3018, %v3016
  %v3499 = vpack.c.b16 %v3019, %v3017
  %v3500 = vpack.c.b16 %v3022, %v3020
  %v3501 = vpack.c.b16 %v3023, %v3021
  %v3502 = vpack.c.b16 %v3026, %v3024
  %v3503 = vpack.c.b16 %v3027, %v3025
  %v3504 = vpack.c.b16 %v3030, %v3028
  %v3505 = vpack.c.b16 %v3031, %v3029
  %v3506 = vpack.c.b16 %v3034, %v3032
  %v3507 = vpack.c.b16 %v3035, %v3033
  %v3508 = vpack.c.b16 %v3038, %v3036
  %v3509 = vpack.c.b16 %v3039, %v3037
  %v3510 = vpack.c.b16 %v3042, %v3040
  %v3511 = vpack.c.b16 %v3043, %v3041
  %v3512 = vpack.c.b16 %v3046, %v3044
  %v3513 = vpack.c.b16 %v3047, %v3045
  %v3514 = vpack.c.b16 %v3050, %v3048
  %v3515 = vpack.c.b16 %v3051, %v3049
  %v3516 = vpack.c.b16 %v3054, %v3052
  %v3517 = vpack.c.b16 %v3055, %v3053
  %v3518 = vpack.c.b16 %v3058, %v3056
  %v3519 = vpack.c.b16 %v3059, %v3057
  %v3520 = vpack.c.b16 %v3062, %v3060
  %v3521 = vpack.c.b16 %v3063, %v3061
  %v3522 = vpack.c.b16 %v3066, %v3064
  %v3523 = vpack.c.b16 %v3067, %v3065
  %v3524 = vpack.c.b16 %v3070, %v3068
  %v3525 = vpack.c.b16 %v3071, %v3069
  %v3526 = vpack.c.b16 %v3074, %v3072
  %v3527 = vpack.c.b16 %v3075, %v3073
  %v3528 = vpack.c.b16 %v3078, %v3076
  %v3529 = vpack.c.b16 %v3079, %v3077
  %v3530 = vpack.c.b16 %v3082, %v3080
  %v3531 = vpack.c.b16 %v3083, %v3081
  %v3532 = vpack.c.b16 %v3086, %v3084
  %v3533 = vpack.c.b16 %v3087, %v3085
  %v3534 = vpack.c.b16 %v3090, %v3088
  %v3535 = vpack.c.b16 %v3091, %v3089
  %v3536 = vpack.c.b16 %v3094, %v3092
  %v3537 = vpack.c.b16 %v3095, %v3093
  %v3538 = vpack.c.b16 %v3098, %v3096
  %v3539 = vpack.c.b16 %v3099, %v3097
  %v3540 = vpack.c.b16 %v3102, %v3100
  %v3541 = vpack.c.b16 %v3103, %v3101
  %v3542 = vpack.c.b16 %v3106, %v3104
  %v3543 = vpack.c.b16 %v3107, %v3105
  %v3544 = vpack.c.b16 %v3110, %v3108
  %v3545 = vpack.c.b16 %v3111, %v3109
  %v3546 = vpack.c.b16 %v3114, %v3112
  %v3547 = vpack.c.b16 %v3115, %v3113
  %v3548 = vpack.c.b16 %v3118, %v3116
  %v3549 = vpack.c.b16 %v3119, %v3117
  %v3550 = vpack.c.b16 %v3122, %v3120
  %v3551 = vpack.c.b16 %v3123, %v3121
  %v3552 = vpack.c.b16 %v3126, %v3124
  %v3553 = vpack.c.b16 %v3127, %v3125
  %v3554 = vpack.c.b16 %v3130, %v3128
  %v3555 = vpack.c.b16 %v3131, %v3129
  %v3556 = vpack.c.b16 %v3134, %v3132
  %v3557 = vpack.c.b16 %v3135, %v3133
  %v3558 = vpack.c.b16 %v3138, %v3136
  %v3559 = vpack.c.b16 %v3139, %v3137
  %v3560 = vpack.c.b16 %v3142, %v3140
  %v3561 = vpack.c.b16 %v3143, %v3141
  %v3562 = vpack.c.b16 %v3146, %v3144
  %v3563 = vpack.c.b16 %v3147, %v3145
  %v3564 = vpack.c.b16 %v3150, %v3148
  %v3565 = vpack.c.b16 %v3151, %v3149
  %v3566 = vpack.c.b16 %v3154, %v3152
  %v3567 = vpack.c.b16 %v3155, %v3153
  %v3568 = vpack.c.b16 %v3158, %v3156
  %v3569 = vpack.c.b16 %v3159, %v3157
  %v3570 = vpack.c.b16 %v3162, %v3160
  %v3571 = vpack.c.b16 %v3163, %v3161
  %v3572 = vpack.c.b16 %v3166, %v3164
  %v3573 = vpack.c.b16 %v3167, %v3165
  %v3574 = vpack.c.b16 %v3170, %v3168
  %v3575 = vpack.c.b16 %v3171, %v3169
  %v3576 = vpack.c.b16 %v3174, %v3172
  %v3577 = vpack.c.b16 %v3175, %v3173
  %v3578 = vpack.c.b16 %v3178, %v3176
  %v3579 = vpack.c.b16 %v3179, %v3177
  %v3580 = vpack.c.b16 %v3182, %v3180
  %v3581 = vpack.c.b16 %v3183, %v3181
  %v3582 = vpack.c.b16 %v3186, %v3184
  %v3583 = vpack.c.b16 %v3187, %v3185
  %v3584 = vpack.c.b16 %v3190, %v3188
  %v3585 = vpack.c.b16 %v3191, %v3189
  %v3586 = vpack.c.b16 %v3194, %v3192
  %v3587 = vpack.c.b16 %v3195, %v3193
  %v3588 = vpack.c.b16 %v3198, %v3196
  %v3589 = vpack.c.b16 %v3199, %v3197
  %v3590 = vpack.c.b16 %v3202, %v3200
  %v3591 = vpack.c.b16 %v3203, %v3201
  %v3592 = vpack.c.b16 %v3206, %v3204
  %v3593 = vpack.c.b16 %v3207, %v3205
  %v3594 = vpack.c.b16 %v3210, %v3208
  %v3595 = vpack.c.b16 %v3211, %v3209
  %v3596 = vpack.c.b16 %v3214, %v3212
  %v3597 = vpack.c.b16 %v3215, %v3213
  %v3598 = vpack.c.b16 %v3218, %v3216
  %v3599 = vpack.c.b16 %v3219, %v3217
  %v3600 = vpack.c.b16 %v3222, %v3220
  %v3601 = vpack.c.b16 %v3223, %v3221
  %v3602 = vpack.c.b16 %v3226, %v3224
  %v3603 = vpack.c.b16 %v3227, %v3225
  %v3604 = vpack.c.b16 %v3230, %v3228
  %v3605 = vpack.c.b16 %v3231, %v3229
  %v3606 = vpack.c.b16 %v3234, %v3232
  %v3607 = vpack.c.b16 %v3235, %v3233
  %v3608 = vpack.c.b16 %v3238, %v3236
  %v3609 = vpack.c.b16 %v3239, %v3237
  %v3610 = vpack.c.b16 %v3242, %v3240
  %v3611 = vpack.c.b16 %v3243, %v3241
  %v3612 = vpack.c.b16 %v3246, %v3244
  %v3613 = vpack.c.b16 %v3247, %v3245
  %v3614 = vpack.c.b16 %v3250, %v3248
  %v3615 = vpack.c.b16 %v3251, %v3249
  %v3616 = vpack.c.b16 %v3254, %v3252
  %v3617 = vpack.c.b16 %v3255, %v3253
  %v3618 = vpack.c.b16 %v3258, %v3256
  %v3619 = vpack.c.b16 %v3259, %v3257
  %v3620 = vpack.c.b16 %v3262, %v3260
  %v3621 = vpack.c.b16 %v3263, %v3261
  %v3622 = vpack.c.b16 %v3266, %v3264
  %v3623 = vpack.c.b16 %v3267, %v3265
  %v3624 = vpack.c.b16 %v3270, %v3268
  %v3625 = vpack.c.b16 %v3271, %v3269
  %v3626 = vpack.c.b16 %v3274, %v3272
  %v3627 = vpack.c.b16 %v3275, %v3273
  %v3628 = vpack.c.b16 %v3278, %v3276
  %v3629 = vpack.c.b16 %v3279, %v3277
  %v3630 = vpack.c.b16 %v3282, %v3280
  %v3631 = vpack.c.b16 %v3283, %v3281
  %v3632 = vpack.c.b16 %v3286, %v3284
  %v3633 = vpack.c.b16 %v3287, %v3285
  %v3634 = vpack.c.b16 %v3290, %v3288
  %v3635 = vpack.c.b16 %v3291, %v3289
  %v3636 = vpack.c.b16 %v3294, %v3292
  %v3637 = vpack.c.b16 %v3295, %v3293
  %v3638 = vpack.c.b16 %v3298, %v3296
  %v3639 = vpack.c.b16 %v3299, %v3297
  %v3640 = vpack.c.b16 %v3302, %v3300
  %v3641 = vpack.c.b16 %v3303, %v3301
  %v3642 = vpack.c.b16 %v3306, %v3304
  %v3643 = vpack.c.b16 %v3307, %v3305
  %v3644 = vpack.c.b16 %v3310, %v3308
  %v3645 = vpack.c.b16 %v3311, %v3309
  %v3646 = vpack.c.b16 %v3314, %v3312
  %v3647 = vpack.c.b16 %v3315, %v3313
  %v3648 = vpack.c.b16 %v3318, %v3316
  %v3649 = vpack.c.b16 %v3319, %v3317
  %v3650 = vpack.c.b16 %v3322, %v3320
  %v3651 = vpack.c.b16 %v3323, %v3321
  %v3652 = vpack.c.b16 %v3326, %v3324
  %v3653 = vpack.c.b16 %v3327, %v3325
  %v3654 = vpack.c.b16 %v3330, %v3328
  %v3655 = vpack.c.b16 %v3331, %v3329
  %v3656 = vpack.c.b16 %v3334, %v3332
  %v3657 = vpack.c.b16 %v3335, %v3333
  %v3658 = vpack.c.b16 %v3338, %v3336
  %v3659 = vpack.c.b16 %v3339, %v3337
  %v3660 = vpack.c.b16 %v3342, %v3340
  %v3661 = vpack.c.b16 %v3343, %v3341
  %v3662 = vpack.c.b16 %v3346, %v3344
  %v3663 = vpack.c.b16 %v3347, %v3345
  %v3664 = vpack.c.b16 %v3350, %v3348
  %v3665 = vpack.c.b16 %v3351, %v3349
  %v3666 = vpack.c.b16 %v3354, %v3352
  %v3667 = vpack.c.b16 %v3355, %v3353
  %v3668 = vpack.c.b16 %v3358, %v3356
  %v3669 = vpack.c.b16 %v3359, %v3357
  %v3670 = vpack.c.b16 %v3362, %v3360
  %v3671 = vpack.c.b16 %v3363, %v3361
  %v3672 = vpack.c.b16 %v3366, %v3364
  %v3673 = vpack.c.b16 %v3367, %v3365
  %v3674 = vpack.c.b16 %v3370, %v3368
  %v3675 = vpack.c.b16 %v3371, %v3369
  %v3676 = vpack.c.b16 %v3374, %v3372
  %v3677 = vpack.c.b16 %v3375, %v3373
  %v3678 = vpack.c.b16 %v3378, %v3376
  %v3679 = vpack.c.b16 %v3379, %v3377
  %v3680 = vpack.c.b16 %v3382, %v3380
  %v3681 = vpack.c.b16 %v3383, %v3381
  %v3682 = vpack.c.b16 %v3386, %v3384
  %v3683 = vpack.c.b16 %v3387, %v3385
  %v3684 = vpack.c.b16 %v3390, %v3388
  %v3685 = vpack.c.b16 %v3391, %v3389
  %v3686 = vpack.c.b16 %v3394, %v3392
  %v3687 = vpack.c.b16 %v3395, %v3393
  %v3688 = vpack.c.b16 %v3398, %v3396
  %v3689 = vpack.c.b16 %v3399, %v3397
  %v3690 = vpack.c.b16 %v3402, %v3400
  %v3691 = vpack.c.b16 %v3403, %v3401
  %3980 = vmatpush.bf16.msra.mxu0 %v3418
  %3981 = vmatpush.bf16.msra.mxu0 %v3416
  %3982 = vmatpush.bf16.msra.mxu0 %v3414
  %3983 = vmatpush.bf16.msra.mxu0 %v3412
  %3984 = vmatpush.bf16.msra.mxu0 %v3410
  %3985 = vmatpush.bf16.msra.mxu0 %v3408
  %3986 = vmatpush.bf16.msra.mxu0 %v3406
  %3987 = vmatpush.bf16.msra.mxu0 %v3404
  %3988 = vmatmul.bf16.gmra.mxu0 %v1574
  %v3989 = vpop.f32.mrf.mxu0
  %v3990 = vadd.f32 %v2536, %v3989
  %v3991 = vpop.f32.mrf.mxu0
  %v3992 = vadd.f32 %v2536, %v3991
  %3993 = vmatmul.bf16.gmra.mxu0 %v1576
  %v3994 = vpop.f32.mrf.mxu0
  %v3995 = vadd.f32 %v2536, %v3994
  %v3996 = vpop.f32.mrf.mxu0
  %v3997 = vadd.f32 %v2536, %v3996
  %3998 = vmatmul.bf16.gmra.mxu0 %v1578
  %v3999 = vpop.f32.mrf.mxu0
  %v4000 = vadd.f32 %v2536, %v3999
  %v4001 = vpop.f32.mrf.mxu0
  %v4002 = vadd.f32 %v2536, %v4001
  %4003 = vmatmul.bf16.gmra.mxu0 %v1580
  %v4004 = vpop.f32.mrf.mxu0
  %v4005 = vadd.f32 %v2536, %v4004
  %v4006 = vpop.f32.mrf.mxu0
  %v4007 = vadd.f32 %v2536, %v4006
  %4008 = vmatmul.bf16.gmra.mxu0 %v1582
  %v4009 = vpop.f32.mrf.mxu0
  %v4010 = vadd.f32 %v2536, %v4009
  %v4011 = vpop.f32.mrf.mxu0
  %v4012 = vadd.f32 %v2536, %v4011
  %4013 = vmatmul.bf16.gmra.mxu0 %v1584
  %v4014 = vpop.f32.mrf.mxu0
  %v4015 = vadd.f32 %v2536, %v4014
  %v4016 = vpop.f32.mrf.mxu0
  %v4017 = vadd.f32 %v2536, %v4016
  %4018 = vmatmul.bf16.gmra.mxu0 %v1586
  %v4019 = vpop.f32.mrf.mxu0
  %v4020 = vadd.f32 %v2536, %v4019
  %v4021 = vpop.f32.mrf.mxu0
  %v4022 = vadd.f32 %v2536, %v4021
  %4023 = vmatmul.bf16.gmra.mxu0 %v1588
  %v4024 = vpop.f32.mrf.mxu0
  %v4025 = vadd.f32 %v2536, %v4024
  %v4026 = vpop.f32.mrf.mxu0
  %v4027 = vadd.f32 %v2536, %v4026
  %4028 = vdwg.mxu0
  %4029 = vmatpush.bf16.msra.mxu0 %v3434
  %4030 = vmatpush.bf16.msra.mxu0 %v3432
  %4031 = vmatpush.bf16.msra.mxu0 %v3430
  %4032 = vmatpush.bf16.msra.mxu0 %v3428
  %4033 = vmatpush.bf16.msra.mxu0 %v3426
  %4034 = vmatpush.bf16.msra.mxu0 %v3424
  %4035 = vmatpush.bf16.msra.mxu0 %v3422
  %4036 = vmatpush.bf16.msra.mxu0 %v3420
  %4037 = vmatmul.bf16.gmra.mxu0 %v1575
  %v4038 = vpop.f32.mrf.mxu0
  %v4039 = vadd.f32 %v3990, %v4038
  %v4040 = vpop.f32.mrf.mxu0
  %v4041 = vadd.f32 %v3992, %v4040
  %4042 = vmatmul.bf16.gmra.mxu0 %v1577
  %v4043 = vpop.f32.mrf.mxu0
  %v4044 = vadd.f32 %v3995, %v4043
  %v4045 = vpop.f32.mrf.mxu0
  %v4046 = vadd.f32 %v3997, %v4045
  %4047 = vmatmul.bf16.gmra.mxu0 %v1579
  %v4048 = vpop.f32.mrf.mxu0
  %v4049 = vadd.f32 %v4000, %v4048
  %v4050 = vpop.f32.mrf.mxu0
  %v4051 = vadd.f32 %v4002, %v4050
  %4052 = vmatmul.bf16.gmra.mxu0 %v1581
  %v4053 = vpop.f32.mrf.mxu0
  %v4054 = vadd.f32 %v4005, %v4053
  %v4055 = vpop.f32.mrf.mxu0
  %v4056 = vadd.f32 %v4007, %v4055
  %4057 = vmatmul.bf16.gmra.mxu0 %v1583
  %v4058 = vpop.f32.mrf.mxu0
  %v4059 = vadd.f32 %v4010, %v4058
  %v4060 = vpop.f32.mrf.mxu0
  %v4061 = vadd.f32 %v4012, %v4060
  %4062 = vmatmul.bf16.gmra.mxu0 %v1585
  %v4063 = vpop.f32.mrf.mxu0
  %v4064 = vadd.f32 %v4015, %v4063
  %v4065 = vpop.f32.mrf.mxu0
  %v4066 = vadd.f32 %v4017, %v4065
  %4067 = vmatmul.bf16.gmra.mxu0 %v1587
  %v4068 = vpop.f32.mrf.mxu0
  %v4069 = vadd.f32 %v4020, %v4068
  %v4070 = vpop.f32.mrf.mxu0
  %v4071 = vadd.f32 %v4022, %v4070
  %4072 = vmatmul.bf16.gmra.mxu0 %v1589
  %v4073 = vpop.f32.mrf.mxu0
  %v4074 = vadd.f32 %v4025, %v4073
  %v4075 = vpop.f32.mrf.mxu0
  %v4076 = vadd.f32 %v4027, %v4075
  %4077 = vdwg.mxu0
  %4078 = vmatpush.bf16.msra.mxu0 %v3450
  %4079 = vmatpush.bf16.msra.mxu0 %v3448
  %4080 = vmatpush.bf16.msra.mxu0 %v3446
  %4081 = vmatpush.bf16.msra.mxu0 %v3444
  %4082 = vmatpush.bf16.msra.mxu0 %v3442
  %4083 = vmatpush.bf16.msra.mxu0 %v3440
  %4084 = vmatpush.bf16.msra.mxu0 %v3438
  %4085 = vmatpush.bf16.msra.mxu0 %v3436
  %4086 = vmatmul.bf16.gmra.mxu0 %v1654
  %v4087 = vpop.f32.mrf.mxu0
  %v4088 = vadd.f32 %v4039, %v4087
  %v4089 = vpop.f32.mrf.mxu0
  %v4090 = vadd.f32 %v4041, %v4089
  %4091 = vmatmul.bf16.gmra.mxu0 %v1656
  %v4092 = vpop.f32.mrf.mxu0
  %v4093 = vadd.f32 %v4044, %v4092
  %v4094 = vpop.f32.mrf.mxu0
  %v4095 = vadd.f32 %v4046, %v4094
  %4096 = vmatmul.bf16.gmra.mxu0 %v1658
  %v4097 = vpop.f32.mrf.mxu0
  %v4098 = vadd.f32 %v4049, %v4097
  %v4099 = vpop.f32.mrf.mxu0
  %v4100 = vadd.f32 %v4051, %v4099
  %4101 = vmatmul.bf16.gmra.mxu0 %v1660
  %v4102 = vpop.f32.mrf.mxu0
  %v4103 = vadd.f32 %v4054, %v4102
  %v4104 = vpop.f32.mrf.mxu0
  %v4105 = vadd.f32 %v4056, %v4104
  %4106 = vmatmul.bf16.gmra.mxu0 %v1662
  %v4107 = vpop.f32.mrf.mxu0
  %v4108 = vadd.f32 %v4059, %v4107
  %v4109 = vpop.f32.mrf.mxu0
  %v4110 = vadd.f32 %v4061, %v4109
  %4111 = vmatmul.bf16.gmra.mxu0 %v1664
  %v4112 = vpop.f32.mrf.mxu0
  %v4113 = vadd.f32 %v4064, %v4112
  %v4114 = vpop.f32.mrf.mxu0
  %v4115 = vadd.f32 %v4066, %v4114
  %4116 = vmatmul.bf16.gmra.mxu0 %v1666
  %v4117 = vpop.f32.mrf.mxu0
  %v4118 = vadd.f32 %v4069, %v4117
  %v4119 = vpop.f32.mrf.mxu0
  %v4120 = vadd.f32 %v4071, %v4119
  %4121 = vmatmul.bf16.gmra.mxu0 %v1668
  %v4122 = vpop.f32.mrf.mxu0
  %v4123 = vadd.f32 %v4074, %v4122
  %v4124 = vpop.f32.mrf.mxu0
  %v4125 = vadd.f32 %v4076, %v4124
  %4126 = vdwg.mxu0
  %4127 = vmatpush.bf16.msra.mxu0 %v3466
  %4128 = vmatpush.bf16.msra.mxu0 %v3464
  %4129 = vmatpush.bf16.msra.mxu0 %v3462
  %4130 = vmatpush.bf16.msra.mxu0 %v3460
  %4131 = vmatpush.bf16.msra.mxu0 %v3458
  %4132 = vmatpush.bf16.msra.mxu0 %v3456
  %4133 = vmatpush.bf16.msra.mxu0 %v3454
  %4134 = vmatpush.bf16.msra.mxu0 %v3452
  %4135 = vmatmul.bf16.gmra.mxu0 %v1655
  %v4136 = vpop.f32.mrf.mxu0
  %v4137 = vadd.f32 %v4088, %v4136
  %v4138 = vpop.f32.mrf.mxu0
  %v4139 = vadd.f32 %v4090, %v4138
  %4140 = vmatmul.bf16.gmra.mxu0 %v1657
  %v4141 = vpop.f32.mrf.mxu0
  %v4142 = vadd.f32 %v4093, %v4141
  %v4143 = vpop.f32.mrf.mxu0
  %v4144 = vadd.f32 %v4095, %v4143
  %4145 = vmatmul.bf16.gmra.mxu0 %v1659
  %v4146 = vpop.f32.mrf.mxu0
  %v4147 = vadd.f32 %v4098, %v4146
  %v4148 = vpop.f32.mrf.mxu0
  %v4149 = vadd.f32 %v4100, %v4148
  %4150 = vmatmul.bf16.gmra.mxu0 %v1661
  %v4151 = vpop.f32.mrf.mxu0
  %v4152 = vadd.f32 %v4103, %v4151
  %v4153 = vpop.f32.mrf.mxu0
  %v4154 = vadd.f32 %v4105, %v4153
  %4155 = vmatmul.bf16.gmra.mxu0 %v1663
  %v4156 = vpop.f32.mrf.mxu0
  %v4157 = vadd.f32 %v4108, %v4156
  %v4158 = vpop.f32.mrf.mxu0
  %v4159 = vadd.f32 %v4110, %v4158
  %4160 = vmatmul.bf16.gmra.mxu0 %v1665
  %v4161 = vpop.f32.mrf.mxu0
  %v4162 = vadd.f32 %v4113, %v4161
  %v4163 = vpop.f32.mrf.mxu0
  %v4164 = vadd.f32 %v4115, %v4163
  %4165 = vmatmul.bf16.gmra.mxu0 %v1667
  %v4166 = vpop.f32.mrf.mxu0
  %v4167 = vadd.f32 %v4118, %v4166
  %v4168 = vpop.f32.mrf.mxu0
  %v4169 = vadd.f32 %v4120, %v4168
  %4170 = vmatmul.bf16.gmra.mxu0 %v1669
  %v4171 = vpop.f32.mrf.mxu0
  %v4172 = vadd.f32 %v4123, %v4171
  %v4173 = vpop.f32.mrf.mxu0
  %v4174 = vadd.f32 %v4125, %v4173
  %4175 = vdwg.mxu0
  %4176 = vmatpush.bf16.msra.mxu0 %v3482
  %4177 = vmatpush.bf16.msra.mxu0 %v3480
  %4178 = vmatpush.bf16.msra.mxu0 %v3478
  %4179 = vmatpush.bf16.msra.mxu0 %v3476
  %4180 = vmatpush.bf16.msra.mxu0 %v3474
  %4181 = vmatpush.bf16.msra.mxu0 %v3472
  %4182 = vmatpush.bf16.msra.mxu0 %v3470
  %4183 = vmatpush.bf16.msra.mxu0 %v3468
  %4184 = vmatmul.bf16.gmra.mxu0 %v1734
  %v4185 = vpop.f32.mrf.mxu0
  %v4186 = vadd.f32 %v4137, %v4185
  %v4187 = vpop.f32.mrf.mxu0
  %v4188 = vadd.f32 %v4139, %v4187
  %4189 = vmatmul.bf16.gmra.mxu0 %v1736
  %v4190 = vpop.f32.mrf.mxu0
  %v4191 = vadd.f32 %v4142, %v4190
  %v4192 = vpop.f32.mrf.mxu0
  %v4193 = vadd.f32 %v4144, %v4192
  %4194 = vmatmul.bf16.gmra.mxu0 %v1738
  %v4195 = vpop.f32.mrf.mxu0
  %v4196 = vadd.f32 %v4147, %v4195
  %v4197 = vpop.f32.mrf.mxu0
  %v4198 = vadd.f32 %v4149, %v4197
  %4199 = vmatmul.bf16.gmra.mxu0 %v1740
  %v4200 = vpop.f32.mrf.mxu0
  %v4201 = vadd.f32 %v4152, %v4200
  %v4202 = vpop.f32.mrf.mxu0
  %v4203 = vadd.f32 %v4154, %v4202
  %4204 = vmatmul.bf16.gmra.mxu0 %v1742
  %v4205 = vpop.f32.mrf.mxu0
  %v4206 = vadd.f32 %v4157, %v4205
  %v4207 = vpop.f32.mrf.mxu0
  %v4208 = vadd.f32 %v4159, %v4207
  %4209 = vmatmul.bf16.gmra.mxu0 %v1744
  %v4210 = vpop.f32.mrf.mxu0
  %v4211 = vadd.f32 %v4162, %v4210
  %v4212 = vpop.f32.mrf.mxu0
  %v4213 = vadd.f32 %v4164, %v4212
  %4214 = vmatmul.bf16.gmra.mxu0 %v1746
  %v4215 = vpop.f32.mrf.mxu0
  %v4216 = vadd.f32 %v4167, %v4215
  %v4217 = vpop.f32.mrf.mxu0
  %v4218 = vadd.f32 %v4169, %v4217
  %4219 = vmatmul.bf16.gmra.mxu0 %v1748
  %v4220 = vpop.f32.mrf.mxu0
  %v4221 = vadd.f32 %v4172, %v4220
  %v4222 = vpop.f32.mrf.mxu0
  %v4223 = vadd.f32 %v4174, %v4222
  %4224 = vdwg.mxu0
  %4225 = vmatpush.bf16.msra.mxu0 %v3498
  %4226 = vmatpush.bf16.msra.mxu0 %v3496
  %4227 = vmatpush.bf16.msra.mxu0 %v3494
  %4228 = vmatpush.bf16.msra.mxu0 %v3492
  %4229 = vmatpush.bf16.msra.mxu0 %v3490
  %4230 = vmatpush.bf16.msra.mxu0 %v3488
  %4231 = vmatpush.bf16.msra.mxu0 %v3486
  %4232 = vmatpush.bf16.msra.mxu0 %v3484
  %4233 = vmatmul.bf16.gmra.mxu0 %v1735
  %v4234 = vpop.f32.mrf.mxu0
  %v4235 = vadd.f32 %v4186, %v4234
  %v4236 = vpop.f32.mrf.mxu0
  %v4237 = vadd.f32 %v4188, %v4236
  %4238 = vmatmul.bf16.gmra.mxu0 %v1737
  %v4239 = vpop.f32.mrf.mxu0
  %v4240 = vadd.f32 %v4191, %v4239
  %v4241 = vpop.f32.mrf.mxu0
  %v4242 = vadd.f32 %v4193, %v4241
  %4243 = vmatmul.bf16.gmra.mxu0 %v1739
  %v4244 = vpop.f32.mrf.mxu0
  %v4245 = vadd.f32 %v4196, %v4244
  %v4246 = vpop.f32.mrf.mxu0
  %v4247 = vadd.f32 %v4198, %v4246
  %4248 = vmatmul.bf16.gmra.mxu0 %v1741
  %v4249 = vpop.f32.mrf.mxu0
  %v4250 = vadd.f32 %v4201, %v4249
  %v4251 = vpop.f32.mrf.mxu0
  %v4252 = vadd.f32 %v4203, %v4251
  %4253 = vmatmul.bf16.gmra.mxu0 %v1743
  %v4254 = vpop.f32.mrf.mxu0
  %v4255 = vadd.f32 %v4206, %v4254
  %v4256 = vpop.f32.mrf.mxu0
  %v4257 = vadd.f32 %v4208, %v4256
  %4258 = vmatmul.bf16.gmra.mxu0 %v1745
  %v4259 = vpop.f32.mrf.mxu0
  %v4260 = vadd.f32 %v4211, %v4259
  %v4261 = vpop.f32.mrf.mxu0
  %v4262 = vadd.f32 %v4213, %v4261
  %4263 = vmatmul.bf16.gmra.mxu0 %v1747
  %v4264 = vpop.f32.mrf.mxu0
  %v4265 = vadd.f32 %v4216, %v4264
  %v4266 = vpop.f32.mrf.mxu0
  %v4267 = vadd.f32 %v4218, %v4266
  %4268 = vmatmul.bf16.gmra.mxu0 %v1749
  %v4269 = vpop.f32.mrf.mxu0
  %v4270 = vadd.f32 %v4221, %v4269
  %v4271 = vpop.f32.mrf.mxu0
  %v4272 = vadd.f32 %v4223, %v4271
  %4273 = vdwg.mxu0
  %4274 = vmatpush.bf16.msra.mxu0 %v3514
  %4275 = vmatpush.bf16.msra.mxu0 %v3512
  %4276 = vmatpush.bf16.msra.mxu0 %v3510
  %4277 = vmatpush.bf16.msra.mxu0 %v3508
  %4278 = vmatpush.bf16.msra.mxu0 %v3506
  %4279 = vmatpush.bf16.msra.mxu0 %v3504
  %4280 = vmatpush.bf16.msra.mxu0 %v3502
  %4281 = vmatpush.bf16.msra.mxu0 %v3500
  %4282 = vmatmul.bf16.gmra.mxu0 %v1814
  %v4283 = vpop.f32.mrf.mxu0
  %v4284 = vadd.f32 %v4235, %v4283
  %v4285 = vpop.f32.mrf.mxu0
  %v4286 = vadd.f32 %v4237, %v4285
  %4287 = vmatmul.bf16.gmra.mxu0 %v1816
  %v4288 = vpop.f32.mrf.mxu0
  %v4289 = vadd.f32 %v4240, %v4288
  %v4290 = vpop.f32.mrf.mxu0
  %v4291 = vadd.f32 %v4242, %v4290
  %4292 = vmatmul.bf16.gmra.mxu0 %v1818
  %v4293 = vpop.f32.mrf.mxu0
  %v4294 = vadd.f32 %v4245, %v4293
  %v4295 = vpop.f32.mrf.mxu0
  %v4296 = vadd.f32 %v4247, %v4295
  %4297 = vmatmul.bf16.gmra.mxu0 %v1820
  %v4298 = vpop.f32.mrf.mxu0
  %v4299 = vadd.f32 %v4250, %v4298
  %v4300 = vpop.f32.mrf.mxu0
  %v4301 = vadd.f32 %v4252, %v4300
  %4302 = vmatmul.bf16.gmra.mxu0 %v1822
  %v4303 = vpop.f32.mrf.mxu0
  %v4304 = vadd.f32 %v4255, %v4303
  %v4305 = vpop.f32.mrf.mxu0
  %v4306 = vadd.f32 %v4257, %v4305
  %4307 = vmatmul.bf16.gmra.mxu0 %v1824
  %v4308 = vpop.f32.mrf.mxu0
  %v4309 = vadd.f32 %v4260, %v4308
  %v4310 = vpop.f32.mrf.mxu0
  %v4311 = vadd.f32 %v4262, %v4310
  %4312 = vmatmul.bf16.gmra.mxu0 %v1826
  %v4313 = vpop.f32.mrf.mxu0
  %v4314 = vadd.f32 %v4265, %v4313
  %v4315 = vpop.f32.mrf.mxu0
  %v4316 = vadd.f32 %v4267, %v4315
  %4317 = vmatmul.bf16.gmra.mxu0 %v1828
  %v4318 = vpop.f32.mrf.mxu0
  %v4319 = vadd.f32 %v4270, %v4318
  %v4320 = vpop.f32.mrf.mxu0
  %v4321 = vadd.f32 %v4272, %v4320
  %4322 = vdwg.mxu0
  %4323 = vmatpush.bf16.msra.mxu0 %v3530
  %4324 = vmatpush.bf16.msra.mxu0 %v3528
  %4325 = vmatpush.bf16.msra.mxu0 %v3526
  %4326 = vmatpush.bf16.msra.mxu0 %v3524
  %4327 = vmatpush.bf16.msra.mxu0 %v3522
  %4328 = vmatpush.bf16.msra.mxu0 %v3520
  %4329 = vmatpush.bf16.msra.mxu0 %v3518
  %4330 = vmatpush.bf16.msra.mxu0 %v3516
  %4331 = vmatmul.bf16.gmra.mxu0 %v1815
  %v4332 = vpop.f32.mrf.mxu0
  %v4333 = vadd.f32 %v4284, %v4332
  %v4334 = vpop.f32.mrf.mxu0
  %v4335 = vadd.f32 %v4286, %v4334
  %4336 = vmatmul.bf16.gmra.mxu0 %v1817
  %v4337 = vpop.f32.mrf.mxu0
  %v4338 = vadd.f32 %v4289, %v4337
  %v4339 = vpop.f32.mrf.mxu0
  %v4340 = vadd.f32 %v4291, %v4339
  %4341 = vmatmul.bf16.gmra.mxu0 %v1819
  %v4342 = vpop.f32.mrf.mxu0
  %v4343 = vadd.f32 %v4294, %v4342
  %v4344 = vpop.f32.mrf.mxu0
  %v4345 = vadd.f32 %v4296, %v4344
  %4346 = vmatmul.bf16.gmra.mxu0 %v1821
  %v4347 = vpop.f32.mrf.mxu0
  %v4348 = vadd.f32 %v4299, %v4347
  %v4349 = vpop.f32.mrf.mxu0
  %v4350 = vadd.f32 %v4301, %v4349
  %4351 = vmatmul.bf16.gmra.mxu0 %v1823
  %v4352 = vpop.f32.mrf.mxu0
  %v4353 = vadd.f32 %v4304, %v4352
  %v4354 = vpop.f32.mrf.mxu0
  %v4355 = vadd.f32 %v4306, %v4354
  %4356 = vmatmul.bf16.gmra.mxu0 %v1825
  %v4357 = vpop.f32.mrf.mxu0
  %v4358 = vadd.f32 %v4309, %v4357
  %v4359 = vpop.f32.mrf.mxu0
  %v4360 = vadd.f32 %v4311, %v4359
  %4361 = vmatmul.bf16.gmra.mxu0 %v1827
  %v4362 = vpop.f32.mrf.mxu0
  %v4363 = vadd.f32 %v4314, %v4362
  %v4364 = vpop.f32.mrf.mxu0
  %v4365 = vadd.f32 %v4316, %v4364
  %4366 = vmatmul.bf16.gmra.mxu0 %v1829
  %v4367 = vpop.f32.mrf.mxu0
  %v4368 = vadd.f32 %v4319, %v4367
  %v4369 = vpop.f32.mrf.mxu0
  %v4370 = vadd.f32 %v4321, %v4369
  %4371 = vdwg.mxu0
  %4372 = vmatpush.bf16.msra.mxu0 %v3546
  %4373 = vmatpush.bf16.msra.mxu0 %v3544
  %4374 = vmatpush.bf16.msra.mxu0 %v3542
  %4375 = vmatpush.bf16.msra.mxu0 %v3540
  %4376 = vmatpush.bf16.msra.mxu0 %v3538
  %4377 = vmatpush.bf16.msra.mxu0 %v3536
  %4378 = vmatpush.bf16.msra.mxu0 %v3534
  %4379 = vmatpush.bf16.msra.mxu0 %v3532
  %4380 = vmatmul.bf16.gmra.mxu0 %v1894
  %v4381 = vpop.f32.mrf.mxu0
  %v4382 = vadd.f32 %v4333, %v4381
  %v4383 = vpop.f32.mrf.mxu0
  %v4384 = vadd.f32 %v4335, %v4383
  %4385 = vmatmul.bf16.gmra.mxu0 %v1896
  %v4386 = vpop.f32.mrf.mxu0
  %v4387 = vadd.f32 %v4338, %v4386
  %v4388 = vpop.f32.mrf.mxu0
  %v4389 = vadd.f32 %v4340, %v4388
  %4390 = vmatmul.bf16.gmra.mxu0 %v1898
  %v4391 = vpop.f32.mrf.mxu0
  %v4392 = vadd.f32 %v4343, %v4391
  %v4393 = vpop.f32.mrf.mxu0
  %v4394 = vadd.f32 %v4345, %v4393
  %4395 = vmatmul.bf16.gmra.mxu0 %v1900
  %v4396 = vpop.f32.mrf.mxu0
  %v4397 = vadd.f32 %v4348, %v4396
  %v4398 = vpop.f32.mrf.mxu0
  %v4399 = vadd.f32 %v4350, %v4398
  %4400 = vmatmul.bf16.gmra.mxu0 %v1902
  %v4401 = vpop.f32.mrf.mxu0
  %v4402 = vadd.f32 %v4353, %v4401
  %v4403 = vpop.f32.mrf.mxu0
  %v4404 = vadd.f32 %v4355, %v4403
  %4405 = vmatmul.bf16.gmra.mxu0 %v1904
  %v4406 = vpop.f32.mrf.mxu0
  %v4407 = vadd.f32 %v4358, %v4406
  %v4408 = vpop.f32.mrf.mxu0
  %v4409 = vadd.f32 %v4360, %v4408
  %4410 = vmatmul.bf16.gmra.mxu0 %v1906
  %v4411 = vpop.f32.mrf.mxu0
  %v4412 = vadd.f32 %v4363, %v4411
  %v4413 = vpop.f32.mrf.mxu0
  %v4414 = vadd.f32 %v4365, %v4413
  %4415 = vmatmul.bf16.gmra.mxu0 %v1908
  %v4416 = vpop.f32.mrf.mxu0
  %v4417 = vadd.f32 %v4368, %v4416
  %v4418 = vpop.f32.mrf.mxu0
  %v4419 = vadd.f32 %v4370, %v4418
  %4420 = vdwg.mxu0
  %4421 = vmatpush.bf16.msra.mxu0 %v3562
  %4422 = vmatpush.bf16.msra.mxu0 %v3560
  %4423 = vmatpush.bf16.msra.mxu0 %v3558
  %4424 = vmatpush.bf16.msra.mxu0 %v3556
  %4425 = vmatpush.bf16.msra.mxu0 %v3554
  %4426 = vmatpush.bf16.msra.mxu0 %v3552
  %4427 = vmatpush.bf16.msra.mxu0 %v3550
  %4428 = vmatpush.bf16.msra.mxu0 %v3548
  %4429 = vmatmul.bf16.gmra.mxu0 %v1895
  %v4430 = vpop.f32.mrf.mxu0
  %v4431 = vadd.f32 %v4382, %v4430
  %v4432 = vpop.f32.mrf.mxu0
  %v4433 = vadd.f32 %v4384, %v4432
  %4434 = vmatmul.bf16.gmra.mxu0 %v1897
  %v4435 = vpop.f32.mrf.mxu0
  %v4436 = vadd.f32 %v4387, %v4435
  %v4437 = vpop.f32.mrf.mxu0
  %v4438 = vadd.f32 %v4389, %v4437
  %4439 = vmatmul.bf16.gmra.mxu0 %v1899
  %v4440 = vpop.f32.mrf.mxu0
  %v4441 = vadd.f32 %v4392, %v4440
  %v4442 = vpop.f32.mrf.mxu0
  %v4443 = vadd.f32 %v4394, %v4442
  %4444 = vmatmul.bf16.gmra.mxu0 %v1901
  %v4445 = vpop.f32.mrf.mxu0
  %v4446 = vadd.f32 %v4397, %v4445
  %v4447 = vpop.f32.mrf.mxu0
  %v4448 = vadd.f32 %v4399, %v4447
  %4449 = vmatmul.bf16.gmra.mxu0 %v1903
  %v4450 = vpop.f32.mrf.mxu0
  %v4451 = vadd.f32 %v4402, %v4450
  %v4452 = vpop.f32.mrf.mxu0
  %v4453 = vadd.f32 %v4404, %v4452
  %4454 = vmatmul.bf16.gmra.mxu0 %v1905
  %v4455 = vpop.f32.mrf.mxu0
  %v4456 = vadd.f32 %v4407, %v4455
  %v4457 = vpop.f32.mrf.mxu0
  %v4458 = vadd.f32 %v4409, %v4457
  %4459 = vmatmul.bf16.gmra.mxu0 %v1907
  %v4460 = vpop.f32.mrf.mxu0
  %v4461 = vadd.f32 %v4412, %v4460
  %v4462 = vpop.f32.mrf.mxu0
  %v4463 = vadd.f32 %v4414, %v4462
  %4464 = vmatmul.bf16.gmra.mxu0 %v1909
  %v4465 = vpop.f32.mrf.mxu0
  %v4466 = vadd.f32 %v4417, %v4465
  %v4467 = vpop.f32.mrf.mxu0
  %v4468 = vadd.f32 %v4419, %v4467
  %4469 = vdwg.mxu0
  %4470 = vmatpush.bf16.msra.mxu0 %v3578
  %4471 = vmatpush.bf16.msra.mxu0 %v3576
  %4472 = vmatpush.bf16.msra.mxu0 %v3574
  %4473 = vmatpush.bf16.msra.mxu0 %v3572
  %4474 = vmatpush.bf16.msra.mxu0 %v3570
  %4475 = vmatpush.bf16.msra.mxu0 %v3568
  %4476 = vmatpush.bf16.msra.mxu0 %v3566
  %4477 = vmatpush.bf16.msra.mxu0 %v3564
  %4478 = vmatmul.bf16.gmra.mxu0 %v1974
  %v4479 = vpop.f32.mrf.mxu0
  %v4480 = vadd.f32 %v4431, %v4479
  %v4481 = vpop.f32.mrf.mxu0
  %v4482 = vadd.f32 %v4433, %v4481
  %4483 = vmatmul.bf16.gmra.mxu0 %v1976
  %v4484 = vpop.f32.mrf.mxu0
  %v4485 = vadd.f32 %v4436, %v4484
  %v4486 = vpop.f32.mrf.mxu0
  %v4487 = vadd.f32 %v4438, %v4486
  %4488 = vmatmul.bf16.gmra.mxu0 %v1978
  %v4489 = vpop.f32.mrf.mxu0
  %v4490 = vadd.f32 %v4441, %v4489
  %v4491 = vpop.f32.mrf.mxu0
  %v4492 = vadd.f32 %v4443, %v4491
  %4493 = vmatmul.bf16.gmra.mxu0 %v1980
  %v4494 = vpop.f32.mrf.mxu0
  %v4495 = vadd.f32 %v4446, %v4494
  %v4496 = vpop.f32.mrf.mxu0
  %v4497 = vadd.f32 %v4448, %v4496
  %4498 = vmatmul.bf16.gmra.mxu0 %v1982
  %v4499 = vpop.f32.mrf.mxu0
  %v4500 = vadd.f32 %v4451, %v4499
  %v4501 = vpop.f32.mrf.mxu0
  %v4502 = vadd.f32 %v4453, %v4501
  %4503 = vmatmul.bf16.gmra.mxu0 %v1984
  %v4504 = vpop.f32.mrf.mxu0
  %v4505 = vadd.f32 %v4456, %v4504
  %v4506 = vpop.f32.mrf.mxu0
  %v4507 = vadd.f32 %v4458, %v4506
  %4508 = vmatmul.bf16.gmra.mxu0 %v1986
  %v4509 = vpop.f32.mrf.mxu0
  %v4510 = vadd.f32 %v4461, %v4509
  %v4511 = vpop.f32.mrf.mxu0
  %v4512 = vadd.f32 %v4463, %v4511
  %4513 = vmatmul.bf16.gmra.mxu0 %v1988
  %v4514 = vpop.f32.mrf.mxu0
  %v4515 = vadd.f32 %v4466, %v4514
  %v4516 = vpop.f32.mrf.mxu0
  %v4517 = vadd.f32 %v4468, %v4516
  %4518 = vdwg.mxu0
  %4519 = vmatpush.bf16.msra.mxu0 %v3594
  %4520 = vmatpush.bf16.msra.mxu0 %v3592
  %4521 = vmatpush.bf16.msra.mxu0 %v3590
  %4522 = vmatpush.bf16.msra.mxu0 %v3588
  %4523 = vmatpush.bf16.msra.mxu0 %v3586
  %4524 = vmatpush.bf16.msra.mxu0 %v3584
  %4525 = vmatpush.bf16.msra.mxu0 %v3582
  %4526 = vmatpush.bf16.msra.mxu0 %v3580
  %4527 = vmatmul.bf16.gmra.mxu0 %v1975
  %v4528 = vpop.f32.mrf.mxu0
  %v4529 = vadd.f32 %v4480, %v4528
  %v4530 = vpop.f32.mrf.mxu0
  %v4531 = vadd.f32 %v4482, %v4530
  %4532 = vmatmul.bf16.gmra.mxu0 %v1977
  %v4533 = vpop.f32.mrf.mxu0
  %v4534 = vadd.f32 %v4485, %v4533
  %v4535 = vpop.f32.mrf.mxu0
  %v4536 = vadd.f32 %v4487, %v4535
  %4537 = vmatmul.bf16.gmra.mxu0 %v1979
  %v4538 = vpop.f32.mrf.mxu0
  %v4539 = vadd.f32 %v4490, %v4538
  %v4540 = vpop.f32.mrf.mxu0
  %v4541 = vadd.f32 %v4492, %v4540
  %4542 = vmatmul.bf16.gmra.mxu0 %v1981
  %v4543 = vpop.f32.mrf.mxu0
  %v4544 = vadd.f32 %v4495, %v4543
  %v4545 = vpop.f32.mrf.mxu0
  %v4546 = vadd.f32 %v4497, %v4545
  %4547 = vmatmul.bf16.gmra.mxu0 %v1983
  %v4548 = vpop.f32.mrf.mxu0
  %v4549 = vadd.f32 %v4500, %v4548
  %v4550 = vpop.f32.mrf.mxu0
  %v4551 = vadd.f32 %v4502, %v4550
  %4552 = vmatmul.bf16.gmra.mxu0 %v1985
  %v4553 = vpop.f32.mrf.mxu0
  %v4554 = vadd.f32 %v4505, %v4553
  %v4555 = vpop.f32.mrf.mxu0
  %v4556 = vadd.f32 %v4507, %v4555
  %4557 = vmatmul.bf16.gmra.mxu0 %v1987
  %v4558 = vpop.f32.mrf.mxu0
  %v4559 = vadd.f32 %v4510, %v4558
  %v4560 = vpop.f32.mrf.mxu0
  %v4561 = vadd.f32 %v4512, %v4560
  %4562 = vmatmul.bf16.gmra.mxu0 %v1989
  %v4563 = vpop.f32.mrf.mxu0
  %v4564 = vadd.f32 %v4515, %v4563
  %v4565 = vpop.f32.mrf.mxu0
  %v4566 = vadd.f32 %v4517, %v4565
  %4567 = vdwg.mxu0
  %4568 = vmatpush.bf16.msra.mxu0 %v3610
  %4569 = vmatpush.bf16.msra.mxu0 %v3608
  %4570 = vmatpush.bf16.msra.mxu0 %v3606
  %4571 = vmatpush.bf16.msra.mxu0 %v3604
  %4572 = vmatpush.bf16.msra.mxu0 %v3602
  %4573 = vmatpush.bf16.msra.mxu0 %v3600
  %4574 = vmatpush.bf16.msra.mxu0 %v3598
  %4575 = vmatpush.bf16.msra.mxu0 %v3596
  %4576 = vmatmul.bf16.gmra.mxu0 %v2054
  %v4577 = vpop.f32.mrf.mxu0
  %v4578 = vadd.f32 %v4529, %v4577
  %v4579 = vpop.f32.mrf.mxu0
  %v4580 = vadd.f32 %v4531, %v4579
  %4581 = vmatmul.bf16.gmra.mxu0 %v2056
  %v4582 = vpop.f32.mrf.mxu0
  %v4583 = vadd.f32 %v4534, %v4582
  %v4584 = vpop.f32.mrf.mxu0
  %v4585 = vadd.f32 %v4536, %v4584
  %4586 = vmatmul.bf16.gmra.mxu0 %v2058
  %v4587 = vpop.f32.mrf.mxu0
  %v4588 = vadd.f32 %v4539, %v4587
  %v4589 = vpop.f32.mrf.mxu0
  %v4590 = vadd.f32 %v4541, %v4589
  %4591 = vmatmul.bf16.gmra.mxu0 %v2060
  %v4592 = vpop.f32.mrf.mxu0
  %v4593 = vadd.f32 %v4544, %v4592
  %v4594 = vpop.f32.mrf.mxu0
  %v4595 = vadd.f32 %v4546, %v4594
  %4596 = vmatmul.bf16.gmra.mxu0 %v2062
  %v4597 = vpop.f32.mrf.mxu0
  %v4598 = vadd.f32 %v4549, %v4597
  %v4599 = vpop.f32.mrf.mxu0
  %v4600 = vadd.f32 %v4551, %v4599
  %4601 = vmatmul.bf16.gmra.mxu0 %v2064
  %v4602 = vpop.f32.mrf.mxu0
  %v4603 = vadd.f32 %v4554, %v4602
  %v4604 = vpop.f32.mrf.mxu0
  %v4605 = vadd.f32 %v4556, %v4604
  %4606 = vmatmul.bf16.gmra.mxu0 %v2066
  %v4607 = vpop.f32.mrf.mxu0
  %v4608 = vadd.f32 %v4559, %v4607
  %v4609 = vpop.f32.mrf.mxu0
  %v4610 = vadd.f32 %v4561, %v4609
  %4611 = vmatmul.bf16.gmra.mxu0 %v2068
  %v4612 = vpop.f32.mrf.mxu0
  %v4613 = vadd.f32 %v4564, %v4612
  %v4614 = vpop.f32.mrf.mxu0
  %v4615 = vadd.f32 %v4566, %v4614
  %4616 = vdwg.mxu0
  %4617 = vmatpush.bf16.msra.mxu0 %v3626
  %4618 = vmatpush.bf16.msra.mxu0 %v3624
  %4619 = vmatpush.bf16.msra.mxu0 %v3622
  %4620 = vmatpush.bf16.msra.mxu0 %v3620
  %4621 = vmatpush.bf16.msra.mxu0 %v3618
  %4622 = vmatpush.bf16.msra.mxu0 %v3616
  %4623 = vmatpush.bf16.msra.mxu0 %v3614
  %4624 = vmatpush.bf16.msra.mxu0 %v3612
  %4625 = vmatmul.bf16.gmra.mxu0 %v2055
  %v4626 = vpop.f32.mrf.mxu0
  %v4627 = vadd.f32 %v4578, %v4626
  %v4628 = vpop.f32.mrf.mxu0
  %v4629 = vadd.f32 %v4580, %v4628
  %4630 = vmatmul.bf16.gmra.mxu0 %v2057
  %v4631 = vpop.f32.mrf.mxu0
  %v4632 = vadd.f32 %v4583, %v4631
  %v4633 = vpop.f32.mrf.mxu0
  %v4634 = vadd.f32 %v4585, %v4633
  %4635 = vmatmul.bf16.gmra.mxu0 %v2059
  %v4636 = vpop.f32.mrf.mxu0
  %v4637 = vadd.f32 %v4588, %v4636
  %v4638 = vpop.f32.mrf.mxu0
  %v4639 = vadd.f32 %v4590, %v4638
  %4640 = vmatmul.bf16.gmra.mxu0 %v2061
  %v4641 = vpop.f32.mrf.mxu0
  %v4642 = vadd.f32 %v4593, %v4641
  %v4643 = vpop.f32.mrf.mxu0
  %v4644 = vadd.f32 %v4595, %v4643
  %4645 = vmatmul.bf16.gmra.mxu0 %v2063
  %v4646 = vpop.f32.mrf.mxu0
  %v4647 = vadd.f32 %v4598, %v4646
  %v4648 = vpop.f32.mrf.mxu0
  %v4649 = vadd.f32 %v4600, %v4648
  %4650 = vmatmul.bf16.gmra.mxu0 %v2065
  %v4651 = vpop.f32.mrf.mxu0
  %v4652 = vadd.f32 %v4603, %v4651
  %v4653 = vpop.f32.mrf.mxu0
  %v4654 = vadd.f32 %v4605, %v4653
  %4655 = vmatmul.bf16.gmra.mxu0 %v2067
  %v4656 = vpop.f32.mrf.mxu0
  %v4657 = vadd.f32 %v4608, %v4656
  %v4658 = vpop.f32.mrf.mxu0
  %v4659 = vadd.f32 %v4610, %v4658
  %4660 = vmatmul.bf16.gmra.mxu0 %v2069
  %v4661 = vpop.f32.mrf.mxu0
  %v4662 = vadd.f32 %v4613, %v4661
  %v4663 = vpop.f32.mrf.mxu0
  %v4664 = vadd.f32 %v4615, %v4663
  %4665 = vdwg.mxu0
  %4666 = vmatpush.bf16.msra.mxu0 %v3642
  %4667 = vmatpush.bf16.msra.mxu0 %v3640
  %4668 = vmatpush.bf16.msra.mxu0 %v3638
  %4669 = vmatpush.bf16.msra.mxu0 %v3636
  %4670 = vmatpush.bf16.msra.mxu0 %v3634
  %4671 = vmatpush.bf16.msra.mxu0 %v3632
  %4672 = vmatpush.bf16.msra.mxu0 %v3630
  %4673 = vmatpush.bf16.msra.mxu0 %v3628
  %4674 = vmatmul.bf16.gmra.mxu0 %v2134
  %v4675 = vpop.f32.mrf.mxu0
  %v4676 = vadd.f32 %v4627, %v4675
  %v4677 = vpop.f32.mrf.mxu0
  %v4678 = vadd.f32 %v4629, %v4677
  %4679 = vmatmul.bf16.gmra.mxu0 %v2136
  %v4680 = vpop.f32.mrf.mxu0
  %v4681 = vadd.f32 %v4632, %v4680
  %v4682 = vpop.f32.mrf.mxu0
  %v4683 = vadd.f32 %v4634, %v4682
  %4684 = vmatmul.bf16.gmra.mxu0 %v2138
  %v4685 = vpop.f32.mrf.mxu0
  %v4686 = vadd.f32 %v4637, %v4685
  %v4687 = vpop.f32.mrf.mxu0
  %v4688 = vadd.f32 %v4639, %v4687
  %4689 = vmatmul.bf16.gmra.mxu0 %v2140
  %v4690 = vpop.f32.mrf.mxu0
  %v4691 = vadd.f32 %v4642, %v4690
  %v4692 = vpop.f32.mrf.mxu0
  %v4693 = vadd.f32 %v4644, %v4692
  %4694 = vmatmul.bf16.gmra.mxu0 %v2142
  %v4695 = vpop.f32.mrf.mxu0
  %v4696 = vadd.f32 %v4647, %v4695
  %v4697 = vpop.f32.mrf.mxu0
  %v4698 = vadd.f32 %v4649, %v4697
  %4699 = vmatmul.bf16.gmra.mxu0 %v2144
  %v4700 = vpop.f32.mrf.mxu0
  %v4701 = vadd.f32 %v4652, %v4700
  %v4702 = vpop.f32.mrf.mxu0
  %v4703 = vadd.f32 %v4654, %v4702
  %4704 = vmatmul.bf16.gmra.mxu0 %v2146
  %v4705 = vpop.f32.mrf.mxu0
  %v4706 = vadd.f32 %v4657, %v4705
  %v4707 = vpop.f32.mrf.mxu0
  %v4708 = vadd.f32 %v4659, %v4707
  %4709 = vmatmul.bf16.gmra.mxu0 %v2148
  %v4710 = vpop.f32.mrf.mxu0
  %v4711 = vadd.f32 %v4662, %v4710
  %v4712 = vpop.f32.mrf.mxu0
  %v4713 = vadd.f32 %v4664, %v4712
  %4714 = vdwg.mxu0
  %4715 = vmatpush.bf16.msra.mxu0 %v3658
  %4716 = vmatpush.bf16.msra.mxu0 %v3656
  %4717 = vmatpush.bf16.msra.mxu0 %v3654
  %4718 = vmatpush.bf16.msra.mxu0 %v3652
  %4719 = vmatpush.bf16.msra.mxu0 %v3650
  %4720 = vmatpush.bf16.msra.mxu0 %v3648
  %4721 = vmatpush.bf16.msra.mxu0 %v3646
  %4722 = vmatpush.bf16.msra.mxu0 %v3644
  %4723 = vmatmul.bf16.gmra.mxu0 %v2135
  %v4724 = vpop.f32.mrf.mxu0
  %v4725 = vadd.f32 %v4676, %v4724
  %v4726 = vpop.f32.mrf.mxu0
  %v4727 = vadd.f32 %v4678, %v4726
  %4728 = vmatmul.bf16.gmra.mxu0 %v2137
  %v4729 = vpop.f32.mrf.mxu0
  %v4730 = vadd.f32 %v4681, %v4729
  %v4731 = vpop.f32.mrf.mxu0
  %v4732 = vadd.f32 %v4683, %v4731
  %4733 = vmatmul.bf16.gmra.mxu0 %v2139
  %v4734 = vpop.f32.mrf.mxu0
  %v4735 = vadd.f32 %v4686, %v4734
  %v4736 = vpop.f32.mrf.mxu0
  %v4737 = vadd.f32 %v4688, %v4736
  %4738 = vmatmul.bf16.gmra.mxu0 %v2141
  %v4739 = vpop.f32.mrf.mxu0
  %v4740 = vadd.f32 %v4691, %v4739
  %v4741 = vpop.f32.mrf.mxu0
  %v4742 = vadd.f32 %v4693, %v4741
  %4743 = vmatmul.bf16.gmra.mxu0 %v2143
  %v4744 = vpop.f32.mrf.mxu0
  %v4745 = vadd.f32 %v4696, %v4744
  %v4746 = vpop.f32.mrf.mxu0
  %v4747 = vadd.f32 %v4698, %v4746
  %4748 = vmatmul.bf16.gmra.mxu0 %v2145
  %v4749 = vpop.f32.mrf.mxu0
  %v4750 = vadd.f32 %v4701, %v4749
  %v4751 = vpop.f32.mrf.mxu0
  %v4752 = vadd.f32 %v4703, %v4751
  %4753 = vmatmul.bf16.gmra.mxu0 %v2147
  %v4754 = vpop.f32.mrf.mxu0
  %v4755 = vadd.f32 %v4706, %v4754
  %v4756 = vpop.f32.mrf.mxu0
  %v4757 = vadd.f32 %v4708, %v4756
  %4758 = vmatmul.bf16.gmra.mxu0 %v2149
  %v4759 = vpop.f32.mrf.mxu0
  %v4760 = vadd.f32 %v4711, %v4759
  %v4761 = vpop.f32.mrf.mxu0
  %v4762 = vadd.f32 %v4713, %v4761
  %4763 = vdwg.mxu0
  %4764 = vmatpush.bf16.msra.mxu0 %v3674
  %4765 = vmatpush.bf16.msra.mxu0 %v3672
  %4766 = vmatpush.bf16.msra.mxu0 %v3670
  %4767 = vmatpush.bf16.msra.mxu0 %v3668
  %4768 = vmatpush.bf16.msra.mxu0 %v3666
  %4769 = vmatpush.bf16.msra.mxu0 %v3664
  %4770 = vmatpush.bf16.msra.mxu0 %v3662
  %4771 = vmatpush.bf16.msra.mxu0 %v3660
  %4772 = vmatmul.bf16.gmra.mxu0 %v2214
  %v4773 = vpop.f32.mrf.mxu0
  %v4774 = vadd.f32 %v4725, %v4773
  %v4775 = vpop.f32.mrf.mxu0
  %v4776 = vadd.f32 %v4727, %v4775
  %4777 = vmatmul.bf16.gmra.mxu0 %v2216
  %v4778 = vpop.f32.mrf.mxu0
  %v4779 = vadd.f32 %v4730, %v4778
  %v4780 = vpop.f32.mrf.mxu0
  %v4781 = vadd.f32 %v4732, %v4780
  %4782 = vmatmul.bf16.gmra.mxu0 %v2218
  %v4783 = vpop.f32.mrf.mxu0
  %v4784 = vadd.f32 %v4735, %v4783
  %v4785 = vpop.f32.mrf.mxu0
  %v4786 = vadd.f32 %v4737, %v4785
  %4787 = vmatmul.bf16.gmra.mxu0 %v2220
  %v4788 = vpop.f32.mrf.mxu0
  %v4789 = vadd.f32 %v4740, %v4788
  %v4790 = vpop.f32.mrf.mxu0
  %v4791 = vadd.f32 %v4742, %v4790
  %4792 = vmatmul.bf16.gmra.mxu0 %v2222
  %v4793 = vpop.f32.mrf.mxu0
  %v4794 = vadd.f32 %v4745, %v4793
  %v4795 = vpop.f32.mrf.mxu0
  %v4796 = vadd.f32 %v4747, %v4795
  %4797 = vmatmul.bf16.gmra.mxu0 %v2224
  %v4798 = vpop.f32.mrf.mxu0
  %v4799 = vadd.f32 %v4750, %v4798
  %v4800 = vpop.f32.mrf.mxu0
  %v4801 = vadd.f32 %v4752, %v4800
  %4802 = vmatmul.bf16.gmra.mxu0 %v2226
  %v4803 = vpop.f32.mrf.mxu0
  %v4804 = vadd.f32 %v4755, %v4803
  %v4805 = vpop.f32.mrf.mxu0
  %v4806 = vadd.f32 %v4757, %v4805
  %4807 = vmatmul.bf16.gmra.mxu0 %v2228
  %v4808 = vpop.f32.mrf.mxu0
  %v4809 = vadd.f32 %v4760, %v4808
  %v4810 = vpop.f32.mrf.mxu0
  %v4811 = vadd.f32 %v4762, %v4810
  %4812 = vdwg.mxu0
  %4813 = vmatpush.bf16.msra.mxu0 %v3690
  %4814 = vmatpush.bf16.msra.mxu0 %v3688
  %4815 = vmatpush.bf16.msra.mxu0 %v3686
  %4816 = vmatpush.bf16.msra.mxu0 %v3684
  %4817 = vmatpush.bf16.msra.mxu0 %v3682
  %4818 = vmatpush.bf16.msra.mxu0 %v3680
  %4819 = vmatpush.bf16.msra.mxu0 %v3678
  %4820 = vmatpush.bf16.msra.mxu0 %v3676
  %4821 = vmatmul.bf16.gmra.mxu0 %v2215
  %v4822 = vpop.f32.mrf.mxu0
  %v4823 = vadd.f32 %v4774, %v4822
  %v4824 = vpop.f32.mrf.mxu0
  %v4825 = vadd.f32 %v4776, %v4824
  %4826 = vmatmul.bf16.gmra.mxu0 %v2217
  %v4827 = vpop.f32.mrf.mxu0
  %v4828 = vadd.f32 %v4779, %v4827
  %v4829 = vpop.f32.mrf.mxu0
  %v4830 = vadd.f32 %v4781, %v4829
  %4831 = vmatmul.bf16.gmra.mxu0 %v2219
  %v4832 = vpop.f32.mrf.mxu0
  %v4833 = vadd.f32 %v4784, %v4832
  %v4834 = vpop.f32.mrf.mxu0
  %v4835 = vadd.f32 %v4786, %v4834
  %4836 = vmatmul.bf16.gmra.mxu0 %v2221
  %v4837 = vpop.f32.mrf.mxu0
  %v4838 = vadd.f32 %v4789, %v4837
  %v4839 = vpop.f32.mrf.mxu0
  %v4840 = vadd.f32 %v4791, %v4839
  %4841 = vmatmul.bf16.gmra.mxu0 %v2223
  %v4842 = vpop.f32.mrf.mxu0
  %v4843 = vadd.f32 %v4794, %v4842
  %v4844 = vpop.f32.mrf.mxu0
  %v4845 = vadd.f32 %v4796, %v4844
  %4846 = vmatmul.bf16.gmra.mxu0 %v2225
  %v4847 = vpop.f32.mrf.mxu0
  %v4848 = vadd.f32 %v4799, %v4847
  %v4849 = vpop.f32.mrf.mxu0
  %v4850 = vadd.f32 %v4801, %v4849
  %4851 = vmatmul.bf16.gmra.mxu0 %v2227
  %v4852 = vpop.f32.mrf.mxu0
  %v4853 = vadd.f32 %v4804, %v4852
  %v4854 = vpop.f32.mrf.mxu0
  %v4855 = vadd.f32 %v4806, %v4854
  %4856 = vmatmul.bf16.gmra.mxu0 %v2229
  %v4857 = vpop.f32.mrf.mxu0
  %v4858 = vadd.f32 %v4809, %v4857
  %v4859 = vpop.f32.mrf.mxu0
  %v4860 = vadd.f32 %v4811, %v4859
  %4861 = vdwg.mxu0
  %4862 = vmatpush.bf16.msra.mxu0 %v3419
  %4863 = vmatpush.bf16.msra.mxu0 %v3417
  %4864 = vmatpush.bf16.msra.mxu0 %v3415
  %4865 = vmatpush.bf16.msra.mxu0 %v3413
  %4866 = vmatpush.bf16.msra.mxu0 %v3411
  %4867 = vmatpush.bf16.msra.mxu0 %v3409
  %4868 = vmatpush.bf16.msra.mxu0 %v3407
  %4869 = vmatpush.bf16.msra.mxu0 %v3405
  %4870 = vmatmul.bf16.gmra.mxu0 %v1574
  %v4871 = vpop.f32.mrf.mxu0
  %v4872 = vadd.f32 %v2537, %v4871
  %v4873 = vpop.f32.mrf.mxu0
  %v4874 = vadd.f32 %v2537, %v4873
  %4875 = vmatmul.bf16.gmra.mxu0 %v1576
  %v4876 = vpop.f32.mrf.mxu0
  %v4877 = vadd.f32 %v2537, %v4876
  %v4878 = vpop.f32.mrf.mxu0
  %v4879 = vadd.f32 %v2537, %v4878
  %4880 = vmatmul.bf16.gmra.mxu0 %v1578
  %v4881 = vpop.f32.mrf.mxu0
  %v4882 = vadd.f32 %v2537, %v4881
  %v4883 = vpop.f32.mrf.mxu0
  %v4884 = vadd.f32 %v2537, %v4883
  %4885 = vmatmul.bf16.gmra.mxu0 %v1580
  %v4886 = vpop.f32.mrf.mxu0
  %v4887 = vadd.f32 %v2537, %v4886
  %v4888 = vpop.f32.mrf.mxu0
  %v4889 = vadd.f32 %v2537, %v4888
  %4890 = vmatmul.bf16.gmra.mxu0 %v1582
  %v4891 = vpop.f32.mrf.mxu0
  %v4892 = vadd.f32 %v2537, %v4891
  %v4893 = vpop.f32.mrf.mxu0
  %v4894 = vadd.f32 %v2537, %v4893
  %4895 = vmatmul.bf16.gmra.mxu0 %v1584
  %v4896 = vpop.f32.mrf.mxu0
  %v4897 = vadd.f32 %v2537, %v4896
  %v4898 = vpop.f32.mrf.mxu0
  %v4899 = vadd.f32 %v2537, %v4898
  %4900 = vmatmul.bf16.gmra.mxu0 %v1586
  %v4901 = vpop.f32.mrf.mxu0
  %v4902 = vadd.f32 %v2537, %v4901
  %v4903 = vpop.f32.mrf.mxu0
  %v4904 = vadd.f32 %v2537, %v4903
  %4905 = vmatmul.bf16.gmra.mxu0 %v1588
  %v4906 = vpop.f32.mrf.mxu0
  %v4907 = vadd.f32 %v2537, %v4906
  %v4908 = vpop.f32.mrf.mxu0
  %v4909 = vadd.f32 %v2537, %v4908
  %4910 = vdwg.mxu0
  %4911 = vmatpush.bf16.msra.mxu0 %v3435
  %4912 = vmatpush.bf16.msra.mxu0 %v3433
  %4913 = vmatpush.bf16.msra.mxu0 %v3431
  %4914 = vmatpush.bf16.msra.mxu0 %v3429
  %4915 = vmatpush.bf16.msra.mxu0 %v3427
  %4916 = vmatpush.bf16.msra.mxu0 %v3425
  %4917 = vmatpush.bf16.msra.mxu0 %v3423
  %4918 = vmatpush.bf16.msra.mxu0 %v3421
  %4919 = vmatmul.bf16.gmra.mxu0 %v1575
  %v4920 = vpop.f32.mrf.mxu0
  %v4921 = vadd.f32 %v4872, %v4920
  %v4922 = vpop.f32.mrf.mxu0
  %v4923 = vadd.f32 %v4874, %v4922
  %4924 = vmatmul.bf16.gmra.mxu0 %v1577
  %v4925 = vpop.f32.mrf.mxu0
  %v4926 = vadd.f32 %v4877, %v4925
  %v4927 = vpop.f32.mrf.mxu0
  %v4928 = vadd.f32 %v4879, %v4927
  %4929 = vmatmul.bf16.gmra.mxu0 %v1579
  %v4930 = vpop.f32.mrf.mxu0
  %v4931 = vadd.f32 %v4882, %v4930
  %v4932 = vpop.f32.mrf.mxu0
  %v4933 = vadd.f32 %v4884, %v4932
  %4934 = vmatmul.bf16.gmra.mxu0 %v1581
  %v4935 = vpop.f32.mrf.mxu0
  %v4936 = vadd.f32 %v4887, %v4935
  %v4937 = vpop.f32.mrf.mxu0
  %v4938 = vadd.f32 %v4889, %v4937
  %4939 = vmatmul.bf16.gmra.mxu0 %v1583
  %v4940 = vpop.f32.mrf.mxu0
  %v4941 = vadd.f32 %v4892, %v4940
  %v4942 = vpop.f32.mrf.mxu0
  %v4943 = vadd.f32 %v4894, %v4942
  %4944 = vmatmul.bf16.gmra.mxu0 %v1585
  %v4945 = vpop.f32.mrf.mxu0
  %v4946 = vadd.f32 %v4897, %v4945
  %v4947 = vpop.f32.mrf.mxu0
  %v4948 = vadd.f32 %v4899, %v4947
  %4949 = vmatmul.bf16.gmra.mxu0 %v1587
  %v4950 = vpop.f32.mrf.mxu0
  %v4951 = vadd.f32 %v4902, %v4950
  %v4952 = vpop.f32.mrf.mxu0
  %v4953 = vadd.f32 %v4904, %v4952
  %4954 = vmatmul.bf16.gmra.mxu0 %v1589
  %v4955 = vpop.f32.mrf.mxu0
  %v4956 = vadd.f32 %v4907, %v4955
  %v4957 = vpop.f32.mrf.mxu0
  %v4958 = vadd.f32 %v4909, %v4957
  %4959 = vdwg.mxu0
  %4960 = vmatpush.bf16.msra.mxu0 %v3451
  %4961 = vmatpush.bf16.msra.mxu0 %v3449
  %4962 = vmatpush.bf16.msra.mxu0 %v3447
  %4963 = vmatpush.bf16.msra.mxu0 %v3445
  %4964 = vmatpush.bf16.msra.mxu0 %v3443
  %4965 = vmatpush.bf16.msra.mxu0 %v3441
  %4966 = vmatpush.bf16.msra.mxu0 %v3439
  %4967 = vmatpush.bf16.msra.mxu0 %v3437
  %4968 = vmatmul.bf16.gmra.mxu0 %v1654
  %v4969 = vpop.f32.mrf.mxu0
  %v4970 = vadd.f32 %v4921, %v4969
  %v4971 = vpop.f32.mrf.mxu0
  %v4972 = vadd.f32 %v4923, %v4971
  %4973 = vmatmul.bf16.gmra.mxu0 %v1656
  %v4974 = vpop.f32.mrf.mxu0
  %v4975 = vadd.f32 %v4926, %v4974
  %v4976 = vpop.f32.mrf.mxu0
  %v4977 = vadd.f32 %v4928, %v4976
  %4978 = vmatmul.bf16.gmra.mxu0 %v1658
  %v4979 = vpop.f32.mrf.mxu0
  %v4980 = vadd.f32 %v4931, %v4979
  %v4981 = vpop.f32.mrf.mxu0
  %v4982 = vadd.f32 %v4933, %v4981
  %4983 = vmatmul.bf16.gmra.mxu0 %v1660
  %v4984 = vpop.f32.mrf.mxu0
  %v4985 = vadd.f32 %v4936, %v4984
  %v4986 = vpop.f32.mrf.mxu0
  %v4987 = vadd.f32 %v4938, %v4986
  %4988 = vmatmul.bf16.gmra.mxu0 %v1662
  %v4989 = vpop.f32.mrf.mxu0
  %v4990 = vadd.f32 %v4941, %v4989
  %v4991 = vpop.f32.mrf.mxu0
  %v4992 = vadd.f32 %v4943, %v4991
  %4993 = vmatmul.bf16.gmra.mxu0 %v1664
  %v4994 = vpop.f32.mrf.mxu0
  %v4995 = vadd.f32 %v4946, %v4994
  %v4996 = vpop.f32.mrf.mxu0
  %v4997 = vadd.f32 %v4948, %v4996
  %4998 = vmatmul.bf16.gmra.mxu0 %v1666
  %v4999 = vpop.f32.mrf.mxu0
  %v5000 = vadd.f32 %v4951, %v4999
  %v5001 = vpop.f32.mrf.mxu0
  %v5002 = vadd.f32 %v4953, %v5001
  %5003 = vmatmul.bf16.gmra.mxu0 %v1668
  %v5004 = vpop.f32.mrf.mxu0
  %v5005 = vadd.f32 %v4956, %v5004
  %v5006 = vpop.f32.mrf.mxu0
  %v5007 = vadd.f32 %v4958, %v5006
  %5008 = vdwg.mxu0
  %5009 = vmatpush.bf16.msra.mxu0 %v3467
  %5010 = vmatpush.bf16.msra.mxu0 %v3465
  %5011 = vmatpush.bf16.msra.mxu0 %v3463
  %5012 = vmatpush.bf16.msra.mxu0 %v3461
  %5013 = vmatpush.bf16.msra.mxu0 %v3459
  %5014 = vmatpush.bf16.msra.mxu0 %v3457
  %5015 = vmatpush.bf16.msra.mxu0 %v3455
  %5016 = vmatpush.bf16.msra.mxu0 %v3453
  %5017 = vmatmul.bf16.gmra.mxu0 %v1655
  %v5018 = vpop.f32.mrf.mxu0
  %v5019 = vadd.f32 %v4970, %v5018
  %v5020 = vpop.f32.mrf.mxu0
  %v5021 = vadd.f32 %v4972, %v5020
  %5022 = vmatmul.bf16.gmra.mxu0 %v1657
  %v5023 = vpop.f32.mrf.mxu0
  %v5024 = vadd.f32 %v4975, %v5023
  %v5025 = vpop.f32.mrf.mxu0
  %v5026 = vadd.f32 %v4977, %v5025
  %5027 = vmatmul.bf16.gmra.mxu0 %v1659
  %v5028 = vpop.f32.mrf.mxu0
  %v5029 = vadd.f32 %v4980, %v5028
  %v5030 = vpop.f32.mrf.mxu0
  %v5031 = vadd.f32 %v4982, %v5030
  %5032 = vmatmul.bf16.gmra.mxu0 %v1661
  %v5033 = vpop.f32.mrf.mxu0
  %v5034 = vadd.f32 %v4985, %v5033
  %v5035 = vpop.f32.mrf.mxu0
  %v5036 = vadd.f32 %v4987, %v5035
  %5037 = vmatmul.bf16.gmra.mxu0 %v1663
  %v5038 = vpop.f32.mrf.mxu0
  %v5039 = vadd.f32 %v4990, %v5038
  %v5040 = vpop.f32.mrf.mxu0
  %v5041 = vadd.f32 %v4992, %v5040
  %5042 = vmatmul.bf16.gmra.mxu0 %v1665
  %v5043 = vpop.f32.mrf.mxu0
  %v5044 = vadd.f32 %v4995, %v5043
  %v5045 = vpop.f32.mrf.mxu0
  %v5046 = vadd.f32 %v4997, %v5045
  %5047 = vmatmul.bf16.gmra.mxu0 %v1667
  %v5048 = vpop.f32.mrf.mxu0
  %v5049 = vadd.f32 %v5000, %v5048
  %v5050 = vpop.f32.mrf.mxu0
  %v5051 = vadd.f32 %v5002, %v5050
  %5052 = vmatmul.bf16.gmra.mxu0 %v1669
  %v5053 = vpop.f32.mrf.mxu0
  %v5054 = vadd.f32 %v5005, %v5053
  %v5055 = vpop.f32.mrf.mxu0
  %v5056 = vadd.f32 %v5007, %v5055
  %5057 = vdwg.mxu0
  %5058 = vmatpush.bf16.msra.mxu0 %v3483
  %5059 = vmatpush.bf16.msra.mxu0 %v3481
  %5060 = vmatpush.bf16.msra.mxu0 %v3479
  %5061 = vmatpush.bf16.msra.mxu0 %v3477
  %5062 = vmatpush.bf16.msra.mxu0 %v3475
  %5063 = vmatpush.bf16.msra.mxu0 %v3473
  %5064 = vmatpush.bf16.msra.mxu0 %v3471
  %5065 = vmatpush.bf16.msra.mxu0 %v3469
  %5066 = vmatmul.bf16.gmra.mxu0 %v1734
  %v5067 = vpop.f32.mrf.mxu0
  %v5068 = vadd.f32 %v5019, %v5067
  %v5069 = vpop.f32.mrf.mxu0
  %v5070 = vadd.f32 %v5021, %v5069
  %5071 = vmatmul.bf16.gmra.mxu0 %v1736
  %v5072 = vpop.f32.mrf.mxu0
  %v5073 = vadd.f32 %v5024, %v5072
  %v5074 = vpop.f32.mrf.mxu0
  %v5075 = vadd.f32 %v5026, %v5074
  %5076 = vmatmul.bf16.gmra.mxu0 %v1738
  %v5077 = vpop.f32.mrf.mxu0
  %v5078 = vadd.f32 %v5029, %v5077
  %v5079 = vpop.f32.mrf.mxu0
  %v5080 = vadd.f32 %v5031, %v5079
  %5081 = vmatmul.bf16.gmra.mxu0 %v1740
  %v5082 = vpop.f32.mrf.mxu0
  %v5083 = vadd.f32 %v5034, %v5082
  %v5084 = vpop.f32.mrf.mxu0
  %v5085 = vadd.f32 %v5036, %v5084
  %5086 = vmatmul.bf16.gmra.mxu0 %v1742
  %v5087 = vpop.f32.mrf.mxu0
  %v5088 = vadd.f32 %v5039, %v5087
  %v5089 = vpop.f32.mrf.mxu0
  %v5090 = vadd.f32 %v5041, %v5089
  %5091 = vmatmul.bf16.gmra.mxu0 %v1744
  %v5092 = vpop.f32.mrf.mxu0
  %v5093 = vadd.f32 %v5044, %v5092
  %v5094 = vpop.f32.mrf.mxu0
  %v5095 = vadd.f32 %v5046, %v5094
  %5096 = vmatmul.bf16.gmra.mxu0 %v1746
  %v5097 = vpop.f32.mrf.mxu0
  %v5098 = vadd.f32 %v5049, %v5097
  %v5099 = vpop.f32.mrf.mxu0
  %v5100 = vadd.f32 %v5051, %v5099
  %5101 = vmatmul.bf16.gmra.mxu0 %v1748
  %v5102 = vpop.f32.mrf.mxu0
  %v5103 = vadd.f32 %v5054, %v5102
  %v5104 = vpop.f32.mrf.mxu0
  %v5105 = vadd.f32 %v5056, %v5104
  %5106 = vdwg.mxu0
  %5107 = vmatpush.bf16.msra.mxu0 %v3499
  %5108 = vmatpush.bf16.msra.mxu0 %v3497
  %5109 = vmatpush.bf16.msra.mxu0 %v3495
  %5110 = vmatpush.bf16.msra.mxu0 %v3493
  %5111 = vmatpush.bf16.msra.mxu0 %v3491
  %5112 = vmatpush.bf16.msra.mxu0 %v3489
  %5113 = vmatpush.bf16.msra.mxu0 %v3487
  %5114 = vmatpush.bf16.msra.mxu0 %v3485
  %5115 = vmatmul.bf16.gmra.mxu0 %v1735
  %v5116 = vpop.f32.mrf.mxu0
  %v5117 = vadd.f32 %v5068, %v5116
  %v5118 = vpop.f32.mrf.mxu0
  %v5119 = vadd.f32 %v5070, %v5118
  %5120 = vmatmul.bf16.gmra.mxu0 %v1737
  %v5121 = vpop.f32.mrf.mxu0
  %v5122 = vadd.f32 %v5073, %v5121
  %v5123 = vpop.f32.mrf.mxu0
  %v5124 = vadd.f32 %v5075, %v5123
  %5125 = vmatmul.bf16.gmra.mxu0 %v1739
  %v5126 = vpop.f32.mrf.mxu0
  %v5127 = vadd.f32 %v5078, %v5126
  %v5128 = vpop.f32.mrf.mxu0
  %v5129 = vadd.f32 %v5080, %v5128
  %5130 = vmatmul.bf16.gmra.mxu0 %v1741
  %v5131 = vpop.f32.mrf.mxu0
  %v5132 = vadd.f32 %v5083, %v5131
  %v5133 = vpop.f32.mrf.mxu0
  %v5134 = vadd.f32 %v5085, %v5133
  %5135 = vmatmul.bf16.gmra.mxu0 %v1743
  %v5136 = vpop.f32.mrf.mxu0
  %v5137 = vadd.f32 %v5088, %v5136
  %v5138 = vpop.f32.mrf.mxu0
  %v5139 = vadd.f32 %v5090, %v5138
  %5140 = vmatmul.bf16.gmra.mxu0 %v1745
  %v5141 = vpop.f32.mrf.mxu0
  %v5142 = vadd.f32 %v5093, %v5141
  %v5143 = vpop.f32.mrf.mxu0
  %v5144 = vadd.f32 %v5095, %v5143
  %5145 = vmatmul.bf16.gmra.mxu0 %v1747
  %v5146 = vpop.f32.mrf.mxu0
  %v5147 = vadd.f32 %v5098, %v5146
  %v5148 = vpop.f32.mrf.mxu0
  %v5149 = vadd.f32 %v5100, %v5148
  %5150 = vmatmul.bf16.gmra.mxu0 %v1749
  %v5151 = vpop.f32.mrf.mxu0
  %v5152 = vadd.f32 %v5103, %v5151
  %v5153 = vpop.f32.mrf.mxu0
  %v5154 = vadd.f32 %v5105, %v5153
  %5155 = vdwg.mxu0
  %5156 = vmatpush.bf16.msra.mxu0 %v3515
  %5157 = vmatpush.bf16.msra.mxu0 %v3513
  %5158 = vmatpush.bf16.msra.mxu0 %v3511
  %5159 = vmatpush.bf16.msra.mxu0 %v3509
  %5160 = vmatpush.bf16.msra.mxu0 %v3507
  %5161 = vmatpush.bf16.msra.mxu0 %v3505
  %5162 = vmatpush.bf16.msra.mxu0 %v3503
  %5163 = vmatpush.bf16.msra.mxu0 %v3501
  %5164 = vmatmul.bf16.gmra.mxu0 %v1814
  %v5165 = vpop.f32.mrf.mxu0
  %v5166 = vadd.f32 %v5117, %v5165
  %v5167 = vpop.f32.mrf.mxu0
  %v5168 = vadd.f32 %v5119, %v5167
  %5169 = vmatmul.bf16.gmra.mxu0 %v1816
  %v5170 = vpop.f32.mrf.mxu0
  %v5171 = vadd.f32 %v5122, %v5170
  %v5172 = vpop.f32.mrf.mxu0
  %v5173 = vadd.f32 %v5124, %v5172
  %5174 = vmatmul.bf16.gmra.mxu0 %v1818
  %v5175 = vpop.f32.mrf.mxu0
  %v5176 = vadd.f32 %v5127, %v5175
  %v5177 = vpop.f32.mrf.mxu0
  %v5178 = vadd.f32 %v5129, %v5177
  %5179 = vmatmul.bf16.gmra.mxu0 %v1820
  %v5180 = vpop.f32.mrf.mxu0
  %v5181 = vadd.f32 %v5132, %v5180
  %v5182 = vpop.f32.mrf.mxu0
  %v5183 = vadd.f32 %v5134, %v5182
  %5184 = vmatmul.bf16.gmra.mxu0 %v1822
  %v5185 = vpop.f32.mrf.mxu0
  %v5186 = vadd.f32 %v5137, %v5185
  %v5187 = vpop.f32.mrf.mxu0
  %v5188 = vadd.f32 %v5139, %v5187
  %5189 = vmatmul.bf16.gmra.mxu0 %v1824
  %v5190 = vpop.f32.mrf.mxu0
  %v5191 = vadd.f32 %v5142, %v5190
  %v5192 = vpop.f32.mrf.mxu0
  %v5193 = vadd.f32 %v5144, %v5192
  %5194 = vmatmul.bf16.gmra.mxu0 %v1826
  %v5195 = vpop.f32.mrf.mxu0
  %v5196 = vadd.f32 %v5147, %v5195
  %v5197 = vpop.f32.mrf.mxu0
  %v5198 = vadd.f32 %v5149, %v5197
  %5199 = vmatmul.bf16.gmra.mxu0 %v1828
  %v5200 = vpop.f32.mrf.mxu0
  %v5201 = vadd.f32 %v5152, %v5200
  %v5202 = vpop.f32.mrf.mxu0
  %v5203 = vadd.f32 %v5154, %v5202
  %5204 = vdwg.mxu0
  %5205 = vmatpush.bf16.msra.mxu0 %v3531
  %5206 = vmatpush.bf16.msra.mxu0 %v3529
  %5207 = vmatpush.bf16.msra.mxu0 %v3527
  %5208 = vmatpush.bf16.msra.mxu0 %v3525
  %5209 = vmatpush.bf16.msra.mxu0 %v3523
  %5210 = vmatpush.bf16.msra.mxu0 %v3521
  %5211 = vmatpush.bf16.msra.mxu0 %v3519
  %5212 = vmatpush.bf16.msra.mxu0 %v3517
  %5213 = vmatmul.bf16.gmra.mxu0 %v1815
  %v5214 = vpop.f32.mrf.mxu0
  %v5215 = vadd.f32 %v5166, %v5214
  %v5216 = vpop.f32.mrf.mxu0
  %v5217 = vadd.f32 %v5168, %v5216
  %5218 = vmatmul.bf16.gmra.mxu0 %v1817
  %v5219 = vpop.f32.mrf.mxu0
  %v5220 = vadd.f32 %v5171, %v5219
  %v5221 = vpop.f32.mrf.mxu0
  %v5222 = vadd.f32 %v5173, %v5221
  %5223 = vmatmul.bf16.gmra.mxu0 %v1819
  %v5224 = vpop.f32.mrf.mxu0
  %v5225 = vadd.f32 %v5176, %v5224
  %v5226 = vpop.f32.mrf.mxu0
  %v5227 = vadd.f32 %v5178, %v5226
  %5228 = vmatmul.bf16.gmra.mxu0 %v1821
  %v5229 = vpop.f32.mrf.mxu0
  %v5230 = vadd.f32 %v5181, %v5229
  %v5231 = vpop.f32.mrf.mxu0
  %v5232 = vadd.f32 %v5183, %v5231
  %5233 = vmatmul.bf16.gmra.mxu0 %v1823
  %v5234 = vpop.f32.mrf.mxu0
  %v5235 = vadd.f32 %v5186, %v5234
  %v5236 = vpop.f32.mrf.mxu0
  %v5237 = vadd.f32 %v5188, %v5236
  %5238 = vmatmul.bf16.gmra.mxu0 %v1825
  %v5239 = vpop.f32.mrf.mxu0
  %v5240 = vadd.f32 %v5191, %v5239
  %v5241 = vpop.f32.mrf.mxu0
  %v5242 = vadd.f32 %v5193, %v5241
  %5243 = vmatmul.bf16.gmra.mxu0 %v1827
  %v5244 = vpop.f32.mrf.mxu0
  %v5245 = vadd.f32 %v5196, %v5244
  %v5246 = vpop.f32.mrf.mxu0
  %v5247 = vadd.f32 %v5198, %v5246
  %5248 = vmatmul.bf16.gmra.mxu0 %v1829
  %v5249 = vpop.f32.mrf.mxu0
  %v5250 = vadd.f32 %v5201, %v5249
  %v5251 = vpop.f32.mrf.mxu0
  %v5252 = vadd.f32 %v5203, %v5251
  %5253 = vdwg.mxu0
  %5254 = vmatpush.bf16.msra.mxu0 %v3547
  %5255 = vmatpush.bf16.msra.mxu0 %v3545
  %5256 = vmatpush.bf16.msra.mxu0 %v3543
  %5257 = vmatpush.bf16.msra.mxu0 %v3541
  %5258 = vmatpush.bf16.msra.mxu0 %v3539
  %5259 = vmatpush.bf16.msra.mxu0 %v3537
  %5260 = vmatpush.bf16.msra.mxu0 %v3535
  %5261 = vmatpush.bf16.msra.mxu0 %v3533
  %5262 = vmatmul.bf16.gmra.mxu0 %v1894
  %v5263 = vpop.f32.mrf.mxu0
  %v5264 = vadd.f32 %v5215, %v5263
  %v5265 = vpop.f32.mrf.mxu0
  %v5266 = vadd.f32 %v5217, %v5265
  %5267 = vmatmul.bf16.gmra.mxu0 %v1896
  %v5268 = vpop.f32.mrf.mxu0
  %v5269 = vadd.f32 %v5220, %v5268
  %v5270 = vpop.f32.mrf.mxu0
  %v5271 = vadd.f32 %v5222, %v5270
  %5272 = vmatmul.bf16.gmra.mxu0 %v1898
  %v5273 = vpop.f32.mrf.mxu0
  %v5274 = vadd.f32 %v5225, %v5273
  %v5275 = vpop.f32.mrf.mxu0
  %v5276 = vadd.f32 %v5227, %v5275
  %5277 = vmatmul.bf16.gmra.mxu0 %v1900
  %v5278 = vpop.f32.mrf.mxu0
  %v5279 = vadd.f32 %v5230, %v5278
  %v5280 = vpop.f32.mrf.mxu0
  %v5281 = vadd.f32 %v5232, %v5280
  %5282 = vmatmul.bf16.gmra.mxu0 %v1902
  %v5283 = vpop.f32.mrf.mxu0
  %v5284 = vadd.f32 %v5235, %v5283
  %v5285 = vpop.f32.mrf.mxu0
  %v5286 = vadd.f32 %v5237, %v5285
  %5287 = vmatmul.bf16.gmra.mxu0 %v1904
  %v5288 = vpop.f32.mrf.mxu0
  %v5289 = vadd.f32 %v5240, %v5288
  %v5290 = vpop.f32.mrf.mxu0
  %v5291 = vadd.f32 %v5242, %v5290
  %5292 = vmatmul.bf16.gmra.mxu0 %v1906
  %v5293 = vpop.f32.mrf.mxu0
  %v5294 = vadd.f32 %v5245, %v5293
  %v5295 = vpop.f32.mrf.mxu0
  %v5296 = vadd.f32 %v5247, %v5295
  %5297 = vmatmul.bf16.gmra.mxu0 %v1908
  %v5298 = vpop.f32.mrf.mxu0
  %v5299 = vadd.f32 %v5250, %v5298
  %v5300 = vpop.f32.mrf.mxu0
  %v5301 = vadd.f32 %v5252, %v5300
  %5302 = vdwg.mxu0
  %5303 = vmatpush.bf16.msra.mxu0 %v3563
  %5304 = vmatpush.bf16.msra.mxu0 %v3561
  %5305 = vmatpush.bf16.msra.mxu0 %v3559
  %5306 = vmatpush.bf16.msra.mxu0 %v3557
  %5307 = vmatpush.bf16.msra.mxu0 %v3555
  %5308 = vmatpush.bf16.msra.mxu0 %v3553
  %5309 = vmatpush.bf16.msra.mxu0 %v3551
  %5310 = vmatpush.bf16.msra.mxu0 %v3549
  %5311 = vmatmul.bf16.gmra.mxu0 %v1895
  %v5312 = vpop.f32.mrf.mxu0
  %v5313 = vadd.f32 %v5264, %v5312
  %v5314 = vpop.f32.mrf.mxu0
  %v5315 = vadd.f32 %v5266, %v5314
  %5316 = vmatmul.bf16.gmra.mxu0 %v1897
  %v5317 = vpop.f32.mrf.mxu0
  %v5318 = vadd.f32 %v5269, %v5317
  %v5319 = vpop.f32.mrf.mxu0
  %v5320 = vadd.f32 %v5271, %v5319
  %5321 = vmatmul.bf16.gmra.mxu0 %v1899
  %v5322 = vpop.f32.mrf.mxu0
  %v5323 = vadd.f32 %v5274, %v5322
  %v5324 = vpop.f32.mrf.mxu0
  %v5325 = vadd.f32 %v5276, %v5324
  %5326 = vmatmul.bf16.gmra.mxu0 %v1901
  %v5327 = vpop.f32.mrf.mxu0
  %v5328 = vadd.f32 %v5279, %v5327
  %v5329 = vpop.f32.mrf.mxu0
  %v5330 = vadd.f32 %v5281, %v5329
  %5331 = vmatmul.bf16.gmra.mxu0 %v1903
  %v5332 = vpop.f32.mrf.mxu0
  %v5333 = vadd.f32 %v5284, %v5332
  %v5334 = vpop.f32.mrf.mxu0
  %v5335 = vadd.f32 %v5286, %v5334
  %5336 = vmatmul.bf16.gmra.mxu0 %v1905
  %v5337 = vpop.f32.mrf.mxu0
  %v5338 = vadd.f32 %v5289, %v5337
  %v5339 = vpop.f32.mrf.mxu0
  %v5340 = vadd.f32 %v5291, %v5339
  %5341 = vmatmul.bf16.gmra.mxu0 %v1907
  %v5342 = vpop.f32.mrf.mxu0
  %v5343 = vadd.f32 %v5294, %v5342
  %v5344 = vpop.f32.mrf.mxu0
  %v5345 = vadd.f32 %v5296, %v5344
  %5346 = vmatmul.bf16.gmra.mxu0 %v1909
  %v5347 = vpop.f32.mrf.mxu0
  %v5348 = vadd.f32 %v5299, %v5347
  %v5349 = vpop.f32.mrf.mxu0
  %v5350 = vadd.f32 %v5301, %v5349
  %5351 = vdwg.mxu0
  %5352 = vmatpush.bf16.msra.mxu0 %v3579
  %5353 = vmatpush.bf16.msra.mxu0 %v3577
  %5354 = vmatpush.bf16.msra.mxu0 %v3575
  %5355 = vmatpush.bf16.msra.mxu0 %v3573
  %5356 = vmatpush.bf16.msra.mxu0 %v3571
  %5357 = vmatpush.bf16.msra.mxu0 %v3569
  %5358 = vmatpush.bf16.msra.mxu0 %v3567
  %5359 = vmatpush.bf16.msra.mxu0 %v3565
  %5360 = vmatmul.bf16.gmra.mxu0 %v1974
  %v5361 = vpop.f32.mrf.mxu0
  %v5362 = vadd.f32 %v5313, %v5361
  %v5363 = vpop.f32.mrf.mxu0
  %v5364 = vadd.f32 %v5315, %v5363
  %5365 = vmatmul.bf16.gmra.mxu0 %v1976
  %v5366 = vpop.f32.mrf.mxu0
  %v5367 = vadd.f32 %v5318, %v5366
  %v5368 = vpop.f32.mrf.mxu0
  %v5369 = vadd.f32 %v5320, %v5368
  %5370 = vmatmul.bf16.gmra.mxu0 %v1978
  %v5371 = vpop.f32.mrf.mxu0
  %v5372 = vadd.f32 %v5323, %v5371
  %v5373 = vpop.f32.mrf.mxu0
  %v5374 = vadd.f32 %v5325, %v5373
  %5375 = vmatmul.bf16.gmra.mxu0 %v1980
  %v5376 = vpop.f32.mrf.mxu0
  %v5377 = vadd.f32 %v5328, %v5376
  %v5378 = vpop.f32.mrf.mxu0
  %v5379 = vadd.f32 %v5330, %v5378
  %5380 = vmatmul.bf16.gmra.mxu0 %v1982
  %v5381 = vpop.f32.mrf.mxu0
  %v5382 = vadd.f32 %v5333, %v5381
  %v5383 = vpop.f32.mrf.mxu0
  %v5384 = vadd.f32 %v5335, %v5383
  %5385 = vmatmul.bf16.gmra.mxu0 %v1984
  %v5386 = vpop.f32.mrf.mxu0
  %v5387 = vadd.f32 %v5338, %v5386
  %v5388 = vpop.f32.mrf.mxu0
  %v5389 = vadd.f32 %v5340, %v5388
  %5390 = vmatmul.bf16.gmra.mxu0 %v1986
  %v5391 = vpop.f32.mrf.mxu0
  %v5392 = vadd.f32 %v5343, %v5391
  %v5393 = vpop.f32.mrf.mxu0
  %v5394 = vadd.f32 %v5345, %v5393
  %5395 = vmatmul.bf16.gmra.mxu0 %v1988
  %v5396 = vpop.f32.mrf.mxu0
  %v5397 = vadd.f32 %v5348, %v5396
  %v5398 = vpop.f32.mrf.mxu0
  %v5399 = vadd.f32 %v5350, %v5398
  %5400 = vdwg.mxu0
  %5401 = vmatpush.bf16.msra.mxu0 %v3595
  %5402 = vmatpush.bf16.msra.mxu0 %v3593
  %5403 = vmatpush.bf16.msra.mxu0 %v3591
  %5404 = vmatpush.bf16.msra.mxu0 %v3589
  %5405 = vmatpush.bf16.msra.mxu0 %v3587
  %5406 = vmatpush.bf16.msra.mxu0 %v3585
  %5407 = vmatpush.bf16.msra.mxu0 %v3583
  %5408 = vmatpush.bf16.msra.mxu0 %v3581
  %5409 = vmatmul.bf16.gmra.mxu0 %v1975
  %v5410 = vpop.f32.mrf.mxu0
  %v5411 = vadd.f32 %v5362, %v5410
  %v5412 = vpop.f32.mrf.mxu0
  %v5413 = vadd.f32 %v5364, %v5412
  %5414 = vmatmul.bf16.gmra.mxu0 %v1977
  %v5415 = vpop.f32.mrf.mxu0
  %v5416 = vadd.f32 %v5367, %v5415
  %v5417 = vpop.f32.mrf.mxu0
  %v5418 = vadd.f32 %v5369, %v5417
  %5419 = vmatmul.bf16.gmra.mxu0 %v1979
  %v5420 = vpop.f32.mrf.mxu0
  %v5421 = vadd.f32 %v5372, %v5420
  %v5422 = vpop.f32.mrf.mxu0
  %v5423 = vadd.f32 %v5374, %v5422
  %5424 = vmatmul.bf16.gmra.mxu0 %v1981
  %v5425 = vpop.f32.mrf.mxu0
  %v5426 = vadd.f32 %v5377, %v5425
  %v5427 = vpop.f32.mrf.mxu0
  %v5428 = vadd.f32 %v5379, %v5427
  %5429 = vmatmul.bf16.gmra.mxu0 %v1983
  %v5430 = vpop.f32.mrf.mxu0
  %v5431 = vadd.f32 %v5382, %v5430
  %v5432 = vpop.f32.mrf.mxu0
  %v5433 = vadd.f32 %v5384, %v5432
  %5434 = vmatmul.bf16.gmra.mxu0 %v1985
  %v5435 = vpop.f32.mrf.mxu0
  %v5436 = vadd.f32 %v5387, %v5435
  %v5437 = vpop.f32.mrf.mxu0
  %v5438 = vadd.f32 %v5389, %v5437
  %5439 = vmatmul.bf16.gmra.mxu0 %v1987
  %v5440 = vpop.f32.mrf.mxu0
  %v5441 = vadd.f32 %v5392, %v5440
  %v5442 = vpop.f32.mrf.mxu0
  %v5443 = vadd.f32 %v5394, %v5442
  %5444 = vmatmul.bf16.gmra.mxu0 %v1989
  %v5445 = vpop.f32.mrf.mxu0
  %v5446 = vadd.f32 %v5397, %v5445
  %v5447 = vpop.f32.mrf.mxu0
  %v5448 = vadd.f32 %v5399, %v5447
  %5449 = vdwg.mxu0
  %5450 = vmatpush.bf16.msra.mxu0 %v3611
  %5451 = vmatpush.bf16.msra.mxu0 %v3609
  %5452 = vmatpush.bf16.msra.mxu0 %v3607
  %5453 = vmatpush.bf16.msra.mxu0 %v3605
  %5454 = vmatpush.bf16.msra.mxu0 %v3603
  %5455 = vmatpush.bf16.msra.mxu0 %v3601
  %5456 = vmatpush.bf16.msra.mxu0 %v3599
  %5457 = vmatpush.bf16.msra.mxu0 %v3597
  %5458 = vmatmul.bf16.gmra.mxu0 %v2054
  %v5459 = vpop.f32.mrf.mxu0
  %v5460 = vadd.f32 %v5411, %v5459
  %v5461 = vpop.f32.mrf.mxu0
  %v5462 = vadd.f32 %v5413, %v5461
  %5463 = vmatmul.bf16.gmra.mxu0 %v2056
  %v5464 = vpop.f32.mrf.mxu0
  %v5465 = vadd.f32 %v5416, %v5464
  %v5466 = vpop.f32.mrf.mxu0
  %v5467 = vadd.f32 %v5418, %v5466
  %5468 = vmatmul.bf16.gmra.mxu0 %v2058
  %v5469 = vpop.f32.mrf.mxu0
  %v5470 = vadd.f32 %v5421, %v5469
  %v5471 = vpop.f32.mrf.mxu0
  %v5472 = vadd.f32 %v5423, %v5471
  %5473 = vmatmul.bf16.gmra.mxu0 %v2060
  %v5474 = vpop.f32.mrf.mxu0
  %v5475 = vadd.f32 %v5426, %v5474
  %v5476 = vpop.f32.mrf.mxu0
  %v5477 = vadd.f32 %v5428, %v5476
  %5478 = vmatmul.bf16.gmra.mxu0 %v2062
  %v5479 = vpop.f32.mrf.mxu0
  %v5480 = vadd.f32 %v5431, %v5479
  %v5481 = vpop.f32.mrf.mxu0
  %v5482 = vadd.f32 %v5433, %v5481
  %5483 = vmatmul.bf16.gmra.mxu0 %v2064
  %v5484 = vpop.f32.mrf.mxu0
  %v5485 = vadd.f32 %v5436, %v5484
  %v5486 = vpop.f32.mrf.mxu0
  %v5487 = vadd.f32 %v5438, %v5486
  %5488 = vmatmul.bf16.gmra.mxu0 %v2066
  %v5489 = vpop.f32.mrf.mxu0
  %v5490 = vadd.f32 %v5441, %v5489
  %v5491 = vpop.f32.mrf.mxu0
  %v5492 = vadd.f32 %v5443, %v5491
  %5493 = vmatmul.bf16.gmra.mxu0 %v2068
  %v5494 = vpop.f32.mrf.mxu0
  %v5495 = vadd.f32 %v5446, %v5494
  %v5496 = vpop.f32.mrf.mxu0
  %v5497 = vadd.f32 %v5448, %v5496
  %5498 = vdwg.mxu0
  %5499 = vmatpush.bf16.msra.mxu0 %v3627
  %5500 = vmatpush.bf16.msra.mxu0 %v3625
  %5501 = vmatpush.bf16.msra.mxu0 %v3623
  %5502 = vmatpush.bf16.msra.mxu0 %v3621
  %5503 = vmatpush.bf16.msra.mxu0 %v3619
  %5504 = vmatpush.bf16.msra.mxu0 %v3617
  %5505 = vmatpush.bf16.msra.mxu0 %v3615
  %5506 = vmatpush.bf16.msra.mxu0 %v3613
  %5507 = vmatmul.bf16.gmra.mxu0 %v2055
  %v5508 = vpop.f32.mrf.mxu0
  %v5509 = vadd.f32 %v5460, %v5508
  %v5510 = vpop.f32.mrf.mxu0
  %v5511 = vadd.f32 %v5462, %v5510
  %5512 = vmatmul.bf16.gmra.mxu0 %v2057
  %v5513 = vpop.f32.mrf.mxu0
  %v5514 = vadd.f32 %v5465, %v5513
  %v5515 = vpop.f32.mrf.mxu0
  %v5516 = vadd.f32 %v5467, %v5515
  %5517 = vmatmul.bf16.gmra.mxu0 %v2059
  %v5518 = vpop.f32.mrf.mxu0
  %v5519 = vadd.f32 %v5470, %v5518
  %v5520 = vpop.f32.mrf.mxu0
  %v5521 = vadd.f32 %v5472, %v5520
  %5522 = vmatmul.bf16.gmra.mxu0 %v2061
  %v5523 = vpop.f32.mrf.mxu0
  %v5524 = vadd.f32 %v5475, %v5523
  %v5525 = vpop.f32.mrf.mxu0
  %v5526 = vadd.f32 %v5477, %v5525
  %5527 = vmatmul.bf16.gmra.mxu0 %v2063
  %v5528 = vpop.f32.mrf.mxu0
  %v5529 = vadd.f32 %v5480, %v5528
  %v5530 = vpop.f32.mrf.mxu0
  %v5531 = vadd.f32 %v5482, %v5530
  %5532 = vmatmul.bf16.gmra.mxu0 %v2065
  %v5533 = vpop.f32.mrf.mxu0
  %v5534 = vadd.f32 %v5485, %v5533
  %v5535 = vpop.f32.mrf.mxu0
  %v5536 = vadd.f32 %v5487, %v5535
  %5537 = vmatmul.bf16.gmra.mxu0 %v2067
  %v5538 = vpop.f32.mrf.mxu0
  %v5539 = vadd.f32 %v5490, %v5538
  %v5540 = vpop.f32.mrf.mxu0
  %v5541 = vadd.f32 %v5492, %v5540
  %5542 = vmatmul.bf16.gmra.mxu0 %v2069
  %v5543 = vpop.f32.mrf.mxu0
  %v5544 = vadd.f32 %v5495, %v5543
  %v5545 = vpop.f32.mrf.mxu0
  %v5546 = vadd.f32 %v5497, %v5545
  %5547 = vdwg.mxu0
  %5548 = vmatpush.bf16.msra.mxu0 %v3643
  %5549 = vmatpush.bf16.msra.mxu0 %v3641
  %5550 = vmatpush.bf16.msra.mxu0 %v3639
  %5551 = vmatpush.bf16.msra.mxu0 %v3637
  %5552 = vmatpush.bf16.msra.mxu0 %v3635
  %5553 = vmatpush.bf16.msra.mxu0 %v3633
  %5554 = vmatpush.bf16.msra.mxu0 %v3631
  %5555 = vmatpush.bf16.msra.mxu0 %v3629
  %5556 = vmatmul.bf16.gmra.mxu0 %v2134
  %v5557 = vpop.f32.mrf.mxu0
  %v5558 = vadd.f32 %v5509, %v5557
  %v5559 = vpop.f32.mrf.mxu0
  %v5560 = vadd.f32 %v5511, %v5559
  %5561 = vmatmul.bf16.gmra.mxu0 %v2136
  %v5562 = vpop.f32.mrf.mxu0
  %v5563 = vadd.f32 %v5514, %v5562
  %v5564 = vpop.f32.mrf.mxu0
  %v5565 = vadd.f32 %v5516, %v5564
  %5566 = vmatmul.bf16.gmra.mxu0 %v2138
  %v5567 = vpop.f32.mrf.mxu0
  %v5568 = vadd.f32 %v5519, %v5567
  %v5569 = vpop.f32.mrf.mxu0
  %v5570 = vadd.f32 %v5521, %v5569
  %5571 = vmatmul.bf16.gmra.mxu0 %v2140
  %v5572 = vpop.f32.mrf.mxu0
  %v5573 = vadd.f32 %v5524, %v5572
  %v5574 = vpop.f32.mrf.mxu0
  %v5575 = vadd.f32 %v5526, %v5574
  %5576 = vmatmul.bf16.gmra.mxu0 %v2142
  %v5577 = vpop.f32.mrf.mxu0
  %v5578 = vadd.f32 %v5529, %v5577
  %v5579 = vpop.f32.mrf.mxu0
  %v5580 = vadd.f32 %v5531, %v5579
  %5581 = vmatmul.bf16.gmra.mxu0 %v2144
  %v5582 = vpop.f32.mrf.mxu0
  %v5583 = vadd.f32 %v5534, %v5582
  %v5584 = vpop.f32.mrf.mxu0
  %v5585 = vadd.f32 %v5536, %v5584
  %5586 = vmatmul.bf16.gmra.mxu0 %v2146
  %v5587 = vpop.f32.mrf.mxu0
  %v5588 = vadd.f32 %v5539, %v5587
  %v5589 = vpop.f32.mrf.mxu0
  %v5590 = vadd.f32 %v5541, %v5589
  %5591 = vmatmul.bf16.gmra.mxu0 %v2148
  %v5592 = vpop.f32.mrf.mxu0
  %v5593 = vadd.f32 %v5544, %v5592
  %v5594 = vpop.f32.mrf.mxu0
  %v5595 = vadd.f32 %v5546, %v5594
  %5596 = vdwg.mxu0
  %5597 = vmatpush.bf16.msra.mxu0 %v3659
  %5598 = vmatpush.bf16.msra.mxu0 %v3657
  %5599 = vmatpush.bf16.msra.mxu0 %v3655
  %5600 = vmatpush.bf16.msra.mxu0 %v3653
  %5601 = vmatpush.bf16.msra.mxu0 %v3651
  %5602 = vmatpush.bf16.msra.mxu0 %v3649
  %5603 = vmatpush.bf16.msra.mxu0 %v3647
  %5604 = vmatpush.bf16.msra.mxu0 %v3645
  %5605 = vmatmul.bf16.gmra.mxu0 %v2135
  %v5606 = vpop.f32.mrf.mxu0
  %v5607 = vadd.f32 %v5558, %v5606
  %v5608 = vpop.f32.mrf.mxu0
  %v5609 = vadd.f32 %v5560, %v5608
  %5610 = vmatmul.bf16.gmra.mxu0 %v2137
  %v5611 = vpop.f32.mrf.mxu0
  %v5612 = vadd.f32 %v5563, %v5611
  %v5613 = vpop.f32.mrf.mxu0
  %v5614 = vadd.f32 %v5565, %v5613
  %5615 = vmatmul.bf16.gmra.mxu0 %v2139
  %v5616 = vpop.f32.mrf.mxu0
  %v5617 = vadd.f32 %v5568, %v5616
  %v5618 = vpop.f32.mrf.mxu0
  %v5619 = vadd.f32 %v5570, %v5618
  %5620 = vmatmul.bf16.gmra.mxu0 %v2141
  %v5621 = vpop.f32.mrf.mxu0
  %v5622 = vadd.f32 %v5573, %v5621
  %v5623 = vpop.f32.mrf.mxu0
  %v5624 = vadd.f32 %v5575, %v5623
  %5625 = vmatmul.bf16.gmra.mxu0 %v2143
  %v5626 = vpop.f32.mrf.mxu0
  %v5627 = vadd.f32 %v5578, %v5626
  %v5628 = vpop.f32.mrf.mxu0
  %v5629 = vadd.f32 %v5580, %v5628
  %5630 = vmatmul.bf16.gmra.mxu0 %v2145
  %v5631 = vpop.f32.mrf.mxu0
  %v5632 = vadd.f32 %v5583, %v5631
  %v5633 = vpop.f32.mrf.mxu0
  %v5634 = vadd.f32 %v5585, %v5633
  %5635 = vmatmul.bf16.gmra.mxu0 %v2147
  %v5636 = vpop.f32.mrf.mxu0
  %v5637 = vadd.f32 %v5588, %v5636
  %v5638 = vpop.f32.mrf.mxu0
  %v5639 = vadd.f32 %v5590, %v5638
  %5640 = vmatmul.bf16.gmra.mxu0 %v2149
  %v5641 = vpop.f32.mrf.mxu0
  %v5642 = vadd.f32 %v5593, %v5641
  %v5643 = vpop.f32.mrf.mxu0
  %v5644 = vadd.f32 %v5595, %v5643
  %5645 = vdwg.mxu0
  %5646 = vmatpush.bf16.msra.mxu0 %v3675
  %5647 = vmatpush.bf16.msra.mxu0 %v3673
  %5648 = vmatpush.bf16.msra.mxu0 %v3671
  %5649 = vmatpush.bf16.msra.mxu0 %v3669
  %5650 = vmatpush.bf16.msra.mxu0 %v3667
  %5651 = vmatpush.bf16.msra.mxu0 %v3665
  %5652 = vmatpush.bf16.msra.mxu0 %v3663
  %5653 = vmatpush.bf16.msra.mxu0 %v3661
  %5654 = vmatmul.bf16.gmra.mxu0 %v2214
  %v5655 = vpop.f32.mrf.mxu0
  %v5656 = vadd.f32 %v5607, %v5655
  %v5657 = vpop.f32.mrf.mxu0
  %v5658 = vadd.f32 %v5609, %v5657
  %5659 = vmatmul.bf16.gmra.mxu0 %v2216
  %v5660 = vpop.f32.mrf.mxu0
  %v5661 = vadd.f32 %v5612, %v5660
  %v5662 = vpop.f32.mrf.mxu0
  %v5663 = vadd.f32 %v5614, %v5662
  %5664 = vmatmul.bf16.gmra.mxu0 %v2218
  %v5665 = vpop.f32.mrf.mxu0
  %v5666 = vadd.f32 %v5617, %v5665
  %v5667 = vpop.f32.mrf.mxu0
  %v5668 = vadd.f32 %v5619, %v5667
  %5669 = vmatmul.bf16.gmra.mxu0 %v2220
  %v5670 = vpop.f32.mrf.mxu0
  %v5671 = vadd.f32 %v5622, %v5670
  %v5672 = vpop.f32.mrf.mxu0
  %v5673 = vadd.f32 %v5624, %v5672
  %5674 = vmatmul.bf16.gmra.mxu0 %v2222
  %v5675 = vpop.f32.mrf.mxu0
  %v5676 = vadd.f32 %v5627, %v5675
  %v5677 = vpop.f32.mrf.mxu0
  %v5678 = vadd.f32 %v5629, %v5677
  %5679 = vmatmul.bf16.gmra.mxu0 %v2224
  %v5680 = vpop.f32.mrf.mxu0
  %v5681 = vadd.f32 %v5632, %v5680
  %v5682 = vpop.f32.mrf.mxu0
  %v5683 = vadd.f32 %v5634, %v5682
  %5684 = vmatmul.bf16.gmra.mxu0 %v2226
  %v5685 = vpop.f32.mrf.mxu0
  %v5686 = vadd.f32 %v5637, %v5685
  %v5687 = vpop.f32.mrf.mxu0
  %v5688 = vadd.f32 %v5639, %v5687
  %5689 = vmatmul.bf16.gmra.mxu0 %v2228
  %v5690 = vpop.f32.mrf.mxu0
  %v5691 = vadd.f32 %v5642, %v5690
  %v5692 = vpop.f32.mrf.mxu0
  %v5693 = vadd.f32 %v5644, %v5692
  %5694 = vdwg.mxu0
  %5695 = vmatpush.bf16.msra.mxu0 %v3691
  %5696 = vmatpush.bf16.msra.mxu0 %v3689
  %5697 = vmatpush.bf16.msra.mxu0 %v3687
  %5698 = vmatpush.bf16.msra.mxu0 %v3685
  %5699 = vmatpush.bf16.msra.mxu0 %v3683
  %5700 = vmatpush.bf16.msra.mxu0 %v3681
  %5701 = vmatpush.bf16.msra.mxu0 %v3679
  %5702 = vmatpush.bf16.msra.mxu0 %v3677
  %5703 = vmatmul.bf16.gmra.mxu0 %v2215
  %v5704 = vpop.f32.mrf.mxu0
  %v5705 = vadd.f32 %v5656, %v5704
  %v5706 = vpop.f32.mrf.mxu0
  %v5707 = vadd.f32 %v5658, %v5706
  %5708 = vmatmul.bf16.gmra.mxu0 %v2217
  %v5709 = vpop.f32.mrf.mxu0
  %v5710 = vadd.f32 %v5661, %v5709
  %v5711 = vpop.f32.mrf.mxu0
  %v5712 = vadd.f32 %v5663, %v5711
  %5713 = vmatmul.bf16.gmra.mxu0 %v2219
  %v5714 = vpop.f32.mrf.mxu0
  %v5715 = vadd.f32 %v5666, %v5714
  %v5716 = vpop.f32.mrf.mxu0
  %v5717 = vadd.f32 %v5668, %v5716
  %5718 = vmatmul.bf16.gmra.mxu0 %v2221
  %v5719 = vpop.f32.mrf.mxu0
  %v5720 = vadd.f32 %v5671, %v5719
  %v5721 = vpop.f32.mrf.mxu0
  %v5722 = vadd.f32 %v5673, %v5721
  %5723 = vmatmul.bf16.gmra.mxu0 %v2223
  %v5724 = vpop.f32.mrf.mxu0
  %v5725 = vadd.f32 %v5676, %v5724
  %v5726 = vpop.f32.mrf.mxu0
  %v5727 = vadd.f32 %v5678, %v5726
  %5728 = vmatmul.bf16.gmra.mxu0 %v2225
  %v5729 = vpop.f32.mrf.mxu0
  %v5730 = vadd.f32 %v5681, %v5729
  %v5731 = vpop.f32.mrf.mxu0
  %v5732 = vadd.f32 %v5683, %v5731
  %5733 = vmatmul.bf16.gmra.mxu0 %v2227
  %v5734 = vpop.f32.mrf.mxu0
  %v5735 = vadd.f32 %v5686, %v5734
  %v5736 = vpop.f32.mrf.mxu0
  %v5737 = vadd.f32 %v5688, %v5736
  %5738 = vmatmul.bf16.gmra.mxu0 %v2229
  %v5739 = vpop.f32.mrf.mxu0
  %v5740 = vadd.f32 %v5691, %v5739
  %v5741 = vpop.f32.mrf.mxu0
  %v5742 = vadd.f32 %v5693, %v5741
  %5743 = vdwg.mxu0
  %v5744 = vmax.f32 %v4823, 0.0
  %v5745 = vmax.f32 %v5705, 0.0
  %v5746 = vmax.f32 %v4825, 0.0
  %v5747 = vmax.f32 %v5707, 0.0
  %v5748 = vmax.f32 %v4828, 0.0
  %v5749 = vmax.f32 %v5710, 0.0
  %v5750 = vmax.f32 %v4830, 0.0
  %v5751 = vmax.f32 %v5712, 0.0
  %v5752 = vmax.f32 %v4833, 0.0
  %v5753 = vmax.f32 %v5715, 0.0
  %v5754 = vmax.f32 %v4835, 0.0
  %v5755 = vmax.f32 %v5717, 0.0
  %v5756 = vmax.f32 %v4838, 0.0
  %v5757 = vmax.f32 %v5720, 0.0
  %v5758 = vmax.f32 %v4840, 0.0
  %v5759 = vmax.f32 %v5722, 0.0
  %v5760 = vmax.f32 %v4843, 0.0
  %v5761 = vmax.f32 %v5725, 0.0
  %v5762 = vmax.f32 %v4845, 0.0
  %v5763 = vmax.f32 %v5727, 0.0
  %v5764 = vmax.f32 %v4848, 0.0
  %v5765 = vmax.f32 %v5730, 0.0
  %v5766 = vmax.f32 %v4850, 0.0
  %v5767 = vmax.f32 %v5732, 0.0
  %v5768 = vmax.f32 %v4853, 0.0
  %v5769 = vmax.f32 %v5735, 0.0
  %v5770 = vmax.f32 %v4855, 0.0
  %v5771 = vmax.f32 %v5737, 0.0
  %v5772 = vmax.f32 %v4858, 0.0
  %v5773 = vmax.f32 %v5740, 0.0
  %v5774 = vmax.f32 %v4860, 0.0
  %v5775 = vmax.f32 %v5742, 0.0
  %v5776 = vrot.slane %v5744, 7
  %v5777 = vrot.slane %v5745, 7
  %v5778 = vrot.slane %v5746, 7
  %v5779 = vrot.slane %v5747, 7
  %v5780 = vrot.slane %v5748, 7
  %v5781 = vrot.slane %v5749, 7
  %v5782 = vrot.slane %v5750, 7
  %v5783 = vrot.slane %v5751, 7
  %v5784 = vrot.slane %v5752, 7
  %v5785 = vrot.slane %v5753, 7
  %v5786 = vrot.slane %v5754, 7
  %v5787 = vrot.slane %v5755, 7
  %v5788 = vrot.slane %v5756, 7
  %v5789 = vrot.slane %v5757, 7
  %v5790 = vrot.slane %v5758, 7
  %v5791 = vrot.slane %v5759, 7
  %v5792 = vrot.slane %v5760, 7
  %v5793 = vrot.slane %v5761, 7
  %v5794 = vrot.slane %v5762, 7
  %v5795 = vrot.slane %v5763, 7
  %v5796 = vrot.slane %v5764, 7
  %v5797 = vrot.slane %v5765, 7
  %v5798 = vrot.slane %v5766, 7
  %v5799 = vrot.slane %v5767, 7
  %v5800 = vrot.slane %v5768, 7
  %v5801 = vrot.slane %v5769, 7
  %v5802 = vrot.slane %v5770, 7
  %v5803 = vrot.slane %v5771, 7
  %v5804 = vrot.slane %v5772, 7
  %v5805 = vrot.slane %v5773, 7
  %v5806 = vrot.slane %v5774, 7
  %v5807 = vrot.slane %v5775, 7
  %v5808 = vsel %vm404, %v5804, %v5806
  %v5809 = vsel %vm404, %v5805, %v5807
  %v5810 = vsel %vm404, %v5802, %v5804
  %v5811 = vsel %vm404, %v5803, %v5805
  %v5812 = vsel %vm404, %v5800, %v5802
  %v5813 = vsel %vm404, %v5801, %v5803
  %v5814 = vsel %vm404, %v5798, %v5800
  %v5815 = vsel %vm404, %v5799, %v5801
  %v5816 = vsel %vm404, %v5796, %v5798
  %v5817 = vsel %vm404, %v5797, %v5799
  %v5818 = vsel %vm404, %v5794, %v5796
  %v5819 = vsel %vm404, %v5795, %v5797
  %v5820 = vsel %vm404, %v5792, %v5794
  %v5821 = vsel %vm404, %v5793, %v5795
  %v5822 = vsel %vm404, %v5790, %v5792
  %v5823 = vsel %vm404, %v5791, %v5793
  %v5824 = vsel %vm404, %v5788, %v5790
  %v5825 = vsel %vm404, %v5789, %v5791
  %v5826 = vsel %vm404, %v5786, %v5788
  %v5827 = vsel %vm404, %v5787, %v5789
  %v5828 = vsel %vm404, %v5784, %v5786
  %v5829 = vsel %vm404, %v5785, %v5787
  %v5830 = vsel %vm404, %v5782, %v5784
  %v5831 = vsel %vm404, %v5783, %v5785
  %v5832 = vsel %vm404, %v5780, %v5782
  %v5833 = vsel %vm404, %v5781, %v5783
  %v5834 = vsel %vm404, %v5778, %v5780
  %v5835 = vsel %vm404, %v5779, %v5781
  %v5836 = vsel %vm404, %v5776, %v5778
  %v5837 = vsel %vm404, %v5777, %v5779
  %v5838 = vsel %vm404, %v5806, %v5776
  %v5839 = vsel %vm404, %v5807, %v5777
  %v5840 = vmul.f32 %v5808, %v440
  %v5841 = vmul.f32 %v5809, %v440
  %v5842 = vmul.f32 %v5838, %v445
  %v5843 = vmul.f32 %v5839, %v445
  %v5844 = vmul.f32 %v5836, %v450
  %v5845 = vmul.f32 %v5837, %v450
  %v5846 = vmul.f32 %v5834, %v455
  %v5847 = vmul.f32 %v5835, %v455
  %v5848 = vmul.f32 %v5832, %v460
  %v5849 = vmul.f32 %v5833, %v460
  %v5850 = vmul.f32 %v5830, %v465
  %v5851 = vmul.f32 %v5831, %v465
  %v5852 = vmul.f32 %v5828, %v470
  %v5853 = vmul.f32 %v5829, %v470
  %v5854 = vmul.f32 %v5826, %v475
  %v5855 = vmul.f32 %v5827, %v475
  %v5856 = vmul.f32 %v5824, %v480
  %v5857 = vmul.f32 %v5825, %v480
  %v5858 = vmul.f32 %v5822, %v485
  %v5859 = vmul.f32 %v5823, %v485
  %v5860 = vmul.f32 %v5820, %v490
  %v5861 = vmul.f32 %v5821, %v490
  %v5862 = vmul.f32 %v5818, %v495
  %v5863 = vmul.f32 %v5819, %v495
  %v5864 = vmul.f32 %v5816, %v500
  %v5865 = vmul.f32 %v5817, %v500
  %v5866 = vmul.f32 %v5814, %v505
  %v5867 = vmul.f32 %v5815, %v505
  %v5868 = vmul.f32 %v5812, %v510
  %v5869 = vmul.f32 %v5813, %v510
  %v5870 = vmul.f32 %v5810, %v515
  %v5871 = vmul.f32 %v5811, %v515
  %v5872 = vpack.c.bf16 %v5841, %v5840
  %v5873 = vpack.c.bf16 %v5843, %v5842
  %v5874 = vpack.c.bf16 %v5845, %v5844
  %v5875 = vpack.c.bf16 %v5847, %v5846
  %v5876 = vpack.c.bf16 %v5849, %v5848
  %v5877 = vpack.c.bf16 %v5851, %v5850
  %v5878 = vpack.c.bf16 %v5853, %v5852
  %v5879 = vpack.c.bf16 %v5855, %v5854
  %v5880 = vpack.c.bf16 %v5857, %v5856
  %v5881 = vpack.c.bf16 %v5859, %v5858
  %v5882 = vpack.c.bf16 %v5861, %v5860
  %v5883 = vpack.c.bf16 %v5863, %v5862
  %v5884 = vpack.c.bf16 %v5865, %v5864
  %v5885 = vpack.c.bf16 %v5867, %v5866
  %v5886 = vpack.c.bf16 %v5869, %v5868
  %v5887 = vpack.c.bf16 %v5871, %v5870
  %v5888 = vmul.f32 %v5774, %v567
  %v5889 = vmul.f32 %v5775, %v567
  %v5890 = vmul.f32 %v5744, %v571
  %v5891 = vmul.f32 %v5745, %v571
  %v5892 = vmul.f32 %v5746, %v575
  %v5893 = vmul.f32 %v5747, %v575
  %v5894 = vmul.f32 %v5748, %v579
  %v5895 = vmul.f32 %v5749, %v579
  %v5896 = vmul.f32 %v5750, %v583
  %v5897 = vmul.f32 %v5751, %v583
  %v5898 = vmul.f32 %v5752, %v587
  %v5899 = vmul.f32 %v5753, %v587
  %v5900 = vmul.f32 %v5754, %v591
  %v5901 = vmul.f32 %v5755, %v591
  %v5902 = vmul.f32 %v5756, %v595
  %v5903 = vmul.f32 %v5757, %v595
  %v5904 = vmul.f32 %v5758, %v599
  %v5905 = vmul.f32 %v5759, %v599
  %v5906 = vmul.f32 %v5760, %v603
  %v5907 = vmul.f32 %v5761, %v603
  %v5908 = vmul.f32 %v5762, %v607
  %v5909 = vmul.f32 %v5763, %v607
  %v5910 = vmul.f32 %v5764, %v611
  %v5911 = vmul.f32 %v5765, %v611
  %v5912 = vmul.f32 %v5766, %v615
  %v5913 = vmul.f32 %v5767, %v615
  %v5914 = vmul.f32 %v5768, %v619
  %v5915 = vmul.f32 %v5769, %v619
  %v5916 = vmul.f32 %v5770, %v623
  %v5917 = vmul.f32 %v5771, %v623
  %v5918 = vmul.f32 %v5772, %v627
  %v5919 = vmul.f32 %v5773, %v627
  %v5920 = vpack.c.bf16 %v5889, %v5888
  %v5921 = vpack.c.bf16 %v5891, %v5890
  %v5922 = vpack.c.bf16 %v5893, %v5892
  %v5923 = vpack.c.bf16 %v5895, %v5894
  %v5924 = vpack.c.bf16 %v5897, %v5896
  %v5925 = vpack.c.bf16 %v5899, %v5898
  %v5926 = vpack.c.bf16 %v5901, %v5900
  %v5927 = vpack.c.bf16 %v5903, %v5902
  %v5928 = vpack.c.bf16 %v5905, %v5904
  %v5929 = vpack.c.bf16 %v5907, %v5906
  %v5930 = vpack.c.bf16 %v5909, %v5908
  %v5931 = vpack.c.bf16 %v5911, %v5910
  %v5932 = vpack.c.bf16 %v5913, %v5912
  %v5933 = vpack.c.bf16 %v5915, %v5914
  %v5934 = vpack.c.bf16 %v5917, %v5916
  %v5935 = vpack.c.bf16 %v5919, %v5918
  %v5936 = vrot.slane %v5744, 1
  %v5937 = vrot.slane %v5745, 1
  %v5938 = vrot.slane %v5746, 1
  %v5939 = vrot.slane %v5747, 1
  %v5940 = vrot.slane %v5748, 1
  %v5941 = vrot.slane %v5749, 1
  %v5942 = vrot.slane %v5750, 1
  %v5943 = vrot.slane %v5751, 1
  %v5944 = vrot.slane %v5752, 1
  %v5945 = vrot.slane %v5753, 1
  %v5946 = vrot.slane %v5754, 1
  %v5947 = vrot.slane %v5755, 1
  %v5948 = vrot.slane %v5756, 1
  %v5949 = vrot.slane %v5757, 1
  %v5950 = vrot.slane %v5758, 1
  %v5951 = vrot.slane %v5759, 1
  %v5952 = vrot.slane %v5760, 1
  %v5953 = vrot.slane %v5761, 1
  %v5954 = vrot.slane %v5762, 1
  %v5955 = vrot.slane %v5763, 1
  %v5956 = vrot.slane %v5764, 1
  %v5957 = vrot.slane %v5765, 1
  %v5958 = vrot.slane %v5766, 1
  %v5959 = vrot.slane %v5767, 1
  %v5960 = vrot.slane %v5768, 1
  %v5961 = vrot.slane %v5769, 1
  %v5962 = vrot.slane %v5770, 1
  %v5963 = vrot.slane %v5771, 1
  %v5964 = vrot.slane %v5772, 1
  %v5965 = vrot.slane %v5773, 1
  %v5966 = vrot.slane %v5774, 1
  %v5967 = vrot.slane %v5775, 1
  %v5968 = vsel %vm709, %v5964, %v5966
  %v5969 = vsel %vm709, %v5965, %v5967
  %v5970 = vsel %vm709, %v5962, %v5964
  %v5971 = vsel %vm709, %v5963, %v5965
  %v5972 = vsel %vm709, %v5960, %v5962
  %v5973 = vsel %vm709, %v5961, %v5963
  %v5974 = vsel %vm709, %v5958, %v5960
  %v5975 = vsel %vm709, %v5959, %v5961
  %v5976 = vsel %vm709, %v5956, %v5958
  %v5977 = vsel %vm709, %v5957, %v5959
  %v5978 = vsel %vm709, %v5954, %v5956
  %v5979 = vsel %vm709, %v5955, %v5957
  %v5980 = vsel %vm709, %v5952, %v5954
  %v5981 = vsel %vm709, %v5953, %v5955
  %v5982 = vsel %vm709, %v5950, %v5952
  %v5983 = vsel %vm709, %v5951, %v5953
  %v5984 = vsel %vm709, %v5948, %v5950
  %v5985 = vsel %vm709, %v5949, %v5951
  %v5986 = vsel %vm709, %v5946, %v5948
  %v5987 = vsel %vm709, %v5947, %v5949
  %v5988 = vsel %vm709, %v5944, %v5946
  %v5989 = vsel %vm709, %v5945, %v5947
  %v5990 = vsel %vm709, %v5942, %v5944
  %v5991 = vsel %vm709, %v5943, %v5945
  %v5992 = vsel %vm709, %v5940, %v5942
  %v5993 = vsel %vm709, %v5941, %v5943
  %v5994 = vsel %vm709, %v5938, %v5940
  %v5995 = vsel %vm709, %v5939, %v5941
  %v5996 = vsel %vm709, %v5936, %v5938
  %v5997 = vsel %vm709, %v5937, %v5939
  %v5998 = vsel %vm709, %v5966, %v5936
  %v5999 = vsel %vm709, %v5967, %v5937
  %v6000 = vmul.f32 %v5998, %v744
  %v6001 = vmul.f32 %v5999, %v744
  %v6002 = vmul.f32 %v5996, %v748
  %v6003 = vmul.f32 %v5997, %v748
  %v6004 = vmul.f32 %v5994, %v752
  %v6005 = vmul.f32 %v5995, %v752
  %v6006 = vmul.f32 %v5992, %v756
  %v6007 = vmul.f32 %v5993, %v756
  %v6008 = vmul.f32 %v5990, %v760
  %v6009 = vmul.f32 %v5991, %v760
  %v6010 = vmul.f32 %v5988, %v764
  %v6011 = vmul.f32 %v5989, %v764
  %v6012 = vmul.f32 %v5986, %v768
  %v6013 = vmul.f32 %v5987, %v768
  %v6014 = vmul.f32 %v5984, %v772
  %v6015 = vmul.f32 %v5985, %v772
  %v6016 = vmul.f32 %v5982, %v776
  %v6017 = vmul.f32 %v5983, %v776
  %v6018 = vmul.f32 %v5980, %v780
  %v6019 = vmul.f32 %v5981, %v780
  %v6020 = vmul.f32 %v5978, %v784
  %v6021 = vmul.f32 %v5979, %v784
  %v6022 = vmul.f32 %v5976, %v788
  %v6023 = vmul.f32 %v5977, %v788
  %v6024 = vmul.f32 %v5974, %v792
  %v6025 = vmul.f32 %v5975, %v792
  %v6026 = vmul.f32 %v5972, %v796
  %v6027 = vmul.f32 %v5973, %v796
  %v6028 = vmul.f32 %v5970, %v800
  %v6029 = vmul.f32 %v5971, %v800
  %v6030 = vmul.f32 %v5968, %v804
  %v6031 = vmul.f32 %v5969, %v804
  %v6032 = vpack.c.bf16 %v6001, %v6000
  %v6033 = vpack.c.bf16 %v6003, %v6002
  %v6034 = vpack.c.bf16 %v6005, %v6004
  %v6035 = vpack.c.bf16 %v6007, %v6006
  %v6036 = vpack.c.bf16 %v6009, %v6008
  %v6037 = vpack.c.bf16 %v6011, %v6010
  %v6038 = vpack.c.bf16 %v6013, %v6012
  %v6039 = vpack.c.bf16 %v6015, %v6014
  %v6040 = vpack.c.bf16 %v6017, %v6016
  %v6041 = vpack.c.bf16 %v6019, %v6018
  %v6042 = vpack.c.bf16 %v6021, %v6020
  %v6043 = vpack.c.bf16 %v6023, %v6022
  %v6044 = vpack.c.bf16 %v6025, %v6024
  %v6045 = vpack.c.bf16 %v6027, %v6026
  %v6046 = vpack.c.bf16 %v6029, %v6028
  %v6047 = vpack.c.bf16 %v6031, %v6030
  %v6048 = vmul.f32 %v5838, %v856
  %v6049 = vmul.f32 %v5839, %v856
  %v6050 = vmul.f32 %v5836, %v860
  %v6051 = vmul.f32 %v5837, %v860
  %v6052 = vmul.f32 %v5834, %v864
  %v6053 = vmul.f32 %v5835, %v864
  %v6054 = vmul.f32 %v5832, %v868
  %v6055 = vmul.f32 %v5833, %v868
  %v6056 = vmul.f32 %v5830, %v872
  %v6057 = vmul.f32 %v5831, %v872
  %v6058 = vmul.f32 %v5828, %v876
  %v6059 = vmul.f32 %v5829, %v876
  %v6060 = vmul.f32 %v5826, %v880
  %v6061 = vmul.f32 %v5827, %v880
  %v6062 = vmul.f32 %v5824, %v884
  %v6063 = vmul.f32 %v5825, %v884
  %v6064 = vmul.f32 %v5822, %v888
  %v6065 = vmul.f32 %v5823, %v888
  %v6066 = vmul.f32 %v5820, %v892
  %v6067 = vmul.f32 %v5821, %v892
  %v6068 = vmul.f32 %v5818, %v896
  %v6069 = vmul.f32 %v5819, %v896
  %v6070 = vmul.f32 %v5816, %v900
  %v6071 = vmul.f32 %v5817, %v900
  %v6072 = vmul.f32 %v5814, %v904
  %v6073 = vmul.f32 %v5815, %v904
  %v6074 = vmul.f32 %v5812, %v908
  %v6075 = vmul.f32 %v5813, %v908
  %v6076 = vmul.f32 %v5810, %v912
  %v6077 = vmul.f32 %v5811, %v912
  %v6078 = vmul.f32 %v5808, %v916
  %v6079 = vmul.f32 %v5809, %v916
  %v6080 = vpack.c.bf16 %v6049, %v6048
  %v6081 = vpack.c.bf16 %v6051, %v6050
  %v6082 = vpack.c.bf16 %v6053, %v6052
  %v6083 = vpack.c.bf16 %v6055, %v6054
  %v6084 = vpack.c.bf16 %v6057, %v6056
  %v6085 = vpack.c.bf16 %v6059, %v6058
  %v6086 = vpack.c.bf16 %v6061, %v6060
  %v6087 = vpack.c.bf16 %v6063, %v6062
  %v6088 = vpack.c.bf16 %v6065, %v6064
  %v6089 = vpack.c.bf16 %v6067, %v6066
  %v6090 = vpack.c.bf16 %v6069, %v6068
  %v6091 = vpack.c.bf16 %v6071, %v6070
  %v6092 = vpack.c.bf16 %v6073, %v6072
  %v6093 = vpack.c.bf16 %v6075, %v6074
  %v6094 = vpack.c.bf16 %v6077, %v6076
  %v6095 = vpack.c.bf16 %v6079, %v6078
  %v6096 = vmul.f32 %v5744, %v968
  %v6097 = vmul.f32 %v5745, %v968
  %v6098 = vmul.f32 %v5746, %v972
  %v6099 = vmul.f32 %v5747, %v972
  %v6100 = vmul.f32 %v5748, %v976
  %v6101 = vmul.f32 %v5749, %v976
  %v6102 = vmul.f32 %v5750, %v980
  %v6103 = vmul.f32 %v5751, %v980
  %v6104 = vmul.f32 %v5752, %v984
  %v6105 = vmul.f32 %v5753, %v984
  %v6106 = vmul.f32 %v5754, %v988
  %v6107 = vmul.f32 %v5755, %v988
  %v6108 = vmul.f32 %v5756, %v992
  %v6109 = vmul.f32 %v5757, %v992
  %v6110 = vmul.f32 %v5758, %v996
  %v6111 = vmul.f32 %v5759, %v996
  %v6112 = vmul.f32 %v5760, %v1000
  %v6113 = vmul.f32 %v5761, %v1000
  %v6114 = vmul.f32 %v5762, %v1004
  %v6115 = vmul.f32 %v5763, %v1004
  %v6116 = vmul.f32 %v5764, %v1008
  %v6117 = vmul.f32 %v5765, %v1008
  %v6118 = vmul.f32 %v5766, %v1012
  %v6119 = vmul.f32 %v5767, %v1012
  %v6120 = vmul.f32 %v5768, %v1016
  %v6121 = vmul.f32 %v5769, %v1016
  %v6122 = vmul.f32 %v5770, %v1020
  %v6123 = vmul.f32 %v5771, %v1020
  %v6124 = vmul.f32 %v5772, %v1024
  %v6125 = vmul.f32 %v5773, %v1024
  %v6126 = vmul.f32 %v5774, %v1028
  %v6127 = vmul.f32 %v5775, %v1028
  %v6128 = vpack.c.bf16 %v6097, %v6096
  %v6129 = vpack.c.bf16 %v6099, %v6098
  %v6130 = vpack.c.bf16 %v6101, %v6100
  %v6131 = vpack.c.bf16 %v6103, %v6102
  %v6132 = vpack.c.bf16 %v6105, %v6104
  %v6133 = vpack.c.bf16 %v6107, %v6106
  %v6134 = vpack.c.bf16 %v6109, %v6108
  %v6135 = vpack.c.bf16 %v6111, %v6110
  %v6136 = vpack.c.bf16 %v6113, %v6112
  %v6137 = vpack.c.bf16 %v6115, %v6114
  %v6138 = vpack.c.bf16 %v6117, %v6116
  %v6139 = vpack.c.bf16 %v6119, %v6118
  %v6140 = vpack.c.bf16 %v6121, %v6120
  %v6141 = vpack.c.bf16 %v6123, %v6122
  %v6142 = vpack.c.bf16 %v6125, %v6124
  %v6143 = vpack.c.bf16 %v6127, %v6126
  %v6144 = vmul.f32 %v5996, %v1080
  %v6145 = vmul.f32 %v5997, %v1080
  %v6146 = vmul.f32 %v5994, %v1084
  %v6147 = vmul.f32 %v5995, %v1084
  %v6148 = vmul.f32 %v5992, %v1088
  %v6149 = vmul.f32 %v5993, %v1088
  %v6150 = vmul.f32 %v5990, %v1092
  %v6151 = vmul.f32 %v5991, %v1092
  %v6152 = vmul.f32 %v5988, %v1096
  %v6153 = vmul.f32 %v5989, %v1096
  %v6154 = vmul.f32 %v5986, %v1100
  %v6155 = vmul.f32 %v5987, %v1100
  %v6156 = vmul.f32 %v5984, %v1104
  %v6157 = vmul.f32 %v5985, %v1104
  %v6158 = vmul.f32 %v5982, %v1108
  %v6159 = vmul.f32 %v5983, %v1108
  %v6160 = vmul.f32 %v5980, %v1112
  %v6161 = vmul.f32 %v5981, %v1112
  %v6162 = vmul.f32 %v5978, %v1116
  %v6163 = vmul.f32 %v5979, %v1116
  %v6164 = vmul.f32 %v5976, %v1120
  %v6165 = vmul.f32 %v5977, %v1120
  %v6166 = vmul.f32 %v5974, %v1124
  %v6167 = vmul.f32 %v5975, %v1124
  %v6168 = vmul.f32 %v5972, %v1128
  %v6169 = vmul.f32 %v5973, %v1128
  %v6170 = vmul.f32 %v5970, %v1132
  %v6171 = vmul.f32 %v5971, %v1132
  %v6172 = vmul.f32 %v5968, %v1136
  %v6173 = vmul.f32 %v5969, %v1136
  %v6174 = vmul.f32 %v5998, %v1140
  %v6175 = vmul.f32 %v5999, %v1140
  %v6176 = vpack.c.bf16 %v6145, %v6144
  %v6177 = vpack.c.bf16 %v6147, %v6146
  %v6178 = vpack.c.bf16 %v6149, %v6148
  %v6179 = vpack.c.bf16 %v6151, %v6150
  %v6180 = vpack.c.bf16 %v6153, %v6152
  %v6181 = vpack.c.bf16 %v6155, %v6154
  %v6182 = vpack.c.bf16 %v6157, %v6156
  %v6183 = vpack.c.bf16 %v6159, %v6158
  %v6184 = vpack.c.bf16 %v6161, %v6160
  %v6185 = vpack.c.bf16 %v6163, %v6162
  %v6186 = vpack.c.bf16 %v6165, %v6164
  %v6187 = vpack.c.bf16 %v6167, %v6166
  %v6188 = vpack.c.bf16 %v6169, %v6168
  %v6189 = vpack.c.bf16 %v6171, %v6170
  %v6190 = vpack.c.bf16 %v6173, %v6172
  %v6191 = vpack.c.bf16 %v6175, %v6174
  %v6192 = vmul.f32 %v5836, %v1192
  %v6193 = vmul.f32 %v5837, %v1192
  %v6194 = vmul.f32 %v5834, %v1196
  %v6195 = vmul.f32 %v5835, %v1196
  %v6196 = vmul.f32 %v5832, %v1200
  %v6197 = vmul.f32 %v5833, %v1200
  %v6198 = vmul.f32 %v5830, %v1204
  %v6199 = vmul.f32 %v5831, %v1204
  %v6200 = vmul.f32 %v5828, %v1208
  %v6201 = vmul.f32 %v5829, %v1208
  %v6202 = vmul.f32 %v5826, %v1212
  %v6203 = vmul.f32 %v5827, %v1212
  %v6204 = vmul.f32 %v5824, %v1216
  %v6205 = vmul.f32 %v5825, %v1216
  %v6206 = vmul.f32 %v5822, %v1220
  %v6207 = vmul.f32 %v5823, %v1220
  %v6208 = vmul.f32 %v5820, %v1224
  %v6209 = vmul.f32 %v5821, %v1224
  %v6210 = vmul.f32 %v5818, %v1228
  %v6211 = vmul.f32 %v5819, %v1228
  %v6212 = vmul.f32 %v5816, %v1232
  %v6213 = vmul.f32 %v5817, %v1232
  %v6214 = vmul.f32 %v5814, %v1236
  %v6215 = vmul.f32 %v5815, %v1236
  %v6216 = vmul.f32 %v5812, %v1240
  %v6217 = vmul.f32 %v5813, %v1240
  %v6218 = vmul.f32 %v5810, %v1244
  %v6219 = vmul.f32 %v5811, %v1244
  %v6220 = vmul.f32 %v5808, %v1248
  %v6221 = vmul.f32 %v5809, %v1248
  %v6222 = vmul.f32 %v5838, %v1252
  %v6223 = vmul.f32 %v5839, %v1252
  %v6224 = vpack.c.bf16 %v6193, %v6192
  %v6225 = vpack.c.bf16 %v6195, %v6194
  %v6226 = vpack.c.bf16 %v6197, %v6196
  %v6227 = vpack.c.bf16 %v6199, %v6198
  %v6228 = vpack.c.bf16 %v6201, %v6200
  %v6229 = vpack.c.bf16 %v6203, %v6202
  %v6230 = vpack.c.bf16 %v6205, %v6204
  %v6231 = vpack.c.bf16 %v6207, %v6206
  %v6232 = vpack.c.bf16 %v6209, %v6208
  %v6233 = vpack.c.bf16 %v6211, %v6210
  %v6234 = vpack.c.bf16 %v6213, %v6212
  %v6235 = vpack.c.bf16 %v6215, %v6214
  %v6236 = vpack.c.bf16 %v6217, %v6216
  %v6237 = vpack.c.bf16 %v6219, %v6218
  %v6238 = vpack.c.bf16 %v6221, %v6220
  %v6239 = vpack.c.bf16 %v6223, %v6222
  %v6240 = vmul.f32 %v5746, %v1304
  %v6241 = vmul.f32 %v5747, %v1304
  %v6242 = vmul.f32 %v5748, %v1308
  %v6243 = vmul.f32 %v5749, %v1308
  %v6244 = vmul.f32 %v5750, %v1312
  %v6245 = vmul.f32 %v5751, %v1312
  %v6246 = vmul.f32 %v5752, %v1316
  %v6247 = vmul.f32 %v5753, %v1316
  %v6248 = vmul.f32 %v5754, %v1320
  %v6249 = vmul.f32 %v5755, %v1320
  %v6250 = vmul.f32 %v5756, %v1324
  %v6251 = vmul.f32 %v5757, %v1324
  %v6252 = vmul.f32 %v5758, %v1328
  %v6253 = vmul.f32 %v5759, %v1328
  %v6254 = vmul.f32 %v5760, %v1332
  %v6255 = vmul.f32 %v5761, %v1332
  %v6256 = vmul.f32 %v5762, %v1336
  %v6257 = vmul.f32 %v5763, %v1336
  %v6258 = vmul.f32 %v5764, %v1340
  %v6259 = vmul.f32 %v5765, %v1340
  %v6260 = vmul.f32 %v5766, %v1344
  %v6261 = vmul.f32 %v5767, %v1344
  %v6262 = vmul.f32 %v5768, %v1348
  %v6263 = vmul.f32 %v5769, %v1348
  %v6264 = vmul.f32 %v5770, %v1352
  %v6265 = vmul.f32 %v5771, %v1352
  %v6266 = vmul.f32 %v5772, %v1356
  %v6267 = vmul.f32 %v5773, %v1356
  %v6268 = vmul.f32 %v5774, %v1360
  %v6269 = vmul.f32 %v5775, %v1360
  %v6270 = vmul.f32 %v5744, %v1364
  %v6271 = vmul.f32 %v5745, %v1364
  %v6272 = vpack.c.bf16 %v6241, %v6240
  %v6273 = vpack.c.bf16 %v6243, %v6242
  %v6274 = vpack.c.bf16 %v6245, %v6244
  %v6275 = vpack.c.bf16 %v6247, %v6246
  %v6276 = vpack.c.bf16 %v6249, %v6248
  %v6277 = vpack.c.bf16 %v6251, %v6250
  %v6278 = vpack.c.bf16 %v6253, %v6252
  %v6279 = vpack.c.bf16 %v6255, %v6254
  %v6280 = vpack.c.bf16 %v6257, %v6256
  %v6281 = vpack.c.bf16 %v6259, %v6258
  %v6282 = vpack.c.bf16 %v6261, %v6260
  %v6283 = vpack.c.bf16 %v6263, %v6262
  %v6284 = vpack.c.bf16 %v6265, %v6264
  %v6285 = vpack.c.bf16 %v6267, %v6266
  %v6286 = vpack.c.bf16 %v6269, %v6268
  %v6287 = vpack.c.bf16 %v6271, %v6270
  %v6288 = vmul.f32 %v5994, %v1416
  %v6289 = vmul.f32 %v5995, %v1416
  %v6290 = vmul.f32 %v5992, %v1420
  %v6291 = vmul.f32 %v5993, %v1420
  %v6292 = vmul.f32 %v5990, %v1424
  %v6293 = vmul.f32 %v5991, %v1424
  %v6294 = vmul.f32 %v5988, %v1428
  %v6295 = vmul.f32 %v5989, %v1428
  %v6296 = vmul.f32 %v5986, %v1432
  %v6297 = vmul.f32 %v5987, %v1432
  %v6298 = vmul.f32 %v5984, %v1436
  %v6299 = vmul.f32 %v5985, %v1436
  %v6300 = vmul.f32 %v5982, %v1440
  %v6301 = vmul.f32 %v5983, %v1440
  %v6302 = vmul.f32 %v5980, %v1444
  %v6303 = vmul.f32 %v5981, %v1444
  %v6304 = vmul.f32 %v5978, %v1448
  %v6305 = vmul.f32 %v5979, %v1448
  %v6306 = vmul.f32 %v5976, %v1452
  %v6307 = vmul.f32 %v5977, %v1452
  %v6308 = vmul.f32 %v5974, %v1456
  %v6309 = vmul.f32 %v5975, %v1456
  %v6310 = vmul.f32 %v5972, %v1460
  %v6311 = vmul.f32 %v5973, %v1460
  %v6312 = vmul.f32 %v5970, %v1464
  %v6313 = vmul.f32 %v5971, %v1464
  %v6314 = vmul.f32 %v5968, %v1468
  %v6315 = vmul.f32 %v5969, %v1468
  %v6316 = vmul.f32 %v5998, %v1472
  %v6317 = vmul.f32 %v5999, %v1472
  %v6318 = vmul.f32 %v5996, %v1476
  %v6319 = vmul.f32 %v5997, %v1476
  %v6320 = vpack.c.bf16 %v6289, %v6288
  %v6321 = vpack.c.bf16 %v6291, %v6290
  %v6322 = vpack.c.bf16 %v6293, %v6292
  %v6323 = vpack.c.bf16 %v6295, %v6294
  %v6324 = vpack.c.bf16 %v6297, %v6296
  %v6325 = vpack.c.bf16 %v6299, %v6298
  %v6326 = vpack.c.bf16 %v6301, %v6300
  %v6327 = vpack.c.bf16 %v6303, %v6302
  %v6328 = vpack.c.bf16 %v6305, %v6304
  %v6329 = vpack.c.bf16 %v6307, %v6306
  %v6330 = vpack.c.bf16 %v6309, %v6308
  %v6331 = vpack.c.bf16 %v6311, %v6310
  %v6332 = vpack.c.bf16 %v6313, %v6312
  %v6333 = vpack.c.bf16 %v6315, %v6314
  %v6334 = vpack.c.bf16 %v6317, %v6316
  %v6335 = vpack.c.bf16 %v6319, %v6318
  %v6352 = vunpack.c.l.b16 %v5872
  %v6353 = vunpack.c.h.b16 %v5872
  %v6354 = vunpack.c.l.b16 %v5873
  %v6355 = vunpack.c.h.b16 %v5873
  %v6356 = vunpack.c.l.b16 %v5874
  %v6357 = vunpack.c.h.b16 %v5874
  %v6358 = vunpack.c.l.b16 %v5875
  %v6359 = vunpack.c.h.b16 %v5875
  %v6360 = vunpack.c.l.b16 %v5876
  %v6361 = vunpack.c.h.b16 %v5876
  %v6362 = vunpack.c.l.b16 %v5877
  %v6363 = vunpack.c.h.b16 %v5877
  %v6364 = vunpack.c.l.b16 %v5878
  %v6365 = vunpack.c.h.b16 %v5878
  %v6366 = vunpack.c.l.b16 %v5879
  %v6367 = vunpack.c.h.b16 %v5879
  %v6368 = vunpack.c.l.b16 %v5880
  %v6369 = vunpack.c.h.b16 %v5880
  %v6370 = vunpack.c.l.b16 %v5881
  %v6371 = vunpack.c.h.b16 %v5881
  %v6372 = vunpack.c.l.b16 %v5882
  %v6373 = vunpack.c.h.b16 %v5882
  %v6374 = vunpack.c.l.b16 %v5883
  %v6375 = vunpack.c.h.b16 %v5883
  %v6376 = vunpack.c.l.b16 %v5884
  %v6377 = vunpack.c.h.b16 %v5884
  %v6378 = vunpack.c.l.b16 %v5885
  %v6379 = vunpack.c.h.b16 %v5885
  %v6380 = vunpack.c.l.b16 %v5886
  %v6381 = vunpack.c.h.b16 %v5886
  %v6382 = vunpack.c.l.b16 %v5887
  %v6383 = vunpack.c.h.b16 %v5887
  %v6384 = vpack.c.b16 %v6354, %v6352
  %v6385 = vpack.c.b16 %v6355, %v6353
  %v6386 = vpack.c.b16 %v6358, %v6356
  %v6387 = vpack.c.b16 %v6359, %v6357
  %v6388 = vpack.c.b16 %v6362, %v6360
  %v6389 = vpack.c.b16 %v6363, %v6361
  %v6390 = vpack.c.b16 %v6366, %v6364
  %v6391 = vpack.c.b16 %v6367, %v6365
  %v6392 = vpack.c.b16 %v6370, %v6368
  %v6393 = vpack.c.b16 %v6371, %v6369
  %v6394 = vpack.c.b16 %v6374, %v6372
  %v6395 = vpack.c.b16 %v6375, %v6373
  %v6396 = vpack.c.b16 %v6378, %v6376
  %v6397 = vpack.c.b16 %v6379, %v6377
  %v6398 = vpack.c.b16 %v6382, %v6380
  %v6399 = vpack.c.b16 %v6383, %v6381
  %v6432 = vunpack.c.l.b16 %v5920
  %v6433 = vunpack.c.h.b16 %v5920
  %v6434 = vunpack.c.l.b16 %v5921
  %v6435 = vunpack.c.h.b16 %v5921
  %v6436 = vunpack.c.l.b16 %v5922
  %v6437 = vunpack.c.h.b16 %v5922
  %v6438 = vunpack.c.l.b16 %v5923
  %v6439 = vunpack.c.h.b16 %v5923
  %v6440 = vunpack.c.l.b16 %v5924
  %v6441 = vunpack.c.h.b16 %v5924
  %v6442 = vunpack.c.l.b16 %v5925
  %v6443 = vunpack.c.h.b16 %v5925
  %v6444 = vunpack.c.l.b16 %v5926
  %v6445 = vunpack.c.h.b16 %v5926
  %v6446 = vunpack.c.l.b16 %v5927
  %v6447 = vunpack.c.h.b16 %v5927
  %v6448 = vunpack.c.l.b16 %v5928
  %v6449 = vunpack.c.h.b16 %v5928
  %v6450 = vunpack.c.l.b16 %v5929
  %v6451 = vunpack.c.h.b16 %v5929
  %v6452 = vunpack.c.l.b16 %v5930
  %v6453 = vunpack.c.h.b16 %v5930
  %v6454 = vunpack.c.l.b16 %v5931
  %v6455 = vunpack.c.h.b16 %v5931
  %v6456 = vunpack.c.l.b16 %v5932
  %v6457 = vunpack.c.h.b16 %v5932
  %v6458 = vunpack.c.l.b16 %v5933
  %v6459 = vunpack.c.h.b16 %v5933
  %v6460 = vunpack.c.l.b16 %v5934
  %v6461 = vunpack.c.h.b16 %v5934
  %v6462 = vunpack.c.l.b16 %v5935
  %v6463 = vunpack.c.h.b16 %v5935
  %v6464 = vpack.c.b16 %v6434, %v6432
  %v6465 = vpack.c.b16 %v6435, %v6433
  %v6466 = vpack.c.b16 %v6438, %v6436
  %v6467 = vpack.c.b16 %v6439, %v6437
  %v6468 = vpack.c.b16 %v6442, %v6440
  %v6469 = vpack.c.b16 %v6443, %v6441
  %v6470 = vpack.c.b16 %v6446, %v6444
  %v6471 = vpack.c.b16 %v6447, %v6445
  %v6472 = vpack.c.b16 %v6450, %v6448
  %v6473 = vpack.c.b16 %v6451, %v6449
  %v6474 = vpack.c.b16 %v6454, %v6452
  %v6475 = vpack.c.b16 %v6455, %v6453
  %v6476 = vpack.c.b16 %v6458, %v6456
  %v6477 = vpack.c.b16 %v6459, %v6457
  %v6478 = vpack.c.b16 %v6462, %v6460
  %v6479 = vpack.c.b16 %v6463, %v6461
  %v6512 = vunpack.c.l.b16 %v6032
  %v6513 = vunpack.c.h.b16 %v6032
  %v6514 = vunpack.c.l.b16 %v6033
  %v6515 = vunpack.c.h.b16 %v6033
  %v6516 = vunpack.c.l.b16 %v6034
  %v6517 = vunpack.c.h.b16 %v6034
  %v6518 = vunpack.c.l.b16 %v6035
  %v6519 = vunpack.c.h.b16 %v6035
  %v6520 = vunpack.c.l.b16 %v6036
  %v6521 = vunpack.c.h.b16 %v6036
  %v6522 = vunpack.c.l.b16 %v6037
  %v6523 = vunpack.c.h.b16 %v6037
  %v6524 = vunpack.c.l.b16 %v6038
  %v6525 = vunpack.c.h.b16 %v6038
  %v6526 = vunpack.c.l.b16 %v6039
  %v6527 = vunpack.c.h.b16 %v6039
  %v6528 = vunpack.c.l.b16 %v6040
  %v6529 = vunpack.c.h.b16 %v6040
  %v6530 = vunpack.c.l.b16 %v6041
  %v6531 = vunpack.c.h.b16 %v6041
  %v6532 = vunpack.c.l.b16 %v6042
  %v6533 = vunpack.c.h.b16 %v6042
  %v6534 = vunpack.c.l.b16 %v6043
  %v6535 = vunpack.c.h.b16 %v6043
  %v6536 = vunpack.c.l.b16 %v6044
  %v6537 = vunpack.c.h.b16 %v6044
  %v6538 = vunpack.c.l.b16 %v6045
  %v6539 = vunpack.c.h.b16 %v6045
  %v6540 = vunpack.c.l.b16 %v6046
  %v6541 = vunpack.c.h.b16 %v6046
  %v6542 = vunpack.c.l.b16 %v6047
  %v6543 = vunpack.c.h.b16 %v6047
  %v6544 = vpack.c.b16 %v6514, %v6512
  %v6545 = vpack.c.b16 %v6515, %v6513
  %v6546 = vpack.c.b16 %v6518, %v6516
  %v6547 = vpack.c.b16 %v6519, %v6517
  %v6548 = vpack.c.b16 %v6522, %v6520
  %v6549 = vpack.c.b16 %v6523, %v6521
  %v6550 = vpack.c.b16 %v6526, %v6524
  %v6551 = vpack.c.b16 %v6527, %v6525
  %v6552 = vpack.c.b16 %v6530, %v6528
  %v6553 = vpack.c.b16 %v6531, %v6529
  %v6554 = vpack.c.b16 %v6534, %v6532
  %v6555 = vpack.c.b16 %v6535, %v6533
  %v6556 = vpack.c.b16 %v6538, %v6536
  %v6557 = vpack.c.b16 %v6539, %v6537
  %v6558 = vpack.c.b16 %v6542, %v6540
  %v6559 = vpack.c.b16 %v6543, %v6541
  %v6592 = vunpack.c.l.b16 %v6080
  %v6593 = vunpack.c.h.b16 %v6080
  %v6594 = vunpack.c.l.b16 %v6081
  %v6595 = vunpack.c.h.b16 %v6081
  %v6596 = vunpack.c.l.b16 %v6082
  %v6597 = vunpack.c.h.b16 %v6082
  %v6598 = vunpack.c.l.b16 %v6083
  %v6599 = vunpack.c.h.b16 %v6083
  %v6600 = vunpack.c.l.b16 %v6084
  %v6601 = vunpack.c.h.b16 %v6084
  %v6602 = vunpack.c.l.b16 %v6085
  %v6603 = vunpack.c.h.b16 %v6085
  %v6604 = vunpack.c.l.b16 %v6086
  %v6605 = vunpack.c.h.b16 %v6086
  %v6606 = vunpack.c.l.b16 %v6087
  %v6607 = vunpack.c.h.b16 %v6087
  %v6608 = vunpack.c.l.b16 %v6088
  %v6609 = vunpack.c.h.b16 %v6088
  %v6610 = vunpack.c.l.b16 %v6089
  %v6611 = vunpack.c.h.b16 %v6089
  %v6612 = vunpack.c.l.b16 %v6090
  %v6613 = vunpack.c.h.b16 %v6090
  %v6614 = vunpack.c.l.b16 %v6091
  %v6615 = vunpack.c.h.b16 %v6091
  %v6616 = vunpack.c.l.b16 %v6092
  %v6617 = vunpack.c.h.b16 %v6092
  %v6618 = vunpack.c.l.b16 %v6093
  %v6619 = vunpack.c.h.b16 %v6093
  %v6620 = vunpack.c.l.b16 %v6094
  %v6621 = vunpack.c.h.b16 %v6094
  %v6622 = vunpack.c.l.b16 %v6095
  %v6623 = vunpack.c.h.b16 %v6095
  %v6624 = vpack.c.b16 %v6594, %v6592
  %v6625 = vpack.c.b16 %v6595, %v6593
  %v6626 = vpack.c.b16 %v6598, %v6596
  %v6627 = vpack.c.b16 %v6599, %v6597
  %v6628 = vpack.c.b16 %v6602, %v6600
  %v6629 = vpack.c.b16 %v6603, %v6601
  %v6630 = vpack.c.b16 %v6606, %v6604
  %v6631 = vpack.c.b16 %v6607, %v6605
  %v6632 = vpack.c.b16 %v6610, %v6608
  %v6633 = vpack.c.b16 %v6611, %v6609
  %v6634 = vpack.c.b16 %v6614, %v6612
  %v6635 = vpack.c.b16 %v6615, %v6613
  %v6636 = vpack.c.b16 %v6618, %v6616
  %v6637 = vpack.c.b16 %v6619, %v6617
  %v6638 = vpack.c.b16 %v6622, %v6620
  %v6639 = vpack.c.b16 %v6623, %v6621
  %v6672 = vunpack.c.l.b16 %v6128
  %v6673 = vunpack.c.h.b16 %v6128
  %v6674 = vunpack.c.l.b16 %v6129
  %v6675 = vunpack.c.h.b16 %v6129
  %v6676 = vunpack.c.l.b16 %v6130
  %v6677 = vunpack.c.h.b16 %v6130
  %v6678 = vunpack.c.l.b16 %v6131
  %v6679 = vunpack.c.h.b16 %v6131
  %v6680 = vunpack.c.l.b16 %v6132
  %v6681 = vunpack.c.h.b16 %v6132
  %v6682 = vunpack.c.l.b16 %v6133
  %v6683 = vunpack.c.h.b16 %v6133
  %v6684 = vunpack.c.l.b16 %v6134
  %v6685 = vunpack.c.h.b16 %v6134
  %v6686 = vunpack.c.l.b16 %v6135
  %v6687 = vunpack.c.h.b16 %v6135
  %v6688 = vunpack.c.l.b16 %v6136
  %v6689 = vunpack.c.h.b16 %v6136
  %v6690 = vunpack.c.l.b16 %v6137
  %v6691 = vunpack.c.h.b16 %v6137
  %v6692 = vunpack.c.l.b16 %v6138
  %v6693 = vunpack.c.h.b16 %v6138
  %v6694 = vunpack.c.l.b16 %v6139
  %v6695 = vunpack.c.h.b16 %v6139
  %v6696 = vunpack.c.l.b16 %v6140
  %v6697 = vunpack.c.h.b16 %v6140
  %v6698 = vunpack.c.l.b16 %v6141
  %v6699 = vunpack.c.h.b16 %v6141
  %v6700 = vunpack.c.l.b16 %v6142
  %v6701 = vunpack.c.h.b16 %v6142
  %v6702 = vunpack.c.l.b16 %v6143
  %v6703 = vunpack.c.h.b16 %v6143
  %v6704 = vpack.c.b16 %v6674, %v6672
  %v6705 = vpack.c.b16 %v6675, %v6673
  %v6706 = vpack.c.b16 %v6678, %v6676
  %v6707 = vpack.c.b16 %v6679, %v6677
  %v6708 = vpack.c.b16 %v6682, %v6680
  %v6709 = vpack.c.b16 %v6683, %v6681
  %v6710 = vpack.c.b16 %v6686, %v6684
  %v6711 = vpack.c.b16 %v6687, %v6685
  %v6712 = vpack.c.b16 %v6690, %v6688
  %v6713 = vpack.c.b16 %v6691, %v6689
  %v6714 = vpack.c.b16 %v6694, %v6692
  %v6715 = vpack.c.b16 %v6695, %v6693
  %v6716 = vpack.c.b16 %v6698, %v6696
  %v6717 = vpack.c.b16 %v6699, %v6697
  %v6718 = vpack.c.b16 %v6702, %v6700
  %v6719 = vpack.c.b16 %v6703, %v6701
  %v6752 = vunpack.c.l.b16 %v6176
  %v6753 = vunpack.c.h.b16 %v6176
  %v6754 = vunpack.c.l.b16 %v6177
  %v6755 = vunpack.c.h.b16 %v6177
  %v6756 = vunpack.c.l.b16 %v6178
  %v6757 = vunpack.c.h.b16 %v6178
  %v6758 = vunpack.c.l.b16 %v6179
  %v6759 = vunpack.c.h.b16 %v6179
  %v6760 = vunpack.c.l.b16 %v6180
  %v6761 = vunpack.c.h.b16 %v6180
  %v6762 = vunpack.c.l.b16 %v6181
  %v6763 = vunpack.c.h.b16 %v6181
  %v6764 = vunpack.c.l.b16 %v6182
  %v6765 = vunpack.c.h.b16 %v6182
  %v6766 = vunpack.c.l.b16 %v6183
  %v6767 = vunpack.c.h.b16 %v6183
  %v6768 = vunpack.c.l.b16 %v6184
  %v6769 = vunpack.c.h.b16 %v6184
  %v6770 = vunpack.c.l.b16 %v6185
  %v6771 = vunpack.c.h.b16 %v6185
  %v6772 = vunpack.c.l.b16 %v6186
  %v6773 = vunpack.c.h.b16 %v6186
  %v6774 = vunpack.c.l.b16 %v6187
  %v6775 = vunpack.c.h.b16 %v6187
  %v6776 = vunpack.c.l.b16 %v6188
  %v6777 = vunpack.c.h.b16 %v6188
  %v6778 = vunpack.c.l.b16 %v6189
  %v6779 = vunpack.c.h.b16 %v6189
  %v6780 = vunpack.c.l.b16 %v6190
  %v6781 = vunpack.c.h.b16 %v6190
  %v6782 = vunpack.c.l.b16 %v6191
  %v6783 = vunpack.c.h.b16 %v6191
  %v6784 = vpack.c.b16 %v6754, %v6752
  %v6785 = vpack.c.b16 %v6755, %v6753
  %v6786 = vpack.c.b16 %v6758, %v6756
  %v6787 = vpack.c.b16 %v6759, %v6757
  %v6788 = vpack.c.b16 %v6762, %v6760
  %v6789 = vpack.c.b16 %v6763, %v6761
  %v6790 = vpack.c.b16 %v6766, %v6764
  %v6791 = vpack.c.b16 %v6767, %v6765
  %v6792 = vpack.c.b16 %v6770, %v6768
  %v6793 = vpack.c.b16 %v6771, %v6769
  %v6794 = vpack.c.b16 %v6774, %v6772
  %v6795 = vpack.c.b16 %v6775, %v6773
  %v6796 = vpack.c.b16 %v6778, %v6776
  %v6797 = vpack.c.b16 %v6779, %v6777
  %v6798 = vpack.c.b16 %v6782, %v6780
  %v6799 = vpack.c.b16 %v6783, %v6781
  %v6832 = vunpack.c.l.b16 %v6224
  %v6833 = vunpack.c.h.b16 %v6224
  %v6834 = vunpack.c.l.b16 %v6225
  %v6835 = vunpack.c.h.b16 %v6225
  %v6836 = vunpack.c.l.b16 %v6226
  %v6837 = vunpack.c.h.b16 %v6226
  %v6838 = vunpack.c.l.b16 %v6227
  %v6839 = vunpack.c.h.b16 %v6227
  %v6840 = vunpack.c.l.b16 %v6228
  %v6841 = vunpack.c.h.b16 %v6228
  %v6842 = vunpack.c.l.b16 %v6229
  %v6843 = vunpack.c.h.b16 %v6229
  %v6844 = vunpack.c.l.b16 %v6230
  %v6845 = vunpack.c.h.b16 %v6230
  %v6846 = vunpack.c.l.b16 %v6231
  %v6847 = vunpack.c.h.b16 %v6231
  %v6848 = vunpack.c.l.b16 %v6232
  %v6849 = vunpack.c.h.b16 %v6232
  %v6850 = vunpack.c.l.b16 %v6233
  %v6851 = vunpack.c.h.b16 %v6233
  %v6852 = vunpack.c.l.b16 %v6234
  %v6853 = vunpack.c.h.b16 %v6234
  %v6854 = vunpack.c.l.b16 %v6235
  %v6855 = vunpack.c.h.b16 %v6235
  %v6856 = vunpack.c.l.b16 %v6236
  %v6857 = vunpack.c.h.b16 %v6236
  %v6858 = vunpack.c.l.b16 %v6237
  %v6859 = vunpack.c.h.b16 %v6237
  %v6860 = vunpack.c.l.b16 %v6238
  %v6861 = vunpack.c.h.b16 %v6238
  %v6862 = vunpack.c.l.b16 %v6239
  %v6863 = vunpack.c.h.b16 %v6239
  %v6864 = vpack.c.b16 %v6834, %v6832
  %v6865 = vpack.c.b16 %v6835, %v6833
  %v6866 = vpack.c.b16 %v6838, %v6836
  %v6867 = vpack.c.b16 %v6839, %v6837
  %v6868 = vpack.c.b16 %v6842, %v6840
  %v6869 = vpack.c.b16 %v6843, %v6841
  %v6870 = vpack.c.b16 %v6846, %v6844
  %v6871 = vpack.c.b16 %v6847, %v6845
  %v6872 = vpack.c.b16 %v6850, %v6848
  %v6873 = vpack.c.b16 %v6851, %v6849
  %v6874 = vpack.c.b16 %v6854, %v6852
  %v6875 = vpack.c.b16 %v6855, %v6853
  %v6876 = vpack.c.b16 %v6858, %v6856
  %v6877 = vpack.c.b16 %v6859, %v6857
  %v6878 = vpack.c.b16 %v6862, %v6860
  %v6879 = vpack.c.b16 %v6863, %v6861
  %v6912 = vunpack.c.l.b16 %v6272
  %v6913 = vunpack.c.h.b16 %v6272
  %v6914 = vunpack.c.l.b16 %v6273
  %v6915 = vunpack.c.h.b16 %v6273
  %v6916 = vunpack.c.l.b16 %v6274
  %v6917 = vunpack.c.h.b16 %v6274
  %v6918 = vunpack.c.l.b16 %v6275
  %v6919 = vunpack.c.h.b16 %v6275
  %v6920 = vunpack.c.l.b16 %v6276
  %v6921 = vunpack.c.h.b16 %v6276
  %v6922 = vunpack.c.l.b16 %v6277
  %v6923 = vunpack.c.h.b16 %v6277
  %v6924 = vunpack.c.l.b16 %v6278
  %v6925 = vunpack.c.h.b16 %v6278
  %v6926 = vunpack.c.l.b16 %v6279
  %v6927 = vunpack.c.h.b16 %v6279
  %v6928 = vunpack.c.l.b16 %v6280
  %v6929 = vunpack.c.h.b16 %v6280
  %v6930 = vunpack.c.l.b16 %v6281
  %v6931 = vunpack.c.h.b16 %v6281
  %v6932 = vunpack.c.l.b16 %v6282
  %v6933 = vunpack.c.h.b16 %v6282
  %v6934 = vunpack.c.l.b16 %v6283
  %v6935 = vunpack.c.h.b16 %v6283
  %v6936 = vunpack.c.l.b16 %v6284
  %v6937 = vunpack.c.h.b16 %v6284
  %v6938 = vunpack.c.l.b16 %v6285
  %v6939 = vunpack.c.h.b16 %v6285
  %v6940 = vunpack.c.l.b16 %v6286
  %v6941 = vunpack.c.h.b16 %v6286
  %v6942 = vunpack.c.l.b16 %v6287
  %v6943 = vunpack.c.h.b16 %v6287
  %v6944 = vpack.c.b16 %v6914, %v6912
  %v6945 = vpack.c.b16 %v6915, %v6913
  %v6946 = vpack.c.b16 %v6918, %v6916
  %v6947 = vpack.c.b16 %v6919, %v6917
  %v6948 = vpack.c.b16 %v6922, %v6920
  %v6949 = vpack.c.b16 %v6923, %v6921
  %v6950 = vpack.c.b16 %v6926, %v6924
  %v6951 = vpack.c.b16 %v6927, %v6925
  %v6952 = vpack.c.b16 %v6930, %v6928
  %v6953 = vpack.c.b16 %v6931, %v6929
  %v6954 = vpack.c.b16 %v6934, %v6932
  %v6955 = vpack.c.b16 %v6935, %v6933
  %v6956 = vpack.c.b16 %v6938, %v6936
  %v6957 = vpack.c.b16 %v6939, %v6937
  %v6958 = vpack.c.b16 %v6942, %v6940
  %v6959 = vpack.c.b16 %v6943, %v6941
  %v6992 = vunpack.c.l.b16 %v6320
  %v6993 = vunpack.c.h.b16 %v6320
  %v6994 = vunpack.c.l.b16 %v6321
  %v6995 = vunpack.c.h.b16 %v6321
  %v6996 = vunpack.c.l.b16 %v6322
  %v6997 = vunpack.c.h.b16 %v6322
  %v6998 = vunpack.c.l.b16 %v6323
  %v6999 = vunpack.c.h.b16 %v6323
  %v7000 = vunpack.c.l.b16 %v6324
  %v7001 = vunpack.c.h.b16 %v6324
  %v7002 = vunpack.c.l.b16 %v6325
  %v7003 = vunpack.c.h.b16 %v6325
  %v7004 = vunpack.c.l.b16 %v6326
  %v7005 = vunpack.c.h.b16 %v6326
  %v7006 = vunpack.c.l.b16 %v6327
  %v7007 = vunpack.c.h.b16 %v6327
  %v7008 = vunpack.c.l.b16 %v6328
  %v7009 = vunpack.c.h.b16 %v6328
  %v7010 = vunpack.c.l.b16 %v6329
  %v7011 = vunpack.c.h.b16 %v6329
  %v7012 = vunpack.c.l.b16 %v6330
  %v7013 = vunpack.c.h.b16 %v6330
  %v7014 = vunpack.c.l.b16 %v6331
  %v7015 = vunpack.c.h.b16 %v6331
  %v7016 = vunpack.c.l.b16 %v6332
  %v7017 = vunpack.c.h.b16 %v6332
  %v7018 = vunpack.c.l.b16 %v6333
  %v7019 = vunpack.c.h.b16 %v6333
  %v7020 = vunpack.c.l.b16 %v6334
  %v7021 = vunpack.c.h.b16 %v6334
  %v7022 = vunpack.c.l.b16 %v6335
  %v7023 = vunpack.c.h.b16 %v6335
  %v7024 = vpack.c.b16 %v6994, %v6992
  %v7025 = vpack.c.b16 %v6995, %v6993
  %v7026 = vpack.c.b16 %v6998, %v6996
  %v7027 = vpack.c.b16 %v6999, %v6997
  %v7028 = vpack.c.b16 %v7002, %v7000
  %v7029 = vpack.c.b16 %v7003, %v7001
  %v7030 = vpack.c.b16 %v7006, %v7004
  %v7031 = vpack.c.b16 %v7007, %v7005
  %v7032 = vpack.c.b16 %v7010, %v7008
  %v7033 = vpack.c.b16 %v7011, %v7009
  %v7034 = vpack.c.b16 %v7014, %v7012
  %v7035 = vpack.c.b16 %v7015, %v7013
  %v7036 = vpack.c.b16 %v7018, %v7016
  %v7037 = vpack.c.b16 %v7019, %v7017
  %v7038 = vpack.c.b16 %v7022, %v7020
  %v7039 = vpack.c.b16 %v7023, %v7021
  %v7056 = vld [vmem:[%s6] sm:$0xff]
  %v7057 = vld [vmem:[%s6 + $0x8] sm:$0xff]
  %v7058 = vld [vmem:[%s6 + $0x10] sm:$0xff]
  %v7059 = vld [vmem:[%s6 + $0x18] sm:$0xff]
  %v7060 = vld [vmem:[%s6 + $0x20] sm:$0xff]
  %v7061 = vld [vmem:[%s6 + $0x28] sm:$0xff]
  %v7062 = vld [vmem:[%s6 + $0x30] sm:$0xff]
  %v7063 = vld [vmem:[%s6 + $0x38] sm:$0xff]
  %v7064 = vld [vmem:[%s6 + $0x40] sm:$0xff]
  %v7065 = vld [vmem:[%s6 + $0x48] sm:$0xff]
  %v7066 = vld [vmem:[%s6 + $0x50] sm:$0xff]
  %v7067 = vld [vmem:[%s6 + $0x58] sm:$0xff]
  %v7068 = vld [vmem:[%s6 + $0x60] sm:$0xff]
  %v7069 = vld [vmem:[%s6 + $0x68] sm:$0xff]
  %v7070 = vld [vmem:[%s6 + $0x70] sm:$0xff]
  %v7071 = vld [vmem:[%s6 + $0x78] sm:$0xff]
  %v7072 = vld [vmem:[%s6 + $0x80] sm:$0xff]
  %v7073 = vld [vmem:[%s6 + $0x88] sm:$0xff]
  %v7074 = vld [vmem:[%s6 + $0x90] sm:$0xff]
  %v7075 = vld [vmem:[%s6 + $0x98] sm:$0xff]
  %v7076 = vld [vmem:[%s6 + $0xa0] sm:$0xff]
  %v7077 = vld [vmem:[%s6 + $0xa8] sm:$0xff]
  %v7078 = vld [vmem:[%s6 + $0xb0] sm:$0xff]
  %v7079 = vld [vmem:[%s6 + $0xb8] sm:$0xff]
  %v7080 = vld [vmem:[%s6 + $0xc0] sm:$0xff]
  %v7081 = vld [vmem:[%s6 + $0xc8] sm:$0xff]
  %v7082 = vld [vmem:[%s6 + $0xd0] sm:$0xff]
  %v7083 = vld [vmem:[%s6 + $0xd8] sm:$0xff]
  %v7084 = vld [vmem:[%s6 + $0xe0] sm:$0xff]
  %v7085 = vld [vmem:[%s6 + $0xe8] sm:$0xff]
  %v7086 = vld [vmem:[%s6 + $0xf0] sm:$0xff]
  %v7087 = vld [vmem:[%s6 + $0xf8] sm:$0xff]
  %v7088 = vld [vmem:[%s6 + $0x100] sm:$0xff]
  %v7089 = vld [vmem:[%s6 + $0x108] sm:$0xff]
  %v7090 = vld [vmem:[%s6 + $0x110] sm:$0xff]
  %v7091 = vld [vmem:[%s6 + $0x118] sm:$0xff]
  %v7092 = vld [vmem:[%s6 + $0x120] sm:$0xff]
  %v7093 = vld [vmem:[%s6 + $0x128] sm:$0xff]
  %v7094 = vld [vmem:[%s6 + $0x130] sm:$0xff]
  %v7095 = vld [vmem:[%s6 + $0x138] sm:$0xff]
  %v7096 = vld [vmem:[%s6 + $0x140] sm:$0xff]
  %v7097 = vld [vmem:[%s6 + $0x148] sm:$0xff]
  %v7098 = vld [vmem:[%s6 + $0x150] sm:$0xff]
  %v7099 = vld [vmem:[%s6 + $0x158] sm:$0xff]
  %v7100 = vld [vmem:[%s6 + $0x160] sm:$0xff]
  %v7101 = vld [vmem:[%s6 + $0x168] sm:$0xff]
  %v7102 = vld [vmem:[%s6 + $0x170] sm:$0xff]
  %v7103 = vld [vmem:[%s6 + $0x178] sm:$0xff]
  %v7104 = vld [vmem:[%s6 + $0x180] sm:$0xff]
  %v7105 = vld [vmem:[%s6 + $0x188] sm:$0xff]
  %v7106 = vld [vmem:[%s6 + $0x190] sm:$0xff]
  %v7107 = vld [vmem:[%s6 + $0x198] sm:$0xff]
  %v7108 = vld [vmem:[%s6 + $0x1a0] sm:$0xff]
  %v7109 = vld [vmem:[%s6 + $0x1a8] sm:$0xff]
  %v7110 = vld [vmem:[%s6 + $0x1b0] sm:$0xff]
  %v7111 = vld [vmem:[%s6 + $0x1b8] sm:$0xff]
  %v7112 = vld [vmem:[%s6 + $0x1c0] sm:$0xff]
  %v7113 = vld [vmem:[%s6 + $0x1c8] sm:$0xff]
  %v7114 = vld [vmem:[%s6 + $0x1d0] sm:$0xff]
  %v7115 = vld [vmem:[%s6 + $0x1d8] sm:$0xff]
  %v7116 = vld [vmem:[%s6 + $0x1e0] sm:$0xff]
  %v7117 = vld [vmem:[%s6 + $0x1e8] sm:$0xff]
  %v7118 = vld [vmem:[%s6 + $0x1f0] sm:$0xff]
  %v7119 = vld [vmem:[%s6 + $0x1f8] sm:$0xff]
  %v7120 = vld [vmem:[%s6 + $0x200] sm:$0xff]
  %v7121 = vld [vmem:[%s6 + $0x208] sm:$0xff]
  %v7122 = vld [vmem:[%s6 + $0x210] sm:$0xff]
  %v7123 = vld [vmem:[%s6 + $0x218] sm:$0xff]
  %v7124 = vld [vmem:[%s6 + $0x220] sm:$0xff]
  %v7125 = vld [vmem:[%s6 + $0x228] sm:$0xff]
  %v7126 = vld [vmem:[%s6 + $0x230] sm:$0xff]
  %v7127 = vld [vmem:[%s6 + $0x238] sm:$0xff]
  %v7128 = vld [vmem:[%s6 + $0x240] sm:$0xff]
  %v7129 = vld [vmem:[%s6 + $0x248] sm:$0xff]
  %v7130 = vld [vmem:[%s6 + $0x250] sm:$0xff]
  %v7131 = vld [vmem:[%s6 + $0x258] sm:$0xff]
  %v7132 = vld [vmem:[%s6 + $0x260] sm:$0xff]
  %v7133 = vld [vmem:[%s6 + $0x268] sm:$0xff]
  %v7134 = vld [vmem:[%s6 + $0x270] sm:$0xff]
  %v7135 = vld [vmem:[%s6 + $0x278] sm:$0xff]
  %v7136 = vld [vmem:[%s6 + $0x280] sm:$0xff]
  %v7137 = vld [vmem:[%s6 + $0x288] sm:$0xff]
  %v7138 = vld [vmem:[%s6 + $0x290] sm:$0xff]
  %v7139 = vld [vmem:[%s6 + $0x298] sm:$0xff]
  %v7140 = vld [vmem:[%s6 + $0x2a0] sm:$0xff]
  %v7141 = vld [vmem:[%s6 + $0x2a8] sm:$0xff]
  %v7142 = vld [vmem:[%s6 + $0x2b0] sm:$0xff]
  %v7143 = vld [vmem:[%s6 + $0x2b8] sm:$0xff]
  %v7144 = vld [vmem:[%s6 + $0x2c0] sm:$0xff]
  %v7145 = vld [vmem:[%s6 + $0x2c8] sm:$0xff]
  %v7146 = vld [vmem:[%s6 + $0x2d0] sm:$0xff]
  %v7147 = vld [vmem:[%s6 + $0x2d8] sm:$0xff]
  %v7148 = vld [vmem:[%s6 + $0x2e0] sm:$0xff]
  %v7149 = vld [vmem:[%s6 + $0x2e8] sm:$0xff]
  %v7150 = vld [vmem:[%s6 + $0x2f0] sm:$0xff]
  %v7151 = vld [vmem:[%s6 + $0x2f8] sm:$0xff]
  %v7152 = vld [vmem:[%s6 + $0x300] sm:$0xff]
  %v7153 = vld [vmem:[%s6 + $0x308] sm:$0xff]
  %v7154 = vld [vmem:[%s6 + $0x310] sm:$0xff]
  %v7155 = vld [vmem:[%s6 + $0x318] sm:$0xff]
  %v7156 = vld [vmem:[%s6 + $0x320] sm:$0xff]
  %v7157 = vld [vmem:[%s6 + $0x328] sm:$0xff]
  %v7158 = vld [vmem:[%s6 + $0x330] sm:$0xff]
  %v7159 = vld [vmem:[%s6 + $0x338] sm:$0xff]
  %v7160 = vld [vmem:[%s6 + $0x340] sm:$0xff]
  %v7161 = vld [vmem:[%s6 + $0x348] sm:$0xff]
  %v7162 = vld [vmem:[%s6 + $0x350] sm:$0xff]
  %v7163 = vld [vmem:[%s6 + $0x358] sm:$0xff]
  %v7164 = vld [vmem:[%s6 + $0x360] sm:$0xff]
  %v7165 = vld [vmem:[%s6 + $0x368] sm:$0xff]
  %v7166 = vld [vmem:[%s6 + $0x370] sm:$0xff]
  %v7167 = vld [vmem:[%s6 + $0x378] sm:$0xff]
  %v7168 = vld [vmem:[%s6 + $0x380] sm:$0xff]
  %v7169 = vld [vmem:[%s6 + $0x388] sm:$0xff]
  %v7170 = vld [vmem:[%s6 + $0x390] sm:$0xff]
  %v7171 = vld [vmem:[%s6 + $0x398] sm:$0xff]
  %v7172 = vld [vmem:[%s6 + $0x3a0] sm:$0xff]
  %v7173 = vld [vmem:[%s6 + $0x3a8] sm:$0xff]
  %v7174 = vld [vmem:[%s6 + $0x3b0] sm:$0xff]
  %v7175 = vld [vmem:[%s6 + $0x3b8] sm:$0xff]
  %v7176 = vld [vmem:[%s6 + $0x3c0] sm:$0xff]
  %v7177 = vld [vmem:[%s6 + $0x3c8] sm:$0xff]
  %v7178 = vld [vmem:[%s6 + $0x3d0] sm:$0xff]
  %v7179 = vld [vmem:[%s6 + $0x3d8] sm:$0xff]
  %v7180 = vld [vmem:[%s6 + $0x3e0] sm:$0xff]
  %v7181 = vld [vmem:[%s6 + $0x3e8] sm:$0xff]
  %v7182 = vld [vmem:[%s6 + $0x3f0] sm:$0xff]
  %v7183 = vld [vmem:[%s6 + $0x3f8] sm:$0xff]
  %v7184 = vld [vmem:[%s6 + $0x400] sm:$0xff]
  %v7185 = vld [vmem:[%s6 + $0x408] sm:$0xff]
  %v7186 = vld [vmem:[%s6 + $0x410] sm:$0xff]
  %v7187 = vld [vmem:[%s6 + $0x418] sm:$0xff]
  %v7188 = vld [vmem:[%s6 + $0x420] sm:$0xff]
  %v7189 = vld [vmem:[%s6 + $0x428] sm:$0xff]
  %v7190 = vld [vmem:[%s6 + $0x430] sm:$0xff]
  %v7191 = vld [vmem:[%s6 + $0x438] sm:$0xff]
  %v7192 = vld [vmem:[%s6 + $0x440] sm:$0xff]
  %v7193 = vld [vmem:[%s6 + $0x448] sm:$0xff]
  %v7194 = vld [vmem:[%s6 + $0x450] sm:$0xff]
  %v7195 = vld [vmem:[%s6 + $0x458] sm:$0xff]
  %v7196 = vld [vmem:[%s6 + $0x460] sm:$0xff]
  %v7197 = vld [vmem:[%s6 + $0x468] sm:$0xff]
  %v7198 = vld [vmem:[%s6 + $0x470] sm:$0xff]
  %v7199 = vld [vmem:[%s6 + $0x478] sm:$0xff]
  %v7200 = vld [vmem:[%s6 + $0x480] sm:$0xff]
  %v7201 = vld [vmem:[%s6 + $0x488] sm:$0xff]
  %v7202 = vld [vmem:[%s6 + $0x490] sm:$0xff]
  %v7203 = vld [vmem:[%s6 + $0x498] sm:$0xff]
  %v7204 = vld [vmem:[%s6 + $0x4a0] sm:$0xff]
  %v7205 = vld [vmem:[%s6 + $0x4a8] sm:$0xff]
  %v7206 = vld [vmem:[%s6 + $0x4b0] sm:$0xff]
  %v7207 = vld [vmem:[%s6 + $0x4b8] sm:$0xff]
  %v7208 = vld [vmem:[%s6 + $0x4c0] sm:$0xff]
  %v7209 = vld [vmem:[%s6 + $0x4c8] sm:$0xff]
  %v7210 = vld [vmem:[%s6 + $0x4d0] sm:$0xff]
  %v7211 = vld [vmem:[%s6 + $0x4d8] sm:$0xff]
  %v7212 = vld [vmem:[%s6 + $0x4e0] sm:$0xff]
  %v7213 = vld [vmem:[%s6 + $0x4e8] sm:$0xff]
  %v7214 = vld [vmem:[%s6 + $0x4f0] sm:$0xff]
  %v7215 = vld [vmem:[%s6 + $0x4f8] sm:$0xff]
  %v7216 = vld [vmem:[%s6 + $0x500] sm:$0xff]
  %v7217 = vld [vmem:[%s6 + $0x508] sm:$0xff]
  %v7218 = vld [vmem:[%s6 + $0x510] sm:$0xff]
  %v7219 = vld [vmem:[%s6 + $0x518] sm:$0xff]
  %v7220 = vld [vmem:[%s6 + $0x520] sm:$0xff]
  %v7221 = vld [vmem:[%s6 + $0x528] sm:$0xff]
  %v7222 = vld [vmem:[%s6 + $0x530] sm:$0xff]
  %v7223 = vld [vmem:[%s6 + $0x538] sm:$0xff]
  %v7224 = vld [vmem:[%s6 + $0x540] sm:$0xff]
  %v7225 = vld [vmem:[%s6 + $0x548] sm:$0xff]
  %v7226 = vld [vmem:[%s6 + $0x550] sm:$0xff]
  %v7227 = vld [vmem:[%s6 + $0x558] sm:$0xff]
  %v7228 = vld [vmem:[%s6 + $0x560] sm:$0xff]
  %v7229 = vld [vmem:[%s6 + $0x568] sm:$0xff]
  %v7230 = vld [vmem:[%s6 + $0x570] sm:$0xff]
  %v7231 = vld [vmem:[%s6 + $0x578] sm:$0xff]
  %v7232 = vld [vmem:[%s6 + $0x580] sm:$0xff]
  %v7233 = vld [vmem:[%s6 + $0x588] sm:$0xff]
  %v7234 = vld [vmem:[%s6 + $0x590] sm:$0xff]
  %v7235 = vld [vmem:[%s6 + $0x598] sm:$0xff]
  %v7236 = vld [vmem:[%s6 + $0x5a0] sm:$0xff]
  %v7237 = vld [vmem:[%s6 + $0x5a8] sm:$0xff]
  %v7238 = vld [vmem:[%s6 + $0x5b0] sm:$0xff]
  %v7239 = vld [vmem:[%s6 + $0x5b8] sm:$0xff]
  %v7240 = vld [vmem:[%s6 + $0x5c0] sm:$0xff]
  %v7241 = vld [vmem:[%s6 + $0x5c8] sm:$0xff]
  %v7242 = vld [vmem:[%s6 + $0x5d0] sm:$0xff]
  %v7243 = vld [vmem:[%s6 + $0x5d8] sm:$0xff]
  %v7244 = vld [vmem:[%s6 + $0x5e0] sm:$0xff]
  %v7245 = vld [vmem:[%s6 + $0x5e8] sm:$0xff]
  %v7246 = vld [vmem:[%s6 + $0x5f0] sm:$0xff]
  %v7247 = vld [vmem:[%s6 + $0x5f8] sm:$0xff]
  %v7248 = vld [vmem:[%s6 + $0x600] sm:$0xff]
  %v7249 = vld [vmem:[%s6 + $0x608] sm:$0xff]
  %v7250 = vld [vmem:[%s6 + $0x610] sm:$0xff]
  %v7251 = vld [vmem:[%s6 + $0x618] sm:$0xff]
  %v7252 = vld [vmem:[%s6 + $0x620] sm:$0xff]
  %v7253 = vld [vmem:[%s6 + $0x628] sm:$0xff]
  %v7254 = vld [vmem:[%s6 + $0x630] sm:$0xff]
  %v7255 = vld [vmem:[%s6 + $0x638] sm:$0xff]
  %v7256 = vld [vmem:[%s6 + $0x640] sm:$0xff]
  %v7257 = vld [vmem:[%s6 + $0x648] sm:$0xff]
  %v7258 = vld [vmem:[%s6 + $0x650] sm:$0xff]
  %v7259 = vld [vmem:[%s6 + $0x658] sm:$0xff]
  %v7260 = vld [vmem:[%s6 + $0x660] sm:$0xff]
  %v7261 = vld [vmem:[%s6 + $0x668] sm:$0xff]
  %v7262 = vld [vmem:[%s6 + $0x670] sm:$0xff]
  %v7263 = vld [vmem:[%s6 + $0x678] sm:$0xff]
  %v7264 = vld [vmem:[%s6 + $0x680] sm:$0xff]
  %v7265 = vld [vmem:[%s6 + $0x688] sm:$0xff]
  %v7266 = vld [vmem:[%s6 + $0x690] sm:$0xff]
  %v7267 = vld [vmem:[%s6 + $0x698] sm:$0xff]
  %v7268 = vld [vmem:[%s6 + $0x6a0] sm:$0xff]
  %v7269 = vld [vmem:[%s6 + $0x6a8] sm:$0xff]
  %v7270 = vld [vmem:[%s6 + $0x6b0] sm:$0xff]
  %v7271 = vld [vmem:[%s6 + $0x6b8] sm:$0xff]
  %v7272 = vld [vmem:[%s6 + $0x6c0] sm:$0xff]
  %v7273 = vld [vmem:[%s6 + $0x6c8] sm:$0xff]
  %v7274 = vld [vmem:[%s6 + $0x6d0] sm:$0xff]
  %v7275 = vld [vmem:[%s6 + $0x6d8] sm:$0xff]
  %v7276 = vld [vmem:[%s6 + $0x6e0] sm:$0xff]
  %v7277 = vld [vmem:[%s6 + $0x6e8] sm:$0xff]
  %v7278 = vld [vmem:[%s6 + $0x6f0] sm:$0xff]
  %v7279 = vld [vmem:[%s6 + $0x6f8] sm:$0xff]
  %v7280 = vld [vmem:[%s6 + $0x700] sm:$0xff]
  %v7281 = vld [vmem:[%s6 + $0x708] sm:$0xff]
  %v7282 = vld [vmem:[%s6 + $0x710] sm:$0xff]
  %v7283 = vld [vmem:[%s6 + $0x718] sm:$0xff]
  %v7284 = vld [vmem:[%s6 + $0x720] sm:$0xff]
  %v7285 = vld [vmem:[%s6 + $0x728] sm:$0xff]
  %v7286 = vld [vmem:[%s6 + $0x730] sm:$0xff]
  %v7287 = vld [vmem:[%s6 + $0x738] sm:$0xff]
  %v7288 = vld [vmem:[%s6 + $0x740] sm:$0xff]
  %v7289 = vld [vmem:[%s6 + $0x748] sm:$0xff]
  %v7290 = vld [vmem:[%s6 + $0x750] sm:$0xff]
  %v7291 = vld [vmem:[%s6 + $0x758] sm:$0xff]
  %v7292 = vld [vmem:[%s6 + $0x760] sm:$0xff]
  %v7293 = vld [vmem:[%s6 + $0x768] sm:$0xff]
  %v7294 = vld [vmem:[%s6 + $0x770] sm:$0xff]
  %v7295 = vld [vmem:[%s6 + $0x778] sm:$0xff]
  %v7296 = vld [vmem:[%s6 + $0x780] sm:$0xff]
  %v7297 = vld [vmem:[%s6 + $0x788] sm:$0xff]
  %v7298 = vld [vmem:[%s6 + $0x790] sm:$0xff]
  %v7299 = vld [vmem:[%s6 + $0x798] sm:$0xff]
  %v7300 = vld [vmem:[%s6 + $0x7a0] sm:$0xff]
  %v7301 = vld [vmem:[%s6 + $0x7a8] sm:$0xff]
  %v7302 = vld [vmem:[%s6 + $0x7b0] sm:$0xff]
  %v7303 = vld [vmem:[%s6 + $0x7b8] sm:$0xff]
  %v7304 = vld [vmem:[%s6 + $0x7c0] sm:$0xff]
  %v7305 = vld [vmem:[%s6 + $0x7c8] sm:$0xff]
  %v7306 = vld [vmem:[%s6 + $0x7d0] sm:$0xff]
  %v7307 = vld [vmem:[%s6 + $0x7d8] sm:$0xff]
  %v7308 = vld [vmem:[%s6 + $0x7e0] sm:$0xff]
  %v7309 = vld [vmem:[%s6 + $0x7e8] sm:$0xff]
  %v7310 = vld [vmem:[%s6 + $0x7f0] sm:$0xff]
  %v7311 = vld [vmem:[%s6 + $0x7f8] sm:$0xff]
  %v7312 = vld [vmem:[%s6 + $0x800] sm:$0xff]
  %v7313 = vld [vmem:[%s6 + $0x808] sm:$0xff]
  %v7314 = vld [vmem:[%s6 + $0x810] sm:$0xff]
  %v7315 = vld [vmem:[%s6 + $0x818] sm:$0xff]
  %v7316 = vld [vmem:[%s6 + $0x820] sm:$0xff]
  %v7317 = vld [vmem:[%s6 + $0x828] sm:$0xff]
  %v7318 = vld [vmem:[%s6 + $0x830] sm:$0xff]
  %v7319 = vld [vmem:[%s6 + $0x838] sm:$0xff]
  %v7320 = vld [vmem:[%s6 + $0x840] sm:$0xff]
  %v7321 = vld [vmem:[%s6 + $0x848] sm:$0xff]
  %v7322 = vld [vmem:[%s6 + $0x850] sm:$0xff]
  %v7323 = vld [vmem:[%s6 + $0x858] sm:$0xff]
  %v7324 = vld [vmem:[%s6 + $0x860] sm:$0xff]
  %v7325 = vld [vmem:[%s6 + $0x868] sm:$0xff]
  %v7326 = vld [vmem:[%s6 + $0x870] sm:$0xff]
  %v7327 = vld [vmem:[%s6 + $0x878] sm:$0xff]
  %v7328 = vld [vmem:[%s6 + $0x880] sm:$0xff]
  %v7329 = vld [vmem:[%s6 + $0x888] sm:$0xff]
  %v7330 = vld [vmem:[%s6 + $0x890] sm:$0xff]
  %v7331 = vld [vmem:[%s6 + $0x898] sm:$0xff]
  %v7332 = vld [vmem:[%s6 + $0x8a0] sm:$0xff]
  %v7333 = vld [vmem:[%s6 + $0x8a8] sm:$0xff]
  %v7334 = vld [vmem:[%s6 + $0x8b0] sm:$0xff]
  %v7335 = vld [vmem:[%s6 + $0x8b8] sm:$0xff]
  %v7336 = vld [vmem:[%s6 + $0x8c0] sm:$0xff]
  %v7337 = vld [vmem:[%s6 + $0x8c8] sm:$0xff]
  %v7338 = vld [vmem:[%s6 + $0x8d0] sm:$0xff]
  %v7339 = vld [vmem:[%s6 + $0x8d8] sm:$0xff]
  %v7340 = vld [vmem:[%s6 + $0x8e0] sm:$0xff]
  %v7341 = vld [vmem:[%s6 + $0x8e8] sm:$0xff]
  %v7342 = vld [vmem:[%s6 + $0x8f0] sm:$0xff]
  %v7343 = vld [vmem:[%s6 + $0x8f8] sm:$0xff]
  %v7344 = vld [vmem:[%s7] sm:$0x3]
  %v7346 = vperm.slane %v7344, 0
  %v7347 = vperm.slane %v7344, 1
  %v7638 = vunpack.c.l.b16 %v7056
  %v7639 = vunpack.c.h.b16 %v7056
  %v7640 = vunpack.c.l.b16 %v7057
  %v7641 = vunpack.c.h.b16 %v7057
  %v7642 = vunpack.c.l.b16 %v7058
  %v7643 = vunpack.c.h.b16 %v7058
  %v7644 = vunpack.c.l.b16 %v7059
  %v7645 = vunpack.c.h.b16 %v7059
  %v7646 = vunpack.c.l.b16 %v7060
  %v7647 = vunpack.c.h.b16 %v7060
  %v7648 = vunpack.c.l.b16 %v7061
  %v7649 = vunpack.c.h.b16 %v7061
  %v7650 = vunpack.c.l.b16 %v7062
  %v7651 = vunpack.c.h.b16 %v7062
  %v7652 = vunpack.c.l.b16 %v7063
  %v7653 = vunpack.c.h.b16 %v7063
  %v7654 = vunpack.c.l.b16 %v7064
  %v7655 = vunpack.c.h.b16 %v7064
  %v7656 = vunpack.c.l.b16 %v7065
  %v7657 = vunpack.c.h.b16 %v7065
  %v7658 = vunpack.c.l.b16 %v7066
  %v7659 = vunpack.c.h.b16 %v7066
  %v7660 = vunpack.c.l.b16 %v7067
  %v7661 = vunpack.c.h.b16 %v7067
  %v7662 = vunpack.c.l.b16 %v7068
  %v7663 = vunpack.c.h.b16 %v7068
  %v7664 = vunpack.c.l.b16 %v7069
  %v7665 = vunpack.c.h.b16 %v7069
  %v7666 = vunpack.c.l.b16 %v7070
  %v7667 = vunpack.c.h.b16 %v7070
  %v7668 = vunpack.c.l.b16 %v7071
  %v7669 = vunpack.c.h.b16 %v7071
  %v7670 = vunpack.c.l.b16 %v7072
  %v7671 = vunpack.c.h.b16 %v7072
  %v7672 = vunpack.c.l.b16 %v7073
  %v7673 = vunpack.c.h.b16 %v7073
  %v7674 = vunpack.c.l.b16 %v7074
  %v7675 = vunpack.c.h.b16 %v7074
  %v7676 = vunpack.c.l.b16 %v7075
  %v7677 = vunpack.c.h.b16 %v7075
  %v7678 = vunpack.c.l.b16 %v7076
  %v7679 = vunpack.c.h.b16 %v7076
  %v7680 = vunpack.c.l.b16 %v7077
  %v7681 = vunpack.c.h.b16 %v7077
  %v7682 = vunpack.c.l.b16 %v7078
  %v7683 = vunpack.c.h.b16 %v7078
  %v7684 = vunpack.c.l.b16 %v7079
  %v7685 = vunpack.c.h.b16 %v7079
  %v7686 = vunpack.c.l.b16 %v7080
  %v7687 = vunpack.c.h.b16 %v7080
  %v7688 = vunpack.c.l.b16 %v7081
  %v7689 = vunpack.c.h.b16 %v7081
  %v7690 = vunpack.c.l.b16 %v7082
  %v7691 = vunpack.c.h.b16 %v7082
  %v7692 = vunpack.c.l.b16 %v7083
  %v7693 = vunpack.c.h.b16 %v7083
  %v7694 = vunpack.c.l.b16 %v7084
  %v7695 = vunpack.c.h.b16 %v7084
  %v7696 = vunpack.c.l.b16 %v7085
  %v7697 = vunpack.c.h.b16 %v7085
  %v7698 = vunpack.c.l.b16 %v7086
  %v7699 = vunpack.c.h.b16 %v7086
  %v7700 = vunpack.c.l.b16 %v7087
  %v7701 = vunpack.c.h.b16 %v7087
  %v7702 = vunpack.c.l.b16 %v7088
  %v7703 = vunpack.c.h.b16 %v7088
  %v7704 = vunpack.c.l.b16 %v7089
  %v7705 = vunpack.c.h.b16 %v7089
  %v7706 = vunpack.c.l.b16 %v7090
  %v7707 = vunpack.c.h.b16 %v7090
  %v7708 = vunpack.c.l.b16 %v7091
  %v7709 = vunpack.c.h.b16 %v7091
  %v7710 = vunpack.c.l.b16 %v7092
  %v7711 = vunpack.c.h.b16 %v7092
  %v7712 = vunpack.c.l.b16 %v7093
  %v7713 = vunpack.c.h.b16 %v7093
  %v7714 = vunpack.c.l.b16 %v7094
  %v7715 = vunpack.c.h.b16 %v7094
  %v7716 = vunpack.c.l.b16 %v7095
  %v7717 = vunpack.c.h.b16 %v7095
  %v7718 = vunpack.c.l.b16 %v7096
  %v7719 = vunpack.c.h.b16 %v7096
  %v7720 = vunpack.c.l.b16 %v7097
  %v7721 = vunpack.c.h.b16 %v7097
  %v7722 = vunpack.c.l.b16 %v7098
  %v7723 = vunpack.c.h.b16 %v7098
  %v7724 = vunpack.c.l.b16 %v7099
  %v7725 = vunpack.c.h.b16 %v7099
  %v7726 = vunpack.c.l.b16 %v7100
  %v7727 = vunpack.c.h.b16 %v7100
  %v7728 = vunpack.c.l.b16 %v7101
  %v7729 = vunpack.c.h.b16 %v7101
  %v7730 = vunpack.c.l.b16 %v7102
  %v7731 = vunpack.c.h.b16 %v7102
  %v7732 = vunpack.c.l.b16 %v7103
  %v7733 = vunpack.c.h.b16 %v7103
  %v7734 = vunpack.c.l.b16 %v7104
  %v7735 = vunpack.c.h.b16 %v7104
  %v7736 = vunpack.c.l.b16 %v7105
  %v7737 = vunpack.c.h.b16 %v7105
  %v7738 = vunpack.c.l.b16 %v7106
  %v7739 = vunpack.c.h.b16 %v7106
  %v7740 = vunpack.c.l.b16 %v7107
  %v7741 = vunpack.c.h.b16 %v7107
  %v7742 = vunpack.c.l.b16 %v7108
  %v7743 = vunpack.c.h.b16 %v7108
  %v7744 = vunpack.c.l.b16 %v7109
  %v7745 = vunpack.c.h.b16 %v7109
  %v7746 = vunpack.c.l.b16 %v7110
  %v7747 = vunpack.c.h.b16 %v7110
  %v7748 = vunpack.c.l.b16 %v7111
  %v7749 = vunpack.c.h.b16 %v7111
  %v7750 = vunpack.c.l.b16 %v7112
  %v7751 = vunpack.c.h.b16 %v7112
  %v7752 = vunpack.c.l.b16 %v7113
  %v7753 = vunpack.c.h.b16 %v7113
  %v7754 = vunpack.c.l.b16 %v7114
  %v7755 = vunpack.c.h.b16 %v7114
  %v7756 = vunpack.c.l.b16 %v7115
  %v7757 = vunpack.c.h.b16 %v7115
  %v7758 = vunpack.c.l.b16 %v7116
  %v7759 = vunpack.c.h.b16 %v7116
  %v7760 = vunpack.c.l.b16 %v7117
  %v7761 = vunpack.c.h.b16 %v7117
  %v7762 = vunpack.c.l.b16 %v7118
  %v7763 = vunpack.c.h.b16 %v7118
  %v7764 = vunpack.c.l.b16 %v7119
  %v7765 = vunpack.c.h.b16 %v7119
  %v7766 = vunpack.c.l.b16 %v7120
  %v7767 = vunpack.c.h.b16 %v7120
  %v7768 = vunpack.c.l.b16 %v7121
  %v7769 = vunpack.c.h.b16 %v7121
  %v7770 = vunpack.c.l.b16 %v7122
  %v7771 = vunpack.c.h.b16 %v7122
  %v7772 = vunpack.c.l.b16 %v7123
  %v7773 = vunpack.c.h.b16 %v7123
  %v7774 = vunpack.c.l.b16 %v7124
  %v7775 = vunpack.c.h.b16 %v7124
  %v7776 = vunpack.c.l.b16 %v7125
  %v7777 = vunpack.c.h.b16 %v7125
  %v7778 = vunpack.c.l.b16 %v7126
  %v7779 = vunpack.c.h.b16 %v7126
  %v7780 = vunpack.c.l.b16 %v7127
  %v7781 = vunpack.c.h.b16 %v7127
  %v7782 = vunpack.c.l.b16 %v7128
  %v7783 = vunpack.c.h.b16 %v7128
  %v7784 = vunpack.c.l.b16 %v7129
  %v7785 = vunpack.c.h.b16 %v7129
  %v7786 = vunpack.c.l.b16 %v7130
  %v7787 = vunpack.c.h.b16 %v7130
  %v7788 = vunpack.c.l.b16 %v7131
  %v7789 = vunpack.c.h.b16 %v7131
  %v7790 = vunpack.c.l.b16 %v7132
  %v7791 = vunpack.c.h.b16 %v7132
  %v7792 = vunpack.c.l.b16 %v7133
  %v7793 = vunpack.c.h.b16 %v7133
  %v7794 = vunpack.c.l.b16 %v7134
  %v7795 = vunpack.c.h.b16 %v7134
  %v7796 = vunpack.c.l.b16 %v7135
  %v7797 = vunpack.c.h.b16 %v7135
  %v7798 = vunpack.c.l.b16 %v7136
  %v7799 = vunpack.c.h.b16 %v7136
  %v7800 = vunpack.c.l.b16 %v7137
  %v7801 = vunpack.c.h.b16 %v7137
  %v7802 = vunpack.c.l.b16 %v7138
  %v7803 = vunpack.c.h.b16 %v7138
  %v7804 = vunpack.c.l.b16 %v7139
  %v7805 = vunpack.c.h.b16 %v7139
  %v7806 = vunpack.c.l.b16 %v7140
  %v7807 = vunpack.c.h.b16 %v7140
  %v7808 = vunpack.c.l.b16 %v7141
  %v7809 = vunpack.c.h.b16 %v7141
  %v7810 = vunpack.c.l.b16 %v7142
  %v7811 = vunpack.c.h.b16 %v7142
  %v7812 = vunpack.c.l.b16 %v7143
  %v7813 = vunpack.c.h.b16 %v7143
  %v7814 = vunpack.c.l.b16 %v7144
  %v7815 = vunpack.c.h.b16 %v7144
  %v7816 = vunpack.c.l.b16 %v7145
  %v7817 = vunpack.c.h.b16 %v7145
  %v7818 = vunpack.c.l.b16 %v7146
  %v7819 = vunpack.c.h.b16 %v7146
  %v7820 = vunpack.c.l.b16 %v7147
  %v7821 = vunpack.c.h.b16 %v7147
  %v7822 = vunpack.c.l.b16 %v7148
  %v7823 = vunpack.c.h.b16 %v7148
  %v7824 = vunpack.c.l.b16 %v7149
  %v7825 = vunpack.c.h.b16 %v7149
  %v7826 = vunpack.c.l.b16 %v7150
  %v7827 = vunpack.c.h.b16 %v7150
  %v7828 = vunpack.c.l.b16 %v7151
  %v7829 = vunpack.c.h.b16 %v7151
  %v7830 = vunpack.c.l.b16 %v7152
  %v7831 = vunpack.c.h.b16 %v7152
  %v7832 = vunpack.c.l.b16 %v7153
  %v7833 = vunpack.c.h.b16 %v7153
  %v7834 = vunpack.c.l.b16 %v7154
  %v7835 = vunpack.c.h.b16 %v7154
  %v7836 = vunpack.c.l.b16 %v7155
  %v7837 = vunpack.c.h.b16 %v7155
  %v7838 = vunpack.c.l.b16 %v7156
  %v7839 = vunpack.c.h.b16 %v7156
  %v7840 = vunpack.c.l.b16 %v7157
  %v7841 = vunpack.c.h.b16 %v7157
  %v7842 = vunpack.c.l.b16 %v7158
  %v7843 = vunpack.c.h.b16 %v7158
  %v7844 = vunpack.c.l.b16 %v7159
  %v7845 = vunpack.c.h.b16 %v7159
  %v7846 = vunpack.c.l.b16 %v7160
  %v7847 = vunpack.c.h.b16 %v7160
  %v7848 = vunpack.c.l.b16 %v7161
  %v7849 = vunpack.c.h.b16 %v7161
  %v7850 = vunpack.c.l.b16 %v7162
  %v7851 = vunpack.c.h.b16 %v7162
  %v7852 = vunpack.c.l.b16 %v7163
  %v7853 = vunpack.c.h.b16 %v7163
  %v7854 = vunpack.c.l.b16 %v7164
  %v7855 = vunpack.c.h.b16 %v7164
  %v7856 = vunpack.c.l.b16 %v7165
  %v7857 = vunpack.c.h.b16 %v7165
  %v7858 = vunpack.c.l.b16 %v7166
  %v7859 = vunpack.c.h.b16 %v7166
  %v7860 = vunpack.c.l.b16 %v7167
  %v7861 = vunpack.c.h.b16 %v7167
  %v7862 = vunpack.c.l.b16 %v7168
  %v7863 = vunpack.c.h.b16 %v7168
  %v7864 = vunpack.c.l.b16 %v7169
  %v7865 = vunpack.c.h.b16 %v7169
  %v7866 = vunpack.c.l.b16 %v7170
  %v7867 = vunpack.c.h.b16 %v7170
  %v7868 = vunpack.c.l.b16 %v7171
  %v7869 = vunpack.c.h.b16 %v7171
  %v7870 = vunpack.c.l.b16 %v7172
  %v7871 = vunpack.c.h.b16 %v7172
  %v7872 = vunpack.c.l.b16 %v7173
  %v7873 = vunpack.c.h.b16 %v7173
  %v7874 = vunpack.c.l.b16 %v7174
  %v7875 = vunpack.c.h.b16 %v7174
  %v7876 = vunpack.c.l.b16 %v7175
  %v7877 = vunpack.c.h.b16 %v7175
  %v7878 = vunpack.c.l.b16 %v7176
  %v7879 = vunpack.c.h.b16 %v7176
  %v7880 = vunpack.c.l.b16 %v7177
  %v7881 = vunpack.c.h.b16 %v7177
  %v7882 = vunpack.c.l.b16 %v7178
  %v7883 = vunpack.c.h.b16 %v7178
  %v7884 = vunpack.c.l.b16 %v7179
  %v7885 = vunpack.c.h.b16 %v7179
  %v7886 = vunpack.c.l.b16 %v7180
  %v7887 = vunpack.c.h.b16 %v7180
  %v7888 = vunpack.c.l.b16 %v7181
  %v7889 = vunpack.c.h.b16 %v7181
  %v7890 = vunpack.c.l.b16 %v7182
  %v7891 = vunpack.c.h.b16 %v7182
  %v7892 = vunpack.c.l.b16 %v7183
  %v7893 = vunpack.c.h.b16 %v7183
  %v7894 = vunpack.c.l.b16 %v7184
  %v7895 = vunpack.c.h.b16 %v7184
  %v7896 = vunpack.c.l.b16 %v7185
  %v7897 = vunpack.c.h.b16 %v7185
  %v7898 = vunpack.c.l.b16 %v7186
  %v7899 = vunpack.c.h.b16 %v7186
  %v7900 = vunpack.c.l.b16 %v7187
  %v7901 = vunpack.c.h.b16 %v7187
  %v7902 = vunpack.c.l.b16 %v7188
  %v7903 = vunpack.c.h.b16 %v7188
  %v7904 = vunpack.c.l.b16 %v7189
  %v7905 = vunpack.c.h.b16 %v7189
  %v7906 = vunpack.c.l.b16 %v7190
  %v7907 = vunpack.c.h.b16 %v7190
  %v7908 = vunpack.c.l.b16 %v7191
  %v7909 = vunpack.c.h.b16 %v7191
  %v7910 = vunpack.c.l.b16 %v7192
  %v7911 = vunpack.c.h.b16 %v7192
  %v7912 = vunpack.c.l.b16 %v7193
  %v7913 = vunpack.c.h.b16 %v7193
  %v7914 = vunpack.c.l.b16 %v7194
  %v7915 = vunpack.c.h.b16 %v7194
  %v7916 = vunpack.c.l.b16 %v7195
  %v7917 = vunpack.c.h.b16 %v7195
  %v7918 = vunpack.c.l.b16 %v7196
  %v7919 = vunpack.c.h.b16 %v7196
  %v7920 = vunpack.c.l.b16 %v7197
  %v7921 = vunpack.c.h.b16 %v7197
  %v7922 = vunpack.c.l.b16 %v7198
  %v7923 = vunpack.c.h.b16 %v7198
  %v7924 = vunpack.c.l.b16 %v7199
  %v7925 = vunpack.c.h.b16 %v7199
  %v7926 = vunpack.c.l.b16 %v7200
  %v7927 = vunpack.c.h.b16 %v7200
  %v7928 = vunpack.c.l.b16 %v7201
  %v7929 = vunpack.c.h.b16 %v7201
  %v7930 = vunpack.c.l.b16 %v7202
  %v7931 = vunpack.c.h.b16 %v7202
  %v7932 = vunpack.c.l.b16 %v7203
  %v7933 = vunpack.c.h.b16 %v7203
  %v7934 = vunpack.c.l.b16 %v7204
  %v7935 = vunpack.c.h.b16 %v7204
  %v7936 = vunpack.c.l.b16 %v7205
  %v7937 = vunpack.c.h.b16 %v7205
  %v7938 = vunpack.c.l.b16 %v7206
  %v7939 = vunpack.c.h.b16 %v7206
  %v7940 = vunpack.c.l.b16 %v7207
  %v7941 = vunpack.c.h.b16 %v7207
  %v7942 = vunpack.c.l.b16 %v7208
  %v7943 = vunpack.c.h.b16 %v7208
  %v7944 = vunpack.c.l.b16 %v7209
  %v7945 = vunpack.c.h.b16 %v7209
  %v7946 = vunpack.c.l.b16 %v7210
  %v7947 = vunpack.c.h.b16 %v7210
  %v7948 = vunpack.c.l.b16 %v7211
  %v7949 = vunpack.c.h.b16 %v7211
  %v7950 = vunpack.c.l.b16 %v7212
  %v7951 = vunpack.c.h.b16 %v7212
  %v7952 = vunpack.c.l.b16 %v7213
  %v7953 = vunpack.c.h.b16 %v7213
  %v7954 = vunpack.c.l.b16 %v7214
  %v7955 = vunpack.c.h.b16 %v7214
  %v7956 = vunpack.c.l.b16 %v7215
  %v7957 = vunpack.c.h.b16 %v7215
  %v7958 = vunpack.c.l.b16 %v7216
  %v7959 = vunpack.c.h.b16 %v7216
  %v7960 = vunpack.c.l.b16 %v7217
  %v7961 = vunpack.c.h.b16 %v7217
  %v7962 = vunpack.c.l.b16 %v7218
  %v7963 = vunpack.c.h.b16 %v7218
  %v7964 = vunpack.c.l.b16 %v7219
  %v7965 = vunpack.c.h.b16 %v7219
  %v7966 = vunpack.c.l.b16 %v7220
  %v7967 = vunpack.c.h.b16 %v7220
  %v7968 = vunpack.c.l.b16 %v7221
  %v7969 = vunpack.c.h.b16 %v7221
  %v7970 = vunpack.c.l.b16 %v7222
  %v7971 = vunpack.c.h.b16 %v7222
  %v7972 = vunpack.c.l.b16 %v7223
  %v7973 = vunpack.c.h.b16 %v7223
  %v7974 = vunpack.c.l.b16 %v7224
  %v7975 = vunpack.c.h.b16 %v7224
  %v7976 = vunpack.c.l.b16 %v7225
  %v7977 = vunpack.c.h.b16 %v7225
  %v7978 = vunpack.c.l.b16 %v7226
  %v7979 = vunpack.c.h.b16 %v7226
  %v7980 = vunpack.c.l.b16 %v7227
  %v7981 = vunpack.c.h.b16 %v7227
  %v7982 = vunpack.c.l.b16 %v7228
  %v7983 = vunpack.c.h.b16 %v7228
  %v7984 = vunpack.c.l.b16 %v7229
  %v7985 = vunpack.c.h.b16 %v7229
  %v7986 = vunpack.c.l.b16 %v7230
  %v7987 = vunpack.c.h.b16 %v7230
  %v7988 = vunpack.c.l.b16 %v7231
  %v7989 = vunpack.c.h.b16 %v7231
  %v7990 = vunpack.c.l.b16 %v7232
  %v7991 = vunpack.c.h.b16 %v7232
  %v7992 = vunpack.c.l.b16 %v7233
  %v7993 = vunpack.c.h.b16 %v7233
  %v7994 = vunpack.c.l.b16 %v7234
  %v7995 = vunpack.c.h.b16 %v7234
  %v7996 = vunpack.c.l.b16 %v7235
  %v7997 = vunpack.c.h.b16 %v7235
  %v7998 = vunpack.c.l.b16 %v7236
  %v7999 = vunpack.c.h.b16 %v7236
  %v8000 = vunpack.c.l.b16 %v7237
  %v8001 = vunpack.c.h.b16 %v7237
  %v8002 = vunpack.c.l.b16 %v7238
  %v8003 = vunpack.c.h.b16 %v7238
  %v8004 = vunpack.c.l.b16 %v7239
  %v8005 = vunpack.c.h.b16 %v7239
  %v8006 = vunpack.c.l.b16 %v7240
  %v8007 = vunpack.c.h.b16 %v7240
  %v8008 = vunpack.c.l.b16 %v7241
  %v8009 = vunpack.c.h.b16 %v7241
  %v8010 = vunpack.c.l.b16 %v7242
  %v8011 = vunpack.c.h.b16 %v7242
  %v8012 = vunpack.c.l.b16 %v7243
  %v8013 = vunpack.c.h.b16 %v7243
  %v8014 = vunpack.c.l.b16 %v7244
  %v8015 = vunpack.c.h.b16 %v7244
  %v8016 = vunpack.c.l.b16 %v7245
  %v8017 = vunpack.c.h.b16 %v7245
  %v8018 = vunpack.c.l.b16 %v7246
  %v8019 = vunpack.c.h.b16 %v7246
  %v8020 = vunpack.c.l.b16 %v7247
  %v8021 = vunpack.c.h.b16 %v7247
  %v8022 = vunpack.c.l.b16 %v7248
  %v8023 = vunpack.c.h.b16 %v7248
  %v8024 = vunpack.c.l.b16 %v7249
  %v8025 = vunpack.c.h.b16 %v7249
  %v8026 = vunpack.c.l.b16 %v7250
  %v8027 = vunpack.c.h.b16 %v7250
  %v8028 = vunpack.c.l.b16 %v7251
  %v8029 = vunpack.c.h.b16 %v7251
  %v8030 = vunpack.c.l.b16 %v7252
  %v8031 = vunpack.c.h.b16 %v7252
  %v8032 = vunpack.c.l.b16 %v7253
  %v8033 = vunpack.c.h.b16 %v7253
  %v8034 = vunpack.c.l.b16 %v7254
  %v8035 = vunpack.c.h.b16 %v7254
  %v8036 = vunpack.c.l.b16 %v7255
  %v8037 = vunpack.c.h.b16 %v7255
  %v8038 = vunpack.c.l.b16 %v7256
  %v8039 = vunpack.c.h.b16 %v7256
  %v8040 = vunpack.c.l.b16 %v7257
  %v8041 = vunpack.c.h.b16 %v7257
  %v8042 = vunpack.c.l.b16 %v7258
  %v8043 = vunpack.c.h.b16 %v7258
  %v8044 = vunpack.c.l.b16 %v7259
  %v8045 = vunpack.c.h.b16 %v7259
  %v8046 = vunpack.c.l.b16 %v7260
  %v8047 = vunpack.c.h.b16 %v7260
  %v8048 = vunpack.c.l.b16 %v7261
  %v8049 = vunpack.c.h.b16 %v7261
  %v8050 = vunpack.c.l.b16 %v7262
  %v8051 = vunpack.c.h.b16 %v7262
  %v8052 = vunpack.c.l.b16 %v7263
  %v8053 = vunpack.c.h.b16 %v7263
  %v8054 = vunpack.c.l.b16 %v7264
  %v8055 = vunpack.c.h.b16 %v7264
  %v8056 = vunpack.c.l.b16 %v7265
  %v8057 = vunpack.c.h.b16 %v7265
  %v8058 = vunpack.c.l.b16 %v7266
  %v8059 = vunpack.c.h.b16 %v7266
  %v8060 = vunpack.c.l.b16 %v7267
  %v8061 = vunpack.c.h.b16 %v7267
  %v8062 = vunpack.c.l.b16 %v7268
  %v8063 = vunpack.c.h.b16 %v7268
  %v8064 = vunpack.c.l.b16 %v7269
  %v8065 = vunpack.c.h.b16 %v7269
  %v8066 = vunpack.c.l.b16 %v7270
  %v8067 = vunpack.c.h.b16 %v7270
  %v8068 = vunpack.c.l.b16 %v7271
  %v8069 = vunpack.c.h.b16 %v7271
  %v8070 = vunpack.c.l.b16 %v7272
  %v8071 = vunpack.c.h.b16 %v7272
  %v8072 = vunpack.c.l.b16 %v7273
  %v8073 = vunpack.c.h.b16 %v7273
  %v8074 = vunpack.c.l.b16 %v7274
  %v8075 = vunpack.c.h.b16 %v7274
  %v8076 = vunpack.c.l.b16 %v7275
  %v8077 = vunpack.c.h.b16 %v7275
  %v8078 = vunpack.c.l.b16 %v7276
  %v8079 = vunpack.c.h.b16 %v7276
  %v8080 = vunpack.c.l.b16 %v7277
  %v8081 = vunpack.c.h.b16 %v7277
  %v8082 = vunpack.c.l.b16 %v7278
  %v8083 = vunpack.c.h.b16 %v7278
  %v8084 = vunpack.c.l.b16 %v7279
  %v8085 = vunpack.c.h.b16 %v7279
  %v8086 = vunpack.c.l.b16 %v7280
  %v8087 = vunpack.c.h.b16 %v7280
  %v8088 = vunpack.c.l.b16 %v7281
  %v8089 = vunpack.c.h.b16 %v7281
  %v8090 = vunpack.c.l.b16 %v7282
  %v8091 = vunpack.c.h.b16 %v7282
  %v8092 = vunpack.c.l.b16 %v7283
  %v8093 = vunpack.c.h.b16 %v7283
  %v8094 = vunpack.c.l.b16 %v7284
  %v8095 = vunpack.c.h.b16 %v7284
  %v8096 = vunpack.c.l.b16 %v7285
  %v8097 = vunpack.c.h.b16 %v7285
  %v8098 = vunpack.c.l.b16 %v7286
  %v8099 = vunpack.c.h.b16 %v7286
  %v8100 = vunpack.c.l.b16 %v7287
  %v8101 = vunpack.c.h.b16 %v7287
  %v8102 = vunpack.c.l.b16 %v7288
  %v8103 = vunpack.c.h.b16 %v7288
  %v8104 = vunpack.c.l.b16 %v7289
  %v8105 = vunpack.c.h.b16 %v7289
  %v8106 = vunpack.c.l.b16 %v7290
  %v8107 = vunpack.c.h.b16 %v7290
  %v8108 = vunpack.c.l.b16 %v7291
  %v8109 = vunpack.c.h.b16 %v7291
  %v8110 = vunpack.c.l.b16 %v7292
  %v8111 = vunpack.c.h.b16 %v7292
  %v8112 = vunpack.c.l.b16 %v7293
  %v8113 = vunpack.c.h.b16 %v7293
  %v8114 = vunpack.c.l.b16 %v7294
  %v8115 = vunpack.c.h.b16 %v7294
  %v8116 = vunpack.c.l.b16 %v7295
  %v8117 = vunpack.c.h.b16 %v7295
  %v8118 = vunpack.c.l.b16 %v7296
  %v8119 = vunpack.c.h.b16 %v7296
  %v8120 = vunpack.c.l.b16 %v7297
  %v8121 = vunpack.c.h.b16 %v7297
  %v8122 = vunpack.c.l.b16 %v7298
  %v8123 = vunpack.c.h.b16 %v7298
  %v8124 = vunpack.c.l.b16 %v7299
  %v8125 = vunpack.c.h.b16 %v7299
  %v8126 = vunpack.c.l.b16 %v7300
  %v8127 = vunpack.c.h.b16 %v7300
  %v8128 = vunpack.c.l.b16 %v7301
  %v8129 = vunpack.c.h.b16 %v7301
  %v8130 = vunpack.c.l.b16 %v7302
  %v8131 = vunpack.c.h.b16 %v7302
  %v8132 = vunpack.c.l.b16 %v7303
  %v8133 = vunpack.c.h.b16 %v7303
  %v8134 = vunpack.c.l.b16 %v7304
  %v8135 = vunpack.c.h.b16 %v7304
  %v8136 = vunpack.c.l.b16 %v7305
  %v8137 = vunpack.c.h.b16 %v7305
  %v8138 = vunpack.c.l.b16 %v7306
  %v8139 = vunpack.c.h.b16 %v7306
  %v8140 = vunpack.c.l.b16 %v7307
  %v8141 = vunpack.c.h.b16 %v7307
  %v8142 = vunpack.c.l.b16 %v7308
  %v8143 = vunpack.c.h.b16 %v7308
  %v8144 = vunpack.c.l.b16 %v7309
  %v8145 = vunpack.c.h.b16 %v7309
  %v8146 = vunpack.c.l.b16 %v7310
  %v8147 = vunpack.c.h.b16 %v7310
  %v8148 = vunpack.c.l.b16 %v7311
  %v8149 = vunpack.c.h.b16 %v7311
  %v8150 = vunpack.c.l.b16 %v7312
  %v8151 = vunpack.c.h.b16 %v7312
  %v8152 = vunpack.c.l.b16 %v7313
  %v8153 = vunpack.c.h.b16 %v7313
  %v8154 = vunpack.c.l.b16 %v7314
  %v8155 = vunpack.c.h.b16 %v7314
  %v8156 = vunpack.c.l.b16 %v7315
  %v8157 = vunpack.c.h.b16 %v7315
  %v8158 = vunpack.c.l.b16 %v7316
  %v8159 = vunpack.c.h.b16 %v7316
  %v8160 = vunpack.c.l.b16 %v7317
  %v8161 = vunpack.c.h.b16 %v7317
  %v8162 = vunpack.c.l.b16 %v7318
  %v8163 = vunpack.c.h.b16 %v7318
  %v8164 = vunpack.c.l.b16 %v7319
  %v8165 = vunpack.c.h.b16 %v7319
  %v8166 = vunpack.c.l.b16 %v7320
  %v8167 = vunpack.c.h.b16 %v7320
  %v8168 = vunpack.c.l.b16 %v7321
  %v8169 = vunpack.c.h.b16 %v7321
  %v8170 = vunpack.c.l.b16 %v7322
  %v8171 = vunpack.c.h.b16 %v7322
  %v8172 = vunpack.c.l.b16 %v7323
  %v8173 = vunpack.c.h.b16 %v7323
  %v8174 = vunpack.c.l.b16 %v7324
  %v8175 = vunpack.c.h.b16 %v7324
  %v8176 = vunpack.c.l.b16 %v7325
  %v8177 = vunpack.c.h.b16 %v7325
  %v8178 = vunpack.c.l.b16 %v7326
  %v8179 = vunpack.c.h.b16 %v7326
  %v8180 = vunpack.c.l.b16 %v7327
  %v8181 = vunpack.c.h.b16 %v7327
  %v8182 = vunpack.c.l.b16 %v7328
  %v8183 = vunpack.c.h.b16 %v7328
  %v8184 = vunpack.c.l.b16 %v7329
  %v8185 = vunpack.c.h.b16 %v7329
  %v8186 = vunpack.c.l.b16 %v7330
  %v8187 = vunpack.c.h.b16 %v7330
  %v8188 = vunpack.c.l.b16 %v7331
  %v8189 = vunpack.c.h.b16 %v7331
  %v8190 = vunpack.c.l.b16 %v7332
  %v8191 = vunpack.c.h.b16 %v7332
  %v8192 = vunpack.c.l.b16 %v7333
  %v8193 = vunpack.c.h.b16 %v7333
  %v8194 = vunpack.c.l.b16 %v7334
  %v8195 = vunpack.c.h.b16 %v7334
  %v8196 = vunpack.c.l.b16 %v7335
  %v8197 = vunpack.c.h.b16 %v7335
  %v8198 = vunpack.c.l.b16 %v7336
  %v8199 = vunpack.c.h.b16 %v7336
  %v8200 = vunpack.c.l.b16 %v7337
  %v8201 = vunpack.c.h.b16 %v7337
  %v8202 = vunpack.c.l.b16 %v7338
  %v8203 = vunpack.c.h.b16 %v7338
  %v8204 = vunpack.c.l.b16 %v7339
  %v8205 = vunpack.c.h.b16 %v7339
  %v8206 = vunpack.c.l.b16 %v7340
  %v8207 = vunpack.c.h.b16 %v7340
  %v8208 = vunpack.c.l.b16 %v7341
  %v8209 = vunpack.c.h.b16 %v7341
  %v8210 = vunpack.c.l.b16 %v7342
  %v8211 = vunpack.c.h.b16 %v7342
  %v8212 = vunpack.c.l.b16 %v7343
  %v8213 = vunpack.c.h.b16 %v7343
  %v8214 = vpack.c.b16 %v7640, %v7638
  %v8215 = vpack.c.b16 %v7641, %v7639
  %v8216 = vpack.c.b16 %v7644, %v7642
  %v8217 = vpack.c.b16 %v7645, %v7643
  %v8218 = vpack.c.b16 %v7648, %v7646
  %v8219 = vpack.c.b16 %v7649, %v7647
  %v8220 = vpack.c.b16 %v7652, %v7650
  %v8221 = vpack.c.b16 %v7653, %v7651
  %v8222 = vpack.c.b16 %v7656, %v7654
  %v8223 = vpack.c.b16 %v7657, %v7655
  %v8224 = vpack.c.b16 %v7660, %v7658
  %v8225 = vpack.c.b16 %v7661, %v7659
  %v8226 = vpack.c.b16 %v7664, %v7662
  %v8227 = vpack.c.b16 %v7665, %v7663
  %v8228 = vpack.c.b16 %v7668, %v7666
  %v8229 = vpack.c.b16 %v7669, %v7667
  %v8230 = vpack.c.b16 %v7672, %v7670
  %v8231 = vpack.c.b16 %v7673, %v7671
  %v8232 = vpack.c.b16 %v7676, %v7674
  %v8233 = vpack.c.b16 %v7677, %v7675
  %v8234 = vpack.c.b16 %v7680, %v7678
  %v8235 = vpack.c.b16 %v7681, %v7679
  %v8236 = vpack.c.b16 %v7684, %v7682
  %v8237 = vpack.c.b16 %v7685, %v7683
  %v8238 = vpack.c.b16 %v7688, %v7686
  %v8239 = vpack.c.b16 %v7689, %v7687
  %v8240 = vpack.c.b16 %v7692, %v7690
  %v8241 = vpack.c.b16 %v7693, %v7691
  %v8242 = vpack.c.b16 %v7696, %v7694
  %v8243 = vpack.c.b16 %v7697, %v7695
  %v8244 = vpack.c.b16 %v7700, %v7698
  %v8245 = vpack.c.b16 %v7701, %v7699
  %v8246 = vpack.c.b16 %v7704, %v7702
  %v8247 = vpack.c.b16 %v7705, %v7703
  %v8248 = vpack.c.b16 %v7708, %v7706
  %v8249 = vpack.c.b16 %v7709, %v7707
  %v8250 = vpack.c.b16 %v7712, %v7710
  %v8251 = vpack.c.b16 %v7713, %v7711
  %v8252 = vpack.c.b16 %v7716, %v7714
  %v8253 = vpack.c.b16 %v7717, %v7715
  %v8254 = vpack.c.b16 %v7720, %v7718
  %v8255 = vpack.c.b16 %v7721, %v7719
  %v8256 = vpack.c.b16 %v7724, %v7722
  %v8257 = vpack.c.b16 %v7725, %v7723
  %v8258 = vpack.c.b16 %v7728, %v7726
  %v8259 = vpack.c.b16 %v7729, %v7727
  %v8260 = vpack.c.b16 %v7732, %v7730
  %v8261 = vpack.c.b16 %v7733, %v7731
  %v8262 = vpack.c.b16 %v7736, %v7734
  %v8263 = vpack.c.b16 %v7737, %v7735
  %v8264 = vpack.c.b16 %v7740, %v7738
  %v8265 = vpack.c.b16 %v7741, %v7739
  %v8266 = vpack.c.b16 %v7744, %v7742
  %v8267 = vpack.c.b16 %v7745, %v7743
  %v8268 = vpack.c.b16 %v7748, %v7746
  %v8269 = vpack.c.b16 %v7749, %v7747
  %v8270 = vpack.c.b16 %v7752, %v7750
  %v8271 = vpack.c.b16 %v7753, %v7751
  %v8272 = vpack.c.b16 %v7756, %v7754
  %v8273 = vpack.c.b16 %v7757, %v7755
  %v8274 = vpack.c.b16 %v7760, %v7758
  %v8275 = vpack.c.b16 %v7761, %v7759
  %v8276 = vpack.c.b16 %v7764, %v7762
  %v8277 = vpack.c.b16 %v7765, %v7763
  %v8278 = vpack.c.b16 %v7768, %v7766
  %v8279 = vpack.c.b16 %v7769, %v7767
  %v8280 = vpack.c.b16 %v7772, %v7770
  %v8281 = vpack.c.b16 %v7773, %v7771
  %v8282 = vpack.c.b16 %v7776, %v7774
  %v8283 = vpack.c.b16 %v7777, %v7775
  %v8284 = vpack.c.b16 %v7780, %v7778
  %v8285 = vpack.c.b16 %v7781, %v7779
  %v8286 = vpack.c.b16 %v7784, %v7782
  %v8287 = vpack.c.b16 %v7785, %v7783
  %v8288 = vpack.c.b16 %v7788, %v7786
  %v8289 = vpack.c.b16 %v7789, %v7787
  %v8290 = vpack.c.b16 %v7792, %v7790
  %v8291 = vpack.c.b16 %v7793, %v7791
  %v8292 = vpack.c.b16 %v7796, %v7794
  %v8293 = vpack.c.b16 %v7797, %v7795
  %v8294 = vpack.c.b16 %v7800, %v7798
  %v8295 = vpack.c.b16 %v7801, %v7799
  %v8296 = vpack.c.b16 %v7804, %v7802
  %v8297 = vpack.c.b16 %v7805, %v7803
  %v8298 = vpack.c.b16 %v7808, %v7806
  %v8299 = vpack.c.b16 %v7809, %v7807
  %v8300 = vpack.c.b16 %v7812, %v7810
  %v8301 = vpack.c.b16 %v7813, %v7811
  %v8302 = vpack.c.b16 %v7816, %v7814
  %v8303 = vpack.c.b16 %v7817, %v7815
  %v8304 = vpack.c.b16 %v7820, %v7818
  %v8305 = vpack.c.b16 %v7821, %v7819
  %v8306 = vpack.c.b16 %v7824, %v7822
  %v8307 = vpack.c.b16 %v7825, %v7823
  %v8308 = vpack.c.b16 %v7828, %v7826
  %v8309 = vpack.c.b16 %v7829, %v7827
  %v8310 = vpack.c.b16 %v7832, %v7830
  %v8311 = vpack.c.b16 %v7833, %v7831
  %v8312 = vpack.c.b16 %v7836, %v7834
  %v8313 = vpack.c.b16 %v7837, %v7835
  %v8314 = vpack.c.b16 %v7840, %v7838
  %v8315 = vpack.c.b16 %v7841, %v7839
  %v8316 = vpack.c.b16 %v7844, %v7842
  %v8317 = vpack.c.b16 %v7845, %v7843
  %v8318 = vpack.c.b16 %v7848, %v7846
  %v8319 = vpack.c.b16 %v7849, %v7847
  %v8320 = vpack.c.b16 %v7852, %v7850
  %v8321 = vpack.c.b16 %v7853, %v7851
  %v8322 = vpack.c.b16 %v7856, %v7854
  %v8323 = vpack.c.b16 %v7857, %v7855
  %v8324 = vpack.c.b16 %v7860, %v7858
  %v8325 = vpack.c.b16 %v7861, %v7859
  %v8326 = vpack.c.b16 %v7864, %v7862
  %v8327 = vpack.c.b16 %v7865, %v7863
  %v8328 = vpack.c.b16 %v7868, %v7866
  %v8329 = vpack.c.b16 %v7869, %v7867
  %v8330 = vpack.c.b16 %v7872, %v7870
  %v8331 = vpack.c.b16 %v7873, %v7871
  %v8332 = vpack.c.b16 %v7876, %v7874
  %v8333 = vpack.c.b16 %v7877, %v7875
  %v8334 = vpack.c.b16 %v7880, %v7878
  %v8335 = vpack.c.b16 %v7881, %v7879
  %v8336 = vpack.c.b16 %v7884, %v7882
  %v8337 = vpack.c.b16 %v7885, %v7883
  %v8338 = vpack.c.b16 %v7888, %v7886
  %v8339 = vpack.c.b16 %v7889, %v7887
  %v8340 = vpack.c.b16 %v7892, %v7890
  %v8341 = vpack.c.b16 %v7893, %v7891
  %v8342 = vpack.c.b16 %v7896, %v7894
  %v8343 = vpack.c.b16 %v7897, %v7895
  %v8344 = vpack.c.b16 %v7900, %v7898
  %v8345 = vpack.c.b16 %v7901, %v7899
  %v8346 = vpack.c.b16 %v7904, %v7902
  %v8347 = vpack.c.b16 %v7905, %v7903
  %v8348 = vpack.c.b16 %v7908, %v7906
  %v8349 = vpack.c.b16 %v7909, %v7907
  %v8350 = vpack.c.b16 %v7912, %v7910
  %v8351 = vpack.c.b16 %v7913, %v7911
  %v8352 = vpack.c.b16 %v7916, %v7914
  %v8353 = vpack.c.b16 %v7917, %v7915
  %v8354 = vpack.c.b16 %v7920, %v7918
  %v8355 = vpack.c.b16 %v7921, %v7919
  %v8356 = vpack.c.b16 %v7924, %v7922
  %v8357 = vpack.c.b16 %v7925, %v7923
  %v8358 = vpack.c.b16 %v7928, %v7926
  %v8359 = vpack.c.b16 %v7929, %v7927
  %v8360 = vpack.c.b16 %v7932, %v7930
  %v8361 = vpack.c.b16 %v7933, %v7931
  %v8362 = vpack.c.b16 %v7936, %v7934
  %v8363 = vpack.c.b16 %v7937, %v7935
  %v8364 = vpack.c.b16 %v7940, %v7938
  %v8365 = vpack.c.b16 %v7941, %v7939
  %v8366 = vpack.c.b16 %v7944, %v7942
  %v8367 = vpack.c.b16 %v7945, %v7943
  %v8368 = vpack.c.b16 %v7948, %v7946
  %v8369 = vpack.c.b16 %v7949, %v7947
  %v8370 = vpack.c.b16 %v7952, %v7950
  %v8371 = vpack.c.b16 %v7953, %v7951
  %v8372 = vpack.c.b16 %v7956, %v7954
  %v8373 = vpack.c.b16 %v7957, %v7955
  %v8374 = vpack.c.b16 %v7960, %v7958
  %v8375 = vpack.c.b16 %v7961, %v7959
  %v8376 = vpack.c.b16 %v7964, %v7962
  %v8377 = vpack.c.b16 %v7965, %v7963
  %v8378 = vpack.c.b16 %v7968, %v7966
  %v8379 = vpack.c.b16 %v7969, %v7967
  %v8380 = vpack.c.b16 %v7972, %v7970
  %v8381 = vpack.c.b16 %v7973, %v7971
  %v8382 = vpack.c.b16 %v7976, %v7974
  %v8383 = vpack.c.b16 %v7977, %v7975
  %v8384 = vpack.c.b16 %v7980, %v7978
  %v8385 = vpack.c.b16 %v7981, %v7979
  %v8386 = vpack.c.b16 %v7984, %v7982
  %v8387 = vpack.c.b16 %v7985, %v7983
  %v8388 = vpack.c.b16 %v7988, %v7986
  %v8389 = vpack.c.b16 %v7989, %v7987
  %v8390 = vpack.c.b16 %v7992, %v7990
  %v8391 = vpack.c.b16 %v7993, %v7991
  %v8392 = vpack.c.b16 %v7996, %v7994
  %v8393 = vpack.c.b16 %v7997, %v7995
  %v8394 = vpack.c.b16 %v8000, %v7998
  %v8395 = vpack.c.b16 %v8001, %v7999
  %v8396 = vpack.c.b16 %v8004, %v8002
  %v8397 = vpack.c.b16 %v8005, %v8003
  %v8398 = vpack.c.b16 %v8008, %v8006
  %v8399 = vpack.c.b16 %v8009, %v8007
  %v8400 = vpack.c.b16 %v8012, %v8010
  %v8401 = vpack.c.b16 %v8013, %v8011
  %v8402 = vpack.c.b16 %v8016, %v8014
  %v8403 = vpack.c.b16 %v8017, %v8015
  %v8404 = vpack.c.b16 %v8020, %v8018
  %v8405 = vpack.c.b16 %v8021, %v8019
  %v8406 = vpack.c.b16 %v8024, %v8022
  %v8407 = vpack.c.b16 %v8025, %v8023
  %v8408 = vpack.c.b16 %v8028, %v8026
  %v8409 = vpack.c.b16 %v8029, %v8027
  %v8410 = vpack.c.b16 %v8032, %v8030
  %v8411 = vpack.c.b16 %v8033, %v8031
  %v8412 = vpack.c.b16 %v8036, %v8034
  %v8413 = vpack.c.b16 %v8037, %v8035
  %v8414 = vpack.c.b16 %v8040, %v8038
  %v8415 = vpack.c.b16 %v8041, %v8039
  %v8416 = vpack.c.b16 %v8044, %v8042
  %v8417 = vpack.c.b16 %v8045, %v8043
  %v8418 = vpack.c.b16 %v8048, %v8046
  %v8419 = vpack.c.b16 %v8049, %v8047
  %v8420 = vpack.c.b16 %v8052, %v8050
  %v8421 = vpack.c.b16 %v8053, %v8051
  %v8422 = vpack.c.b16 %v8056, %v8054
  %v8423 = vpack.c.b16 %v8057, %v8055
  %v8424 = vpack.c.b16 %v8060, %v8058
  %v8425 = vpack.c.b16 %v8061, %v8059
  %v8426 = vpack.c.b16 %v8064, %v8062
  %v8427 = vpack.c.b16 %v8065, %v8063
  %v8428 = vpack.c.b16 %v8068, %v8066
  %v8429 = vpack.c.b16 %v8069, %v8067
  %v8430 = vpack.c.b16 %v8072, %v8070
  %v8431 = vpack.c.b16 %v8073, %v8071
  %v8432 = vpack.c.b16 %v8076, %v8074
  %v8433 = vpack.c.b16 %v8077, %v8075
  %v8434 = vpack.c.b16 %v8080, %v8078
  %v8435 = vpack.c.b16 %v8081, %v8079
  %v8436 = vpack.c.b16 %v8084, %v8082
  %v8437 = vpack.c.b16 %v8085, %v8083
  %v8438 = vpack.c.b16 %v8088, %v8086
  %v8439 = vpack.c.b16 %v8089, %v8087
  %v8440 = vpack.c.b16 %v8092, %v8090
  %v8441 = vpack.c.b16 %v8093, %v8091
  %v8442 = vpack.c.b16 %v8096, %v8094
  %v8443 = vpack.c.b16 %v8097, %v8095
  %v8444 = vpack.c.b16 %v8100, %v8098
  %v8445 = vpack.c.b16 %v8101, %v8099
  %v8446 = vpack.c.b16 %v8104, %v8102
  %v8447 = vpack.c.b16 %v8105, %v8103
  %v8448 = vpack.c.b16 %v8108, %v8106
  %v8449 = vpack.c.b16 %v8109, %v8107
  %v8450 = vpack.c.b16 %v8112, %v8110
  %v8451 = vpack.c.b16 %v8113, %v8111
  %v8452 = vpack.c.b16 %v8116, %v8114
  %v8453 = vpack.c.b16 %v8117, %v8115
  %v8454 = vpack.c.b16 %v8120, %v8118
  %v8455 = vpack.c.b16 %v8121, %v8119
  %v8456 = vpack.c.b16 %v8124, %v8122
  %v8457 = vpack.c.b16 %v8125, %v8123
  %v8458 = vpack.c.b16 %v8128, %v8126
  %v8459 = vpack.c.b16 %v8129, %v8127
  %v8460 = vpack.c.b16 %v8132, %v8130
  %v8461 = vpack.c.b16 %v8133, %v8131
  %v8462 = vpack.c.b16 %v8136, %v8134
  %v8463 = vpack.c.b16 %v8137, %v8135
  %v8464 = vpack.c.b16 %v8140, %v8138
  %v8465 = vpack.c.b16 %v8141, %v8139
  %v8466 = vpack.c.b16 %v8144, %v8142
  %v8467 = vpack.c.b16 %v8145, %v8143
  %v8468 = vpack.c.b16 %v8148, %v8146
  %v8469 = vpack.c.b16 %v8149, %v8147
  %v8470 = vpack.c.b16 %v8152, %v8150
  %v8471 = vpack.c.b16 %v8153, %v8151
  %v8472 = vpack.c.b16 %v8156, %v8154
  %v8473 = vpack.c.b16 %v8157, %v8155
  %v8474 = vpack.c.b16 %v8160, %v8158
  %v8475 = vpack.c.b16 %v8161, %v8159
  %v8476 = vpack.c.b16 %v8164, %v8162
  %v8477 = vpack.c.b16 %v8165, %v8163
  %v8478 = vpack.c.b16 %v8168, %v8166
  %v8479 = vpack.c.b16 %v8169, %v8167
  %v8480 = vpack.c.b16 %v8172, %v8170
  %v8481 = vpack.c.b16 %v8173, %v8171
  %v8482 = vpack.c.b16 %v8176, %v8174
  %v8483 = vpack.c.b16 %v8177, %v8175
  %v8484 = vpack.c.b16 %v8180, %v8178
  %v8485 = vpack.c.b16 %v8181, %v8179
  %v8486 = vpack.c.b16 %v8184, %v8182
  %v8487 = vpack.c.b16 %v8185, %v8183
  %v8488 = vpack.c.b16 %v8188, %v8186
  %v8489 = vpack.c.b16 %v8189, %v8187
  %v8490 = vpack.c.b16 %v8192, %v8190
  %v8491 = vpack.c.b16 %v8193, %v8191
  %v8492 = vpack.c.b16 %v8196, %v8194
  %v8493 = vpack.c.b16 %v8197, %v8195
  %v8494 = vpack.c.b16 %v8200, %v8198
  %v8495 = vpack.c.b16 %v8201, %v8199
  %v8496 = vpack.c.b16 %v8204, %v8202
  %v8497 = vpack.c.b16 %v8205, %v8203
  %v8498 = vpack.c.b16 %v8208, %v8206
  %v8499 = vpack.c.b16 %v8209, %v8207
  %v8500 = vpack.c.b16 %v8212, %v8210
  %v8501 = vpack.c.b16 %v8213, %v8211
  %8790 = vmatpush.bf16.msra.mxu0 %v8228
  %8791 = vmatpush.bf16.msra.mxu0 %v8226
  %8792 = vmatpush.bf16.msra.mxu0 %v8224
  %8793 = vmatpush.bf16.msra.mxu0 %v8222
  %8794 = vmatpush.bf16.msra.mxu0 %v8220
  %8795 = vmatpush.bf16.msra.mxu0 %v8218
  %8796 = vmatpush.bf16.msra.mxu0 %v8216
  %8797 = vmatpush.bf16.msra.mxu0 %v8214
  %8798 = vmatmul.bf16.gmra.mxu0 %v6384
  %v8799 = vpop.f32.mrf.mxu0
  %v8800 = vadd.f32 %v7346, %v8799
  %v8801 = vpop.f32.mrf.mxu0
  %v8802 = vadd.f32 %v7346, %v8801
  %8803 = vmatmul.bf16.gmra.mxu0 %v6386
  %v8804 = vpop.f32.mrf.mxu0
  %v8805 = vadd.f32 %v7346, %v8804
  %v8806 = vpop.f32.mrf.mxu0
  %v8807 = vadd.f32 %v7346, %v8806
  %8808 = vmatmul.bf16.gmra.mxu0 %v6388
  %v8809 = vpop.f32.mrf.mxu0
  %v8810 = vadd.f32 %v7346, %v8809
  %v8811 = vpop.f32.mrf.mxu0
  %v8812 = vadd.f32 %v7346, %v8811
  %8813 = vmatmul.bf16.gmra.mxu0 %v6390
  %v8814 = vpop.f32.mrf.mxu0
  %v8815 = vadd.f32 %v7346, %v8814
  %v8816 = vpop.f32.mrf.mxu0
  %v8817 = vadd.f32 %v7346, %v8816
  %8818 = vmatmul.bf16.gmra.mxu0 %v6392
  %v8819 = vpop.f32.mrf.mxu0
  %v8820 = vadd.f32 %v7346, %v8819
  %v8821 = vpop.f32.mrf.mxu0
  %v8822 = vadd.f32 %v7346, %v8821
  %8823 = vmatmul.bf16.gmra.mxu0 %v6394
  %v8824 = vpop.f32.mrf.mxu0
  %v8825 = vadd.f32 %v7346, %v8824
  %v8826 = vpop.f32.mrf.mxu0
  %v8827 = vadd.f32 %v7346, %v8826
  %8828 = vmatmul.bf16.gmra.mxu0 %v6396
  %v8829 = vpop.f32.mrf.mxu0
  %v8830 = vadd.f32 %v7346, %v8829
  %v8831 = vpop.f32.mrf.mxu0
  %v8832 = vadd.f32 %v7346, %v8831
  %8833 = vmatmul.bf16.gmra.mxu0 %v6398
  %v8834 = vpop.f32.mrf.mxu0
  %v8835 = vadd.f32 %v7346, %v8834
  %v8836 = vpop.f32.mrf.mxu0
  %v8837 = vadd.f32 %v7346, %v8836
  %8838 = vdwg.mxu0
  %8839 = vmatpush.bf16.msra.mxu0 %v8244
  %8840 = vmatpush.bf16.msra.mxu0 %v8242
  %8841 = vmatpush.bf16.msra.mxu0 %v8240
  %8842 = vmatpush.bf16.msra.mxu0 %v8238
  %8843 = vmatpush.bf16.msra.mxu0 %v8236
  %8844 = vmatpush.bf16.msra.mxu0 %v8234
  %8845 = vmatpush.bf16.msra.mxu0 %v8232
  %8846 = vmatpush.bf16.msra.mxu0 %v8230
  %8847 = vmatmul.bf16.gmra.mxu0 %v6385
  %v8848 = vpop.f32.mrf.mxu0
  %v8849 = vadd.f32 %v8800, %v8848
  %v8850 = vpop.f32.mrf.mxu0
  %v8851 = vadd.f32 %v8802, %v8850
  %8852 = vmatmul.bf16.gmra.mxu0 %v6387
  %v8853 = vpop.f32.mrf.mxu0
  %v8854 = vadd.f32 %v8805, %v8853
  %v8855 = vpop.f32.mrf.mxu0
  %v8856 = vadd.f32 %v8807, %v8855
  %8857 = vmatmul.bf16.gmra.mxu0 %v6389
  %v8858 = vpop.f32.mrf.mxu0
  %v8859 = vadd.f32 %v8810, %v8858
  %v8860 = vpop.f32.mrf.mxu0
  %v8861 = vadd.f32 %v8812, %v8860
  %8862 = vmatmul.bf16.gmra.mxu0 %v6391
  %v8863 = vpop.f32.mrf.mxu0
  %v8864 = vadd.f32 %v8815, %v8863
  %v8865 = vpop.f32.mrf.mxu0
  %v8866 = vadd.f32 %v8817, %v8865
  %8867 = vmatmul.bf16.gmra.mxu0 %v6393
  %v8868 = vpop.f32.mrf.mxu0
  %v8869 = vadd.f32 %v8820, %v8868
  %v8870 = vpop.f32.mrf.mxu0
  %v8871 = vadd.f32 %v8822, %v8870
  %8872 = vmatmul.bf16.gmra.mxu0 %v6395
  %v8873 = vpop.f32.mrf.mxu0
  %v8874 = vadd.f32 %v8825, %v8873
  %v8875 = vpop.f32.mrf.mxu0
  %v8876 = vadd.f32 %v8827, %v8875
  %8877 = vmatmul.bf16.gmra.mxu0 %v6397
  %v8878 = vpop.f32.mrf.mxu0
  %v8879 = vadd.f32 %v8830, %v8878
  %v8880 = vpop.f32.mrf.mxu0
  %v8881 = vadd.f32 %v8832, %v8880
  %8882 = vmatmul.bf16.gmra.mxu0 %v6399
  %v8883 = vpop.f32.mrf.mxu0
  %v8884 = vadd.f32 %v8835, %v8883
  %v8885 = vpop.f32.mrf.mxu0
  %v8886 = vadd.f32 %v8837, %v8885
  %8887 = vdwg.mxu0
  %8888 = vmatpush.bf16.msra.mxu0 %v8260
  %8889 = vmatpush.bf16.msra.mxu0 %v8258
  %8890 = vmatpush.bf16.msra.mxu0 %v8256
  %8891 = vmatpush.bf16.msra.mxu0 %v8254
  %8892 = vmatpush.bf16.msra.mxu0 %v8252
  %8893 = vmatpush.bf16.msra.mxu0 %v8250
  %8894 = vmatpush.bf16.msra.mxu0 %v8248
  %8895 = vmatpush.bf16.msra.mxu0 %v8246
  %8896 = vmatmul.bf16.gmra.mxu0 %v6464
  %v8897 = vpop.f32.mrf.mxu0
  %v8898 = vadd.f32 %v8849, %v8897
  %v8899 = vpop.f32.mrf.mxu0
  %v8900 = vadd.f32 %v8851, %v8899
  %8901 = vmatmul.bf16.gmra.mxu0 %v6466
  %v8902 = vpop.f32.mrf.mxu0
  %v8903 = vadd.f32 %v8854, %v8902
  %v8904 = vpop.f32.mrf.mxu0
  %v8905 = vadd.f32 %v8856, %v8904
  %8906 = vmatmul.bf16.gmra.mxu0 %v6468
  %v8907 = vpop.f32.mrf.mxu0
  %v8908 = vadd.f32 %v8859, %v8907
  %v8909 = vpop.f32.mrf.mxu0
  %v8910 = vadd.f32 %v8861, %v8909
  %8911 = vmatmul.bf16.gmra.mxu0 %v6470
  %v8912 = vpop.f32.mrf.mxu0
  %v8913 = vadd.f32 %v8864, %v8912
  %v8914 = vpop.f32.mrf.mxu0
  %v8915 = vadd.f32 %v8866, %v8914
  %8916 = vmatmul.bf16.gmra.mxu0 %v6472
  %v8917 = vpop.f32.mrf.mxu0
  %v8918 = vadd.f32 %v8869, %v8917
  %v8919 = vpop.f32.mrf.mxu0
  %v8920 = vadd.f32 %v8871, %v8919
  %8921 = vmatmul.bf16.gmra.mxu0 %v6474
  %v8922 = vpop.f32.mrf.mxu0
  %v8923 = vadd.f32 %v8874, %v8922
  %v8924 = vpop.f32.mrf.mxu0
  %v8925 = vadd.f32 %v8876, %v8924
  %8926 = vmatmul.bf16.gmra.mxu0 %v6476
  %v8927 = vpop.f32.mrf.mxu0
  %v8928 = vadd.f32 %v8879, %v8927
  %v8929 = vpop.f32.mrf.mxu0
  %v8930 = vadd.f32 %v8881, %v8929
  %8931 = vmatmul.bf16.gmra.mxu0 %v6478
  %v8932 = vpop.f32.mrf.mxu0
  %v8933 = vadd.f32 %v8884, %v8932
  %v8934 = vpop.f32.mrf.mxu0
  %v8935 = vadd.f32 %v8886, %v8934
  %8936 = vdwg.mxu0
  %8937 = vmatpush.bf16.msra.mxu0 %v8276
  %8938 = vmatpush.bf16.msra.mxu0 %v8274
  %8939 = vmatpush.bf16.msra.mxu0 %v8272
  %8940 = vmatpush.bf16.msra.mxu0 %v8270
  %8941 = vmatpush.bf16.msra.mxu0 %v8268
  %8942 = vmatpush.bf16.msra.mxu0 %v8266
  %8943 = vmatpush.bf16.msra.mxu0 %v8264
  %8944 = vmatpush.bf16.msra.mxu0 %v8262
  %8945 = vmatmul.bf16.gmra.mxu0 %v6465
  %v8946 = vpop.f32.mrf.mxu0
  %v8947 = vadd.f32 %v8898, %v8946
  %v8948 = vpop.f32.mrf.mxu0
  %v8949 = vadd.f32 %v8900, %v8948
  %8950 = vmatmul.bf16.gmra.mxu0 %v6467
  %v8951 = vpop.f32.mrf.mxu0
  %v8952 = vadd.f32 %v8903, %v8951
  %v8953 = vpop.f32.mrf.mxu0
  %v8954 = vadd.f32 %v8905, %v8953
  %8955 = vmatmul.bf16.gmra.mxu0 %v6469
  %v8956 = vpop.f32.mrf.mxu0
  %v8957 = vadd.f32 %v8908, %v8956
  %v8958 = vpop.f32.mrf.mxu0
  %v8959 = vadd.f32 %v8910, %v8958
  %8960 = vmatmul.bf16.gmra.mxu0 %v6471
  %v8961 = vpop.f32.mrf.mxu0
  %v8962 = vadd.f32 %v8913, %v8961
  %v8963 = vpop.f32.mrf.mxu0
  %v8964 = vadd.f32 %v8915, %v8963
  %8965 = vmatmul.bf16.gmra.mxu0 %v6473
  %v8966 = vpop.f32.mrf.mxu0
  %v8967 = vadd.f32 %v8918, %v8966
  %v8968 = vpop.f32.mrf.mxu0
  %v8969 = vadd.f32 %v8920, %v8968
  %8970 = vmatmul.bf16.gmra.mxu0 %v6475
  %v8971 = vpop.f32.mrf.mxu0
  %v8972 = vadd.f32 %v8923, %v8971
  %v8973 = vpop.f32.mrf.mxu0
  %v8974 = vadd.f32 %v8925, %v8973
  %8975 = vmatmul.bf16.gmra.mxu0 %v6477
  %v8976 = vpop.f32.mrf.mxu0
  %v8977 = vadd.f32 %v8928, %v8976
  %v8978 = vpop.f32.mrf.mxu0
  %v8979 = vadd.f32 %v8930, %v8978
  %8980 = vmatmul.bf16.gmra.mxu0 %v6479
  %v8981 = vpop.f32.mrf.mxu0
  %v8982 = vadd.f32 %v8933, %v8981
  %v8983 = vpop.f32.mrf.mxu0
  %v8984 = vadd.f32 %v8935, %v8983
  %8985 = vdwg.mxu0
  %8986 = vmatpush.bf16.msra.mxu0 %v8292
  %8987 = vmatpush.bf16.msra.mxu0 %v8290
  %8988 = vmatpush.bf16.msra.mxu0 %v8288
  %8989 = vmatpush.bf16.msra.mxu0 %v8286
  %8990 = vmatpush.bf16.msra.mxu0 %v8284
  %8991 = vmatpush.bf16.msra.mxu0 %v8282
  %8992 = vmatpush.bf16.msra.mxu0 %v8280
  %8993 = vmatpush.bf16.msra.mxu0 %v8278
  %8994 = vmatmul.bf16.gmra.mxu0 %v6544
  %v8995 = vpop.f32.mrf.mxu0
  %v8996 = vadd.f32 %v8947, %v8995
  %v8997 = vpop.f32.mrf.mxu0
  %v8998 = vadd.f32 %v8949, %v8997
  %8999 = vmatmul.bf16.gmra.mxu0 %v6546
  %v9000 = vpop.f32.mrf.mxu0
  %v9001 = vadd.f32 %v8952, %v9000
  %v9002 = vpop.f32.mrf.mxu0
  %v9003 = vadd.f32 %v8954, %v9002
  %9004 = vmatmul.bf16.gmra.mxu0 %v6548
  %v9005 = vpop.f32.mrf.mxu0
  %v9006 = vadd.f32 %v8957, %v9005
  %v9007 = vpop.f32.mrf.mxu0
  %v9008 = vadd.f32 %v8959, %v9007
  %9009 = vmatmul.bf16.gmra.mxu0 %v6550
  %v9010 = vpop.f32.mrf.mxu0
  %v9011 = vadd.f32 %v8962, %v9010
  %v9012 = vpop.f32.mrf.mxu0
  %v9013 = vadd.f32 %v8964, %v9012
  %9014 = vmatmul.bf16.gmra.mxu0 %v6552
  %v9015 = vpop.f32.mrf.mxu0
  %v9016 = vadd.f32 %v8967, %v9015
  %v9017 = vpop.f32.mrf.mxu0
  %v9018 = vadd.f32 %v8969, %v9017
  %9019 = vmatmul.bf16.gmra.mxu0 %v6554
  %v9020 = vpop.f32.mrf.mxu0
  %v9021 = vadd.f32 %v8972, %v9020
  %v9022 = vpop.f32.mrf.mxu0
  %v9023 = vadd.f32 %v8974, %v9022
  %9024 = vmatmul.bf16.gmra.mxu0 %v6556
  %v9025 = vpop.f32.mrf.mxu0
  %v9026 = vadd.f32 %v8977, %v9025
  %v9027 = vpop.f32.mrf.mxu0
  %v9028 = vadd.f32 %v8979, %v9027
  %9029 = vmatmul.bf16.gmra.mxu0 %v6558
  %v9030 = vpop.f32.mrf.mxu0
  %v9031 = vadd.f32 %v8982, %v9030
  %v9032 = vpop.f32.mrf.mxu0
  %v9033 = vadd.f32 %v8984, %v9032
  %9034 = vdwg.mxu0
  %9035 = vmatpush.bf16.msra.mxu0 %v8308
  %9036 = vmatpush.bf16.msra.mxu0 %v8306
  %9037 = vmatpush.bf16.msra.mxu0 %v8304
  %9038 = vmatpush.bf16.msra.mxu0 %v8302
  %9039 = vmatpush.bf16.msra.mxu0 %v8300
  %9040 = vmatpush.bf16.msra.mxu0 %v8298
  %9041 = vmatpush.bf16.msra.mxu0 %v8296
  %9042 = vmatpush.bf16.msra.mxu0 %v8294
  %9043 = vmatmul.bf16.gmra.mxu0 %v6545
  %v9044 = vpop.f32.mrf.mxu0
  %v9045 = vadd.f32 %v8996, %v9044
  %v9046 = vpop.f32.mrf.mxu0
  %v9047 = vadd.f32 %v8998, %v9046
  %9048 = vmatmul.bf16.gmra.mxu0 %v6547
  %v9049 = vpop.f32.mrf.mxu0
  %v9050 = vadd.f32 %v9001, %v9049
  %v9051 = vpop.f32.mrf.mxu0
  %v9052 = vadd.f32 %v9003, %v9051
  %9053 = vmatmul.bf16.gmra.mxu0 %v6549
  %v9054 = vpop.f32.mrf.mxu0
  %v9055 = vadd.f32 %v9006, %v9054
  %v9056 = vpop.f32.mrf.mxu0
  %v9057 = vadd.f32 %v9008, %v9056
  %9058 = vmatmul.bf16.gmra.mxu0 %v6551
  %v9059 = vpop.f32.mrf.mxu0
  %v9060 = vadd.f32 %v9011, %v9059
  %v9061 = vpop.f32.mrf.mxu0
  %v9062 = vadd.f32 %v9013, %v9061
  %9063 = vmatmul.bf16.gmra.mxu0 %v6553
  %v9064 = vpop.f32.mrf.mxu0
  %v9065 = vadd.f32 %v9016, %v9064
  %v9066 = vpop.f32.mrf.mxu0
  %v9067 = vadd.f32 %v9018, %v9066
  %9068 = vmatmul.bf16.gmra.mxu0 %v6555
  %v9069 = vpop.f32.mrf.mxu0
  %v9070 = vadd.f32 %v9021, %v9069
  %v9071 = vpop.f32.mrf.mxu0
  %v9072 = vadd.f32 %v9023, %v9071
  %9073 = vmatmul.bf16.gmra.mxu0 %v6557
  %v9074 = vpop.f32.mrf.mxu0
  %v9075 = vadd.f32 %v9026, %v9074
  %v9076 = vpop.f32.mrf.mxu0
  %v9077 = vadd.f32 %v9028, %v9076
  %9078 = vmatmul.bf16.gmra.mxu0 %v6559
  %v9079 = vpop.f32.mrf.mxu0
  %v9080 = vadd.f32 %v9031, %v9079
  %v9081 = vpop.f32.mrf.mxu0
  %v9082 = vadd.f32 %v9033, %v9081
  %9083 = vdwg.mxu0
  %9084 = vmatpush.bf16.msra.mxu0 %v8324
  %9085 = vmatpush.bf16.msra.mxu0 %v8322
  %9086 = vmatpush.bf16.msra.mxu0 %v8320
  %9087 = vmatpush.bf16.msra.mxu0 %v8318
  %9088 = vmatpush.bf16.msra.mxu0 %v8316
  %9089 = vmatpush.bf16.msra.mxu0 %v8314
  %9090 = vmatpush.bf16.msra.mxu0 %v8312
  %9091 = vmatpush.bf16.msra.mxu0 %v8310
  %9092 = vmatmul.bf16.gmra.mxu0 %v6624
  %v9093 = vpop.f32.mrf.mxu0
  %v9094 = vadd.f32 %v9045, %v9093
  %v9095 = vpop.f32.mrf.mxu0
  %v9096 = vadd.f32 %v9047, %v9095
  %9097 = vmatmul.bf16.gmra.mxu0 %v6626
  %v9098 = vpop.f32.mrf.mxu0
  %v9099 = vadd.f32 %v9050, %v9098
  %v9100 = vpop.f32.mrf.mxu0
  %v9101 = vadd.f32 %v9052, %v9100
  %9102 = vmatmul.bf16.gmra.mxu0 %v6628
  %v9103 = vpop.f32.mrf.mxu0
  %v9104 = vadd.f32 %v9055, %v9103
  %v9105 = vpop.f32.mrf.mxu0
  %v9106 = vadd.f32 %v9057, %v9105
  %9107 = vmatmul.bf16.gmra.mxu0 %v6630
  %v9108 = vpop.f32.mrf.mxu0
  %v9109 = vadd.f32 %v9060, %v9108
  %v9110 = vpop.f32.mrf.mxu0
  %v9111 = vadd.f32 %v9062, %v9110
  %9112 = vmatmul.bf16.gmra.mxu0 %v6632
  %v9113 = vpop.f32.mrf.mxu0
  %v9114 = vadd.f32 %v9065, %v9113
  %v9115 = vpop.f32.mrf.mxu0
  %v9116 = vadd.f32 %v9067, %v9115
  %9117 = vmatmul.bf16.gmra.mxu0 %v6634
  %v9118 = vpop.f32.mrf.mxu0
  %v9119 = vadd.f32 %v9070, %v9118
  %v9120 = vpop.f32.mrf.mxu0
  %v9121 = vadd.f32 %v9072, %v9120
  %9122 = vmatmul.bf16.gmra.mxu0 %v6636
  %v9123 = vpop.f32.mrf.mxu0
  %v9124 = vadd.f32 %v9075, %v9123
  %v9125 = vpop.f32.mrf.mxu0
  %v9126 = vadd.f32 %v9077, %v9125
  %9127 = vmatmul.bf16.gmra.mxu0 %v6638
  %v9128 = vpop.f32.mrf.mxu0
  %v9129 = vadd.f32 %v9080, %v9128
  %v9130 = vpop.f32.mrf.mxu0
  %v9131 = vadd.f32 %v9082, %v9130
  %9132 = vdwg.mxu0
  %9133 = vmatpush.bf16.msra.mxu0 %v8340
  %9134 = vmatpush.bf16.msra.mxu0 %v8338
  %9135 = vmatpush.bf16.msra.mxu0 %v8336
  %9136 = vmatpush.bf16.msra.mxu0 %v8334
  %9137 = vmatpush.bf16.msra.mxu0 %v8332
  %9138 = vmatpush.bf16.msra.mxu0 %v8330
  %9139 = vmatpush.bf16.msra.mxu0 %v8328
  %9140 = vmatpush.bf16.msra.mxu0 %v8326
  %9141 = vmatmul.bf16.gmra.mxu0 %v6625
  %v9142 = vpop.f32.mrf.mxu0
  %v9143 = vadd.f32 %v9094, %v9142
  %v9144 = vpop.f32.mrf.mxu0
  %v9145 = vadd.f32 %v9096, %v9144
  %9146 = vmatmul.bf16.gmra.mxu0 %v6627
  %v9147 = vpop.f32.mrf.mxu0
  %v9148 = vadd.f32 %v9099, %v9147
  %v9149 = vpop.f32.mrf.mxu0
  %v9150 = vadd.f32 %v9101, %v9149
  %9151 = vmatmul.bf16.gmra.mxu0 %v6629
  %v9152 = vpop.f32.mrf.mxu0
  %v9153 = vadd.f32 %v9104, %v9152
  %v9154 = vpop.f32.mrf.mxu0
  %v9155 = vadd.f32 %v9106, %v9154
  %9156 = vmatmul.bf16.gmra.mxu0 %v6631
  %v9157 = vpop.f32.mrf.mxu0
  %v9158 = vadd.f32 %v9109, %v9157
  %v9159 = vpop.f32.mrf.mxu0
  %v9160 = vadd.f32 %v9111, %v9159
  %9161 = vmatmul.bf16.gmra.mxu0 %v6633
  %v9162 = vpop.f32.mrf.mxu0
  %v9163 = vadd.f32 %v9114, %v9162
  %v9164 = vpop.f32.mrf.mxu0
  %v9165 = vadd.f32 %v9116, %v9164
  %9166 = vmatmul.bf16.gmra.mxu0 %v6635
  %v9167 = vpop.f32.mrf.mxu0
  %v9168 = vadd.f32 %v9119, %v9167
  %v9169 = vpop.f32.mrf.mxu0
  %v9170 = vadd.f32 %v9121, %v9169
  %9171 = vmatmul.bf16.gmra.mxu0 %v6637
  %v9172 = vpop.f32.mrf.mxu0
  %v9173 = vadd.f32 %v9124, %v9172
  %v9174 = vpop.f32.mrf.mxu0
  %v9175 = vadd.f32 %v9126, %v9174
  %9176 = vmatmul.bf16.gmra.mxu0 %v6639
  %v9177 = vpop.f32.mrf.mxu0
  %v9178 = vadd.f32 %v9129, %v9177
  %v9179 = vpop.f32.mrf.mxu0
  %v9180 = vadd.f32 %v9131, %v9179
  %9181 = vdwg.mxu0
  %9182 = vmatpush.bf16.msra.mxu0 %v8356
  %9183 = vmatpush.bf16.msra.mxu0 %v8354
  %9184 = vmatpush.bf16.msra.mxu0 %v8352
  %9185 = vmatpush.bf16.msra.mxu0 %v8350
  %9186 = vmatpush.bf16.msra.mxu0 %v8348
  %9187 = vmatpush.bf16.msra.mxu0 %v8346
  %9188 = vmatpush.bf16.msra.mxu0 %v8344
  %9189 = vmatpush.bf16.msra.mxu0 %v8342
  %9190 = vmatmul.bf16.gmra.mxu0 %v6704
  %v9191 = vpop.f32.mrf.mxu0
  %v9192 = vadd.f32 %v9143, %v9191
  %v9193 = vpop.f32.mrf.mxu0
  %v9194 = vadd.f32 %v9145, %v9193
  %9195 = vmatmul.bf16.gmra.mxu0 %v6706
  %v9196 = vpop.f32.mrf.mxu0
  %v9197 = vadd.f32 %v9148, %v9196
  %v9198 = vpop.f32.mrf.mxu0
  %v9199 = vadd.f32 %v9150, %v9198
  %9200 = vmatmul.bf16.gmra.mxu0 %v6708
  %v9201 = vpop.f32.mrf.mxu0
  %v9202 = vadd.f32 %v9153, %v9201
  %v9203 = vpop.f32.mrf.mxu0
  %v9204 = vadd.f32 %v9155, %v9203
  %9205 = vmatmul.bf16.gmra.mxu0 %v6710
  %v9206 = vpop.f32.mrf.mxu0
  %v9207 = vadd.f32 %v9158, %v9206
  %v9208 = vpop.f32.mrf.mxu0
  %v9209 = vadd.f32 %v9160, %v9208
  %9210 = vmatmul.bf16.gmra.mxu0 %v6712
  %v9211 = vpop.f32.mrf.mxu0
  %v9212 = vadd.f32 %v9163, %v9211
  %v9213 = vpop.f32.mrf.mxu0
  %v9214 = vadd.f32 %v9165, %v9213
  %9215 = vmatmul.bf16.gmra.mxu0 %v6714
  %v9216 = vpop.f32.mrf.mxu0
  %v9217 = vadd.f32 %v9168, %v9216
  %v9218 = vpop.f32.mrf.mxu0
  %v9219 = vadd.f32 %v9170, %v9218
  %9220 = vmatmul.bf16.gmra.mxu0 %v6716
  %v9221 = vpop.f32.mrf.mxu0
  %v9222 = vadd.f32 %v9173, %v9221
  %v9223 = vpop.f32.mrf.mxu0
  %v9224 = vadd.f32 %v9175, %v9223
  %9225 = vmatmul.bf16.gmra.mxu0 %v6718
  %v9226 = vpop.f32.mrf.mxu0
  %v9227 = vadd.f32 %v9178, %v9226
  %v9228 = vpop.f32.mrf.mxu0
  %v9229 = vadd.f32 %v9180, %v9228
  %9230 = vdwg.mxu0
  %9231 = vmatpush.bf16.msra.mxu0 %v8372
  %9232 = vmatpush.bf16.msra.mxu0 %v8370
  %9233 = vmatpush.bf16.msra.mxu0 %v8368
  %9234 = vmatpush.bf16.msra.mxu0 %v8366
  %9235 = vmatpush.bf16.msra.mxu0 %v8364
  %9236 = vmatpush.bf16.msra.mxu0 %v8362
  %9237 = vmatpush.bf16.msra.mxu0 %v8360
  %9238 = vmatpush.bf16.msra.mxu0 %v8358
  %9239 = vmatmul.bf16.gmra.mxu0 %v6705
  %v9240 = vpop.f32.mrf.mxu0
  %v9241 = vadd.f32 %v9192, %v9240
  %v9242 = vpop.f32.mrf.mxu0
  %v9243 = vadd.f32 %v9194, %v9242
  %9244 = vmatmul.bf16.gmra.mxu0 %v6707
  %v9245 = vpop.f32.mrf.mxu0
  %v9246 = vadd.f32 %v9197, %v9245
  %v9247 = vpop.f32.mrf.mxu0
  %v9248 = vadd.f32 %v9199, %v9247
  %9249 = vmatmul.bf16.gmra.mxu0 %v6709
  %v9250 = vpop.f32.mrf.mxu0
  %v9251 = vadd.f32 %v9202, %v9250
  %v9252 = vpop.f32.mrf.mxu0
  %v9253 = vadd.f32 %v9204, %v9252
  %9254 = vmatmul.bf16.gmra.mxu0 %v6711
  %v9255 = vpop.f32.mrf.mxu0
  %v9256 = vadd.f32 %v9207, %v9255
  %v9257 = vpop.f32.mrf.mxu0
  %v9258 = vadd.f32 %v9209, %v9257
  %9259 = vmatmul.bf16.gmra.mxu0 %v6713
  %v9260 = vpop.f32.mrf.mxu0
  %v9261 = vadd.f32 %v9212, %v9260
  %v9262 = vpop.f32.mrf.mxu0
  %v9263 = vadd.f32 %v9214, %v9262
  %9264 = vmatmul.bf16.gmra.mxu0 %v6715
  %v9265 = vpop.f32.mrf.mxu0
  %v9266 = vadd.f32 %v9217, %v9265
  %v9267 = vpop.f32.mrf.mxu0
  %v9268 = vadd.f32 %v9219, %v9267
  %9269 = vmatmul.bf16.gmra.mxu0 %v6717
  %v9270 = vpop.f32.mrf.mxu0
  %v9271 = vadd.f32 %v9222, %v9270
  %v9272 = vpop.f32.mrf.mxu0
  %v9273 = vadd.f32 %v9224, %v9272
  %9274 = vmatmul.bf16.gmra.mxu0 %v6719
  %v9275 = vpop.f32.mrf.mxu0
  %v9276 = vadd.f32 %v9227, %v9275
  %v9277 = vpop.f32.mrf.mxu0
  %v9278 = vadd.f32 %v9229, %v9277
  %9279 = vdwg.mxu0
  %9280 = vmatpush.bf16.msra.mxu0 %v8388
  %9281 = vmatpush.bf16.msra.mxu0 %v8386
  %9282 = vmatpush.bf16.msra.mxu0 %v8384
  %9283 = vmatpush.bf16.msra.mxu0 %v8382
  %9284 = vmatpush.bf16.msra.mxu0 %v8380
  %9285 = vmatpush.bf16.msra.mxu0 %v8378
  %9286 = vmatpush.bf16.msra.mxu0 %v8376
  %9287 = vmatpush.bf16.msra.mxu0 %v8374
  %9288 = vmatmul.bf16.gmra.mxu0 %v6784
  %v9289 = vpop.f32.mrf.mxu0
  %v9290 = vadd.f32 %v9241, %v9289
  %v9291 = vpop.f32.mrf.mxu0
  %v9292 = vadd.f32 %v9243, %v9291
  %9293 = vmatmul.bf16.gmra.mxu0 %v6786
  %v9294 = vpop.f32.mrf.mxu0
  %v9295 = vadd.f32 %v9246, %v9294
  %v9296 = vpop.f32.mrf.mxu0
  %v9297 = vadd.f32 %v9248, %v9296
  %9298 = vmatmul.bf16.gmra.mxu0 %v6788
  %v9299 = vpop.f32.mrf.mxu0
  %v9300 = vadd.f32 %v9251, %v9299
  %v9301 = vpop.f32.mrf.mxu0
  %v9302 = vadd.f32 %v9253, %v9301
  %9303 = vmatmul.bf16.gmra.mxu0 %v6790
  %v9304 = vpop.f32.mrf.mxu0
  %v9305 = vadd.f32 %v9256, %v9304
  %v9306 = vpop.f32.mrf.mxu0
  %v9307 = vadd.f32 %v9258, %v9306
  %9308 = vmatmul.bf16.gmra.mxu0 %v6792
  %v9309 = vpop.f32.mrf.mxu0
  %v9310 = vadd.f32 %v9261, %v9309
  %v9311 = vpop.f32.mrf.mxu0
  %v9312 = vadd.f32 %v9263, %v9311
  %9313 = vmatmul.bf16.gmra.mxu0 %v6794
  %v9314 = vpop.f32.mrf.mxu0
  %v9315 = vadd.f32 %v9266, %v9314
  %v9316 = vpop.f32.mrf.mxu0
  %v9317 = vadd.f32 %v9268, %v9316
  %9318 = vmatmul.bf16.gmra.mxu0 %v6796
  %v9319 = vpop.f32.mrf.mxu0
  %v9320 = vadd.f32 %v9271, %v9319
  %v9321 = vpop.f32.mrf.mxu0
  %v9322 = vadd.f32 %v9273, %v9321
  %9323 = vmatmul.bf16.gmra.mxu0 %v6798
  %v9324 = vpop.f32.mrf.mxu0
  %v9325 = vadd.f32 %v9276, %v9324
  %v9326 = vpop.f32.mrf.mxu0
  %v9327 = vadd.f32 %v9278, %v9326
  %9328 = vdwg.mxu0
  %9329 = vmatpush.bf16.msra.mxu0 %v8404
  %9330 = vmatpush.bf16.msra.mxu0 %v8402
  %9331 = vmatpush.bf16.msra.mxu0 %v8400
  %9332 = vmatpush.bf16.msra.mxu0 %v8398
  %9333 = vmatpush.bf16.msra.mxu0 %v8396
  %9334 = vmatpush.bf16.msra.mxu0 %v8394
  %9335 = vmatpush.bf16.msra.mxu0 %v8392
  %9336 = vmatpush.bf16.msra.mxu0 %v8390
  %9337 = vmatmul.bf16.gmra.mxu0 %v6785
  %v9338 = vpop.f32.mrf.mxu0
  %v9339 = vadd.f32 %v9290, %v9338
  %v9340 = vpop.f32.mrf.mxu0
  %v9341 = vadd.f32 %v9292, %v9340
  %9342 = vmatmul.bf16.gmra.mxu0 %v6787
  %v9343 = vpop.f32.mrf.mxu0
  %v9344 = vadd.f32 %v9295, %v9343
  %v9345 = vpop.f32.mrf.mxu0
  %v9346 = vadd.f32 %v9297, %v9345
  %9347 = vmatmul.bf16.gmra.mxu0 %v6789
  %v9348 = vpop.f32.mrf.mxu0
  %v9349 = vadd.f32 %v9300, %v9348
  %v9350 = vpop.f32.mrf.mxu0
  %v9351 = vadd.f32 %v9302, %v9350
  %9352 = vmatmul.bf16.gmra.mxu0 %v6791
  %v9353 = vpop.f32.mrf.mxu0
  %v9354 = vadd.f32 %v9305, %v9353
  %v9355 = vpop.f32.mrf.mxu0
  %v9356 = vadd.f32 %v9307, %v9355
  %9357 = vmatmul.bf16.gmra.mxu0 %v6793
  %v9358 = vpop.f32.mrf.mxu0
  %v9359 = vadd.f32 %v9310, %v9358
  %v9360 = vpop.f32.mrf.mxu0
  %v9361 = vadd.f32 %v9312, %v9360
  %9362 = vmatmul.bf16.gmra.mxu0 %v6795
  %v9363 = vpop.f32.mrf.mxu0
  %v9364 = vadd.f32 %v9315, %v9363
  %v9365 = vpop.f32.mrf.mxu0
  %v9366 = vadd.f32 %v9317, %v9365
  %9367 = vmatmul.bf16.gmra.mxu0 %v6797
  %v9368 = vpop.f32.mrf.mxu0
  %v9369 = vadd.f32 %v9320, %v9368
  %v9370 = vpop.f32.mrf.mxu0
  %v9371 = vadd.f32 %v9322, %v9370
  %9372 = vmatmul.bf16.gmra.mxu0 %v6799
  %v9373 = vpop.f32.mrf.mxu0
  %v9374 = vadd.f32 %v9325, %v9373
  %v9375 = vpop.f32.mrf.mxu0
  %v9376 = vadd.f32 %v9327, %v9375
  %9377 = vdwg.mxu0
  %9378 = vmatpush.bf16.msra.mxu0 %v8420
  %9379 = vmatpush.bf16.msra.mxu0 %v8418
  %9380 = vmatpush.bf16.msra.mxu0 %v8416
  %9381 = vmatpush.bf16.msra.mxu0 %v8414
  %9382 = vmatpush.bf16.msra.mxu0 %v8412
  %9383 = vmatpush.bf16.msra.mxu0 %v8410
  %9384 = vmatpush.bf16.msra.mxu0 %v8408
  %9385 = vmatpush.bf16.msra.mxu0 %v8406
  %9386 = vmatmul.bf16.gmra.mxu0 %v6864
  %v9387 = vpop.f32.mrf.mxu0
  %v9388 = vadd.f32 %v9339, %v9387
  %v9389 = vpop.f32.mrf.mxu0
  %v9390 = vadd.f32 %v9341, %v9389
  %9391 = vmatmul.bf16.gmra.mxu0 %v6866
  %v9392 = vpop.f32.mrf.mxu0
  %v9393 = vadd.f32 %v9344, %v9392
  %v9394 = vpop.f32.mrf.mxu0
  %v9395 = vadd.f32 %v9346, %v9394
  %9396 = vmatmul.bf16.gmra.mxu0 %v6868
  %v9397 = vpop.f32.mrf.mxu0
  %v9398 = vadd.f32 %v9349, %v9397
  %v9399 = vpop.f32.mrf.mxu0
  %v9400 = vadd.f32 %v9351, %v9399
  %9401 = vmatmul.bf16.gmra.mxu0 %v6870
  %v9402 = vpop.f32.mrf.mxu0
  %v9403 = vadd.f32 %v9354, %v9402
  %v9404 = vpop.f32.mrf.mxu0
  %v9405 = vadd.f32 %v9356, %v9404
  %9406 = vmatmul.bf16.gmra.mxu0 %v6872
  %v9407 = vpop.f32.mrf.mxu0
  %v9408 = vadd.f32 %v9359, %v9407
  %v9409 = vpop.f32.mrf.mxu0
  %v9410 = vadd.f32 %v9361, %v9409
  %9411 = vmatmul.bf16.gmra.mxu0 %v6874
  %v9412 = vpop.f32.mrf.mxu0
  %v9413 = vadd.f32 %v9364, %v9412
  %v9414 = vpop.f32.mrf.mxu0
  %v9415 = vadd.f32 %v9366, %v9414
  %9416 = vmatmul.bf16.gmra.mxu0 %v6876
  %v9417 = vpop.f32.mrf.mxu0
  %v9418 = vadd.f32 %v9369, %v9417
  %v9419 = vpop.f32.mrf.mxu0
  %v9420 = vadd.f32 %v9371, %v9419
  %9421 = vmatmul.bf16.gmra.mxu0 %v6878
  %v9422 = vpop.f32.mrf.mxu0
  %v9423 = vadd.f32 %v9374, %v9422
  %v9424 = vpop.f32.mrf.mxu0
  %v9425 = vadd.f32 %v9376, %v9424
  %9426 = vdwg.mxu0
  %9427 = vmatpush.bf16.msra.mxu0 %v8436
  %9428 = vmatpush.bf16.msra.mxu0 %v8434
  %9429 = vmatpush.bf16.msra.mxu0 %v8432
  %9430 = vmatpush.bf16.msra.mxu0 %v8430
  %9431 = vmatpush.bf16.msra.mxu0 %v8428
  %9432 = vmatpush.bf16.msra.mxu0 %v8426
  %9433 = vmatpush.bf16.msra.mxu0 %v8424
  %9434 = vmatpush.bf16.msra.mxu0 %v8422
  %9435 = vmatmul.bf16.gmra.mxu0 %v6865
  %v9436 = vpop.f32.mrf.mxu0
  %v9437 = vadd.f32 %v9388, %v9436
  %v9438 = vpop.f32.mrf.mxu0
  %v9439 = vadd.f32 %v9390, %v9438
  %9440 = vmatmul.bf16.gmra.mxu0 %v6867
  %v9441 = vpop.f32.mrf.mxu0
  %v9442 = vadd.f32 %v9393, %v9441
  %v9443 = vpop.f32.mrf.mxu0
  %v9444 = vadd.f32 %v9395, %v9443
  %9445 = vmatmul.bf16.gmra.mxu0 %v6869
  %v9446 = vpop.f32.mrf.mxu0
  %v9447 = vadd.f32 %v9398, %v9446
  %v9448 = vpop.f32.mrf.mxu0
  %v9449 = vadd.f32 %v9400, %v9448
  %9450 = vmatmul.bf16.gmra.mxu0 %v6871
  %v9451 = vpop.f32.mrf.mxu0
  %v9452 = vadd.f32 %v9403, %v9451
  %v9453 = vpop.f32.mrf.mxu0
  %v9454 = vadd.f32 %v9405, %v9453
  %9455 = vmatmul.bf16.gmra.mxu0 %v6873
  %v9456 = vpop.f32.mrf.mxu0
  %v9457 = vadd.f32 %v9408, %v9456
  %v9458 = vpop.f32.mrf.mxu0
  %v9459 = vadd.f32 %v9410, %v9458
  %9460 = vmatmul.bf16.gmra.mxu0 %v6875
  %v9461 = vpop.f32.mrf.mxu0
  %v9462 = vadd.f32 %v9413, %v9461
  %v9463 = vpop.f32.mrf.mxu0
  %v9464 = vadd.f32 %v9415, %v9463
  %9465 = vmatmul.bf16.gmra.mxu0 %v6877
  %v9466 = vpop.f32.mrf.mxu0
  %v9467 = vadd.f32 %v9418, %v9466
  %v9468 = vpop.f32.mrf.mxu0
  %v9469 = vadd.f32 %v9420, %v9468
  %9470 = vmatmul.bf16.gmra.mxu0 %v6879
  %v9471 = vpop.f32.mrf.mxu0
  %v9472 = vadd.f32 %v9423, %v9471
  %v9473 = vpop.f32.mrf.mxu0
  %v9474 = vadd.f32 %v9425, %v9473
  %9475 = vdwg.mxu0
  %9476 = vmatpush.bf16.msra.mxu0 %v8452
  %9477 = vmatpush.bf16.msra.mxu0 %v8450
  %9478 = vmatpush.bf16.msra.mxu0 %v8448
  %9479 = vmatpush.bf16.msra.mxu0 %v8446
  %9480 = vmatpush.bf16.msra.mxu0 %v8444
  %9481 = vmatpush.bf16.msra.mxu0 %v8442
  %9482 = vmatpush.bf16.msra.mxu0 %v8440
  %9483 = vmatpush.bf16.msra.mxu0 %v8438
  %9484 = vmatmul.bf16.gmra.mxu0 %v6944
  %v9485 = vpop.f32.mrf.mxu0
  %v9486 = vadd.f32 %v9437, %v9485
  %v9487 = vpop.f32.mrf.mxu0
  %v9488 = vadd.f32 %v9439, %v9487
  %9489 = vmatmul.bf16.gmra.mxu0 %v6946
  %v9490 = vpop.f32.mrf.mxu0
  %v9491 = vadd.f32 %v9442, %v9490
  %v9492 = vpop.f32.mrf.mxu0
  %v9493 = vadd.f32 %v9444, %v9492
  %9494 = vmatmul.bf16.gmra.mxu0 %v6948
  %v9495 = vpop.f32.mrf.mxu0
  %v9496 = vadd.f32 %v9447, %v9495
  %v9497 = vpop.f32.mrf.mxu0
  %v9498 = vadd.f32 %v9449, %v9497
  %9499 = vmatmul.bf16.gmra.mxu0 %v6950
  %v9500 = vpop.f32.mrf.mxu0
  %v9501 = vadd.f32 %v9452, %v9500
  %v9502 = vpop.f32.mrf.mxu0
  %v9503 = vadd.f32 %v9454, %v9502
  %9504 = vmatmul.bf16.gmra.mxu0 %v6952
  %v9505 = vpop.f32.mrf.mxu0
  %v9506 = vadd.f32 %v9457, %v9505
  %v9507 = vpop.f32.mrf.mxu0
  %v9508 = vadd.f32 %v9459, %v9507
  %9509 = vmatmul.bf16.gmra.mxu0 %v6954
  %v9510 = vpop.f32.mrf.mxu0
  %v9511 = vadd.f32 %v9462, %v9510
  %v9512 = vpop.f32.mrf.mxu0
  %v9513 = vadd.f32 %v9464, %v9512
  %9514 = vmatmul.bf16.gmra.mxu0 %v6956
  %v9515 = vpop.f32.mrf.mxu0
  %v9516 = vadd.f32 %v9467, %v9515
  %v9517 = vpop.f32.mrf.mxu0
  %v9518 = vadd.f32 %v9469, %v9517
  %9519 = vmatmul.bf16.gmra.mxu0 %v6958
  %v9520 = vpop.f32.mrf.mxu0
  %v9521 = vadd.f32 %v9472, %v9520
  %v9522 = vpop.f32.mrf.mxu0
  %v9523 = vadd.f32 %v9474, %v9522
  %9524 = vdwg.mxu0
  %9525 = vmatpush.bf16.msra.mxu0 %v8468
  %9526 = vmatpush.bf16.msra.mxu0 %v8466
  %9527 = vmatpush.bf16.msra.mxu0 %v8464
  %9528 = vmatpush.bf16.msra.mxu0 %v8462
  %9529 = vmatpush.bf16.msra.mxu0 %v8460
  %9530 = vmatpush.bf16.msra.mxu0 %v8458
  %9531 = vmatpush.bf16.msra.mxu0 %v8456
  %9532 = vmatpush.bf16.msra.mxu0 %v8454
  %9533 = vmatmul.bf16.gmra.mxu0 %v6945
  %v9534 = vpop.f32.mrf.mxu0
  %v9535 = vadd.f32 %v9486, %v9534
  %v9536 = vpop.f32.mrf.mxu0
  %v9537 = vadd.f32 %v9488, %v9536
  %9538 = vmatmul.bf16.gmra.mxu0 %v6947
  %v9539 = vpop.f32.mrf.mxu0
  %v9540 = vadd.f32 %v9491, %v9539
  %v9541 = vpop.f32.mrf.mxu0
  %v9542 = vadd.f32 %v9493, %v9541
  %9543 = vmatmul.bf16.gmra.mxu0 %v6949
  %v9544 = vpop.f32.mrf.mxu0
  %v9545 = vadd.f32 %v9496, %v9544
  %v9546 = vpop.f32.mrf.mxu0
  %v9547 = vadd.f32 %v9498, %v9546
  %9548 = vmatmul.bf16.gmra.mxu0 %v6951
  %v9549 = vpop.f32.mrf.mxu0
  %v9550 = vadd.f32 %v9501, %v9549
  %v9551 = vpop.f32.mrf.mxu0
  %v9552 = vadd.f32 %v9503, %v9551
  %9553 = vmatmul.bf16.gmra.mxu0 %v6953
  %v9554 = vpop.f32.mrf.mxu0
  %v9555 = vadd.f32 %v9506, %v9554
  %v9556 = vpop.f32.mrf.mxu0
  %v9557 = vadd.f32 %v9508, %v9556
  %9558 = vmatmul.bf16.gmra.mxu0 %v6955
  %v9559 = vpop.f32.mrf.mxu0
  %v9560 = vadd.f32 %v9511, %v9559
  %v9561 = vpop.f32.mrf.mxu0
  %v9562 = vadd.f32 %v9513, %v9561
  %9563 = vmatmul.bf16.gmra.mxu0 %v6957
  %v9564 = vpop.f32.mrf.mxu0
  %v9565 = vadd.f32 %v9516, %v9564
  %v9566 = vpop.f32.mrf.mxu0
  %v9567 = vadd.f32 %v9518, %v9566
  %9568 = vmatmul.bf16.gmra.mxu0 %v6959
  %v9569 = vpop.f32.mrf.mxu0
  %v9570 = vadd.f32 %v9521, %v9569
  %v9571 = vpop.f32.mrf.mxu0
  %v9572 = vadd.f32 %v9523, %v9571
  %9573 = vdwg.mxu0
  %9574 = vmatpush.bf16.msra.mxu0 %v8484
  %9575 = vmatpush.bf16.msra.mxu0 %v8482
  %9576 = vmatpush.bf16.msra.mxu0 %v8480
  %9577 = vmatpush.bf16.msra.mxu0 %v8478
  %9578 = vmatpush.bf16.msra.mxu0 %v8476
  %9579 = vmatpush.bf16.msra.mxu0 %v8474
  %9580 = vmatpush.bf16.msra.mxu0 %v8472
  %9581 = vmatpush.bf16.msra.mxu0 %v8470
  %9582 = vmatmul.bf16.gmra.mxu0 %v7024
  %v9583 = vpop.f32.mrf.mxu0
  %v9584 = vadd.f32 %v9535, %v9583
  %v9585 = vpop.f32.mrf.mxu0
  %v9586 = vadd.f32 %v9537, %v9585
  %9587 = vmatmul.bf16.gmra.mxu0 %v7026
  %v9588 = vpop.f32.mrf.mxu0
  %v9589 = vadd.f32 %v9540, %v9588
  %v9590 = vpop.f32.mrf.mxu0
  %v9591 = vadd.f32 %v9542, %v9590
  %9592 = vmatmul.bf16.gmra.mxu0 %v7028
  %v9593 = vpop.f32.mrf.mxu0
  %v9594 = vadd.f32 %v9545, %v9593
  %v9595 = vpop.f32.mrf.mxu0
  %v9596 = vadd.f32 %v9547, %v9595
  %9597 = vmatmul.bf16.gmra.mxu0 %v7030
  %v9598 = vpop.f32.mrf.mxu0
  %v9599 = vadd.f32 %v9550, %v9598
  %v9600 = vpop.f32.mrf.mxu0
  %v9601 = vadd.f32 %v9552, %v9600
  %9602 = vmatmul.bf16.gmra.mxu0 %v7032
  %v9603 = vpop.f32.mrf.mxu0
  %v9604 = vadd.f32 %v9555, %v9603
  %v9605 = vpop.f32.mrf.mxu0
  %v9606 = vadd.f32 %v9557, %v9605
  %9607 = vmatmul.bf16.gmra.mxu0 %v7034
  %v9608 = vpop.f32.mrf.mxu0
  %v9609 = vadd.f32 %v9560, %v9608
  %v9610 = vpop.f32.mrf.mxu0
  %v9611 = vadd.f32 %v9562, %v9610
  %9612 = vmatmul.bf16.gmra.mxu0 %v7036
  %v9613 = vpop.f32.mrf.mxu0
  %v9614 = vadd.f32 %v9565, %v9613
  %v9615 = vpop.f32.mrf.mxu0
  %v9616 = vadd.f32 %v9567, %v9615
  %9617 = vmatmul.bf16.gmra.mxu0 %v7038
  %v9618 = vpop.f32.mrf.mxu0
  %v9619 = vadd.f32 %v9570, %v9618
  %v9620 = vpop.f32.mrf.mxu0
  %v9621 = vadd.f32 %v9572, %v9620
  %9622 = vdwg.mxu0
  %9623 = vmatpush.bf16.msra.mxu0 %v8500
  %9624 = vmatpush.bf16.msra.mxu0 %v8498
  %9625 = vmatpush.bf16.msra.mxu0 %v8496
  %9626 = vmatpush.bf16.msra.mxu0 %v8494
  %9627 = vmatpush.bf16.msra.mxu0 %v8492
  %9628 = vmatpush.bf16.msra.mxu0 %v8490
  %9629 = vmatpush.bf16.msra.mxu0 %v8488
  %9630 = vmatpush.bf16.msra.mxu0 %v8486
  %9631 = vmatmul.bf16.gmra.mxu0 %v7025
  %v9632 = vpop.f32.mrf.mxu0
  %v9633 = vadd.f32 %v9584, %v9632
  %v9634 = vpop.f32.mrf.mxu0
  %v9635 = vadd.f32 %v9586, %v9634
  %9636 = vmatmul.bf16.gmra.mxu0 %v7027
  %v9637 = vpop.f32.mrf.mxu0
  %v9638 = vadd.f32 %v9589, %v9637
  %v9639 = vpop.f32.mrf.mxu0
  %v9640 = vadd.f32 %v9591, %v9639
  %9641 = vmatmul.bf16.gmra.mxu0 %v7029
  %v9642 = vpop.f32.mrf.mxu0
  %v9643 = vadd.f32 %v9594, %v9642
  %v9644 = vpop.f32.mrf.mxu0
  %v9645 = vadd.f32 %v9596, %v9644
  %9646 = vmatmul.bf16.gmra.mxu0 %v7031
  %v9647 = vpop.f32.mrf.mxu0
  %v9648 = vadd.f32 %v9599, %v9647
  %v9649 = vpop.f32.mrf.mxu0
  %v9650 = vadd.f32 %v9601, %v9649
  %9651 = vmatmul.bf16.gmra.mxu0 %v7033
  %v9652 = vpop.f32.mrf.mxu0
  %v9653 = vadd.f32 %v9604, %v9652
  %v9654 = vpop.f32.mrf.mxu0
  %v9655 = vadd.f32 %v9606, %v9654
  %9656 = vmatmul.bf16.gmra.mxu0 %v7035
  %v9657 = vpop.f32.mrf.mxu0
  %v9658 = vadd.f32 %v9609, %v9657
  %v9659 = vpop.f32.mrf.mxu0
  %v9660 = vadd.f32 %v9611, %v9659
  %9661 = vmatmul.bf16.gmra.mxu0 %v7037
  %v9662 = vpop.f32.mrf.mxu0
  %v9663 = vadd.f32 %v9614, %v9662
  %v9664 = vpop.f32.mrf.mxu0
  %v9665 = vadd.f32 %v9616, %v9664
  %9666 = vmatmul.bf16.gmra.mxu0 %v7039
  %v9667 = vpop.f32.mrf.mxu0
  %v9668 = vadd.f32 %v9619, %v9667
  %v9669 = vpop.f32.mrf.mxu0
  %v9670 = vadd.f32 %v9621, %v9669
  %9671 = vdwg.mxu0
  %9672 = vmatpush.bf16.msra.mxu0 %v8229
  %9673 = vmatpush.bf16.msra.mxu0 %v8227
  %9674 = vmatpush.bf16.msra.mxu0 %v8225
  %9675 = vmatpush.bf16.msra.mxu0 %v8223
  %9676 = vmatpush.bf16.msra.mxu0 %v8221
  %9677 = vmatpush.bf16.msra.mxu0 %v8219
  %9678 = vmatpush.bf16.msra.mxu0 %v8217
  %9679 = vmatpush.bf16.msra.mxu0 %v8215
  %9680 = vmatmul.bf16.gmra.mxu0 %v6384
  %v9681 = vpop.f32.mrf.mxu0
  %v9682 = vadd.f32 %v7347, %v9681
  %v9683 = vpop.f32.mrf.mxu0
  %v9684 = vadd.f32 %v7347, %v9683
  %9685 = vmatmul.bf16.gmra.mxu0 %v6386
  %v9686 = vpop.f32.mrf.mxu0
  %v9687 = vadd.f32 %v7347, %v9686
  %v9688 = vpop.f32.mrf.mxu0
  %v9689 = vadd.f32 %v7347, %v9688
  %9690 = vmatmul.bf16.gmra.mxu0 %v6388
  %v9691 = vpop.f32.mrf.mxu0
  %v9692 = vadd.f32 %v7347, %v9691
  %v9693 = vpop.f32.mrf.mxu0
  %v9694 = vadd.f32 %v7347, %v9693
  %9695 = vmatmul.bf16.gmra.mxu0 %v6390
  %v9696 = vpop.f32.mrf.mxu0
  %v9697 = vadd.f32 %v7347, %v9696
  %v9698 = vpop.f32.mrf.mxu0
  %v9699 = vadd.f32 %v7347, %v9698
  %9700 = vmatmul.bf16.gmra.mxu0 %v6392
  %v9701 = vpop.f32.mrf.mxu0
  %v9702 = vadd.f32 %v7347, %v9701
  %v9703 = vpop.f32.mrf.mxu0
  %v9704 = vadd.f32 %v7347, %v9703
  %9705 = vmatmul.bf16.gmra.mxu0 %v6394
  %v9706 = vpop.f32.mrf.mxu0
  %v9707 = vadd.f32 %v7347, %v9706
  %v9708 = vpop.f32.mrf.mxu0
  %v9709 = vadd.f32 %v7347, %v9708
  %9710 = vmatmul.bf16.gmra.mxu0 %v6396
  %v9711 = vpop.f32.mrf.mxu0
  %v9712 = vadd.f32 %v7347, %v9711
  %v9713 = vpop.f32.mrf.mxu0
  %v9714 = vadd.f32 %v7347, %v9713
  %9715 = vmatmul.bf16.gmra.mxu0 %v6398
  %v9716 = vpop.f32.mrf.mxu0
  %v9717 = vadd.f32 %v7347, %v9716
  %v9718 = vpop.f32.mrf.mxu0
  %v9719 = vadd.f32 %v7347, %v9718
  %9720 = vdwg.mxu0
  %9721 = vmatpush.bf16.msra.mxu0 %v8245
  %9722 = vmatpush.bf16.msra.mxu0 %v8243
  %9723 = vmatpush.bf16.msra.mxu0 %v8241
  %9724 = vmatpush.bf16.msra.mxu0 %v8239
  %9725 = vmatpush.bf16.msra.mxu0 %v8237
  %9726 = vmatpush.bf16.msra.mxu0 %v8235
  %9727 = vmatpush.bf16.msra.mxu0 %v8233
  %9728 = vmatpush.bf16.msra.mxu0 %v8231
  %9729 = vmatmul.bf16.gmra.mxu0 %v6385
  %v9730 = vpop.f32.mrf.mxu0
  %v9731 = vadd.f32 %v9682, %v9730
  %v9732 = vpop.f32.mrf.mxu0
  %v9733 = vadd.f32 %v9684, %v9732
  %9734 = vmatmul.bf16.gmra.mxu0 %v6387
  %v9735 = vpop.f32.mrf.mxu0
  %v9736 = vadd.f32 %v9687, %v9735
  %v9737 = vpop.f32.mrf.mxu0
  %v9738 = vadd.f32 %v9689, %v9737
  %9739 = vmatmul.bf16.gmra.mxu0 %v6389
  %v9740 = vpop.f32.mrf.mxu0
  %v9741 = vadd.f32 %v9692, %v9740
  %v9742 = vpop.f32.mrf.mxu0
  %v9743 = vadd.f32 %v9694, %v9742
  %9744 = vmatmul.bf16.gmra.mxu0 %v6391
  %v9745 = vpop.f32.mrf.mxu0
  %v9746 = vadd.f32 %v9697, %v9745
  %v9747 = vpop.f32.mrf.mxu0
  %v9748 = vadd.f32 %v9699, %v9747
  %9749 = vmatmul.bf16.gmra.mxu0 %v6393
  %v9750 = vpop.f32.mrf.mxu0
  %v9751 = vadd.f32 %v9702, %v9750
  %v9752 = vpop.f32.mrf.mxu0
  %v9753 = vadd.f32 %v9704, %v9752
  %9754 = vmatmul.bf16.gmra.mxu0 %v6395
  %v9755 = vpop.f32.mrf.mxu0
  %v9756 = vadd.f32 %v9707, %v9755
  %v9757 = vpop.f32.mrf.mxu0
  %v9758 = vadd.f32 %v9709, %v9757
  %9759 = vmatmul.bf16.gmra.mxu0 %v6397
  %v9760 = vpop.f32.mrf.mxu0
  %v9761 = vadd.f32 %v9712, %v9760
  %v9762 = vpop.f32.mrf.mxu0
  %v9763 = vadd.f32 %v9714, %v9762
  %9764 = vmatmul.bf16.gmra.mxu0 %v6399
  %v9765 = vpop.f32.mrf.mxu0
  %v9766 = vadd.f32 %v9717, %v9765
  %v9767 = vpop.f32.mrf.mxu0
  %v9768 = vadd.f32 %v9719, %v9767
  %9769 = vdwg.mxu0
  %9770 = vmatpush.bf16.msra.mxu0 %v8261
  %9771 = vmatpush.bf16.msra.mxu0 %v8259
  %9772 = vmatpush.bf16.msra.mxu0 %v8257
  %9773 = vmatpush.bf16.msra.mxu0 %v8255
  %9774 = vmatpush.bf16.msra.mxu0 %v8253
  %9775 = vmatpush.bf16.msra.mxu0 %v8251
  %9776 = vmatpush.bf16.msra.mxu0 %v8249
  %9777 = vmatpush.bf16.msra.mxu0 %v8247
  %9778 = vmatmul.bf16.gmra.mxu0 %v6464
  %v9779 = vpop.f32.mrf.mxu0
  %v9780 = vadd.f32 %v9731, %v9779
  %v9781 = vpop.f32.mrf.mxu0
  %v9782 = vadd.f32 %v9733, %v9781
  %9783 = vmatmul.bf16.gmra.mxu0 %v6466
  %v9784 = vpop.f32.mrf.mxu0
  %v9785 = vadd.f32 %v9736, %v9784
  %v9786 = vpop.f32.mrf.mxu0
  %v9787 = vadd.f32 %v9738, %v9786
  %9788 = vmatmul.bf16.gmra.mxu0 %v6468
  %v9789 = vpop.f32.mrf.mxu0
  %v9790 = vadd.f32 %v9741, %v9789
  %v9791 = vpop.f32.mrf.mxu0
  %v9792 = vadd.f32 %v9743, %v9791
  %9793 = vmatmul.bf16.gmra.mxu0 %v6470
  %v9794 = vpop.f32.mrf.mxu0
  %v9795 = vadd.f32 %v9746, %v9794
  %v9796 = vpop.f32.mrf.mxu0
  %v9797 = vadd.f32 %v9748, %v9796
  %9798 = vmatmul.bf16.gmra.mxu0 %v6472
  %v9799 = vpop.f32.mrf.mxu0
  %v9800 = vadd.f32 %v9751, %v9799
  %v9801 = vpop.f32.mrf.mxu0
  %v9802 = vadd.f32 %v9753, %v9801
  %9803 = vmatmul.bf16.gmra.mxu0 %v6474
  %v9804 = vpop.f32.mrf.mxu0
  %v9805 = vadd.f32 %v9756, %v9804
  %v9806 = vpop.f32.mrf.mxu0
  %v9807 = vadd.f32 %v9758, %v9806
  %9808 = vmatmul.bf16.gmra.mxu0 %v6476
  %v9809 = vpop.f32.mrf.mxu0
  %v9810 = vadd.f32 %v9761, %v9809
  %v9811 = vpop.f32.mrf.mxu0
  %v9812 = vadd.f32 %v9763, %v9811
  %9813 = vmatmul.bf16.gmra.mxu0 %v6478
  %v9814 = vpop.f32.mrf.mxu0
  %v9815 = vadd.f32 %v9766, %v9814
  %v9816 = vpop.f32.mrf.mxu0
  %v9817 = vadd.f32 %v9768, %v9816
  %9818 = vdwg.mxu0
  %9819 = vmatpush.bf16.msra.mxu0 %v8277
  %9820 = vmatpush.bf16.msra.mxu0 %v8275
  %9821 = vmatpush.bf16.msra.mxu0 %v8273
  %9822 = vmatpush.bf16.msra.mxu0 %v8271
  %9823 = vmatpush.bf16.msra.mxu0 %v8269
  %9824 = vmatpush.bf16.msra.mxu0 %v8267
  %9825 = vmatpush.bf16.msra.mxu0 %v8265
  %9826 = vmatpush.bf16.msra.mxu0 %v8263
  %9827 = vmatmul.bf16.gmra.mxu0 %v6465
  %v9828 = vpop.f32.mrf.mxu0
  %v9829 = vadd.f32 %v9780, %v9828
  %v9830 = vpop.f32.mrf.mxu0
  %v9831 = vadd.f32 %v9782, %v9830
  %9832 = vmatmul.bf16.gmra.mxu0 %v6467
  %v9833 = vpop.f32.mrf.mxu0
  %v9834 = vadd.f32 %v9785, %v9833
  %v9835 = vpop.f32.mrf.mxu0
  %v9836 = vadd.f32 %v9787, %v9835
  %9837 = vmatmul.bf16.gmra.mxu0 %v6469
  %v9838 = vpop.f32.mrf.mxu0
  %v9839 = vadd.f32 %v9790, %v9838
  %v9840 = vpop.f32.mrf.mxu0
  %v9841 = vadd.f32 %v9792, %v9840
  %9842 = vmatmul.bf16.gmra.mxu0 %v6471
  %v9843 = vpop.f32.mrf.mxu0
  %v9844 = vadd.f32 %v9795, %v9843
  %v9845 = vpop.f32.mrf.mxu0
  %v9846 = vadd.f32 %v9797, %v9845
  %9847 = vmatmul.bf16.gmra.mxu0 %v6473
  %v9848 = vpop.f32.mrf.mxu0
  %v9849 = vadd.f32 %v9800, %v9848
  %v9850 = vpop.f32.mrf.mxu0
  %v9851 = vadd.f32 %v9802, %v9850
  %9852 = vmatmul.bf16.gmra.mxu0 %v6475
  %v9853 = vpop.f32.mrf.mxu0
  %v9854 = vadd.f32 %v9805, %v9853
  %v9855 = vpop.f32.mrf.mxu0
  %v9856 = vadd.f32 %v9807, %v9855
  %9857 = vmatmul.bf16.gmra.mxu0 %v6477
  %v9858 = vpop.f32.mrf.mxu0
  %v9859 = vadd.f32 %v9810, %v9858
  %v9860 = vpop.f32.mrf.mxu0
  %v9861 = vadd.f32 %v9812, %v9860
  %9862 = vmatmul.bf16.gmra.mxu0 %v6479
  %v9863 = vpop.f32.mrf.mxu0
  %v9864 = vadd.f32 %v9815, %v9863
  %v9865 = vpop.f32.mrf.mxu0
  %v9866 = vadd.f32 %v9817, %v9865
  %9867 = vdwg.mxu0
  %9868 = vmatpush.bf16.msra.mxu0 %v8293
  %9869 = vmatpush.bf16.msra.mxu0 %v8291
  %9870 = vmatpush.bf16.msra.mxu0 %v8289
  %9871 = vmatpush.bf16.msra.mxu0 %v8287
  %9872 = vmatpush.bf16.msra.mxu0 %v8285
  %9873 = vmatpush.bf16.msra.mxu0 %v8283
  %9874 = vmatpush.bf16.msra.mxu0 %v8281
  %9875 = vmatpush.bf16.msra.mxu0 %v8279
  %9876 = vmatmul.bf16.gmra.mxu0 %v6544
  %v9877 = vpop.f32.mrf.mxu0
  %v9878 = vadd.f32 %v9829, %v9877
  %v9879 = vpop.f32.mrf.mxu0
  %v9880 = vadd.f32 %v9831, %v9879
  %9881 = vmatmul.bf16.gmra.mxu0 %v6546
  %v9882 = vpop.f32.mrf.mxu0
  %v9883 = vadd.f32 %v9834, %v9882
  %v9884 = vpop.f32.mrf.mxu0
  %v9885 = vadd.f32 %v9836, %v9884
  %9886 = vmatmul.bf16.gmra.mxu0 %v6548
  %v9887 = vpop.f32.mrf.mxu0
  %v9888 = vadd.f32 %v9839, %v9887
  %v9889 = vpop.f32.mrf.mxu0
  %v9890 = vadd.f32 %v9841, %v9889
  %9891 = vmatmul.bf16.gmra.mxu0 %v6550
  %v9892 = vpop.f32.mrf.mxu0
  %v9893 = vadd.f32 %v9844, %v9892
  %v9894 = vpop.f32.mrf.mxu0
  %v9895 = vadd.f32 %v9846, %v9894
  %9896 = vmatmul.bf16.gmra.mxu0 %v6552
  %v9897 = vpop.f32.mrf.mxu0
  %v9898 = vadd.f32 %v9849, %v9897
  %v9899 = vpop.f32.mrf.mxu0
  %v9900 = vadd.f32 %v9851, %v9899
  %9901 = vmatmul.bf16.gmra.mxu0 %v6554
  %v9902 = vpop.f32.mrf.mxu0
  %v9903 = vadd.f32 %v9854, %v9902
  %v9904 = vpop.f32.mrf.mxu0
  %v9905 = vadd.f32 %v9856, %v9904
  %9906 = vmatmul.bf16.gmra.mxu0 %v6556
  %v9907 = vpop.f32.mrf.mxu0
  %v9908 = vadd.f32 %v9859, %v9907
  %v9909 = vpop.f32.mrf.mxu0
  %v9910 = vadd.f32 %v9861, %v9909
  %9911 = vmatmul.bf16.gmra.mxu0 %v6558
  %v9912 = vpop.f32.mrf.mxu0
  %v9913 = vadd.f32 %v9864, %v9912
  %v9914 = vpop.f32.mrf.mxu0
  %v9915 = vadd.f32 %v9866, %v9914
  %9916 = vdwg.mxu0
  %9917 = vmatpush.bf16.msra.mxu0 %v8309
  %9918 = vmatpush.bf16.msra.mxu0 %v8307
  %9919 = vmatpush.bf16.msra.mxu0 %v8305
  %9920 = vmatpush.bf16.msra.mxu0 %v8303
  %9921 = vmatpush.bf16.msra.mxu0 %v8301
  %9922 = vmatpush.bf16.msra.mxu0 %v8299
  %9923 = vmatpush.bf16.msra.mxu0 %v8297
  %9924 = vmatpush.bf16.msra.mxu0 %v8295
  %9925 = vmatmul.bf16.gmra.mxu0 %v6545
  %v9926 = vpop.f32.mrf.mxu0
  %v9927 = vadd.f32 %v9878, %v9926
  %v9928 = vpop.f32.mrf.mxu0
  %v9929 = vadd.f32 %v9880, %v9928
  %9930 = vmatmul.bf16.gmra.mxu0 %v6547
  %v9931 = vpop.f32.mrf.mxu0
  %v9932 = vadd.f32 %v9883, %v9931
  %v9933 = vpop.f32.mrf.mxu0
  %v9934 = vadd.f32 %v9885, %v9933
  %9935 = vmatmul.bf16.gmra.mxu0 %v6549
  %v9936 = vpop.f32.mrf.mxu0
  %v9937 = vadd.f32 %v9888, %v9936
  %v9938 = vpop.f32.mrf.mxu0
  %v9939 = vadd.f32 %v9890, %v9938
  %9940 = vmatmul.bf16.gmra.mxu0 %v6551
  %v9941 = vpop.f32.mrf.mxu0
  %v9942 = vadd.f32 %v9893, %v9941
  %v9943 = vpop.f32.mrf.mxu0
  %v9944 = vadd.f32 %v9895, %v9943
  %9945 = vmatmul.bf16.gmra.mxu0 %v6553
  %v9946 = vpop.f32.mrf.mxu0
  %v9947 = vadd.f32 %v9898, %v9946
  %v9948 = vpop.f32.mrf.mxu0
  %v9949 = vadd.f32 %v9900, %v9948
  %9950 = vmatmul.bf16.gmra.mxu0 %v6555
  %v9951 = vpop.f32.mrf.mxu0
  %v9952 = vadd.f32 %v9903, %v9951
  %v9953 = vpop.f32.mrf.mxu0
  %v9954 = vadd.f32 %v9905, %v9953
  %9955 = vmatmul.bf16.gmra.mxu0 %v6557
  %v9956 = vpop.f32.mrf.mxu0
  %v9957 = vadd.f32 %v9908, %v9956
  %v9958 = vpop.f32.mrf.mxu0
  %v9959 = vadd.f32 %v9910, %v9958
  %9960 = vmatmul.bf16.gmra.mxu0 %v6559
  %v9961 = vpop.f32.mrf.mxu0
  %v9962 = vadd.f32 %v9913, %v9961
  %v9963 = vpop.f32.mrf.mxu0
  %v9964 = vadd.f32 %v9915, %v9963
  %9965 = vdwg.mxu0
  %9966 = vmatpush.bf16.msra.mxu0 %v8325
  %9967 = vmatpush.bf16.msra.mxu0 %v8323
  %9968 = vmatpush.bf16.msra.mxu0 %v8321
  %9969 = vmatpush.bf16.msra.mxu0 %v8319
  %9970 = vmatpush.bf16.msra.mxu0 %v8317
  %9971 = vmatpush.bf16.msra.mxu0 %v8315
  %9972 = vmatpush.bf16.msra.mxu0 %v8313
  %9973 = vmatpush.bf16.msra.mxu0 %v8311
  %9974 = vmatmul.bf16.gmra.mxu0 %v6624
  %v9975 = vpop.f32.mrf.mxu0
  %v9976 = vadd.f32 %v9927, %v9975
  %v9977 = vpop.f32.mrf.mxu0
  %v9978 = vadd.f32 %v9929, %v9977
  %9979 = vmatmul.bf16.gmra.mxu0 %v6626
  %v9980 = vpop.f32.mrf.mxu0
  %v9981 = vadd.f32 %v9932, %v9980
  %v9982 = vpop.f32.mrf.mxu0
  %v9983 = vadd.f32 %v9934, %v9982
  %9984 = vmatmul.bf16.gmra.mxu0 %v6628
  %v9985 = vpop.f32.mrf.mxu0
  %v9986 = vadd.f32 %v9937, %v9985
  %v9987 = vpop.f32.mrf.mxu0
  %v9988 = vadd.f32 %v9939, %v9987
  %9989 = vmatmul.bf16.gmra.mxu0 %v6630
  %v9990 = vpop.f32.mrf.mxu0
  %v9991 = vadd.f32 %v9942, %v9990
  %v9992 = vpop.f32.mrf.mxu0
  %v9993 = vadd.f32 %v9944, %v9992
  %9994 = vmatmul.bf16.gmra.mxu0 %v6632
  %v9995 = vpop.f32.mrf.mxu0
  %v9996 = vadd.f32 %v9947, %v9995
  %v9997 = vpop.f32.mrf.mxu0
  %v9998 = vadd.f32 %v9949, %v9997
  %9999 = vmatmul.bf16.gmra.mxu0 %v6634
  %v10000 = vpop.f32.mrf.mxu0
  %v10001 = vadd.f32 %v9952, %v10000
  %v10002 = vpop.f32.mrf.mxu0
  %v10003 = vadd.f32 %v9954, %v10002
  %10004 = vmatmul.bf16.gmra.mxu0 %v6636
  %v10005 = vpop.f32.mrf.mxu0
  %v10006 = vadd.f32 %v9957, %v10005
  %v10007 = vpop.f32.mrf.mxu0
  %v10008 = vadd.f32 %v9959, %v10007
  %10009 = vmatmul.bf16.gmra.mxu0 %v6638
  %v10010 = vpop.f32.mrf.mxu0
  %v10011 = vadd.f32 %v9962, %v10010
  %v10012 = vpop.f32.mrf.mxu0
  %v10013 = vadd.f32 %v9964, %v10012
  %10014 = vdwg.mxu0
  %10015 = vmatpush.bf16.msra.mxu0 %v8341
  %10016 = vmatpush.bf16.msra.mxu0 %v8339
  %10017 = vmatpush.bf16.msra.mxu0 %v8337
  %10018 = vmatpush.bf16.msra.mxu0 %v8335
  %10019 = vmatpush.bf16.msra.mxu0 %v8333
  %10020 = vmatpush.bf16.msra.mxu0 %v8331
  %10021 = vmatpush.bf16.msra.mxu0 %v8329
  %10022 = vmatpush.bf16.msra.mxu0 %v8327
  %10023 = vmatmul.bf16.gmra.mxu0 %v6625
  %v10024 = vpop.f32.mrf.mxu0
  %v10025 = vadd.f32 %v9976, %v10024
  %v10026 = vpop.f32.mrf.mxu0
  %v10027 = vadd.f32 %v9978, %v10026
  %10028 = vmatmul.bf16.gmra.mxu0 %v6627
  %v10029 = vpop.f32.mrf.mxu0
  %v10030 = vadd.f32 %v9981, %v10029
  %v10031 = vpop.f32.mrf.mxu0
  %v10032 = vadd.f32 %v9983, %v10031
  %10033 = vmatmul.bf16.gmra.mxu0 %v6629
  %v10034 = vpop.f32.mrf.mxu0
  %v10035 = vadd.f32 %v9986, %v10034
  %v10036 = vpop.f32.mrf.mxu0
  %v10037 = vadd.f32 %v9988, %v10036
  %10038 = vmatmul.bf16.gmra.mxu0 %v6631
  %v10039 = vpop.f32.mrf.mxu0
  %v10040 = vadd.f32 %v9991, %v10039
  %v10041 = vpop.f32.mrf.mxu0
  %v10042 = vadd.f32 %v9993, %v10041
  %10043 = vmatmul.bf16.gmra.mxu0 %v6633
  %v10044 = vpop.f32.mrf.mxu0
  %v10045 = vadd.f32 %v9996, %v10044
  %v10046 = vpop.f32.mrf.mxu0
  %v10047 = vadd.f32 %v9998, %v10046
  %10048 = vmatmul.bf16.gmra.mxu0 %v6635
  %v10049 = vpop.f32.mrf.mxu0
  %v10050 = vadd.f32 %v10001, %v10049
  %v10051 = vpop.f32.mrf.mxu0
  %v10052 = vadd.f32 %v10003, %v10051
  %10053 = vmatmul.bf16.gmra.mxu0 %v6637
  %v10054 = vpop.f32.mrf.mxu0
  %v10055 = vadd.f32 %v10006, %v10054
  %v10056 = vpop.f32.mrf.mxu0
  %v10057 = vadd.f32 %v10008, %v10056
  %10058 = vmatmul.bf16.gmra.mxu0 %v6639
  %v10059 = vpop.f32.mrf.mxu0
  %v10060 = vadd.f32 %v10011, %v10059
  %v10061 = vpop.f32.mrf.mxu0
  %v10062 = vadd.f32 %v10013, %v10061
  %10063 = vdwg.mxu0
  %10064 = vmatpush.bf16.msra.mxu0 %v8357
  %10065 = vmatpush.bf16.msra.mxu0 %v8355
  %10066 = vmatpush.bf16.msra.mxu0 %v8353
  %10067 = vmatpush.bf16.msra.mxu0 %v8351
  %10068 = vmatpush.bf16.msra.mxu0 %v8349
  %10069 = vmatpush.bf16.msra.mxu0 %v8347
  %10070 = vmatpush.bf16.msra.mxu0 %v8345
  %10071 = vmatpush.bf16.msra.mxu0 %v8343
  %10072 = vmatmul.bf16.gmra.mxu0 %v6704
  %v10073 = vpop.f32.mrf.mxu0
  %v10074 = vadd.f32 %v10025, %v10073
  %v10075 = vpop.f32.mrf.mxu0
  %v10076 = vadd.f32 %v10027, %v10075
  %10077 = vmatmul.bf16.gmra.mxu0 %v6706
  %v10078 = vpop.f32.mrf.mxu0
  %v10079 = vadd.f32 %v10030, %v10078
  %v10080 = vpop.f32.mrf.mxu0
  %v10081 = vadd.f32 %v10032, %v10080
  %10082 = vmatmul.bf16.gmra.mxu0 %v6708
  %v10083 = vpop.f32.mrf.mxu0
  %v10084 = vadd.f32 %v10035, %v10083
  %v10085 = vpop.f32.mrf.mxu0
  %v10086 = vadd.f32 %v10037, %v10085
  %10087 = vmatmul.bf16.gmra.mxu0 %v6710
  %v10088 = vpop.f32.mrf.mxu0
  %v10089 = vadd.f32 %v10040, %v10088
  %v10090 = vpop.f32.mrf.mxu0
  %v10091 = vadd.f32 %v10042, %v10090
  %10092 = vmatmul.bf16.gmra.mxu0 %v6712
  %v10093 = vpop.f32.mrf.mxu0
  %v10094 = vadd.f32 %v10045, %v10093
  %v10095 = vpop.f32.mrf.mxu0
  %v10096 = vadd.f32 %v10047, %v10095
  %10097 = vmatmul.bf16.gmra.mxu0 %v6714
  %v10098 = vpop.f32.mrf.mxu0
  %v10099 = vadd.f32 %v10050, %v10098
  %v10100 = vpop.f32.mrf.mxu0
  %v10101 = vadd.f32 %v10052, %v10100
  %10102 = vmatmul.bf16.gmra.mxu0 %v6716
  %v10103 = vpop.f32.mrf.mxu0
  %v10104 = vadd.f32 %v10055, %v10103
  %v10105 = vpop.f32.mrf.mxu0
  %v10106 = vadd.f32 %v10057, %v10105
  %10107 = vmatmul.bf16.gmra.mxu0 %v6718
  %v10108 = vpop.f32.mrf.mxu0
  %v10109 = vadd.f32 %v10060, %v10108
  %v10110 = vpop.f32.mrf.mxu0
  %v10111 = vadd.f32 %v10062, %v10110
  %10112 = vdwg.mxu0
  %10113 = vmatpush.bf16.msra.mxu0 %v8373
  %10114 = vmatpush.bf16.msra.mxu0 %v8371
  %10115 = vmatpush.bf16.msra.mxu0 %v8369
  %10116 = vmatpush.bf16.msra.mxu0 %v8367
  %10117 = vmatpush.bf16.msra.mxu0 %v8365
  %10118 = vmatpush.bf16.msra.mxu0 %v8363
  %10119 = vmatpush.bf16.msra.mxu0 %v8361
  %10120 = vmatpush.bf16.msra.mxu0 %v8359
  %10121 = vmatmul.bf16.gmra.mxu0 %v6705
  %v10122 = vpop.f32.mrf.mxu0
  %v10123 = vadd.f32 %v10074, %v10122
  %v10124 = vpop.f32.mrf.mxu0
  %v10125 = vadd.f32 %v10076, %v10124
  %10126 = vmatmul.bf16.gmra.mxu0 %v6707
  %v10127 = vpop.f32.mrf.mxu0
  %v10128 = vadd.f32 %v10079, %v10127
  %v10129 = vpop.f32.mrf.mxu0
  %v10130 = vadd.f32 %v10081, %v10129
  %10131 = vmatmul.bf16.gmra.mxu0 %v6709
  %v10132 = vpop.f32.mrf.mxu0
  %v10133 = vadd.f32 %v10084, %v10132
  %v10134 = vpop.f32.mrf.mxu0
  %v10135 = vadd.f32 %v10086, %v10134
  %10136 = vmatmul.bf16.gmra.mxu0 %v6711
  %v10137 = vpop.f32.mrf.mxu0
  %v10138 = vadd.f32 %v10089, %v10137
  %v10139 = vpop.f32.mrf.mxu0
  %v10140 = vadd.f32 %v10091, %v10139
  %10141 = vmatmul.bf16.gmra.mxu0 %v6713
  %v10142 = vpop.f32.mrf.mxu0
  %v10143 = vadd.f32 %v10094, %v10142
  %v10144 = vpop.f32.mrf.mxu0
  %v10145 = vadd.f32 %v10096, %v10144
  %10146 = vmatmul.bf16.gmra.mxu0 %v6715
  %v10147 = vpop.f32.mrf.mxu0
  %v10148 = vadd.f32 %v10099, %v10147
  %v10149 = vpop.f32.mrf.mxu0
  %v10150 = vadd.f32 %v10101, %v10149
  %10151 = vmatmul.bf16.gmra.mxu0 %v6717
  %v10152 = vpop.f32.mrf.mxu0
  %v10153 = vadd.f32 %v10104, %v10152
  %v10154 = vpop.f32.mrf.mxu0
  %v10155 = vadd.f32 %v10106, %v10154
  %10156 = vmatmul.bf16.gmra.mxu0 %v6719
  %v10157 = vpop.f32.mrf.mxu0
  %v10158 = vadd.f32 %v10109, %v10157
  %v10159 = vpop.f32.mrf.mxu0
  %v10160 = vadd.f32 %v10111, %v10159
  %10161 = vdwg.mxu0
  %10162 = vmatpush.bf16.msra.mxu0 %v8389
  %10163 = vmatpush.bf16.msra.mxu0 %v8387
  %10164 = vmatpush.bf16.msra.mxu0 %v8385
  %10165 = vmatpush.bf16.msra.mxu0 %v8383
  %10166 = vmatpush.bf16.msra.mxu0 %v8381
  %10167 = vmatpush.bf16.msra.mxu0 %v8379
  %10168 = vmatpush.bf16.msra.mxu0 %v8377
  %10169 = vmatpush.bf16.msra.mxu0 %v8375
  %10170 = vmatmul.bf16.gmra.mxu0 %v6784
  %v10171 = vpop.f32.mrf.mxu0
  %v10172 = vadd.f32 %v10123, %v10171
  %v10173 = vpop.f32.mrf.mxu0
  %v10174 = vadd.f32 %v10125, %v10173
  %10175 = vmatmul.bf16.gmra.mxu0 %v6786
  %v10176 = vpop.f32.mrf.mxu0
  %v10177 = vadd.f32 %v10128, %v10176
  %v10178 = vpop.f32.mrf.mxu0
  %v10179 = vadd.f32 %v10130, %v10178
  %10180 = vmatmul.bf16.gmra.mxu0 %v6788
  %v10181 = vpop.f32.mrf.mxu0
  %v10182 = vadd.f32 %v10133, %v10181
  %v10183 = vpop.f32.mrf.mxu0
  %v10184 = vadd.f32 %v10135, %v10183
  %10185 = vmatmul.bf16.gmra.mxu0 %v6790
  %v10186 = vpop.f32.mrf.mxu0
  %v10187 = vadd.f32 %v10138, %v10186
  %v10188 = vpop.f32.mrf.mxu0
  %v10189 = vadd.f32 %v10140, %v10188
  %10190 = vmatmul.bf16.gmra.mxu0 %v6792
  %v10191 = vpop.f32.mrf.mxu0
  %v10192 = vadd.f32 %v10143, %v10191
  %v10193 = vpop.f32.mrf.mxu0
  %v10194 = vadd.f32 %v10145, %v10193
  %10195 = vmatmul.bf16.gmra.mxu0 %v6794
  %v10196 = vpop.f32.mrf.mxu0
  %v10197 = vadd.f32 %v10148, %v10196
  %v10198 = vpop.f32.mrf.mxu0
  %v10199 = vadd.f32 %v10150, %v10198
  %10200 = vmatmul.bf16.gmra.mxu0 %v6796
  %v10201 = vpop.f32.mrf.mxu0
  %v10202 = vadd.f32 %v10153, %v10201
  %v10203 = vpop.f32.mrf.mxu0
  %v10204 = vadd.f32 %v10155, %v10203
  %10205 = vmatmul.bf16.gmra.mxu0 %v6798
  %v10206 = vpop.f32.mrf.mxu0
  %v10207 = vadd.f32 %v10158, %v10206
  %v10208 = vpop.f32.mrf.mxu0
  %v10209 = vadd.f32 %v10160, %v10208
  %10210 = vdwg.mxu0
  %10211 = vmatpush.bf16.msra.mxu0 %v8405
  %10212 = vmatpush.bf16.msra.mxu0 %v8403
  %10213 = vmatpush.bf16.msra.mxu0 %v8401
  %10214 = vmatpush.bf16.msra.mxu0 %v8399
  %10215 = vmatpush.bf16.msra.mxu0 %v8397
  %10216 = vmatpush.bf16.msra.mxu0 %v8395
  %10217 = vmatpush.bf16.msra.mxu0 %v8393
  %10218 = vmatpush.bf16.msra.mxu0 %v8391
  %10219 = vmatmul.bf16.gmra.mxu0 %v6785
  %v10220 = vpop.f32.mrf.mxu0
  %v10221 = vadd.f32 %v10172, %v10220
  %v10222 = vpop.f32.mrf.mxu0
  %v10223 = vadd.f32 %v10174, %v10222
  %10224 = vmatmul.bf16.gmra.mxu0 %v6787
  %v10225 = vpop.f32.mrf.mxu0
  %v10226 = vadd.f32 %v10177, %v10225
  %v10227 = vpop.f32.mrf.mxu0
  %v10228 = vadd.f32 %v10179, %v10227
  %10229 = vmatmul.bf16.gmra.mxu0 %v6789
  %v10230 = vpop.f32.mrf.mxu0
  %v10231 = vadd.f32 %v10182, %v10230
  %v10232 = vpop.f32.mrf.mxu0
  %v10233 = vadd.f32 %v10184, %v10232
  %10234 = vmatmul.bf16.gmra.mxu0 %v6791
  %v10235 = vpop.f32.mrf.mxu0
  %v10236 = vadd.f32 %v10187, %v10235
  %v10237 = vpop.f32.mrf.mxu0
  %v10238 = vadd.f32 %v10189, %v10237
  %10239 = vmatmul.bf16.gmra.mxu0 %v6793
  %v10240 = vpop.f32.mrf.mxu0
  %v10241 = vadd.f32 %v10192, %v10240
  %v10242 = vpop.f32.mrf.mxu0
  %v10243 = vadd.f32 %v10194, %v10242
  %10244 = vmatmul.bf16.gmra.mxu0 %v6795
  %v10245 = vpop.f32.mrf.mxu0
  %v10246 = vadd.f32 %v10197, %v10245
  %v10247 = vpop.f32.mrf.mxu0
  %v10248 = vadd.f32 %v10199, %v10247
  %10249 = vmatmul.bf16.gmra.mxu0 %v6797
  %v10250 = vpop.f32.mrf.mxu0
  %v10251 = vadd.f32 %v10202, %v10250
  %v10252 = vpop.f32.mrf.mxu0
  %v10253 = vadd.f32 %v10204, %v10252
  %10254 = vmatmul.bf16.gmra.mxu0 %v6799
  %v10255 = vpop.f32.mrf.mxu0
  %v10256 = vadd.f32 %v10207, %v10255
  %v10257 = vpop.f32.mrf.mxu0
  %v10258 = vadd.f32 %v10209, %v10257
  %10259 = vdwg.mxu0
  %10260 = vmatpush.bf16.msra.mxu0 %v8421
  %10261 = vmatpush.bf16.msra.mxu0 %v8419
  %10262 = vmatpush.bf16.msra.mxu0 %v8417
  %10263 = vmatpush.bf16.msra.mxu0 %v8415
  %10264 = vmatpush.bf16.msra.mxu0 %v8413
  %10265 = vmatpush.bf16.msra.mxu0 %v8411
  %10266 = vmatpush.bf16.msra.mxu0 %v8409
  %10267 = vmatpush.bf16.msra.mxu0 %v8407
  %10268 = vmatmul.bf16.gmra.mxu0 %v6864
  %v10269 = vpop.f32.mrf.mxu0
  %v10270 = vadd.f32 %v10221, %v10269
  %v10271 = vpop.f32.mrf.mxu0
  %v10272 = vadd.f32 %v10223, %v10271
  %10273 = vmatmul.bf16.gmra.mxu0 %v6866
  %v10274 = vpop.f32.mrf.mxu0
  %v10275 = vadd.f32 %v10226, %v10274
  %v10276 = vpop.f32.mrf.mxu0
  %v10277 = vadd.f32 %v10228, %v10276
  %10278 = vmatmul.bf16.gmra.mxu0 %v6868
  %v10279 = vpop.f32.mrf.mxu0
  %v10280 = vadd.f32 %v10231, %v10279
  %v10281 = vpop.f32.mrf.mxu0
  %v10282 = vadd.f32 %v10233, %v10281
  %10283 = vmatmul.bf16.gmra.mxu0 %v6870
  %v10284 = vpop.f32.mrf.mxu0
  %v10285 = vadd.f32 %v10236, %v10284
  %v10286 = vpop.f32.mrf.mxu0
  %v10287 = vadd.f32 %v10238, %v10286
  %10288 = vmatmul.bf16.gmra.mxu0 %v6872
  %v10289 = vpop.f32.mrf.mxu0
  %v10290 = vadd.f32 %v10241, %v10289
  %v10291 = vpop.f32.mrf.mxu0
  %v10292 = vadd.f32 %v10243, %v10291
  %10293 = vmatmul.bf16.gmra.mxu0 %v6874
  %v10294 = vpop.f32.mrf.mxu0
  %v10295 = vadd.f32 %v10246, %v10294
  %v10296 = vpop.f32.mrf.mxu0
  %v10297 = vadd.f32 %v10248, %v10296
  %10298 = vmatmul.bf16.gmra.mxu0 %v6876
  %v10299 = vpop.f32.mrf.mxu0
  %v10300 = vadd.f32 %v10251, %v10299
  %v10301 = vpop.f32.mrf.mxu0
  %v10302 = vadd.f32 %v10253, %v10301
  %10303 = vmatmul.bf16.gmra.mxu0 %v6878
  %v10304 = vpop.f32.mrf.mxu0
  %v10305 = vadd.f32 %v10256, %v10304
  %v10306 = vpop.f32.mrf.mxu0
  %v10307 = vadd.f32 %v10258, %v10306
  %10308 = vdwg.mxu0
  %10309 = vmatpush.bf16.msra.mxu0 %v8437
  %10310 = vmatpush.bf16.msra.mxu0 %v8435
  %10311 = vmatpush.bf16.msra.mxu0 %v8433
  %10312 = vmatpush.bf16.msra.mxu0 %v8431
  %10313 = vmatpush.bf16.msra.mxu0 %v8429
  %10314 = vmatpush.bf16.msra.mxu0 %v8427
  %10315 = vmatpush.bf16.msra.mxu0 %v8425
  %10316 = vmatpush.bf16.msra.mxu0 %v8423
  %10317 = vmatmul.bf16.gmra.mxu0 %v6865
  %v10318 = vpop.f32.mrf.mxu0
  %v10319 = vadd.f32 %v10270, %v10318
  %v10320 = vpop.f32.mrf.mxu0
  %v10321 = vadd.f32 %v10272, %v10320
  %10322 = vmatmul.bf16.gmra.mxu0 %v6867
  %v10323 = vpop.f32.mrf.mxu0
  %v10324 = vadd.f32 %v10275, %v10323
  %v10325 = vpop.f32.mrf.mxu0
  %v10326 = vadd.f32 %v10277, %v10325
  %10327 = vmatmul.bf16.gmra.mxu0 %v6869
  %v10328 = vpop.f32.mrf.mxu0
  %v10329 = vadd.f32 %v10280, %v10328
  %v10330 = vpop.f32.mrf.mxu0
  %v10331 = vadd.f32 %v10282, %v10330
  %10332 = vmatmul.bf16.gmra.mxu0 %v6871
  %v10333 = vpop.f32.mrf.mxu0
  %v10334 = vadd.f32 %v10285, %v10333
  %v10335 = vpop.f32.mrf.mxu0
  %v10336 = vadd.f32 %v10287, %v10335
  %10337 = vmatmul.bf16.gmra.mxu0 %v6873
  %v10338 = vpop.f32.mrf.mxu0
  %v10339 = vadd.f32 %v10290, %v10338
  %v10340 = vpop.f32.mrf.mxu0
  %v10341 = vadd.f32 %v10292, %v10340
  %10342 = vmatmul.bf16.gmra.mxu0 %v6875
  %v10343 = vpop.f32.mrf.mxu0
  %v10344 = vadd.f32 %v10295, %v10343
  %v10345 = vpop.f32.mrf.mxu0
  %v10346 = vadd.f32 %v10297, %v10345
  %10347 = vmatmul.bf16.gmra.mxu0 %v6877
  %v10348 = vpop.f32.mrf.mxu0
  %v10349 = vadd.f32 %v10300, %v10348
  %v10350 = vpop.f32.mrf.mxu0
  %v10351 = vadd.f32 %v10302, %v10350
  %10352 = vmatmul.bf16.gmra.mxu0 %v6879
  %v10353 = vpop.f32.mrf.mxu0
  %v10354 = vadd.f32 %v10305, %v10353
  %v10355 = vpop.f32.mrf.mxu0
  %v10356 = vadd.f32 %v10307, %v10355
  %10357 = vdwg.mxu0
  %10358 = vmatpush.bf16.msra.mxu0 %v8453
  %10359 = vmatpush.bf16.msra.mxu0 %v8451
  %10360 = vmatpush.bf16.msra.mxu0 %v8449
  %10361 = vmatpush.bf16.msra.mxu0 %v8447
  %10362 = vmatpush.bf16.msra.mxu0 %v8445
  %10363 = vmatpush.bf16.msra.mxu0 %v8443
  %10364 = vmatpush.bf16.msra.mxu0 %v8441
  %10365 = vmatpush.bf16.msra.mxu0 %v8439
  %10366 = vmatmul.bf16.gmra.mxu0 %v6944
  %v10367 = vpop.f32.mrf.mxu0
  %v10368 = vadd.f32 %v10319, %v10367
  %v10369 = vpop.f32.mrf.mxu0
  %v10370 = vadd.f32 %v10321, %v10369
  %10371 = vmatmul.bf16.gmra.mxu0 %v6946
  %v10372 = vpop.f32.mrf.mxu0
  %v10373 = vadd.f32 %v10324, %v10372
  %v10374 = vpop.f32.mrf.mxu0
  %v10375 = vadd.f32 %v10326, %v10374
  %10376 = vmatmul.bf16.gmra.mxu0 %v6948
  %v10377 = vpop.f32.mrf.mxu0
  %v10378 = vadd.f32 %v10329, %v10377
  %v10379 = vpop.f32.mrf.mxu0
  %v10380 = vadd.f32 %v10331, %v10379
  %10381 = vmatmul.bf16.gmra.mxu0 %v6950
  %v10382 = vpop.f32.mrf.mxu0
  %v10383 = vadd.f32 %v10334, %v10382
  %v10384 = vpop.f32.mrf.mxu0
  %v10385 = vadd.f32 %v10336, %v10384
  %10386 = vmatmul.bf16.gmra.mxu0 %v6952
  %v10387 = vpop.f32.mrf.mxu0
  %v10388 = vadd.f32 %v10339, %v10387
  %v10389 = vpop.f32.mrf.mxu0
  %v10390 = vadd.f32 %v10341, %v10389
  %10391 = vmatmul.bf16.gmra.mxu0 %v6954
  %v10392 = vpop.f32.mrf.mxu0
  %v10393 = vadd.f32 %v10344, %v10392
  %v10394 = vpop.f32.mrf.mxu0
  %v10395 = vadd.f32 %v10346, %v10394
  %10396 = vmatmul.bf16.gmra.mxu0 %v6956
  %v10397 = vpop.f32.mrf.mxu0
  %v10398 = vadd.f32 %v10349, %v10397
  %v10399 = vpop.f32.mrf.mxu0
  %v10400 = vadd.f32 %v10351, %v10399
  %10401 = vmatmul.bf16.gmra.mxu0 %v6958
  %v10402 = vpop.f32.mrf.mxu0
  %v10403 = vadd.f32 %v10354, %v10402
  %v10404 = vpop.f32.mrf.mxu0
  %v10405 = vadd.f32 %v10356, %v10404
  %10406 = vdwg.mxu0
  %10407 = vmatpush.bf16.msra.mxu0 %v8469
  %10408 = vmatpush.bf16.msra.mxu0 %v8467
  %10409 = vmatpush.bf16.msra.mxu0 %v8465
  %10410 = vmatpush.bf16.msra.mxu0 %v8463
  %10411 = vmatpush.bf16.msra.mxu0 %v8461
  %10412 = vmatpush.bf16.msra.mxu0 %v8459
  %10413 = vmatpush.bf16.msra.mxu0 %v8457
  %10414 = vmatpush.bf16.msra.mxu0 %v8455
  %10415 = vmatmul.bf16.gmra.mxu0 %v6945
  %v10416 = vpop.f32.mrf.mxu0
  %v10417 = vadd.f32 %v10368, %v10416
  %v10418 = vpop.f32.mrf.mxu0
  %v10419 = vadd.f32 %v10370, %v10418
  %10420 = vmatmul.bf16.gmra.mxu0 %v6947
  %v10421 = vpop.f32.mrf.mxu0
  %v10422 = vadd.f32 %v10373, %v10421
  %v10423 = vpop.f32.mrf.mxu0
  %v10424 = vadd.f32 %v10375, %v10423
  %10425 = vmatmul.bf16.gmra.mxu0 %v6949
  %v10426 = vpop.f32.mrf.mxu0
  %v10427 = vadd.f32 %v10378, %v10426
  %v10428 = vpop.f32.mrf.mxu0
  %v10429 = vadd.f32 %v10380, %v10428
  %10430 = vmatmul.bf16.gmra.mxu0 %v6951
  %v10431 = vpop.f32.mrf.mxu0
  %v10432 = vadd.f32 %v10383, %v10431
  %v10433 = vpop.f32.mrf.mxu0
  %v10434 = vadd.f32 %v10385, %v10433
  %10435 = vmatmul.bf16.gmra.mxu0 %v6953
  %v10436 = vpop.f32.mrf.mxu0
  %v10437 = vadd.f32 %v10388, %v10436
  %v10438 = vpop.f32.mrf.mxu0
  %v10439 = vadd.f32 %v10390, %v10438
  %10440 = vmatmul.bf16.gmra.mxu0 %v6955
  %v10441 = vpop.f32.mrf.mxu0
  %v10442 = vadd.f32 %v10393, %v10441
  %v10443 = vpop.f32.mrf.mxu0
  %v10444 = vadd.f32 %v10395, %v10443
  %10445 = vmatmul.bf16.gmra.mxu0 %v6957
  %v10446 = vpop.f32.mrf.mxu0
  %v10447 = vadd.f32 %v10398, %v10446
  %v10448 = vpop.f32.mrf.mxu0
  %v10449 = vadd.f32 %v10400, %v10448
  %10450 = vmatmul.bf16.gmra.mxu0 %v6959
  %v10451 = vpop.f32.mrf.mxu0
  %v10452 = vadd.f32 %v10403, %v10451
  %v10453 = vpop.f32.mrf.mxu0
  %v10454 = vadd.f32 %v10405, %v10453
  %10455 = vdwg.mxu0
  %10456 = vmatpush.bf16.msra.mxu0 %v8485
  %10457 = vmatpush.bf16.msra.mxu0 %v8483
  %10458 = vmatpush.bf16.msra.mxu0 %v8481
  %10459 = vmatpush.bf16.msra.mxu0 %v8479
  %10460 = vmatpush.bf16.msra.mxu0 %v8477
  %10461 = vmatpush.bf16.msra.mxu0 %v8475
  %10462 = vmatpush.bf16.msra.mxu0 %v8473
  %10463 = vmatpush.bf16.msra.mxu0 %v8471
  %10464 = vmatmul.bf16.gmra.mxu0 %v7024
  %v10465 = vpop.f32.mrf.mxu0
  %v10466 = vadd.f32 %v10417, %v10465
  %v10467 = vpop.f32.mrf.mxu0
  %v10468 = vadd.f32 %v10419, %v10467
  %10469 = vmatmul.bf16.gmra.mxu0 %v7026
  %v10470 = vpop.f32.mrf.mxu0
  %v10471 = vadd.f32 %v10422, %v10470
  %v10472 = vpop.f32.mrf.mxu0
  %v10473 = vadd.f32 %v10424, %v10472
  %10474 = vmatmul.bf16.gmra.mxu0 %v7028
  %v10475 = vpop.f32.mrf.mxu0
  %v10476 = vadd.f32 %v10427, %v10475
  %v10477 = vpop.f32.mrf.mxu0
  %v10478 = vadd.f32 %v10429, %v10477
  %10479 = vmatmul.bf16.gmra.mxu0 %v7030
  %v10480 = vpop.f32.mrf.mxu0
  %v10481 = vadd.f32 %v10432, %v10480
  %v10482 = vpop.f32.mrf.mxu0
  %v10483 = vadd.f32 %v10434, %v10482
  %10484 = vmatmul.bf16.gmra.mxu0 %v7032
  %v10485 = vpop.f32.mrf.mxu0
  %v10486 = vadd.f32 %v10437, %v10485
  %v10487 = vpop.f32.mrf.mxu0
  %v10488 = vadd.f32 %v10439, %v10487
  %10489 = vmatmul.bf16.gmra.mxu0 %v7034
  %v10490 = vpop.f32.mrf.mxu0
  %v10491 = vadd.f32 %v10442, %v10490
  %v10492 = vpop.f32.mrf.mxu0
  %v10493 = vadd.f32 %v10444, %v10492
  %10494 = vmatmul.bf16.gmra.mxu0 %v7036
  %v10495 = vpop.f32.mrf.mxu0
  %v10496 = vadd.f32 %v10447, %v10495
  %v10497 = vpop.f32.mrf.mxu0
  %v10498 = vadd.f32 %v10449, %v10497
  %10499 = vmatmul.bf16.gmra.mxu0 %v7038
  %v10500 = vpop.f32.mrf.mxu0
  %v10501 = vadd.f32 %v10452, %v10500
  %v10502 = vpop.f32.mrf.mxu0
  %v10503 = vadd.f32 %v10454, %v10502
  %10504 = vdwg.mxu0
  %10505 = vmatpush.bf16.msra.mxu0 %v8501
  %10506 = vmatpush.bf16.msra.mxu0 %v8499
  %10507 = vmatpush.bf16.msra.mxu0 %v8497
  %10508 = vmatpush.bf16.msra.mxu0 %v8495
  %10509 = vmatpush.bf16.msra.mxu0 %v8493
  %10510 = vmatpush.bf16.msra.mxu0 %v8491
  %10511 = vmatpush.bf16.msra.mxu0 %v8489
  %10512 = vmatpush.bf16.msra.mxu0 %v8487
  %10513 = vmatmul.bf16.gmra.mxu0 %v7025
  %v10514 = vpop.f32.mrf.mxu0
  %v10515 = vadd.f32 %v10466, %v10514
  %v10516 = vpop.f32.mrf.mxu0
  %v10517 = vadd.f32 %v10468, %v10516
  %10518 = vmatmul.bf16.gmra.mxu0 %v7027
  %v10519 = vpop.f32.mrf.mxu0
  %v10520 = vadd.f32 %v10471, %v10519
  %v10521 = vpop.f32.mrf.mxu0
  %v10522 = vadd.f32 %v10473, %v10521
  %10523 = vmatmul.bf16.gmra.mxu0 %v7029
  %v10524 = vpop.f32.mrf.mxu0
  %v10525 = vadd.f32 %v10476, %v10524
  %v10526 = vpop.f32.mrf.mxu0
  %v10527 = vadd.f32 %v10478, %v10526
  %10528 = vmatmul.bf16.gmra.mxu0 %v7031
  %v10529 = vpop.f32.mrf.mxu0
  %v10530 = vadd.f32 %v10481, %v10529
  %v10531 = vpop.f32.mrf.mxu0
  %v10532 = vadd.f32 %v10483, %v10531
  %10533 = vmatmul.bf16.gmra.mxu0 %v7033
  %v10534 = vpop.f32.mrf.mxu0
  %v10535 = vadd.f32 %v10486, %v10534
  %v10536 = vpop.f32.mrf.mxu0
  %v10537 = vadd.f32 %v10488, %v10536
  %10538 = vmatmul.bf16.gmra.mxu0 %v7035
  %v10539 = vpop.f32.mrf.mxu0
  %v10540 = vadd.f32 %v10491, %v10539
  %v10541 = vpop.f32.mrf.mxu0
  %v10542 = vadd.f32 %v10493, %v10541
  %10543 = vmatmul.bf16.gmra.mxu0 %v7037
  %v10544 = vpop.f32.mrf.mxu0
  %v10545 = vadd.f32 %v10496, %v10544
  %v10546 = vpop.f32.mrf.mxu0
  %v10547 = vadd.f32 %v10498, %v10546
  %10548 = vmatmul.bf16.gmra.mxu0 %v7039
  %v10549 = vpop.f32.mrf.mxu0
  %v10550 = vadd.f32 %v10501, %v10549
  %v10551 = vpop.f32.mrf.mxu0
  %v10552 = vadd.f32 %v10503, %v10551
  %10553 = vdwg.mxu0
  %v10554 = vmax.f32 %v9633, 0.0
  %v10555 = vmax.f32 %v10515, 0.0
  %v10556 = vmax.f32 %v9635, 0.0
  %v10557 = vmax.f32 %v10517, 0.0
  %v10558 = vmax.f32 %v9638, 0.0
  %v10559 = vmax.f32 %v10520, 0.0
  %v10560 = vmax.f32 %v9640, 0.0
  %v10561 = vmax.f32 %v10522, 0.0
  %v10562 = vmax.f32 %v9643, 0.0
  %v10563 = vmax.f32 %v10525, 0.0
  %v10564 = vmax.f32 %v9645, 0.0
  %v10565 = vmax.f32 %v10527, 0.0
  %v10566 = vmax.f32 %v9648, 0.0
  %v10567 = vmax.f32 %v10530, 0.0
  %v10568 = vmax.f32 %v9650, 0.0
  %v10569 = vmax.f32 %v10532, 0.0
  %v10570 = vmax.f32 %v9653, 0.0
  %v10571 = vmax.f32 %v10535, 0.0
  %v10572 = vmax.f32 %v9655, 0.0
  %v10573 = vmax.f32 %v10537, 0.0
  %v10574 = vmax.f32 %v9658, 0.0
  %v10575 = vmax.f32 %v10540, 0.0
  %v10576 = vmax.f32 %v9660, 0.0
  %v10577 = vmax.f32 %v10542, 0.0
  %v10578 = vmax.f32 %v9663, 0.0
  %v10579 = vmax.f32 %v10545, 0.0
  %v10580 = vmax.f32 %v9665, 0.0
  %v10581 = vmax.f32 %v10547, 0.0
  %v10582 = vmax.f32 %v9668, 0.0
  %v10583 = vmax.f32 %v10550, 0.0
  %v10584 = vmax.f32 %v9670, 0.0
  %v10585 = vmax.f32 %v10552, 0.0
  %v10586 = vpack.c.bf16 %v10556, %v10554
  %v10587 = vpack.c.bf16 %v10557, %v10555
  %v10588 = vpack.c.bf16 %v10560, %v10558
  %v10589 = vpack.c.bf16 %v10561, %v10559
  %v10590 = vpack.c.bf16 %v10564, %v10562
  %v10591 = vpack.c.bf16 %v10565, %v10563
  %v10592 = vpack.c.bf16 %v10568, %v10566
  %v10593 = vpack.c.bf16 %v10569, %v10567
  %v10594 = vpack.c.bf16 %v10572, %v10570
  %v10595 = vpack.c.bf16 %v10573, %v10571
  %v10596 = vpack.c.bf16 %v10576, %v10574
  %v10597 = vpack.c.bf16 %v10577, %v10575
  %v10598 = vpack.c.bf16 %v10580, %v10578
  %v10599 = vpack.c.bf16 %v10581, %v10579
  %v10600 = vpack.c.bf16 %v10584, %v10582
  %v10601 = vpack.c.bf16 %v10585, %v10583
  %v10602 = vld [vmem:[%s8] sm:$0xf]
  %v10603 = vld [vmem:[%s8 + $0x4] sm:$0xf]
  %v10604 = vld [vmem:[%s8 + $0x8] sm:$0xf]
  %v10605 = vld [vmem:[%s8 + $0xc] sm:$0xf]
  %v10606 = vld [vmem:[%s8 + $0x10] sm:$0xf]
  %v10607 = vld [vmem:[%s8 + $0x14] sm:$0xf]
  %v10608 = vld [vmem:[%s8 + $0x18] sm:$0xf]
  %v10609 = vld [vmem:[%s8 + $0x1c] sm:$0xf]
  %v10610 = vld [vmem:[%s8 + $0x20] sm:$0xf]
  %v10611 = vld [vmem:[%s8 + $0x24] sm:$0xf]
  %v10612 = vld [vmem:[%s8 + $0x28] sm:$0xf]
  %v10613 = vld [vmem:[%s8 + $0x2c] sm:$0xf]
  %v10614 = vld [vmem:[%s8 + $0x30] sm:$0xf]
  %v10615 = vld [vmem:[%s8 + $0x34] sm:$0xf]
  %v10616 = vld [vmem:[%s8 + $0x38] sm:$0xf]
  %v10617 = vld [vmem:[%s8 + $0x3c] sm:$0xf]
  %v10618 = vld [vmem:[%s8 + $0x40] sm:$0xf]
  %v10619 = vld [vmem:[%s8 + $0x44] sm:$0xf]
  %v10620 = vld [vmem:[%s8 + $0x48] sm:$0xf]
  %v10621 = vld [vmem:[%s8 + $0x4c] sm:$0xf]
  %v10622 = vld [vmem:[%s8 + $0x50] sm:$0xf]
  %v10623 = vld [vmem:[%s8 + $0x54] sm:$0xf]
  %v10624 = vld [vmem:[%s8 + $0x58] sm:$0xf]
  %v10625 = vld [vmem:[%s8 + $0x5c] sm:$0xf]
  %v10626 = vld [vmem:[%s8 + $0x60] sm:$0xf]
  %v10627 = vld [vmem:[%s8 + $0x64] sm:$0xf]
  %v10628 = vld [vmem:[%s8 + $0x68] sm:$0xf]
  %v10629 = vld [vmem:[%s8 + $0x6c] sm:$0xf]
  %v10630 = vld [vmem:[%s8 + $0x70] sm:$0xf]
  %v10631 = vld [vmem:[%s8 + $0x74] sm:$0xf]
  %v10632 = vld [vmem:[%s8 + $0x78] sm:$0xf]
  %v10633 = vld [vmem:[%s8 + $0x7c] sm:$0xf]
  %v10634 = vld [vmem:[%s9] sm:$0x1]
  %v10636 = vperm.slane %v10634, 0
  %v10670 = vunpack.c.l.b16 %v10602
  %v10671 = vunpack.c.l.b16 %v10603
  %v10672 = vunpack.c.l.b16 %v10604
  %v10673 = vunpack.c.l.b16 %v10605
  %v10674 = vunpack.c.l.b16 %v10606
  %v10675 = vunpack.c.l.b16 %v10607
  %v10676 = vunpack.c.l.b16 %v10608
  %v10677 = vunpack.c.l.b16 %v10609
  %v10678 = vunpack.c.l.b16 %v10610
  %v10679 = vunpack.c.l.b16 %v10611
  %v10680 = vunpack.c.l.b16 %v10612
  %v10681 = vunpack.c.l.b16 %v10613
  %v10682 = vunpack.c.l.b16 %v10614
  %v10683 = vunpack.c.l.b16 %v10615
  %v10684 = vunpack.c.l.b16 %v10616
  %v10685 = vunpack.c.l.b16 %v10617
  %v10686 = vunpack.c.l.b16 %v10618
  %v10687 = vunpack.c.l.b16 %v10619
  %v10688 = vunpack.c.l.b16 %v10620
  %v10689 = vunpack.c.l.b16 %v10621
  %v10690 = vunpack.c.l.b16 %v10622
  %v10691 = vunpack.c.l.b16 %v10623
  %v10692 = vunpack.c.l.b16 %v10624
  %v10693 = vunpack.c.l.b16 %v10625
  %v10694 = vunpack.c.l.b16 %v10626
  %v10695 = vunpack.c.l.b16 %v10627
  %v10696 = vunpack.c.l.b16 %v10628
  %v10697 = vunpack.c.l.b16 %v10629
  %v10698 = vunpack.c.l.b16 %v10630
  %v10699 = vunpack.c.l.b16 %v10631
  %v10700 = vunpack.c.l.b16 %v10632
  %v10701 = vunpack.c.l.b16 %v10633
  %v10702 = vpack.c.b16 %v10671, %v10670
  %v10703 = vpack.c.b16 %v10673, %v10672
  %v10704 = vpack.c.b16 %v10675, %v10674
  %v10705 = vpack.c.b16 %v10677, %v10676
  %v10706 = vpack.c.b16 %v10679, %v10678
  %v10707 = vpack.c.b16 %v10681, %v10680
  %v10708 = vpack.c.b16 %v10683, %v10682
  %v10709 = vpack.c.b16 %v10685, %v10684
  %v10710 = vpack.c.b16 %v10687, %v10686
  %v10711 = vpack.c.b16 %v10689, %v10688
  %v10712 = vpack.c.b16 %v10691, %v10690
  %v10713 = vpack.c.b16 %v10693, %v10692
  %v10714 = vpack.c.b16 %v10695, %v10694
  %v10715 = vpack.c.b16 %v10697, %v10696
  %v10716 = vpack.c.b16 %v10699, %v10698
  %v10717 = vpack.c.b16 %v10701, %v10700
  %10734 = vmatpush.bf16.msra.mxu0 %v10709
  %10735 = vmatpush.bf16.msra.mxu0 %v10708
  %10736 = vmatpush.bf16.msra.mxu0 %v10707
  %10737 = vmatpush.bf16.msra.mxu0 %v10706
  %10738 = vmatpush.bf16.msra.mxu0 %v10705
  %10739 = vmatpush.bf16.msra.mxu0 %v10704
  %10740 = vmatpush.bf16.msra.mxu0 %v10703
  %10741 = vmatpush.bf16.msra.mxu0 %v10702
  %10742 = vmatmul.bf16.gmra.mxu0 %v10586
  %v10743 = vpop.f32.mrf.mxu0
  %v10744 = vadd.f32 %v10636, %v10743
  %v10745 = vpop.f32.mrf.mxu0
  %v10746 = vadd.f32 %v10636, %v10745
  %10747 = vmatmul.bf16.gmra.mxu0 %v10588
  %v10748 = vpop.f32.mrf.mxu0
  %v10749 = vadd.f32 %v10636, %v10748
  %v10750 = vpop.f32.mrf.mxu0
  %v10751 = vadd.f32 %v10636, %v10750
  %10752 = vmatmul.bf16.gmra.mxu0 %v10590
  %v10753 = vpop.f32.mrf.mxu0
  %v10754 = vadd.f32 %v10636, %v10753
  %v10755 = vpop.f32.mrf.mxu0
  %v10756 = vadd.f32 %v10636, %v10755
  %10757 = vmatmul.bf16.gmra.mxu0 %v10592
  %v10758 = vpop.f32.mrf.mxu0
  %v10759 = vadd.f32 %v10636, %v10758
  %v10760 = vpop.f32.mrf.mxu0
  %v10761 = vadd.f32 %v10636, %v10760
  %10762 = vmatmul.bf16.gmra.mxu0 %v10594
  %v10763 = vpop.f32.mrf.mxu0
  %v10764 = vadd.f32 %v10636, %v10763
  %v10765 = vpop.f32.mrf.mxu0
  %v10766 = vadd.f32 %v10636, %v10765
  %10767 = vmatmul.bf16.gmra.mxu0 %v10596
  %v10768 = vpop.f32.mrf.mxu0
  %v10769 = vadd.f32 %v10636, %v10768
  %v10770 = vpop.f32.mrf.mxu0
  %v10771 = vadd.f32 %v10636, %v10770
  %10772 = vmatmul.bf16.gmra.mxu0 %v10598
  %v10773 = vpop.f32.mrf.mxu0
  %v10774 = vadd.f32 %v10636, %v10773
  %v10775 = vpop.f32.mrf.mxu0
  %v10776 = vadd.f32 %v10636, %v10775
  %10777 = vmatmul.bf16.gmra.mxu0 %v10600
  %v10778 = vpop.f32.mrf.mxu0
  %v10779 = vadd.f32 %v10636, %v10778
  %v10780 = vpop.f32.mrf.mxu0
  %v10781 = vadd.f32 %v10636, %v10780
  %10782 = vdwg.mxu0
  %10783 = vmatpush.bf16.msra.mxu0 %v10717
  %10784 = vmatpush.bf16.msra.mxu0 %v10716
  %10785 = vmatpush.bf16.msra.mxu0 %v10715
  %10786 = vmatpush.bf16.msra.mxu0 %v10714
  %10787 = vmatpush.bf16.msra.mxu0 %v10713
  %10788 = vmatpush.bf16.msra.mxu0 %v10712
  %10789 = vmatpush.bf16.msra.mxu0 %v10711
  %10790 = vmatpush.bf16.msra.mxu0 %v10710
  %10791 = vmatmul.bf16.gmra.mxu0 %v10587
  %v10792 = vpop.f32.mrf.mxu0
  %v10793 = vadd.f32 %v10744, %v10792
  %v10794 = vpop.f32.mrf.mxu0
  %v10795 = vadd.f32 %v10746, %v10794
  %10796 = vmatmul.bf16.gmra.mxu0 %v10589
  %v10797 = vpop.f32.mrf.mxu0
  %v10798 = vadd.f32 %v10749, %v10797
  %v10799 = vpop.f32.mrf.mxu0
  %v10800 = vadd.f32 %v10751, %v10799
  %10801 = vmatmul.bf16.gmra.mxu0 %v10591
  %v10802 = vpop.f32.mrf.mxu0
  %v10803 = vadd.f32 %v10754, %v10802
  %v10804 = vpop.f32.mrf.mxu0
  %v10805 = vadd.f32 %v10756, %v10804
  %10806 = vmatmul.bf16.gmra.mxu0 %v10593
  %v10807 = vpop.f32.mrf.mxu0
  %v10808 = vadd.f32 %v10759, %v10807
  %v10809 = vpop.f32.mrf.mxu0
  %v10810 = vadd.f32 %v10761, %v10809
  %10811 = vmatmul.bf16.gmra.mxu0 %v10595
  %v10812 = vpop.f32.mrf.mxu0
  %v10813 = vadd.f32 %v10764, %v10812
  %v10814 = vpop.f32.mrf.mxu0
  %v10815 = vadd.f32 %v10766, %v10814
  %10816 = vmatmul.bf16.gmra.mxu0 %v10597
  %v10817 = vpop.f32.mrf.mxu0
  %v10818 = vadd.f32 %v10769, %v10817
  %v10819 = vpop.f32.mrf.mxu0
  %v10820 = vadd.f32 %v10771, %v10819
  %10821 = vmatmul.bf16.gmra.mxu0 %v10599
  %v10822 = vpop.f32.mrf.mxu0
  %v10823 = vadd.f32 %v10774, %v10822
  %v10824 = vpop.f32.mrf.mxu0
  %v10825 = vadd.f32 %v10776, %v10824
  %10826 = vmatmul.bf16.gmra.mxu0 %v10601
  %v10827 = vpop.f32.mrf.mxu0
  %v10828 = vadd.f32 %v10779, %v10827
  %v10829 = vpop.f32.mrf.mxu0
  %v10830 = vadd.f32 %v10781, %v10829
  %10831 = vdwg.mxu0
  %v10832 = vmax.f32 %v10793, 0.0
  %v10833 = vmax.f32 %v10795, 0.0
  %v10834 = vmax.f32 %v10798, 0.0
  %v10835 = vmax.f32 %v10800, 0.0
  %v10836 = vmax.f32 %v10803, 0.0
  %v10837 = vmax.f32 %v10805, 0.0
  %v10838 = vmax.f32 %v10808, 0.0
  %v10839 = vmax.f32 %v10810, 0.0
  %v10840 = vmax.f32 %v10813, 0.0
  %v10841 = vmax.f32 %v10815, 0.0
  %v10842 = vmax.f32 %v10818, 0.0
  %v10843 = vmax.f32 %v10820, 0.0
  %v10844 = vmax.f32 %v10823, 0.0
  %v10845 = vmax.f32 %v10825, 0.0
  %v10846 = vmax.f32 %v10828, 0.0
  %v10847 = vmax.f32 %v10830, 0.0
  %v10848 = vld [vmem:[%s10] sm:$0xff]
  %v10849 = vld [vmem:[%s10 + $0x8] sm:$0xff]
  %v10850 = vld [vmem:[%s10 + $0x10] sm:$0xff]
  %v10851 = vld [vmem:[%s10 + $0x18] sm:$0xff]
  %v10852 = vld [vmem:[%s10 + $0x20] sm:$0xff]
  %v10853 = vld [vmem:[%s10 + $0x28] sm:$0xff]
  %v10854 = vld [vmem:[%s10 + $0x30] sm:$0xff]
  %v10855 = vld [vmem:[%s10 + $0x38] sm:$0xff]
  %v10856 = vld [vmem:[%s11] sm:$0xff]
  %v10857 = vld [vmem:[%s11 + $0x8] sm:$0xff]
  %v10858 = vld [vmem:[%s11 + $0x10] sm:$0xff]
  %v10859 = vld [vmem:[%s11 + $0x18] sm:$0xff]
  %v10860 = vld [vmem:[%s11 + $0x20] sm:$0xff]
  %v10861 = vld [vmem:[%s11 + $0x28] sm:$0xff]
  %v10862 = vld [vmem:[%s11 + $0x30] sm:$0xff]
  %v10863 = vld [vmem:[%s11 + $0x38] sm:$0xff]
  %v10864 = vld [vmem:[%s12] sm:$0x1]
  %v10865 = vld [vmem:[%s13] sm:$0xff]
  %v10866 = vld [vmem:[%s13 + $0x8] sm:$0xff]
  %v10867 = vld [vmem:[%s13 + $0x10] sm:$0xff]
  %v10868 = vld [vmem:[%s13 + $0x18] sm:$0xff]
  %v10869 = vld [vmem:[%s13 + $0x20] sm:$0xff]
  %v10870 = vld [vmem:[%s13 + $0x28] sm:$0xff]
  %v10871 = vld [vmem:[%s13 + $0x30] sm:$0xff]
  %v10872 = vld [vmem:[%s13 + $0x38] sm:$0xff]
  %v10873 = vld [vmem:[%s13 + $0x40] sm:$0xff]
  %v10874 = vld [vmem:[%s13 + $0x48] sm:$0xff]
  %v10875 = vld [vmem:[%s13 + $0x50] sm:$0xff]
  %v10876 = vld [vmem:[%s13 + $0x58] sm:$0xff]
  %v10877 = vld [vmem:[%s13 + $0x60] sm:$0xff]
  %v10878 = vld [vmem:[%s13 + $0x68] sm:$0xff]
  %v10879 = vld [vmem:[%s13 + $0x70] sm:$0xff]
  %v10880 = vld [vmem:[%s13 + $0x78] sm:$0xff]
  %v10881 = vld [vmem:[%s14] sm:$0x3]
  %v10882 = vld [vmem:[%s15] sm:$0x3]
  %v10883 = vld [vmem:[#allocation2] sm:$0x1]
  %v10884 = vlaneseq
  %v10885 = vand.u32 %v10884, 127
  %10887 = vset.pattern.permute.xlu0 0
  %10888 = vperm.xlu0 %10887, %v10832
  %v10889 = vpop.permute.xlu0 %10888
  %10892 = vset.pattern.permute.xlu0 0
  %10893 = vperm.xlu0 %10892, %v10833
  %v10894 = vpop.permute.xlu0 %10893
  %10897 = vset.pattern.permute.xlu0 0
  %10898 = vperm.xlu0 %10897, %v10834
  %v10899 = vpop.permute.xlu0 %10898
  %10902 = vset.pattern.permute.xlu0 0
  %10903 = vperm.xlu0 %10902, %v10835
  %v10904 = vpop.permute.xlu0 %10903
  %10907 = vset.pattern.permute.xlu0 0
  %10908 = vperm.xlu0 %10907, %v10836
  %v10909 = vpop.permute.xlu0 %10908
  %10912 = vset.pattern.permute.xlu0 0
  %10913 = vperm.xlu0 %10912, %v10837
  %v10914 = vpop.permute.xlu0 %10913
  %10917 = vset.pattern.permute.xlu0 0
  %10918 = vperm.xlu0 %10917, %v10838
  %v10919 = vpop.permute.xlu0 %10918
  %10922 = vset.pattern.permute.xlu0 0
  %10923 = vperm.xlu0 %10922, %v10839
  %v10924 = vpop.permute.xlu0 %10923
  %v10926 = vmul.f32 %v10889, %v10848
  %v10927 = vmul.f32 %v10894, %v10849
  %v10928 = vmul.f32 %v10899, %v10850
  %v10929 = vmul.f32 %v10904, %v10851
  %v10930 = vmul.f32 %v10909, %v10852
  %v10931 = vmul.f32 %v10914, %v10853
  %v10932 = vmul.f32 %v10919, %v10854
  %v10933 = vmul.f32 %v10924, %v10855
  %10934 = vset.pattern.permute.xlu0 1
  %10935 = vperm.xlu0 %10934, %v10832
  %v10936 = vpop.permute.xlu0 %10935
  %10938 = vset.pattern.permute.xlu0 1
  %10939 = vperm.xlu0 %10938, %v10833
  %v10940 = vpop.permute.xlu0 %10939
  %10942 = vset.pattern.permute.xlu0 1
  %10943 = vperm.xlu0 %10942, %v10834
  %v10944 = vpop.permute.xlu0 %10943
  %10946 = vset.pattern.permute.xlu0 1
  %10947 = vperm.xlu0 %10946, %v10835
  %v10948 = vpop.permute.xlu0 %10947
  %10950 = vset.pattern.permute.xlu0 1
  %10951 = vperm.xlu0 %10950, %v10836
  %v10952 = vpop.permute.xlu0 %10951
  %10954 = vset.pattern.permute.xlu0 1
  %10955 = vperm.xlu0 %10954, %v10837
  %v10956 = vpop.permute.xlu0 %10955
  %10958 = vset.pattern.permute.xlu0 1
  %10959 = vperm.xlu0 %10958, %v10838
  %v10960 = vpop.permute.xlu0 %10959
  %10962 = vset.pattern.permute.xlu0 1
  %10963 = vperm.xlu0 %10962, %v10839
  %v10964 = vpop.permute.xlu0 %10963
  %v10966 = vmul.f32 %v10936, %v10856
  %v10967 = vmul.f32 %v10940, %v10857
  %v10968 = vmul.f32 %v10944, %v10858
  %v10969 = vmul.f32 %v10948, %v10859
  %v10970 = vmul.f32 %v10952, %v10860
  %v10971 = vmul.f32 %v10956, %v10861
  %v10972 = vmul.f32 %v10960, %v10862
  %v10973 = vmul.f32 %v10964, %v10863
  %v10974 = vadd.f32 %v10926, %v10966
  %v10975 = vadd.f32 %v10927, %v10967
  %v10976 = vadd.f32 %v10928, %v10968
  %v10977 = vadd.f32 %v10929, %v10969
  %v10978 = vadd.f32 %v10930, %v10970
  %v10979 = vadd.f32 %v10931, %v10971
  %v10980 = vadd.f32 %v10932, %v10972
  %v10981 = vadd.f32 %v10933, %v10973
  %v10982 = vadd.f32 %v10974, %v10975
  %v10983 = vadd.f32 %v10982, %v10976
  %v10984 = vadd.f32 %v10983, %v10977
  %v10985 = vadd.f32 %v10984, %v10978
  %v10986 = vadd.f32 %v10985, %v10979
  %v10987 = vadd.f32 %v10986, %v10980
  %v10988 = vadd.f32 %v10987, %v10981
  %v10989 = vrot.slane %v10988, 4
  %v10990 = vadd.f32 %v10988, %v10989
  %v10991 = vrot.slane %v10990, 2
  %v10992 = vadd.f32 %v10990, %v10991
  %v10993 = vrot.slane %v10992, 1
  %v10994 = vadd.f32 %v10992, %v10993
  %v10995 = vadd.f32 %v10994, %v10864
  %vm10996 = vcmp.lt.s32.totalorder %v10885, 65
  %v10997 = vsel %vm10996, %v10995, -1e+30
  %vm10998 = vcmask 1040384
  %v10999 = vsel %vm10998, %v10997, -inf
  %11000 = vmax.xlane.f32.xlu0 %v10999
  %v11001 = vpop.xlane.xlu0 %11000
  %v11002 = vsub.f32 %v10997, %v11001
  %v11003 = vmul.f32 %v11002, 1.442695
  %v11004 = vpow.pop %v11003
  %v11005 = vsel %vm10998, %v11004, 0.0
  %11006 = vadd.xlane.f32.xlu0 %v11005
  %v11007 = vpop.xlane.xlu0 %11006
  %v11008 = vrcp.pop %v11007
  %v11009 = vmul.f32 %v11007, %v11008
  %v11010 = vsub.f32 1.0, %v11009
  %v11011 = vmul.f32 %v11008, %v11010
  %v11012 = vadd.f32 %v11008, %v11011
  %vm11013 = vweird.f32 %v11007
  %vm11014 = vweird.f32 %v11008
  %vm11015 = vmor %vm11013, %vm11014
  %v11016 = vsel %vm11015, %v11008, %v11012
  %v11017 = vand.u32 2147483647, %v11007
  %vm11018 = vcmp.eq.f32.partialorder %v11017, 8.507059e+37
  %v11019 = vand.u32 %v11007, 2147483648
  %v11020 = vor.u32 1.1754944e-38, %v11019
  %v11021 = vsel %vm11018, %v11020, %v11016
  %v11022 = vmul.f32 %v11004, %v11021
  %11023 = vset.pattern.permute.xlu0 2
  %11024 = vperm.xlu0 %11023, %v10832
  %v11025 = vpop.permute.xlu0 %11024
  %11027 = vset.pattern.permute.xlu0 2
  %11028 = vperm.xlu0 %11027, %v10833
  %v11029 = vpop.permute.xlu0 %11028
  %11031 = vset.pattern.permute.xlu0 2
  %11032 = vperm.xlu0 %11031, %v10834
  %v11033 = vpop.permute.xlu0 %11032
  %11035 = vset.pattern.permute.xlu0 2
  %11036 = vperm.xlu0 %11035, %v10835
  %v11037 = vpop.permute.xlu0 %11036
  %11039 = vset.pattern.permute.xlu0 2
  %11040 = vperm.xlu0 %11039, %v10836
  %v11041 = vpop.permute.xlu0 %11040
  %11043 = vset.pattern.permute.xlu0 2
  %11044 = vperm.xlu0 %11043, %v10837
  %v11045 = vpop.permute.xlu0 %11044
  %11047 = vset.pattern.permute.xlu0 2
  %11048 = vperm.xlu0 %11047, %v10838
  %v11049 = vpop.permute.xlu0 %11048
  %11051 = vset.pattern.permute.xlu0 2
  %11052 = vperm.xlu0 %11051, %v10839
  %v11053 = vpop.permute.xlu0 %11052
  %v11055 = vmul.f32 %v11025, %v10865
  %v11056 = vmul.f32 %v11025, %v10866
  %v11057 = vmul.f32 %v11029, %v10867
  %v11058 = vmul.f32 %v11029, %v10868
  %v11059 = vmul.f32 %v11033, %v10869
  %v11060 = vmul.f32 %v11033, %v10870
  %v11061 = vmul.f32 %v11037, %v10871
  %v11062 = vmul.f32 %v11037, %v10872
  %v11063 = vmul.f32 %v11041, %v10873
  %v11064 = vmul.f32 %v11041, %v10874
  %v11065 = vmul.f32 %v11045, %v10875
  %v11066 = vmul.f32 %v11045, %v10876
  %v11067 = vmul.f32 %v11049, %v10877
  %v11068 = vmul.f32 %v11049, %v10878
  %v11069 = vmul.f32 %v11053, %v10879
  %v11070 = vmul.f32 %v11053, %v10880
  %v11071 = vadd.f32 %v11055, %v11057
  %v11072 = vadd.f32 %v11071, %v11059
  %v11073 = vadd.f32 %v11072, %v11061
  %v11074 = vadd.f32 %v11073, %v11063
  %v11075 = vadd.f32 %v11074, %v11065
  %v11076 = vadd.f32 %v11075, %v11067
  %v11077 = vadd.f32 %v11076, %v11069
  %v11078 = vrot.slane %v11077, 4
  %v11079 = vadd.f32 %v11077, %v11078
  %v11080 = vrot.slane %v11079, 2
  %v11081 = vadd.f32 %v11079, %v11080
  %v11082 = vrot.slane %v11081, 1
  %v11083 = vadd.f32 %v11081, %v11082
  %v11084 = vadd.f32 %v11056, %v11058
  %v11085 = vadd.f32 %v11084, %v11060
  %v11086 = vadd.f32 %v11085, %v11062
  %v11087 = vadd.f32 %v11086, %v11064
  %v11088 = vadd.f32 %v11087, %v11066
  %v11089 = vadd.f32 %v11088, %v11068
  %v11090 = vadd.f32 %v11089, %v11070
  %v11091 = vrot.slane %v11090, 4
  %v11092 = vadd.f32 %v11090, %v11091
  %v11093 = vrot.slane %v11092, 2
  %v11094 = vadd.f32 %v11092, %v11093
  %v11095 = vrot.slane %v11094, 1
  %v11096 = vadd.f32 %v11094, %v11095
  %v11098 = vperm.slane %v10881, 0
  %v11099 = vperm.slane %v10881, 1
  %v11102 = vadd.f32 %v11083, %v11098
  %v11103 = vadd.f32 %v11096, %v11099
  %v11104 = vmax.f32 %v11102, 0.0
  %v11105 = vmax.f32 %v11103, 0.0
  %v11107 = vperm.slane %v10882, 0
  %v11108 = vperm.slane %v10882, 1
  %v11111 = vmul.f32 %v11104, %v11107
  %v11112 = vmul.f32 %v11105, %v11108
  %v11113 = vsel %vm10998, %v11111, 0.0
  %v11114 = vsel %vm10998, %v11112, 0.0
  %v11115 = vadd.f32 %v11113, %v11114
  %11116 = vadd.xlane.f32.xlu0 %v11115
  %v11117 = vpop.xlane.xlu0 %11116
  %v11118 = vadd.f32 %v11117, %v10883
  %v11119 = vtanh.pop %v11118
  %vm11120 = vcmp.eq.s32.totalorder %v10885, 127
  %11122 = vset.pattern.permute.xlu0 0
  %11123 = vperm.xlu0 %11122, %v11119
  %v11124 = vpop.permute.xlu0 %11123
  %v11126 = vsel %vm11120, %v11124, %v11022
  %11127 = vst [vmem:[%s17] sm:$0x1] %v11126
  %11129 = vset.pattern.permute.xlu0 0
  %11130 = vperm.xlu0 %11129, %v10840
  %v11131 = vpop.permute.xlu0 %11130
  %11134 = vset.pattern.permute.xlu0 0
  %11135 = vperm.xlu0 %11134, %v10841
  %v11136 = vpop.permute.xlu0 %11135
  %11139 = vset.pattern.permute.xlu0 0
  %11140 = vperm.xlu0 %11139, %v10842
  %v11141 = vpop.permute.xlu0 %11140
  %11144 = vset.pattern.permute.xlu0 0
  %11145 = vperm.xlu0 %11144, %v10843
  %v11146 = vpop.permute.xlu0 %11145
  %11149 = vset.pattern.permute.xlu0 0
  %11150 = vperm.xlu0 %11149, %v10844
  %v11151 = vpop.permute.xlu0 %11150
  %11154 = vset.pattern.permute.xlu0 0
  %11155 = vperm.xlu0 %11154, %v10845
  %v11156 = vpop.permute.xlu0 %11155
  %11159 = vset.pattern.permute.xlu0 0
  %11160 = vperm.xlu0 %11159, %v10846
  %v11161 = vpop.permute.xlu0 %11160
  %11164 = vset.pattern.permute.xlu0 0
  %11165 = vperm.xlu0 %11164, %v10847
  %v11166 = vpop.permute.xlu0 %11165
  %v11168 = vmul.f32 %v11131, %v10848
  %v11169 = vmul.f32 %v11136, %v10849
  %v11170 = vmul.f32 %v11141, %v10850
  %v11171 = vmul.f32 %v11146, %v10851
  %v11172 = vmul.f32 %v11151, %v10852
  %v11173 = vmul.f32 %v11156, %v10853
  %v11174 = vmul.f32 %v11161, %v10854
  %v11175 = vmul.f32 %v11166, %v10855
  %11176 = vset.pattern.permute.xlu0 1
  %11177 = vperm.xlu0 %11176, %v10840
  %v11178 = vpop.permute.xlu0 %11177
  %11180 = vset.pattern.permute.xlu0 1
  %11181 = vperm.xlu0 %11180, %v10841
  %v11182 = vpop.permute.xlu0 %11181
  %11184 = vset.pattern.permute.xlu0 1
  %11185 = vperm.xlu0 %11184, %v10842
  %v11186 = vpop.permute.xlu0 %11185
  %11188 = vset.pattern.permute.xlu0 1
  %11189 = vperm.xlu0 %11188, %v10843
  %v11190 = vpop.permute.xlu0 %11189
  %11192 = vset.pattern.permute.xlu0 1
  %11193 = vperm.xlu0 %11192, %v10844
  %v11194 = vpop.permute.xlu0 %11193
  %11196 = vset.pattern.permute.xlu0 1
  %11197 = vperm.xlu0 %11196, %v10845
  %v11198 = vpop.permute.xlu0 %11197
  %11200 = vset.pattern.permute.xlu0 1
  %11201 = vperm.xlu0 %11200, %v10846
  %v11202 = vpop.permute.xlu0 %11201
  %11204 = vset.pattern.permute.xlu0 1
  %11205 = vperm.xlu0 %11204, %v10847
  %v11206 = vpop.permute.xlu0 %11205
  %v11208 = vmul.f32 %v11178, %v10856
  %v11209 = vmul.f32 %v11182, %v10857
  %v11210 = vmul.f32 %v11186, %v10858
  %v11211 = vmul.f32 %v11190, %v10859
  %v11212 = vmul.f32 %v11194, %v10860
  %v11213 = vmul.f32 %v11198, %v10861
  %v11214 = vmul.f32 %v11202, %v10862
  %v11215 = vmul.f32 %v11206, %v10863
  %v11216 = vadd.f32 %v11168, %v11208
  %v11217 = vadd.f32 %v11169, %v11209
  %v11218 = vadd.f32 %v11170, %v11210
  %v11219 = vadd.f32 %v11171, %v11211
  %v11220 = vadd.f32 %v11172, %v11212
  %v11221 = vadd.f32 %v11173, %v11213
  %v11222 = vadd.f32 %v11174, %v11214
  %v11223 = vadd.f32 %v11175, %v11215
  %v11224 = vadd.f32 %v11216, %v11217
  %v11225 = vadd.f32 %v11224, %v11218
  %v11226 = vadd.f32 %v11225, %v11219
  %v11227 = vadd.f32 %v11226, %v11220
  %v11228 = vadd.f32 %v11227, %v11221
  %v11229 = vadd.f32 %v11228, %v11222
  %v11230 = vadd.f32 %v11229, %v11223
  %v11231 = vrot.slane %v11230, 4
  %v11232 = vadd.f32 %v11230, %v11231
  %v11233 = vrot.slane %v11232, 2
  %v11234 = vadd.f32 %v11232, %v11233
  %v11235 = vrot.slane %v11234, 1
  %v11236 = vadd.f32 %v11234, %v11235
  %v11237 = vadd.f32 %v11236, %v10864
  %v11238 = vsel %vm10996, %v11237, -1e+30
  %v11239 = vsel %vm10998, %v11238, -inf
  %11240 = vmax.xlane.f32.xlu0 %v11239
  %v11241 = vpop.xlane.xlu0 %11240
  %v11242 = vsub.f32 %v11238, %v11241
  %v11243 = vmul.f32 %v11242, 1.442695
  %v11244 = vpow.pop %v11243
  %v11245 = vsel %vm10998, %v11244, 0.0
  %11246 = vadd.xlane.f32.xlu0 %v11245
  %v11247 = vpop.xlane.xlu0 %11246
  %v11248 = vrcp.pop %v11247
  %v11249 = vmul.f32 %v11247, %v11248
  %v11250 = vsub.f32 1.0, %v11249
  %v11251 = vmul.f32 %v11248, %v11250
  %v11252 = vadd.f32 %v11248, %v11251
  %vm11253 = vweird.f32 %v11247
  %vm11254 = vweird.f32 %v11248
  %vm11255 = vmor %vm11253, %vm11254
  %v11256 = vsel %vm11255, %v11248, %v11252
  %v11257 = vand.u32 2147483647, %v11247
  %vm11258 = vcmp.eq.f32.partialorder %v11257, 8.507059e+37
  %v11259 = vand.u32 %v11247, 2147483648
  %v11260 = vor.u32 1.1754944e-38, %v11259
  %v11261 = vsel %vm11258, %v11260, %v11256
  %v11262 = vmul.f32 %v11244, %v11261
  %11263 = vset.pattern.permute.xlu0 2
  %11264 = vperm.xlu0 %11263, %v10840
  %v11265 = vpop.permute.xlu0 %11264
  %11267 = vset.pattern.permute.xlu0 2
  %11268 = vperm.xlu0 %11267, %v10841
  %v11269 = vpop.permute.xlu0 %11268
  %11271 = vset.pattern.permute.xlu0 2
  %11272 = vperm.xlu0 %11271, %v10842
  %v11273 = vpop.permute.xlu0 %11272
  %11275 = vset.pattern.permute.xlu0 2
  %11276 = vperm.xlu0 %11275, %v10843
  %v11277 = vpop.permute.xlu0 %11276
  %11279 = vset.pattern.permute.xlu0 2
  %11280 = vperm.xlu0 %11279, %v10844
  %v11281 = vpop.permute.xlu0 %11280
  %11283 = vset.pattern.permute.xlu0 2
  %11284 = vperm.xlu0 %11283, %v10845
  %v11285 = vpop.permute.xlu0 %11284
  %11287 = vset.pattern.permute.xlu0 2
  %11288 = vperm.xlu0 %11287, %v10846
  %v11289 = vpop.permute.xlu0 %11288
  %11291 = vset.pattern.permute.xlu0 2
  %11292 = vperm.xlu0 %11291, %v10847
  %v11293 = vpop.permute.xlu0 %11292
  %v11295 = vmul.f32 %v11265, %v10865
  %v11296 = vmul.f32 %v11265, %v10866
  %v11297 = vmul.f32 %v11269, %v10867
  %v11298 = vmul.f32 %v11269, %v10868
  %v11299 = vmul.f32 %v11273, %v10869
  %v11300 = vmul.f32 %v11273, %v10870
  %v11301 = vmul.f32 %v11277, %v10871
  %v11302 = vmul.f32 %v11277, %v10872
  %v11303 = vmul.f32 %v11281, %v10873
  %v11304 = vmul.f32 %v11281, %v10874
  %v11305 = vmul.f32 %v11285, %v10875
  %v11306 = vmul.f32 %v11285, %v10876
  %v11307 = vmul.f32 %v11289, %v10877
  %v11308 = vmul.f32 %v11289, %v10878
  %v11309 = vmul.f32 %v11293, %v10879
  %v11310 = vmul.f32 %v11293, %v10880
  %v11311 = vadd.f32 %v11295, %v11297
  %v11312 = vadd.f32 %v11311, %v11299
  %v11313 = vadd.f32 %v11312, %v11301
  %v11314 = vadd.f32 %v11313, %v11303
  %v11315 = vadd.f32 %v11314, %v11305
  %v11316 = vadd.f32 %v11315, %v11307
  %v11317 = vadd.f32 %v11316, %v11309
  %v11318 = vrot.slane %v11317, 4
  %v11319 = vadd.f32 %v11317, %v11318
  %v11320 = vrot.slane %v11319, 2
  %v11321 = vadd.f32 %v11319, %v11320
  %v11322 = vrot.slane %v11321, 1
  %v11323 = vadd.f32 %v11321, %v11322
  %v11324 = vadd.f32 %v11296, %v11298
  %v11325 = vadd.f32 %v11324, %v11300
  %v11326 = vadd.f32 %v11325, %v11302
  %v11327 = vadd.f32 %v11326, %v11304
  %v11328 = vadd.f32 %v11327, %v11306
  %v11329 = vadd.f32 %v11328, %v11308
  %v11330 = vadd.f32 %v11329, %v11310
  %v11331 = vrot.slane %v11330, 4
  %v11332 = vadd.f32 %v11330, %v11331
  %v11333 = vrot.slane %v11332, 2
  %v11334 = vadd.f32 %v11332, %v11333
  %v11335 = vrot.slane %v11334, 1
  %v11336 = vadd.f32 %v11334, %v11335
  %v11337 = vadd.f32 %v11323, %v11098
  %v11338 = vadd.f32 %v11336, %v11099
  %v11339 = vmax.f32 %v11337, 0.0
  %v11340 = vmax.f32 %v11338, 0.0
  %v11341 = vmul.f32 %v11339, %v11107
  %v11342 = vmul.f32 %v11340, %v11108
  %v11343 = vsel %vm10998, %v11341, 0.0
  %v11344 = vsel %vm10998, %v11342, 0.0
  %v11345 = vadd.f32 %v11343, %v11344
  %11346 = vadd.xlane.f32.xlu0 %v11345
  %v11347 = vpop.xlane.xlu0 %11346
  %v11348 = vadd.f32 %v11347, %v10883
  %v11349 = vtanh.pop %v11348
  %11351 = vset.pattern.permute.xlu0 0
  %11352 = vperm.xlu0 %11351, %v11349
  %v11353 = vpop.permute.xlu0 %11352
  %v11355 = vsel %vm11120, %v11353, %v11262
  %11356 = vst [vmem:[%s17 + $0x1] sm:$0x1] %v11355
  // Predicated region
  $region70: #{policy_value_forward.1} parent=0 // pred_check
    _
  $region71: #{policy_value_forward.1} parent=0 // pred_check_branch
    %11358 = sbr.rel (0) target = $region73
  $region72: #{policy_value_forward.1} parent=0 // pred_region
    _
  $region73: #{policy_value_forward.1} parent=0 // pred_fallthru
    _
  // Predicated region
  $region74: #{policy_value_forward.1} parent=0 // pred_check
    _
  $region75: #{policy_value_forward.1} parent=0 // pred_check_branch
    %11360 = sbr.rel (0) target = $region77
  $region76: #{policy_value_forward.1} parent=0 // pred_region
    _
  $region77: #{policy_value_forward.1} parent=0 // pred_fallthru
    _

</llo_original>
